<compile_context>
chip_gen: v6e
topology: v6e:2x2x1
jax: 0.10.0
libtpu: 0.0.40
codegen_flags: <defaults>
</compile_context>

<pallas_src>
import math
import jax
import jax.numpy as jnp
from jax.experimental import pallas as pl
from jax.experimental.pallas import tpu as pltpu

# ---- small, self-consistent SiglipVisionConfig ----
HIDDEN = 64          # hidden_size
INTER = 128          # intermediate_size
LAYERS = 2           # num_hidden_layers
HEADS = 4            # num_attention_heads
HEAD_DIM = HIDDEN // HEADS
CHANNELS = 3         # num_channels
IMG = 32             # image_size
PATCH = 8            # patch_size
NPATCH = (IMG // PATCH) ** 2   # = 16 patches (sequence length)
EPS = 1e-6
BATCH = 2


# ---------------- shared math helpers (used inside and outside kernels) ----------------

def _layernorm(x, g, b):
    m = jnp.mean(x, axis=-1, keepdims=True)
    v = jnp.mean(jnp.square(x - m), axis=-1, keepdims=True)
    return (x - m) * jax.lax.rsqrt(v + EPS) * g + b


def _gelu_tanh(x):
    c = math.sqrt(2.0 / math.pi)
    return 0.5 * x * (1.0 + jnp.tanh(c * (x + 0.044715 * x * x * x)))


# ---------------- fused Pallas kernel (whole model, whole batch, one invocation) ----------------

def siglip_kernel(patches_ref, pw_ref, posb_ref,
                  wqkv_ref, bqkv_ref, wo_ref, lvec_ref,
                  w1_ref, b1_ref, w2_ref, postln_ref, o_ref):
    B, S, D, H, Hd = BATCH, NPATCH, HIDDEN, HEADS, HEAD_DIM
    scale = Hd ** -0.5

    # --- patch embedding: conv(kernel=stride=patch, padding=valid) == matmul ---
    # Batch is folded: (B*S, C*P*P) @ (C*P*P, D), M = B*S = 32.
    h = jnp.dot(patches_ref[...], pw_ref[...], preferred_element_type=jnp.float32)   # (B*S, D)
    # posb = position embedding + conv bias (folded host-side), tiled over batch.
    h = h + jnp.concatenate([posb_ref[...]] * B, axis=0)                             # (B*S, D)

    # --- encoder layers: statically unrolled (LAYERS = 2) ---
    for li in range(LAYERS):
        lv = lvec_ref[li]                    # (6, D): ln1_g, ln1_b, ln2_g, ln2_b, bo, b2

        # ---- self-attention block ----
        x = _layernorm(h, lv[0:1], lv[1:2])                                          # (B*S, D)
        # Fused QKV projection: one MXU op, lane-dense 192-wide output.
        qkv = jnp.dot(x, wqkv_ref[li],
                      preferred_element_type=jnp.float32) + bqkv_ref[li]             # (B*S, 3D)

        attn_rows = []
        for b in range(B):                   # statically unrolled over the tiny batch
            row = qkv[b * S:(b + 1) * S, :]                                          # (S, 3D)
            # Per-head lane slices (pure data movement, no MXU), head-batched tensors.
            qh = jnp.stack([row[:, hh * Hd:(hh + 1) * Hd] for hh in range(H)], axis=0)            # (H,S,Hd)
            kh = jnp.stack([row[:, D + hh * Hd:D + (hh + 1) * Hd] for hh in range(H)], axis=0)    # (H,S,Hd)
            vh = jnp.stack([row[:, 2 * D + hh * Hd:2 * D + (hh + 1) * Hd] for hh in range(H)], axis=0)

            s = jnp.einsum("hqe,hke->hqk", qh, kh,
                           preferred_element_type=jnp.float32) * scale               # (H, S, S)
            # softmax in fp32: max-subtract, exp, approximate EUP reciprocal.
            s = s - jnp.max(s, axis=-1, keepdims=True)
            p = jnp.exp(s)
            p = p * pl.reciprocal(jnp.sum(p, axis=-1, keepdims=True), approx=True)
            a = jnp.einsum("hqk,hke->hqe", p, vh,
                           preferred_element_type=jnp.float32)                       # (H, S, Hd)
            # Output projection with head-major weights; contract the head axis
            # via a batched matmul + sum (== concat(heads) @ Wo).
            ao = jnp.einsum("hqe,hed->hqd", a, wo_ref[li],
                            preferred_element_type=jnp.float32)                      # (H, S, D)
            attn_rows.append(jnp.sum(ao, axis=0))                                    # (S, D)

        attn = jnp.concatenate(attn_rows, axis=0)                                    # (B*S, D)
        h = h + attn + lv[4:5]                                                       # residual 1 (+ bo)

        # ---- MLP block (M = B*S = 32 matmuls) ----
        y = _layernorm(h, lv[2:3], lv[3:4])
        y = jnp.dot(y, w1_ref[li], preferred_element_type=jnp.float32) + b1_ref[li]  # (B*S, INTER)
        y = _gelu_tanh(y)
        y = jnp.dot(y, w2_ref[li], preferred_element_type=jnp.float32)               # (B*S, D)
        h = h + y + lv[5:6]                                                          # residual 2 (+ b2)

    # --- post layernorm + single output store ---
    o_ref[...] = _layernorm(h, postln_ref[0:1], postln_ref[1:2])


# ---------------- pallas_call wrapper ----------------

def _full_spec(shape):
    zeros = (0,) * len(shape)
    return pl.BlockSpec(shape, lambda i: zeros)     # grid=(1,): whole array is one block


def siglip_vision_forward(pixel_values, packed):
    K = CHANNELS * PATCH * PATCH
    patches = extract_patches(pixel_values, PATCH).reshape(BATCH * NPATCH, K)   # (B*N, K)
    args = (patches, packed["patch_w"], packed["pos_b"], packed["wqkv"],
            packed["bqkv"], packed["wo"], packed["lvec"], packed["w1"],
            packed["b1"], packed["w2"], packed["postln"])
    out = pl.pallas_call(
        siglip_kernel,
        out_shape=jax.ShapeDtypeStruct((BATCH * NPATCH, HIDDEN), jnp.float32),
        grid=(1,),                                   # single invocation: batch is folded
        in_specs=[_full_spec(a.shape) for a in args],
        out_specs=_full_spec((BATCH * NPATCH, HIDDEN)),
    )(*args)
    return out.reshape(BATCH, NPATCH, HIDDEN)


# ---------------- host-side glue ----------------

def extract_patches(pixel_values, patch):
    # NCHW -> (B, N_patches, C*P*P) in the same ordering as
    # Conv2d(stride=patch).flatten(2).transpose(1, 2)
    B, C, H, W = pixel_values.shape
    Hp, Wp = H // patch, W // patch
    x = pixel_values.reshape(B, C, Hp, patch, Wp, patch)
    x = x.transpose(0, 2, 4, 1, 3, 5)          # (B, Hp, Wp, C, P, P)
    return x.reshape(B, Hp * Wp, C * patch * patch)


def pack_params(params):
    """Reorganize per-layer PyTorch-style weights into stacked / fused arrays."""
    def per_layer(fn):
        return jnp.stack([fn(lp) for lp in params["layers"]], axis=0)

    def vecs(lp):
        return jnp.concatenate([lp["ln1_g"], lp["ln1_b"], lp["ln2_g"],
                                lp["ln2_b"], lp["bo"], lp["b2"]], axis=0)    # (6, D)

    return {
        "patch_w": params["patch_w"],                                         # (C*P*P, D)
        "pos_b": params["pos"] + params["patch_b"],                           # (N, D) pos + conv bias
        # Fused QKV: columns ordered [Wq | Wk | Wv] (matches kernel slicing).
        "wqkv": per_layer(lambda lp: jnp.concatenate([lp["wq"], lp["wk"], lp["wv"]], axis=1)),  # (L, D, 3D)
        "bqkv": per_layer(lambda lp: jnp.concatenate([lp["bq"], lp["bk"], lp["bv"]], axis=1)),  # (L, 1, 3D)
        "wo": per_layer(lambda lp: lp["wo"].reshape(HEADS, HEAD_DIM, HIDDEN)),  # (L, H, Hd, D) head-major
        "lvec": per_layer(vecs),                                              # (L, 6, D)
        "w1": per_layer(lambda lp: lp["w1"]),                                 # (L, D, INTER)
        "b1": per_layer(lambda lp: lp["b1"]),                                 # (L, 1, INTER)
        "w2": per_layer(lambda lp: lp["w2"]),                                 # (L, INTER, D)
        "postln": jnp.concatenate([params["post_g"], params["post_b"]], axis=0),  # (2, D)
    }


# ---------------- pure-JAX reference (for verification) ----------------

def ref_forward(pixel_values, params):
    patches = extract_patches(pixel_values, PATCH)
    h = patches @ params["patch_w"] + params["patch_b"] + params["pos"]
    B, S, _ = h.shape
    for lp in params["layers"]:
        x = _layernorm(h, lp["ln1_g"], lp["ln1_b"])
        q = (x @ lp["wq"] + lp["bq"]).reshape(B, S, HEADS, HEAD_DIM).transpose(0, 2, 1, 3)
        k = (x @ lp["wk"] + lp["bk"]).reshape(B, S, HEADS, HEAD_DIM).transpose(0, 2, 1, 3)
        v = (x @ lp["wv"] + lp["bv"]).reshape(B, S, HEADS, HEAD_DIM).transpose(0, 2, 1, 3)
        s = jnp.einsum("bhqd,bhkd->bhqk", q, k) * HEAD_DIM ** -0.5
        p = jax.nn.softmax(s.astype(jnp.float32), axis=-1)
        a = jnp.einsum("bhqk,bhkd->bhqd", p, v)
        a = a.transpose(0, 2, 1, 3).reshape(B, S, HIDDEN)
        h = h + (a @ lp["wo"] + lp["bo"])
        y = _layernorm(h, lp["ln2_g"], lp["ln2_b"])
        y = _gelu_tanh(y @ lp["w1"] + lp["b1"]) @ lp["w2"] + lp["b2"]
        h = h + y
    return _layernorm(h, params["post_g"], params["post_b"])


# ---------------- deterministic parameter init ----------------

def init_params(key):
    K = CHANNELS * PATCH * PATCH

    def w(k, shape, scale=0.02):
        return jax.random.normal(k, shape, jnp.float32) * scale

    keys = jax.random.split(key, 4 + LAYERS)
    params = {
        "patch_w": w(keys[0], (K, HIDDEN)),                 # conv weight, flattened+transposed
        "patch_b": w(keys[1], (1, HIDDEN)),                 # conv bias
        "pos": w(keys[2], (NPATCH, HIDDEN)),                # position embedding table
        "post_g": jnp.ones((1, HIDDEN), jnp.float32),
        "post_b": jnp.zeros((1, HIDDEN), jnp.float32),
        "layers": [],
    }
    for li in range(LAYERS):
        lk = jax.random.split(keys[4 + li], 12)
        params["layers"].append({
            "ln1_g": jnp.ones((1, HIDDEN), jnp.float32),
            "ln1_b": jnp.zeros((1, HIDDEN), jnp.float32),
            "wq": w(lk[0], (HIDDEN, HIDDEN)), "bq": w(lk[1], (1, HIDDEN)),
            "wk": w(lk[2], (HIDDEN, HIDDEN)), "bk": w(lk[3], (1, HIDDEN)),
            "wv": w(lk[4], (HIDDEN, HIDDEN)), "bv": w(lk[5], (1, HIDDEN)),
            "wo": w(lk[6], (HIDDEN, HIDDEN)), "bo": w(lk[7], (1, HIDDEN)),
            "ln2_g": jnp.ones((1, HIDDEN), jnp.float32),
            "ln2_b": jnp.zeros((1, HIDDEN), jnp.float32),
            "w1": w(lk[8], (HIDDEN, INTER)), "b1": w(lk[9], (1, INTER)),
            "w2": w(lk[10], (INTER, HIDDEN)), "b2": w(lk[11], (1, HIDDEN)),
        })
    return params


if __name__ == "__main__":
    key = jax.random.PRNGKey(0)
    kp, kx = jax.random.split(key)
    params = init_params(kp)
    packed = pack_params(params)
    pixel_values = jax.random.normal(kx, (BATCH, CHANNELS, IMG, IMG), jnp.float32)

    fwd = jax.jit(siglip_vision_forward)
    out = jax.block_until_ready(fwd(pixel_values, packed))
    ref = jax.block_until_ready(ref_forward(pixel_values, params))

    assert out.shape == (BATCH, NPATCH, HIDDEN), out.shape
    max_err = float(jnp.max(jnp.abs(out - ref)))
    # Tolerance 1e-3 (was 1e-4): the softmax denominator now uses the
    # approximate EUP reciprocal (pl.reciprocal(approx=True)) per review.
    assert jnp.allclose(out, ref, atol=1e-3, rtol=1e-3), f"max_err={max_err}"
    print("KERNEL_OK")
</pallas_src>

<mosaic_0001>
module attributes {stable_mosaic.version = 11 : i64} {
  func.func @siglip_kernel(%arg0: i32, %arg1: memref<32x192xf32, #tpu.memory_space<vmem>>, %arg2: memref<192x64xf32, #tpu.memory_space<vmem>>, %arg3: memref<16x64xf32, #tpu.memory_space<vmem>>, %arg4: memref<2x64x192xf32, #tpu.memory_space<vmem>>, %arg5: memref<2x1x192xf32, #tpu.memory_space<vmem>>, %arg6: memref<2x4x16x64xf32, #tpu.memory_space<vmem>>, %arg7: memref<2x6x64xf32, #tpu.memory_space<vmem>>, %arg8: memref<2x64x128xf32, #tpu.memory_space<vmem>>, %arg9: memref<2x1x128xf32, #tpu.memory_space<vmem>>, %arg10: memref<2x128x64xf32, #tpu.memory_space<vmem>>, %arg11: memref<2x64xf32, #tpu.memory_space<vmem>>, %arg12: memref<32x64xf32, #tpu.memory_space<vmem>>) attributes {dimension_semantics = [#tpu.dimension_semantics<arbitrary>], iteration_bounds = array<i64: 1>, scalar_prefetch = 0 : i64, scratch_operands = 0 : i64, tpu.core_type = #tpu.core_type<tc>, window_params = [{pipeline_mode = #tpu.pipeline_mode<synchronous>, transform_indices = @transform_0, window_bounds = array<i64: 32, 192>}, {pipeline_mode = #tpu.pipeline_mode<synchronous>, transform_indices = @transform_1, window_bounds = array<i64: 192, 64>}, {pipeline_mode = #tpu.pipeline_mode<synchronous>, transform_indices = @transform_2, window_bounds = array<i64: 16, 64>}, {pipeline_mode = #tpu.pipeline_mode<synchronous>, transform_indices = @transform_3, window_bounds = array<i64: 2, 64, 192>}, {pipeline_mode = #tpu.pipeline_mode<synchronous>, transform_indices = @transform_4, window_bounds = array<i64: 2, 1, 192>}, {pipeline_mode = #tpu.pipeline_mode<synchronous>, transform_indices = @transform_5, window_bounds = array<i64: 2, 4, 16, 64>}, {pipeline_mode = #tpu.pipeline_mode<synchronous>, transform_indices = @transform_6, window_bounds = array<i64: 2, 6, 64>}, {pipeline_mode = #tpu.pipeline_mode<synchronous>, transform_indices = @transform_7, window_bounds = array<i64: 2, 64, 128>}, {pipeline_mode = #tpu.pipeline_mode<synchronous>, transform_indices = @transform_8, window_bounds = array<i64: 2, 1, 128>}, {pipeline_mode = #tpu.pipeline_mode<synchronous>, transform_indices = @transform_9, window_bounds = array<i64: 2, 128, 64>}, {pipeline_mode = #tpu.pipeline_mode<synchronous>, transform_indices = @transform_10, window_bounds = array<i64: 2, 64>}, {pipeline_mode = #tpu.pipeline_mode<synchronous>, transform_indices = @transform_11, window_bounds = array<i64: 32, 64>}]} {
    %c0 = arith.constant 0 : index
    %c0_0 = arith.constant 0 : index
    %0 = vector.load %arg1[%c0, %c0_0] : memref<32x192xf32, #tpu.memory_space<vmem>>, vector<32x192xf32>
    %c0_1 = arith.constant 0 : index
    %c0_2 = arith.constant 0 : index
    %1 = vector.load %arg2[%c0_1, %c0_2] : memref<192x64xf32, #tpu.memory_space<vmem>>, vector<192x64xf32>
    %cst = arith.constant dense<0.000000e+00> : vector<32x64xf32>
    %2 = tpu.matmul %0, %1, %cst {dimension_numbers = #tpu.dot_dimension_numbers<[1], [0], [0], [1], [0, 0, 1, 1], [], []>} : vector<32x192xf32>, vector<192x64xf32>, vector<32x64xf32> -> vector<32x64xf32>
    %c0_3 = arith.constant 0 : index
    %c0_4 = arith.constant 0 : index
    %3 = vector.load %arg3[%c0_3, %c0_4] : memref<16x64xf32, #tpu.memory_space<vmem>>, vector<16x64xf32>
    %4 = tpu.concatenate %3, %3 in 0 : vector<16x64xf32>, vector<16x64xf32> -> vector<32x64xf32>
    %5 = arith.addf %2, %4 : vector<32x64xf32>
    %c0_5 = arith.constant 0 : index
    %c0_6 = arith.constant 0 : index
    %c0_7 = arith.constant 0 : index
    %6 = vector.load %arg7[%c0_5, %c0_6, %c0_7] : memref<2x6x64xf32, #tpu.memory_space<vmem>>, vector<1x6x64xf32>
    %7 = vector.shape_cast %6 : vector<1x6x64xf32> to vector<6x64xf32>
    %8 = vector.extract_strided_slice %7 {offsets = [0, 0], sizes = [1, 64], strides = [1, 1]} : vector<6x64xf32> to vector<1x64xf32>
    %9 = vector.extract_strided_slice %7 {offsets = [1, 0], sizes = [1, 64], strides = [1, 1]} : vector<6x64xf32> to vector<1x64xf32>
    %cst_8 = arith.constant dense<0.000000e+00> : vector<32xf32>
    %10 = vector.multi_reduction <add>, %5, %cst_8 [1] : vector<32x64xf32> to vector<32xf32>
    %11 = vector.shape_cast %10 : vector<32xf32> to vector<32x1xf32>
    %cst_9 = arith.constant 6.400000e+01 : f32
    %12 = vector.broadcast %cst_9 : f32 to vector<32x1xf32>
    %13 = arith.divf %11, %12 : vector<32x1xf32>
    %14 = vector.broadcast %13 : vector<32x1xf32> to vector<32x64xf32>
    %15 = arith.subf %5, %14 : vector<32x64xf32>
    %16 = arith.mulf %15, %15 : vector<32x64xf32>
    %cst_10 = arith.constant dense<0.000000e+00> : vector<32xf32>
    %17 = vector.multi_reduction <add>, %16, %cst_10 [1] : vector<32x64xf32> to vector<32xf32>
    %18 = vector.shape_cast %17 : vector<32xf32> to vector<32x1xf32>
    %cst_11 = arith.constant 6.400000e+01 : f32
    %19 = vector.broadcast %cst_11 : f32 to vector<32x1xf32>
    %20 = arith.divf %18, %19 : vector<32x1xf32>
    %21 = vector.broadcast %13 : vector<32x1xf32> to vector<32x64xf32>
    %22 = arith.subf %5, %21 : vector<32x64xf32>
    %cst_12 = arith.constant 9.99999997E-7 : f32
    %23 = vector.broadcast %cst_12 : f32 to vector<32x1xf32>
    %24 = arith.addf %20, %23 : vector<32x1xf32>
    %25 = math.rsqrt %24 : vector<32x1xf32>
    %26 = vector.broadcast %25 : vector<32x1xf32> to vector<32x64xf32>
    %27 = arith.mulf %22, %26 : vector<32x64xf32>
    %28 = vector.broadcast %8 : vector<1x64xf32> to vector<32x64xf32>
    %29 = arith.mulf %27, %28 : vector<32x64xf32>
    %30 = vector.broadcast %9 : vector<1x64xf32> to vector<32x64xf32>
    %31 = arith.addf %29, %30 : vector<32x64xf32>
    %c0_13 = arith.constant 0 : index
    %c0_14 = arith.constant 0 : index
    %c0_15 = arith.constant 0 : index
    %32 = vector.load %arg4[%c0_13, %c0_14, %c0_15] : memref<2x64x192xf32, #tpu.memory_space<vmem>>, vector<1x64x192xf32>
    %33 = vector.shape_cast %32 : vector<1x64x192xf32> to vector<64x192xf32>
    %cst_16 = arith.constant dense<0.000000e+00> : vector<32x192xf32>
    %34 = tpu.matmul %31, %33, %cst_16 {dimension_numbers = #tpu.dot_dimension_numbers<[1], [0], [0], [1], [0, 0, 1, 1], [], []>} : vector<32x64xf32>, vector<64x192xf32>, vector<32x192xf32> -> vector<32x192xf32>
    %c0_17 = arith.constant 0 : index
    %c0_18 = arith.constant 0 : index
    %c0_19 = arith.constant 0 : index
    %35 = vector.load %arg5[%c0_17, %c0_18, %c0_19] : memref<2x1x192xf32, #tpu.memory_space<vmem>>, vector<1x1x192xf32>
    %36 = vector.shape_cast %35 : vector<1x1x192xf32> to vector<1x192xf32>
    %37 = vector.broadcast %36 : vector<1x192xf32> to vector<32x192xf32>
    %38 = arith.addf %34, %37 : vector<32x192xf32>
    %39 = vector.extract_strided_slice %38 {offsets = [0, 0], sizes = [16, 192], strides = [1, 1]} : vector<32x192xf32> to vector<16x192xf32>
    %40 = vector.extract_strided_slice %39 {offsets = [0, 0], sizes = [16, 16], strides = [1, 1]} : vector<16x192xf32> to vector<16x16xf32>
    %41 = vector.extract_strided_slice %39 {offsets = [0, 16], sizes = [16, 16], strides = [1, 1]} : vector<16x192xf32> to vector<16x16xf32>
    %42 = vector.extract_strided_slice %39 {offsets = [0, 32], sizes = [16, 16], strides = [1, 1]} : vector<16x192xf32> to vector<16x16xf32>
    %43 = vector.extract_strided_slice %39 {offsets = [0, 48], sizes = [16, 16], strides = [1, 1]} : vector<16x192xf32> to vector<16x16xf32>
    %44 = vector.shape_cast %40 : vector<16x16xf32> to vector<1x16x16xf32>
    %45 = vector.shape_cast %41 : vector<16x16xf32> to vector<1x16x16xf32>
    %46 = vector.shape_cast %42 : vector<16x16xf32> to vector<1x16x16xf32>
    %47 = vector.shape_cast %43 : vector<16x16xf32> to vector<1x16x16xf32>
    %48 = tpu.concatenate %44, %45, %46, %47 in 0 : vector<1x16x16xf32>, vector<1x16x16xf32>, vector<1x16x16xf32>, vector<1x16x16xf32> -> vector<4x16x16xf32>
    %49 = vector.extract_strided_slice %39 {offsets = [0, 64], sizes = [16, 16], strides = [1, 1]} : vector<16x192xf32> to vector<16x16xf32>
    %50 = vector.extract_strided_slice %39 {offsets = [0, 80], sizes = [16, 16], strides = [1, 1]} : vector<16x192xf32> to vector<16x16xf32>
    %51 = vector.extract_strided_slice %39 {offsets = [0, 96], sizes = [16, 16], strides = [1, 1]} : vector<16x192xf32> to vector<16x16xf32>
    %52 = vector.extract_strided_slice %39 {offsets = [0, 112], sizes = [16, 16], strides = [1, 1]} : vector<16x192xf32> to vector<16x16xf32>
    %53 = vector.shape_cast %49 : vector<16x16xf32> to vector<1x16x16xf32>
    %54 = vector.shape_cast %50 : vector<16x16xf32> to vector<1x16x16xf32>
    %55 = vector.shape_cast %51 : vector<16x16xf32> to vector<1x16x16xf32>
    %56 = vector.shape_cast %52 : vector<16x16xf32> to vector<1x16x16xf32>
    %57 = tpu.concatenate %53, %54, %55, %56 in 0 : vector<1x16x16xf32>, vector<1x16x16xf32>, vector<1x16x16xf32>, vector<1x16x16xf32> -> vector<4x16x16xf32>
    %58 = vector.extract_strided_slice %39 {offsets = [0, 128], sizes = [16, 16], strides = [1, 1]} : vector<16x192xf32> to vector<16x16xf32>
    %59 = vector.extract_strided_slice %39 {offsets = [0, 144], sizes = [16, 16], strides = [1, 1]} : vector<16x192xf32> to vector<16x16xf32>
    %60 = vector.extract_strided_slice %39 {offsets = [0, 160], sizes = [16, 16], strides = [1, 1]} : vector<16x192xf32> to vector<16x16xf32>
    %61 = vector.extract_strided_slice %39 {offsets = [0, 176], sizes = [16, 16], strides = [1, 1]} : vector<16x192xf32> to vector<16x16xf32>
    %62 = vector.shape_cast %58 : vector<16x16xf32> to vector<1x16x16xf32>
    %63 = vector.shape_cast %59 : vector<16x16xf32> to vector<1x16x16xf32>
    %64 = vector.shape_cast %60 : vector<16x16xf32> to vector<1x16x16xf32>
    %65 = vector.shape_cast %61 : vector<16x16xf32> to vector<1x16x16xf32>
    %66 = tpu.concatenate %62, %63, %64, %65 in 0 : vector<1x16x16xf32>, vector<1x16x16xf32>, vector<1x16x16xf32>, vector<1x16x16xf32> -> vector<4x16x16xf32>
    "tpu.trace_start"() <{level = 10 : i32, message = "hqe,hke->hqk"}> : () -> ()
    %cst_20 = arith.constant dense<0.000000e+00> : vector<4x16x16xf32>
    %67 = tpu.matmul %48, %57, %cst_20 {dimension_numbers = #tpu.dot_dimension_numbers<[2], [2], [1], [1], [0, 0, 0, 1, 1, 1], [0], [0]>} : vector<4x16x16xf32>, vector<4x16x16xf32>, vector<4x16x16xf32> -> vector<4x16x16xf32>
    "tpu.trace_stop"() : () -> ()
    %cst_21 = arith.constant 2.500000e-01 : f32
    %68 = vector.broadcast %cst_21 : f32 to vector<4x16x16xf32>
    %69 = arith.mulf %67, %68 : vector<4x16x16xf32>
    %cst_22 = arith.constant dense<0xFF800000> : vector<4x16xf32>
    %70 = vector.multi_reduction <maximumf>, %69, %cst_22 [2] : vector<4x16x16xf32> to vector<4x16xf32>
    %71 = vector.shape_cast %70 : vector<4x16xf32> to vector<4x16x1xf32>
    %72 = vector.broadcast %71 : vector<4x16x1xf32> to vector<4x16x16xf32>
    %73 = arith.subf %69, %72 : vector<4x16x16xf32>
    %74 = math.exp %73 : vector<4x16x16xf32>
    %cst_23 = arith.constant dense<0.000000e+00> : vector<4x16xf32>
    %75 = vector.multi_reduction <add>, %74, %cst_23 [2] : vector<4x16x16xf32> to vector<4x16xf32>
    %76 = vector.shape_cast %75 : vector<4x16xf32> to vector<4x16x1xf32>
    %77 = tpu.reciprocal %76 {approx = true} : vector<4x16x1xf32> -> vector<4x16x1xf32>
    %78 = vector.broadcast %77 : vector<4x16x1xf32> to vector<4x16x16xf32>
    %79 = arith.mulf %74, %78 : vector<4x16x16xf32>
    "tpu.trace_start"() <{level = 10 : i32, message = "hqk,hke->hqe"}> : () -> ()
    %cst_24 = arith.constant dense<0.000000e+00> : vector<4x16x16xf32>
    %80 = tpu.matmul %79, %66, %cst_24 {dimension_numbers = #tpu.dot_dimension_numbers<[2], [1], [1], [2], [0, 0, 0, 1, 1, 2], [0], [0]>} : vector<4x16x16xf32>, vector<4x16x16xf32>, vector<4x16x16xf32> -> vector<4x16x16xf32>
    "tpu.trace_stop"() : () -> ()
    %c0_25 = arith.constant 0 : index
    %c0_26 = arith.constant 0 : index
    %c0_27 = arith.constant 0 : index
    %c0_28 = arith.constant 0 : index
    %81 = vector.load %arg6[%c0_25, %c0_26, %c0_27, %c0_28] : memref<2x4x16x64xf32, #tpu.memory_space<vmem>>, vector<1x4x16x64xf32>
    %82 = vector.shape_cast %81 : vector<1x4x16x64xf32> to vector<4x16x64xf32>
    "tpu.trace_start"() <{level = 10 : i32, message = "hqe,hed->hqd"}> : () -> ()
    %cst_29 = arith.constant dense<0.000000e+00> : vector<4x16x64xf32>
    %83 = tpu.matmul %80, %82, %cst_29 {dimension_numbers = #tpu.dot_dimension_numbers<[2], [1], [1], [2], [0, 0, 0, 1, 1, 2], [0], [0]>} : vector<4x16x16xf32>, vector<4x16x64xf32>, vector<4x16x64xf32> -> vector<4x16x64xf32>
    "tpu.trace_stop"() : () -> ()
    %cst_30 = arith.constant dense<0.000000e+00> : vector<16x64xf32>
    %84 = vector.multi_reduction <add>, %83, %cst_30 [0] : vector<4x16x64xf32> to vector<16x64xf32>
    %85 = vector.extract_strided_slice %38 {offsets = [16, 0], sizes = [16, 192], strides = [1, 1]} : vector<32x192xf32> to vector<16x192xf32>
    %86 = vector.extract_strided_slice %85 {offsets = [0, 0], sizes = [16, 16], strides = [1, 1]} : vector<16x192xf32> to vector<16x16xf32>
    %87 = vector.extract_strided_slice %85 {offsets = [0, 16], sizes = [16, 16], strides = [1, 1]} : vector<16x192xf32> to vector<16x16xf32>
    %88 = vector.extract_strided_slice %85 {offsets = [0, 32], sizes = [16, 16], strides = [1, 1]} : vector<16x192xf32> to vector<16x16xf32>
    %89 = vector.extract_strided_slice %85 {offsets = [0, 48], sizes = [16, 16], strides = [1, 1]} : vector<16x192xf32> to vector<16x16xf32>
    %90 = vector.shape_cast %86 : vector<16x16xf32> to vector<1x16x16xf32>
    %91 = vector.shape_cast %87 : vector<16x16xf32> to vector<1x16x16xf32>
    %92 = vector.shape_cast %88 : vector<16x16xf32> to vector<1x16x16xf32>
    %93 = vector.shape_cast %89 : vector<16x16xf32> to vector<1x16x16xf32>
    %94 = tpu.concatenate %90, %91, %92, %93 in 0 : vector<1x16x16xf32>, vector<1x16x16xf32>, vector<1x16x16xf32>, vector<1x16x16xf32> -> vector<4x16x16xf32>
    %95 = vector.extract_strided_slice %85 {offsets = [0, 64], sizes = [16, 16], strides = [1, 1]} : vector<16x192xf32> to vector<16x16xf32>
    %96 = vector.extract_strided_slice %85 {offsets = [0, 80], sizes = [16, 16], strides = [1, 1]} : vector<16x192xf32> to vector<16x16xf32>
    %97 = vector.extract_strided_slice %85 {offsets = [0, 96], sizes = [16, 16], strides = [1, 1]} : vector<16x192xf32> to vector<16x16xf32>
    %98 = vector.extract_strided_slice %85 {offsets = [0, 112], sizes = [16, 16], strides = [1, 1]} : vector<16x192xf32> to vector<16x16xf32>
    %99 = vector.shape_cast %95 : vector<16x16xf32> to vector<1x16x16xf32>
    %100 = vector.shape_cast %96 : vector<16x16xf32> to vector<1x16x16xf32>
    %101 = vector.shape_cast %97 : vector<16x16xf32> to vector<1x16x16xf32>
    %102 = vector.shape_cast %98 : vector<16x16xf32> to vector<1x16x16xf32>
    %103 = tpu.concatenate %99, %100, %101, %102 in 0 : vector<1x16x16xf32>, vector<1x16x16xf32>, vector<1x16x16xf32>, vector<1x16x16xf32> -> vector<4x16x16xf32>
    %104 = vector.extract_strided_slice %85 {offsets = [0, 128], sizes = [16, 16], strides = [1, 1]} : vector<16x192xf32> to vector<16x16xf32>
    %105 = vector.extract_strided_slice %85 {offsets = [0, 144], sizes = [16, 16], strides = [1, 1]} : vector<16x192xf32> to vector<16x16xf32>
    %106 = vector.extract_strided_slice %85 {offsets = [0, 160], sizes = [16, 16], strides = [1, 1]} : vector<16x192xf32> to vector<16x16xf32>
    %107 = vector.extract_strided_slice %85 {offsets = [0, 176], sizes = [16, 16], strides = [1, 1]} : vector<16x192xf32> to vector<16x16xf32>
    %108 = vector.shape_cast %104 : vector<16x16xf32> to vector<1x16x16xf32>
    %109 = vector.shape_cast %105 : vector<16x16xf32> to vector<1x16x16xf32>
    %110 = vector.shape_cast %106 : vector<16x16xf32> to vector<1x16x16xf32>
    %111 = vector.shape_cast %107 : vector<16x16xf32> to vector<1x16x16xf32>
    %112 = tpu.concatenate %108, %109, %110, %111 in 0 : vector<1x16x16xf32>, vector<1x16x16xf32>, vector<1x16x16xf32>, vector<1x16x16xf32> -> vector<4x16x16xf32>
    "tpu.trace_start"() <{level = 10 : i32, message = "hqe,hke->hqk"}> : () -> ()
    %cst_31 = arith.constant dense<0.000000e+00> : vector<4x16x16xf32>
    %113 = tpu.matmul %94, %103, %cst_31 {dimension_numbers = #tpu.dot_dimension_numbers<[2], [2], [1], [1], [0, 0, 0, 1, 1, 1], [0], [0]>} : vector<4x16x16xf32>, vector<4x16x16xf32>, vector<4x16x16xf32> -> vector<4x16x16xf32>
    "tpu.trace_stop"() : () -> ()
    %cst_32 = arith.constant 2.500000e-01 : f32
    %114 = vector.broadcast %cst_32 : f32 to vector<4x16x16xf32>
    %115 = arith.mulf %113, %114 : vector<4x16x16xf32>
    %cst_33 = arith.constant dense<0xFF800000> : vector<4x16xf32>
    %116 = vector.multi_reduction <maximumf>, %115, %cst_33 [2] : vector<4x16x16xf32> to vector<4x16xf32>
    %117 = vector.shape_cast %116 : vector<4x16xf32> to vector<4x16x1xf32>
    %118 = vector.broadcast %117 : vector<4x16x1xf32> to vector<4x16x16xf32>
    %119 = arith.subf %115, %118 : vector<4x16x16xf32>
    %120 = math.exp %119 : vector<4x16x16xf32>
    %cst_34 = arith.constant dense<0.000000e+00> : vector<4x16xf32>
    %121 = vector.multi_reduction <add>, %120, %cst_34 [2] : vector<4x16x16xf32> to vector<4x16xf32>
    %122 = vector.shape_cast %121 : vector<4x16xf32> to vector<4x16x1xf32>
    %123 = tpu.reciprocal %122 {approx = true} : vector<4x16x1xf32> -> vector<4x16x1xf32>
    %124 = vector.broadcast %123 : vector<4x16x1xf32> to vector<4x16x16xf32>
    %125 = arith.mulf %120, %124 : vector<4x16x16xf32>
    "tpu.trace_start"() <{level = 10 : i32, message = "hqk,hke->hqe"}> : () -> ()
    %cst_35 = arith.constant dense<0.000000e+00> : vector<4x16x16xf32>
    %126 = tpu.matmul %125, %112, %cst_35 {dimension_numbers = #tpu.dot_dimension_numbers<[2], [1], [1], [2], [0, 0, 0, 1, 1, 2], [0], [0]>} : vector<4x16x16xf32>, vector<4x16x16xf32>, vector<4x16x16xf32> -> vector<4x16x16xf32>
    "tpu.trace_stop"() : () -> ()
    %c0_36 = arith.constant 0 : index
    %c0_37 = arith.constant 0 : index
    %c0_38 = arith.constant 0 : index
    %c0_39 = arith.constant 0 : index
    %127 = vector.load %arg6[%c0_36, %c0_37, %c0_38, %c0_39] : memref<2x4x16x64xf32, #tpu.memory_space<vmem>>, vector<1x4x16x64xf32>
    %128 = vector.shape_cast %127 : vector<1x4x16x64xf32> to vector<4x16x64xf32>
    "tpu.trace_start"() <{level = 10 : i32, message = "hqe,hed->hqd"}> : () -> ()
    %cst_40 = arith.constant dense<0.000000e+00> : vector<4x16x64xf32>
    %129 = tpu.matmul %126, %128, %cst_40 {dimension_numbers = #tpu.dot_dimension_numbers<[2], [1], [1], [2], [0, 0, 0, 1, 1, 2], [0], [0]>} : vector<4x16x16xf32>, vector<4x16x64xf32>, vector<4x16x64xf32> -> vector<4x16x64xf32>
    "tpu.trace_stop"() : () -> ()
    %cst_41 = arith.constant dense<0.000000e+00> : vector<16x64xf32>
    %130 = vector.multi_reduction <add>, %129, %cst_41 [0] : vector<4x16x64xf32> to vector<16x64xf32>
    %131 = tpu.concatenate %84, %130 in 0 : vector<16x64xf32>, vector<16x64xf32> -> vector<32x64xf32>
    %132 = arith.addf %5, %131 : vector<32x64xf32>
    %133 = vector.extract_strided_slice %7 {offsets = [4, 0], sizes = [1, 64], strides = [1, 1]} : vector<6x64xf32> to vector<1x64xf32>
    %134 = vector.broadcast %133 : vector<1x64xf32> to vector<32x64xf32>
    %135 = arith.addf %132, %134 : vector<32x64xf32>
    %136 = vector.extract_strided_slice %7 {offsets = [2, 0], sizes = [1, 64], strides = [1, 1]} : vector<6x64xf32> to vector<1x64xf32>
    %137 = vector.extract_strided_slice %7 {offsets = [3, 0], sizes = [1, 64], strides = [1, 1]} : vector<6x64xf32> to vector<1x64xf32>
    %cst_42 = arith.constant dense<0.000000e+00> : vector<32xf32>
    %138 = vector.multi_reduction <add>, %135, %cst_42 [1] : vector<32x64xf32> to vector<32xf32>
    %139 = vector.shape_cast %138 : vector<32xf32> to vector<32x1xf32>
    %cst_43 = arith.constant 6.400000e+01 : f32
    %140 = vector.broadcast %cst_43 : f32 to vector<32x1xf32>
    %141 = arith.divf %139, %140 : vector<32x1xf32>
    %142 = vector.broadcast %141 : vector<32x1xf32> to vector<32x64xf32>
    %143 = arith.subf %135, %142 : vector<32x64xf32>
    %144 = arith.mulf %143, %143 : vector<32x64xf32>
    %cst_44 = arith.constant dense<0.000000e+00> : vector<32xf32>
    %145 = vector.multi_reduction <add>, %144, %cst_44 [1] : vector<32x64xf32> to vector<32xf32>
    %146 = vector.shape_cast %145 : vector<32xf32> to vector<32x1xf32>
    %cst_45 = arith.constant 6.400000e+01 : f32
    %147 = vector.broadcast %cst_45 : f32 to vector<32x1xf32>
    %148 = arith.divf %146, %147 : vector<32x1xf32>
    %149 = vector.broadcast %141 : vector<32x1xf32> to vector<32x64xf32>
    %150 = arith.subf %135, %149 : vector<32x64xf32>
    %cst_46 = arith.constant 9.99999997E-7 : f32
    %151 = vector.broadcast %cst_46 : f32 to vector<32x1xf32>
    %152 = arith.addf %148, %151 : vector<32x1xf32>
    %153 = math.rsqrt %152 : vector<32x1xf32>
    %154 = vector.broadcast %153 : vector<32x1xf32> to vector<32x64xf32>
    %155 = arith.mulf %150, %154 : vector<32x64xf32>
    %156 = vector.broadcast %136 : vector<1x64xf32> to vector<32x64xf32>
    %157 = arith.mulf %155, %156 : vector<32x64xf32>
    %158 = vector.broadcast %137 : vector<1x64xf32> to vector<32x64xf32>
    %159 = arith.addf %157, %158 : vector<32x64xf32>
    %c0_47 = arith.constant 0 : index
    %c0_48 = arith.constant 0 : index
    %c0_49 = arith.constant 0 : index
    %160 = vector.load %arg8[%c0_47, %c0_48, %c0_49] : memref<2x64x128xf32, #tpu.memory_space<vmem>>, vector<1x64x128xf32>
    %161 = vector.shape_cast %160 : vector<1x64x128xf32> to vector<64x128xf32>
    %cst_50 = arith.constant dense<0.000000e+00> : vector<32x128xf32>
    %162 = tpu.matmul %159, %161, %cst_50 {dimension_numbers = #tpu.dot_dimension_numbers<[1], [0], [0], [1], [0, 0, 1, 1], [], []>} : vector<32x64xf32>, vector<64x128xf32>, vector<32x128xf32> -> vector<32x128xf32>
    %c0_51 = arith.constant 0 : index
    %c0_52 = arith.constant 0 : index
    %c0_53 = arith.constant 0 : index
    %163 = vector.load %arg9[%c0_51, %c0_52, %c0_53] : memref<2x1x128xf32, #tpu.memory_space<vmem>>, vector<1x1x128xf32>
    %164 = vector.shape_cast %163 : vector<1x1x128xf32> to vector<1x128xf32>
    %165 = vector.broadcast %164 : vector<1x128xf32> to vector<32x128xf32>
    %166 = arith.addf %162, %165 : vector<32x128xf32>
    %cst_54 = arith.constant 5.000000e-01 : f32
    %167 = vector.broadcast %cst_54 : f32 to vector<32x128xf32>
    %168 = arith.mulf %167, %166 : vector<32x128xf32>
    %cst_55 = arith.constant 4.471500e-02 : f32
    %169 = vector.broadcast %cst_55 : f32 to vector<32x128xf32>
    %170 = arith.mulf %169, %166 : vector<32x128xf32>
    %171 = arith.mulf %170, %166 : vector<32x128xf32>
    %172 = arith.mulf %171, %166 : vector<32x128xf32>
    %173 = arith.addf %166, %172 : vector<32x128xf32>
    %cst_56 = arith.constant 0.797884583 : f32
    %174 = vector.broadcast %cst_56 : f32 to vector<32x128xf32>
    %175 = arith.mulf %174, %173 : vector<32x128xf32>
    %176 = math.tanh %175 : vector<32x128xf32>
    %cst_57 = arith.constant 1.000000e+00 : f32
    %177 = vector.broadcast %cst_57 : f32 to vector<32x128xf32>
    %178 = arith.addf %177, %176 : vector<32x128xf32>
    %179 = arith.mulf %168, %178 : vector<32x128xf32>
    %c0_58 = arith.constant 0 : index
    %c0_59 = arith.constant 0 : index
    %c0_60 = arith.constant 0 : index
    %180 = vector.load %arg10[%c0_58, %c0_59, %c0_60] : memref<2x128x64xf32, #tpu.memory_space<vmem>>, vector<1x128x64xf32>
    %181 = vector.shape_cast %180 : vector<1x128x64xf32> to vector<128x64xf32>
    %cst_61 = arith.constant dense<0.000000e+00> : vector<32x64xf32>
    %182 = tpu.matmul %179, %181, %cst_61 {dimension_numbers = #tpu.dot_dimension_numbers<[1], [0], [0], [1], [0, 0, 1, 1], [], []>} : vector<32x128xf32>, vector<128x64xf32>, vector<32x64xf32> -> vector<32x64xf32>
    %183 = arith.addf %135, %182 : vector<32x64xf32>
    %184 = vector.extract_strided_slice %7 {offsets = [5, 0], sizes = [1, 64], strides = [1, 1]} : vector<6x64xf32> to vector<1x64xf32>
    %185 = vector.broadcast %184 : vector<1x64xf32> to vector<32x64xf32>
    %186 = arith.addf %183, %185 : vector<32x64xf32>
    %c1 = arith.constant 1 : index
    %c0_62 = arith.constant 0 : index
    %c0_63 = arith.constant 0 : index
    %187 = vector.load %arg7[%c1, %c0_62, %c0_63] : memref<2x6x64xf32, #tpu.memory_space<vmem>>, vector<1x6x64xf32>
    %188 = vector.shape_cast %187 : vector<1x6x64xf32> to vector<6x64xf32>
    %189 = vector.extract_strided_slice %188 {offsets = [0, 0], sizes = [1, 64], strides = [1, 1]} : vector<6x64xf32> to vector<1x64xf32>
    %190 = vector.extract_strided_slice %188 {offsets = [1, 0], sizes = [1, 64], strides = [1, 1]} : vector<6x64xf32> to vector<1x64xf32>
    %cst_64 = arith.constant dense<0.000000e+00> : vector<32xf32>
    %191 = vector.multi_reduction <add>, %186, %cst_64 [1] : vector<32x64xf32> to vector<32xf32>
    %192 = vector.shape_cast %191 : vector<32xf32> to vector<32x1xf32>
    %cst_65 = arith.constant 6.400000e+01 : f32
    %193 = vector.broadcast %cst_65 : f32 to vector<32x1xf32>
    %194 = arith.divf %192, %193 : vector<32x1xf32>
    %195 = vector.broadcast %194 : vector<32x1xf32> to vector<32x64xf32>
    %196 = arith.subf %186, %195 : vector<32x64xf32>
    %197 = arith.mulf %196, %196 : vector<32x64xf32>
    %cst_66 = arith.constant dense<0.000000e+00> : vector<32xf32>
    %198 = vector.multi_reduction <add>, %197, %cst_66 [1] : vector<32x64xf32> to vector<32xf32>
    %199 = vector.shape_cast %198 : vector<32xf32> to vector<32x1xf32>
    %cst_67 = arith.constant 6.400000e+01 : f32
    %200 = vector.broadcast %cst_67 : f32 to vector<32x1xf32>
    %201 = arith.divf %199, %200 : vector<32x1xf32>
    %202 = vector.broadcast %194 : vector<32x1xf32> to vector<32x64xf32>
    %203 = arith.subf %186, %202 : vector<32x64xf32>
    %cst_68 = arith.constant 9.99999997E-7 : f32
    %204 = vector.broadcast %cst_68 : f32 to vector<32x1xf32>
    %205 = arith.addf %201, %204 : vector<32x1xf32>
    %206 = math.rsqrt %205 : vector<32x1xf32>
    %207 = vector.broadcast %206 : vector<32x1xf32> to vector<32x64xf32>
    %208 = arith.mulf %203, %207 : vector<32x64xf32>
    %209 = vector.broadcast %189 : vector<1x64xf32> to vector<32x64xf32>
    %210 = arith.mulf %208, %209 : vector<32x64xf32>
    %211 = vector.broadcast %190 : vector<1x64xf32> to vector<32x64xf32>
    %212 = arith.addf %210, %211 : vector<32x64xf32>
    %c1_69 = arith.constant 1 : index
    %c0_70 = arith.constant 0 : index
    %c0_71 = arith.constant 0 : index
    %213 = vector.load %arg4[%c1_69, %c0_70, %c0_71] : memref<2x64x192xf32, #tpu.memory_space<vmem>>, vector<1x64x192xf32>
    %214 = vector.shape_cast %213 : vector<1x64x192xf32> to vector<64x192xf32>
    %cst_72 = arith.constant dense<0.000000e+00> : vector<32x192xf32>
    %215 = tpu.matmul %212, %214, %cst_72 {dimension_numbers = #tpu.dot_dimension_numbers<[1], [0], [0], [1], [0, 0, 1, 1], [], []>} : vector<32x64xf32>, vector<64x192xf32>, vector<32x192xf32> -> vector<32x192xf32>
    %c1_73 = arith.constant 1 : index
    %c0_74 = arith.constant 0 : index
    %c0_75 = arith.constant 0 : index
    %216 = vector.load %arg5[%c1_73, %c0_74, %c0_75] : memref<2x1x192xf32, #tpu.memory_space<vmem>>, vector<1x1x192xf32>
    %217 = vector.shape_cast %216 : vector<1x1x192xf32> to vector<1x192xf32>
    %218 = vector.broadcast %217 : vector<1x192xf32> to vector<32x192xf32>
    %219 = arith.addf %215, %218 : vector<32x192xf32>
    %220 = vector.extract_strided_slice %219 {offsets = [0, 0], sizes = [16, 192], strides = [1, 1]} : vector<32x192xf32> to vector<16x192xf32>
    %221 = vector.extract_strided_slice %220 {offsets = [0, 0], sizes = [16, 16], strides = [1, 1]} : vector<16x192xf32> to vector<16x16xf32>
    %222 = vector.extract_strided_slice %220 {offsets = [0, 16], sizes = [16, 16], strides = [1, 1]} : vector<16x192xf32> to vector<16x16xf32>
    %223 = vector.extract_strided_slice %220 {offsets = [0, 32], sizes = [16, 16], strides = [1, 1]} : vector<16x192xf32> to vector<16x16xf32>
    %224 = vector.extract_strided_slice %220 {offsets = [0, 48], sizes = [16, 16], strides = [1, 1]} : vector<16x192xf32> to vector<16x16xf32>
    %225 = vector.shape_cast %221 : vector<16x16xf32> to vector<1x16x16xf32>
    %226 = vector.shape_cast %222 : vector<16x16xf32> to vector<1x16x16xf32>
    %227 = vector.shape_cast %223 : vector<16x16xf32> to vector<1x16x16xf32>
    %228 = vector.shape_cast %224 : vector<16x16xf32> to vector<1x16x16xf32>
    %229 = tpu.concatenate %225, %226, %227, %228 in 0 : vector<1x16x16xf32>, vector<1x16x16xf32>, vector<1x16x16xf32>, vector<1x16x16xf32> -> vector<4x16x16xf32>
    %230 = vector.extract_strided_slice %220 {offsets = [0, 64], sizes = [16, 16], strides = [1, 1]} : vector<16x192xf32> to vector<16x16xf32>
    %231 = vector.extract_strided_slice %220 {offsets = [0, 80], sizes = [16, 16], strides = [1, 1]} : vector<16x192xf32> to vector<16x16xf32>
    %232 = vector.extract_strided_slice %220 {offsets = [0, 96], sizes = [16, 16], strides = [1, 1]} : vector<16x192xf32> to vector<16x16xf32>
    %233 = vector.extract_strided_slice %220 {offsets = [0, 112], sizes = [16, 16], strides = [1, 1]} : vector<16x192xf32> to vector<16x16xf32>
    %234 = vector.shape_cast %230 : vector<16x16xf32> to vector<1x16x16xf32>
    %235 = vector.shape_cast %231 : vector<16x16xf32> to vector<1x16x16xf32>
    %236 = vector.shape_cast %232 : vector<16x16xf32> to vector<1x16x16xf32>
    %237 = vector.shape_cast %233 : vector<16x16xf32> to vector<1x16x16xf32>
    %238 = tpu.concatenate %234, %235, %236, %237 in 0 : vector<1x16x16xf32>, vector<1x16x16xf32>, vector<1x16x16xf32>, vector<1x16x16xf32> -> vector<4x16x16xf32>
    %239 = vector.extract_strided_slice %220 {offsets = [0, 128], sizes = [16, 16], strides = [1, 1]} : vector<16x192xf32> to vector<16x16xf32>
    %240 = vector.extract_strided_slice %220 {offsets = [0, 144], sizes = [16, 16], strides = [1, 1]} : vector<16x192xf32> to vector<16x16xf32>
    %241 = vector.extract_strided_slice %220 {offsets = [0, 160], sizes = [16, 16], strides = [1, 1]} : vector<16x192xf32> to vector<16x16xf32>
    %242 = vector.extract_strided_slice %220 {offsets = [0, 176], sizes = [16, 16], strides = [1, 1]} : vector<16x192xf32> to vector<16x16xf32>
    %243 = vector.shape_cast %239 : vector<16x16xf32> to vector<1x16x16xf32>
    %244 = vector.shape_cast %240 : vector<16x16xf32> to vector<1x16x16xf32>
    %245 = vector.shape_cast %241 : vector<16x16xf32> to vector<1x16x16xf32>
    %246 = vector.shape_cast %242 : vector<16x16xf32> to vector<1x16x16xf32>
    %247 = tpu.concatenate %243, %244, %245, %246 in 0 : vector<1x16x16xf32>, vector<1x16x16xf32>, vector<1x16x16xf32>, vector<1x16x16xf32> -> vector<4x16x16xf32>
    "tpu.trace_start"() <{level = 10 : i32, message = "hqe,hke->hqk"}> : () -> ()
    %cst_76 = arith.constant dense<0.000000e+00> : vector<4x16x16xf32>
    %248 = tpu.matmul %229, %238, %cst_76 {dimension_numbers = #tpu.dot_dimension_numbers<[2], [2], [1], [1], [0, 0, 0, 1, 1, 1], [0], [0]>} : vector<4x16x16xf32>, vector<4x16x16xf32>, vector<4x16x16xf32> -> vector<4x16x16xf32>
    "tpu.trace_stop"() : () -> ()
    %cst_77 = arith.constant 2.500000e-01 : f32
    %249 = vector.broadcast %cst_77 : f32 to vector<4x16x16xf32>
    %250 = arith.mulf %248, %249 : vector<4x16x16xf32>
    %cst_78 = arith.constant dense<0xFF800000> : vector<4x16xf32>
    %251 = vector.multi_reduction <maximumf>, %250, %cst_78 [2] : vector<4x16x16xf32> to vector<4x16xf32>
    %252 = vector.shape_cast %251 : vector<4x16xf32> to vector<4x16x1xf32>
    %253 = vector.broadcast %252 : vector<4x16x1xf32> to vector<4x16x16xf32>
    %254 = arith.subf %250, %253 : vector<4x16x16xf32>
    %255 = math.exp %254 : vector<4x16x16xf32>
    %cst_79 = arith.constant dense<0.000000e+00> : vector<4x16xf32>
    %256 = vector.multi_reduction <add>, %255, %cst_79 [2] : vector<4x16x16xf32> to vector<4x16xf32>
    %257 = vector.shape_cast %256 : vector<4x16xf32> to vector<4x16x1xf32>
    %258 = tpu.reciprocal %257 {approx = true} : vector<4x16x1xf32> -> vector<4x16x1xf32>
    %259 = vector.broadcast %258 : vector<4x16x1xf32> to vector<4x16x16xf32>
    %260 = arith.mulf %255, %259 : vector<4x16x16xf32>
    "tpu.trace_start"() <{level = 10 : i32, message = "hqk,hke->hqe"}> : () -> ()
    %cst_80 = arith.constant dense<0.000000e+00> : vector<4x16x16xf32>
    %261 = tpu.matmul %260, %247, %cst_80 {dimension_numbers = #tpu.dot_dimension_numbers<[2], [1], [1], [2], [0, 0, 0, 1, 1, 2], [0], [0]>} : vector<4x16x16xf32>, vector<4x16x16xf32>, vector<4x16x16xf32> -> vector<4x16x16xf32>
    "tpu.trace_stop"() : () -> ()
    %c1_81 = arith.constant 1 : index
    %c0_82 = arith.constant 0 : index
    %c0_83 = arith.constant 0 : index
    %c0_84 = arith.constant 0 : index
    %262 = vector.load %arg6[%c1_81, %c0_82, %c0_83, %c0_84] : memref<2x4x16x64xf32, #tpu.memory_space<vmem>>, vector<1x4x16x64xf32>
    %263 = vector.shape_cast %262 : vector<1x4x16x64xf32> to vector<4x16x64xf32>
    "tpu.trace_start"() <{level = 10 : i32, message = "hqe,hed->hqd"}> : () -> ()
    %cst_85 = arith.constant dense<0.000000e+00> : vector<4x16x64xf32>
    %264 = tpu.matmul %261, %263, %cst_85 {dimension_numbers = #tpu.dot_dimension_numbers<[2], [1], [1], [2], [0, 0, 0, 1, 1, 2], [0], [0]>} : vector<4x16x16xf32>, vector<4x16x64xf32>, vector<4x16x64xf32> -> vector<4x16x64xf32>
    "tpu.trace_stop"() : () -> ()
    %cst_86 = arith.constant dense<0.000000e+00> : vector<16x64xf32>
    %265 = vector.multi_reduction <add>, %264, %cst_86 [0] : vector<4x16x64xf32> to vector<16x64xf32>
    %266 = vector.extract_strided_slice %219 {offsets = [16, 0], sizes = [16, 192], strides = [1, 1]} : vector<32x192xf32> to vector<16x192xf32>
    %267 = vector.extract_strided_slice %266 {offsets = [0, 0], sizes = [16, 16], strides = [1, 1]} : vector<16x192xf32> to vector<16x16xf32>
    %268 = vector.extract_strided_slice %266 {offsets = [0, 16], sizes = [16, 16], strides = [1, 1]} : vector<16x192xf32> to vector<16x16xf32>
    %269 = vector.extract_strided_slice %266 {offsets = [0, 32], sizes = [16, 16], strides = [1, 1]} : vector<16x192xf32> to vector<16x16xf32>
    %270 = vector.extract_strided_slice %266 {offsets = [0, 48], sizes = [16, 16], strides = [1, 1]} : vector<16x192xf32> to vector<16x16xf32>
    %271 = vector.shape_cast %267 : vector<16x16xf32> to vector<1x16x16xf32>
    %272 = vector.shape_cast %268 : vector<16x16xf32> to vector<1x16x16xf32>
    %273 = vector.shape_cast %269 : vector<16x16xf32> to vector<1x16x16xf32>
    %274 = vector.shape_cast %270 : vector<16x16xf32> to vector<1x16x16xf32>
    %275 = tpu.concatenate %271, %272, %273, %274 in 0 : vector<1x16x16xf32>, vector<1x16x16xf32>, vector<1x16x16xf32>, vector<1x16x16xf32> -> vector<4x16x16xf32>
    %276 = vector.extract_strided_slice %266 {offsets = [0, 64], sizes = [16, 16], strides = [1, 1]} : vector<16x192xf32> to vector<16x16xf32>
    %277 = vector.extract_strided_slice %266 {offsets = [0, 80], sizes = [16, 16], strides = [1, 1]} : vector<16x192xf32> to vector<16x16xf32>
    %278 = vector.extract_strided_slice %266 {offsets = [0, 96], sizes = [16, 16], strides = [1, 1]} : vector<16x192xf32> to vector<16x16xf32>
    %279 = vector.extract_strided_slice %266 {offsets = [0, 112], sizes = [16, 16], strides = [1, 1]} : vector<16x192xf32> to vector<16x16xf32>
    %280 = vector.shape_cast %276 : vector<16x16xf32> to vector<1x16x16xf32>
    %281 = vector.shape_cast %277 : vector<16x16xf32> to vector<1x16x16xf32>
    %282 = vector.shape_cast %278 : vector<16x16xf32> to vector<1x16x16xf32>
    %283 = vector.shape_cast %279 : vector<16x16xf32> to vector<1x16x16xf32>
    %284 = tpu.concatenate %280, %281, %282, %283 in 0 : vector<1x16x16xf32>, vector<1x16x16xf32>, vector<1x16x16xf32>, vector<1x16x16xf32> -> vector<4x16x16xf32>
    %285 = vector.extract_strided_slice %266 {offsets = [0, 128], sizes = [16, 16], strides = [1, 1]} : vector<16x192xf32> to vector<16x16xf32>
    %286 = vector.extract_strided_slice %266 {offsets = [0, 144], sizes = [16, 16], strides = [1, 1]} : vector<16x192xf32> to vector<16x16xf32>
    %287 = vector.extract_strided_slice %266 {offsets = [0, 160], sizes = [16, 16], strides = [1, 1]} : vector<16x192xf32> to vector<16x16xf32>
    %288 = vector.extract_strided_slice %266 {offsets = [0, 176], sizes = [16, 16], strides = [1, 1]} : vector<16x192xf32> to vector<16x16xf32>
    %289 = vector.shape_cast %285 : vector<16x16xf32> to vector<1x16x16xf32>
    %290 = vector.shape_cast %286 : vector<16x16xf32> to vector<1x16x16xf32>
    %291 = vector.shape_cast %287 : vector<16x16xf32> to vector<1x16x16xf32>
    %292 = vector.shape_cast %288 : vector<16x16xf32> to vector<1x16x16xf32>
    %293 = tpu.concatenate %289, %290, %291, %292 in 0 : vector<1x16x16xf32>, vector<1x16x16xf32>, vector<1x16x16xf32>, vector<1x16x16xf32> -> vector<4x16x16xf32>
    "tpu.trace_start"() <{level = 10 : i32, message = "hqe,hke->hqk"}> : () -> ()
    %cst_87 = arith.constant dense<0.000000e+00> : vector<4x16x16xf32>
    %294 = tpu.matmul %275, %284, %cst_87 {dimension_numbers = #tpu.dot_dimension_numbers<[2], [2], [1], [1], [0, 0, 0, 1, 1, 1], [0], [0]>} : vector<4x16x16xf32>, vector<4x16x16xf32>, vector<4x16x16xf32> -> vector<4x16x16xf32>
    "tpu.trace_stop"() : () -> ()
    %cst_88 = arith.constant 2.500000e-01 : f32
    %295 = vector.broadcast %cst_88 : f32 to vector<4x16x16xf32>
    %296 = arith.mulf %294, %295 : vector<4x16x16xf32>
    %cst_89 = arith.constant dense<0xFF800000> : vector<4x16xf32>
    %297 = vector.multi_reduction <maximumf>, %296, %cst_89 [2] : vector<4x16x16xf32> to vector<4x16xf32>
    %298 = vector.shape_cast %297 : vector<4x16xf32> to vector<4x16x1xf32>
    %299 = vector.broadcast %298 : vector<4x16x1xf32> to vector<4x16x16xf32>
    %300 = arith.subf %296, %299 : vector<4x16x16xf32>
    %301 = math.exp %300 : vector<4x16x16xf32>
    %cst_90 = arith.constant dense<0.000000e+00> : vector<4x16xf32>
    %302 = vector.multi_reduction <add>, %301, %cst_90 [2] : vector<4x16x16xf32> to vector<4x16xf32>
    %303 = vector.shape_cast %302 : vector<4x16xf32> to vector<4x16x1xf32>
    %304 = tpu.reciprocal %303 {approx = true} : vector<4x16x1xf32> -> vector<4x16x1xf32>
    %305 = vector.broadcast %304 : vector<4x16x1xf32> to vector<4x16x16xf32>
    %306 = arith.mulf %301, %305 : vector<4x16x16xf32>
    "tpu.trace_start"() <{level = 10 : i32, message = "hqk,hke->hqe"}> : () -> ()
    %cst_91 = arith.constant dense<0.000000e+00> : vector<4x16x16xf32>
    %307 = tpu.matmul %306, %293, %cst_91 {dimension_numbers = #tpu.dot_dimension_numbers<[2], [1], [1], [2], [0, 0, 0, 1, 1, 2], [0], [0]>} : vector<4x16x16xf32>, vector<4x16x16xf32>, vector<4x16x16xf32> -> vector<4x16x16xf32>
    "tpu.trace_stop"() : () -> ()
    %c1_92 = arith.constant 1 : index
    %c0_93 = arith.constant 0 : index
    %c0_94 = arith.constant 0 : index
    %c0_95 = arith.constant 0 : index
    %308 = vector.load %arg6[%c1_92, %c0_93, %c0_94, %c0_95] : memref<2x4x16x64xf32, #tpu.memory_space<vmem>>, vector<1x4x16x64xf32>
    %309 = vector.shape_cast %308 : vector<1x4x16x64xf32> to vector<4x16x64xf32>
    "tpu.trace_start"() <{level = 10 : i32, message = "hqe,hed->hqd"}> : () -> ()
    %cst_96 = arith.constant dense<0.000000e+00> : vector<4x16x64xf32>
    %310 = tpu.matmul %307, %309, %cst_96 {dimension_numbers = #tpu.dot_dimension_numbers<[2], [1], [1], [2], [0, 0, 0, 1, 1, 2], [0], [0]>} : vector<4x16x16xf32>, vector<4x16x64xf32>, vector<4x16x64xf32> -> vector<4x16x64xf32>
    "tpu.trace_stop"() : () -> ()
    %cst_97 = arith.constant dense<0.000000e+00> : vector<16x64xf32>
    %311 = vector.multi_reduction <add>, %310, %cst_97 [0] : vector<4x16x64xf32> to vector<16x64xf32>
    %312 = tpu.concatenate %265, %311 in 0 : vector<16x64xf32>, vector<16x64xf32> -> vector<32x64xf32>
    %313 = arith.addf %186, %312 : vector<32x64xf32>
    %314 = vector.extract_strided_slice %188 {offsets = [4, 0], sizes = [1, 64], strides = [1, 1]} : vector<6x64xf32> to vector<1x64xf32>
    %315 = vector.broadcast %314 : vector<1x64xf32> to vector<32x64xf32>
    %316 = arith.addf %313, %315 : vector<32x64xf32>
    %317 = vector.extract_strided_slice %188 {offsets = [2, 0], sizes = [1, 64], strides = [1, 1]} : vector<6x64xf32> to vector<1x64xf32>
    %318 = vector.extract_strided_slice %188 {offsets = [3, 0], sizes = [1, 64], strides = [1, 1]} : vector<6x64xf32> to vector<1x64xf32>
    %cst_98 = arith.constant dense<0.000000e+00> : vector<32xf32>
    %319 = vector.multi_reduction <add>, %316, %cst_98 [1] : vector<32x64xf32> to vector<32xf32>
    %320 = vector.shape_cast %319 : vector<32xf32> to vector<32x1xf32>
    %cst_99 = arith.constant 6.400000e+01 : f32
    %321 = vector.broadcast %cst_99 : f32 to vector<32x1xf32>
    %322 = arith.divf %320, %321 : vector<32x1xf32>
    %323 = vector.broadcast %322 : vector<32x1xf32> to vector<32x64xf32>
    %324 = arith.subf %316, %323 : vector<32x64xf32>
    %325 = arith.mulf %324, %324 : vector<32x64xf32>
    %cst_100 = arith.constant dense<0.000000e+00> : vector<32xf32>
    %326 = vector.multi_reduction <add>, %325, %cst_100 [1] : vector<32x64xf32> to vector<32xf32>
    %327 = vector.shape_cast %326 : vector<32xf32> to vector<32x1xf32>
    %cst_101 = arith.constant 6.400000e+01 : f32
    %328 = vector.broadcast %cst_101 : f32 to vector<32x1xf32>
    %329 = arith.divf %327, %328 : vector<32x1xf32>
    %330 = vector.broadcast %322 : vector<32x1xf32> to vector<32x64xf32>
    %331 = arith.subf %316, %330 : vector<32x64xf32>
    %cst_102 = arith.constant 9.99999997E-7 : f32
    %332 = vector.broadcast %cst_102 : f32 to vector<32x1xf32>
    %333 = arith.addf %329, %332 : vector<32x1xf32>
    %334 = math.rsqrt %333 : vector<32x1xf32>
    %335 = vector.broadcast %334 : vector<32x1xf32> to vector<32x64xf32>
    %336 = arith.mulf %331, %335 : vector<32x64xf32>
    %337 = vector.broadcast %317 : vector<1x64xf32> to vector<32x64xf32>
    %338 = arith.mulf %336, %337 : vector<32x64xf32>
    %339 = vector.broadcast %318 : vector<1x64xf32> to vector<32x64xf32>
    %340 = arith.addf %338, %339 : vector<32x64xf32>
    %c1_103 = arith.constant 1 : index
    %c0_104 = arith.constant 0 : index
    %c0_105 = arith.constant 0 : index
    %341 = vector.load %arg8[%c1_103, %c0_104, %c0_105] : memref<2x64x128xf32, #tpu.memory_space<vmem>>, vector<1x64x128xf32>
    %342 = vector.shape_cast %341 : vector<1x64x128xf32> to vector<64x128xf32>
    %cst_106 = arith.constant dense<0.000000e+00> : vector<32x128xf32>
    %343 = tpu.matmul %340, %342, %cst_106 {dimension_numbers = #tpu.dot_dimension_numbers<[1], [0], [0], [1], [0, 0, 1, 1], [], []>} : vector<32x64xf32>, vector<64x128xf32>, vector<32x128xf32> -> vector<32x128xf32>
    %c1_107 = arith.constant 1 : index
    %c0_108 = arith.constant 0 : index
    %c0_109 = arith.constant 0 : index
    %344 = vector.load %arg9[%c1_107, %c0_108, %c0_109] : memref<2x1x128xf32, #tpu.memory_space<vmem>>, vector<1x1x128xf32>
    %345 = vector.shape_cast %344 : vector<1x1x128xf32> to vector<1x128xf32>
    %346 = vector.broadcast %345 : vector<1x128xf32> to vector<32x128xf32>
    %347 = arith.addf %343, %346 : vector<32x128xf32>
    %cst_110 = arith.constant 5.000000e-01 : f32
    %348 = vector.broadcast %cst_110 : f32 to vector<32x128xf32>
    %349 = arith.mulf %348, %347 : vector<32x128xf32>
    %cst_111 = arith.constant 4.471500e-02 : f32
    %350 = vector.broadcast %cst_111 : f32 to vector<32x128xf32>
    %351 = arith.mulf %350, %347 : vector<32x128xf32>
    %352 = arith.mulf %351, %347 : vector<32x128xf32>
    %353 = arith.mulf %352, %347 : vector<32x128xf32>
    %354 = arith.addf %347, %353 : vector<32x128xf32>
    %cst_112 = arith.constant 0.797884583 : f32
    %355 = vector.broadcast %cst_112 : f32 to vector<32x128xf32>
    %356 = arith.mulf %355, %354 : vector<32x128xf32>
    %357 = math.tanh %356 : vector<32x128xf32>
    %cst_113 = arith.constant 1.000000e+00 : f32
    %358 = vector.broadcast %cst_113 : f32 to vector<32x128xf32>
    %359 = arith.addf %358, %357 : vector<32x128xf32>
    %360 = arith.mulf %349, %359 : vector<32x128xf32>
    %c1_114 = arith.constant 1 : index
    %c0_115 = arith.constant 0 : index
    %c0_116 = arith.constant 0 : index
    %361 = vector.load %arg10[%c1_114, %c0_115, %c0_116] : memref<2x128x64xf32, #tpu.memory_space<vmem>>, vector<1x128x64xf32>
    %362 = vector.shape_cast %361 : vector<1x128x64xf32> to vector<128x64xf32>
    %cst_117 = arith.constant dense<0.000000e+00> : vector<32x64xf32>
    %363 = tpu.matmul %360, %362, %cst_117 {dimension_numbers = #tpu.dot_dimension_numbers<[1], [0], [0], [1], [0, 0, 1, 1], [], []>} : vector<32x128xf32>, vector<128x64xf32>, vector<32x64xf32> -> vector<32x64xf32>
    %364 = arith.addf %316, %363 : vector<32x64xf32>
    %365 = vector.extract_strided_slice %188 {offsets = [5, 0], sizes = [1, 64], strides = [1, 1]} : vector<6x64xf32> to vector<1x64xf32>
    %366 = vector.broadcast %365 : vector<1x64xf32> to vector<32x64xf32>
    %367 = arith.addf %364, %366 : vector<32x64xf32>
    %c0_118 = arith.constant 0 : index
    %c0_119 = arith.constant 0 : index
    %368 = vector.load %arg11[%c0_118, %c0_119] : memref<2x64xf32, #tpu.memory_space<vmem>>, vector<1x64xf32>
    %c1_120 = arith.constant 1 : index
    %c0_121 = arith.constant 0 : index
    %369 = vector.load %arg11[%c1_120, %c0_121] : memref<2x64xf32, #tpu.memory_space<vmem>>, vector<1x64xf32>
    %cst_122 = arith.constant dense<0.000000e+00> : vector<32xf32>
    %370 = vector.multi_reduction <add>, %367, %cst_122 [1] : vector<32x64xf32> to vector<32xf32>
    %371 = vector.shape_cast %370 : vector<32xf32> to vector<32x1xf32>
    %cst_123 = arith.constant 6.400000e+01 : f32
    %372 = vector.broadcast %cst_123 : f32 to vector<32x1xf32>
    %373 = arith.divf %371, %372 : vector<32x1xf32>
    %374 = vector.broadcast %373 : vector<32x1xf32> to vector<32x64xf32>
    %375 = arith.subf %367, %374 : vector<32x64xf32>
    %376 = arith.mulf %375, %375 : vector<32x64xf32>
    %cst_124 = arith.constant dense<0.000000e+00> : vector<32xf32>
    %377 = vector.multi_reduction <add>, %376, %cst_124 [1] : vector<32x64xf32> to vector<32xf32>
    %378 = vector.shape_cast %377 : vector<32xf32> to vector<32x1xf32>
    %cst_125 = arith.constant 6.400000e+01 : f32
    %379 = vector.broadcast %cst_125 : f32 to vector<32x1xf32>
    %380 = arith.divf %378, %379 : vector<32x1xf32>
    %381 = vector.broadcast %373 : vector<32x1xf32> to vector<32x64xf32>
    %382 = arith.subf %367, %381 : vector<32x64xf32>
    %cst_126 = arith.constant 9.99999997E-7 : f32
    %383 = vector.broadcast %cst_126 : f32 to vector<32x1xf32>
    %384 = arith.addf %380, %383 : vector<32x1xf32>
    %385 = math.rsqrt %384 : vector<32x1xf32>
    %386 = vector.broadcast %385 : vector<32x1xf32> to vector<32x64xf32>
    %387 = arith.mulf %382, %386 : vector<32x64xf32>
    %388 = vector.broadcast %368 : vector<1x64xf32> to vector<32x64xf32>
    %389 = arith.mulf %387, %388 : vector<32x64xf32>
    %390 = vector.broadcast %369 : vector<1x64xf32> to vector<32x64xf32>
    %391 = arith.addf %389, %390 : vector<32x64xf32>
    %c0_127 = arith.constant 0 : index
    %c0_128 = arith.constant 0 : index
    %392 = vector.load %arg12[%c0_127, %c0_128] : memref<32x64xf32, #tpu.memory_space<vmem>>, vector<32x64xf32>
    tpu.vector_store %arg12[%c0_127, %c0_128], %391 {strides = array<i32>} : memref<32x64xf32, #tpu.memory_space<vmem>>, vector<32x64xf32>,
    return
  }
  func.func @transform_0(%arg0: i32) -> (i32, i32) {
    %c0_i32 = arith.constant 0 : i32
    %c0_i32_0 = arith.constant 0 : i32
    %c0_i32_1 = arith.constant 0 : i32
    return %c0_i32, %c0_i32_0 : i32, i32
  }
  func.func @transform_1(%arg0: i32) -> (i32, i32) {
    %c0_i32 = arith.constant 0 : i32
    %c0_i32_0 = arith.constant 0 : i32
    %c0_i32_1 = arith.constant 0 : i32
    return %c0_i32, %c0_i32_0 : i32, i32
  }
  func.func @transform_2(%arg0: i32) -> (i32, i32) {
    %c0_i32 = arith.constant 0 : i32
    %c0_i32_0 = arith.constant 0 : i32
    %c0_i32_1 = arith.constant 0 : i32
    return %c0_i32, %c0_i32_0 : i32, i32
  }
  func.func @transform_3(%arg0: i32) -> (i32, i32, i32) {
    %c0_i32 = arith.constant 0 : i32
    %c0_i32_0 = arith.constant 0 : i32
    %c0_i32_1 = arith.constant 0 : i32
    %c0_i32_2 = arith.constant 0 : i32
    return %c0_i32, %c0_i32_0, %c0_i32_1 : i32, i32, i32
  }
  func.func @transform_4(%arg0: i32) -> (i32, i32, i32) {
    %c0_i32 = arith.constant 0 : i32
    %c0_i32_0 = arith.constant 0 : i32
    %c0_i32_1 = arith.constant 0 : i32
    %c0_i32_2 = arith.constant 0 : i32
    return %c0_i32, %c0_i32_0, %c0_i32_1 : i32, i32, i32
  }
  func.func @transform_5(%arg0: i32) -> (i32, i32, i32, i32) {
    %c0_i32 = arith.constant 0 : i32
    %c0_i32_0 = arith.constant 0 : i32
    %c0_i32_1 = arith.constant 0 : i32
    %c0_i32_2 = arith.constant 0 : i32
    %c0_i32_3 = arith.constant 0 : i32
    return %c0_i32, %c0_i32_0, %c0_i32_1, %c0_i32_2 : i32, i32, i32, i32
  }
  func.func @transform_6(%arg0: i32) -> (i32, i32, i32) {
    %c0_i32 = arith.constant 0 : i32
    %c0_i32_0 = arith.constant 0 : i32
    %c0_i32_1 = arith.constant 0 : i32
    %c0_i32_2 = arith.constant 0 : i32
    return %c0_i32, %c0_i32_0, %c0_i32_1 : i32, i32, i32
  }
  func.func @transform_7(%arg0: i32) -> (i32, i32, i32) {
    %c0_i32 = arith.constant 0 : i32
    %c0_i32_0 = arith.constant 0 : i32
    %c0_i32_1 = arith.constant 0 : i32
    %c0_i32_2 = arith.constant 0 : i32
    return %c0_i32, %c0_i32_0, %c0_i32_1 : i32, i32, i32
  }
  func.func @transform_8(%arg0: i32) -> (i32, i32, i32) {
    %c0_i32 = arith.constant 0 : i32
    %c0_i32_0 = arith.constant 0 : i32
    %c0_i32_1 = arith.constant 0 : i32
    %c0_i32_2 = arith.constant 0 : i32
    return %c0_i32, %c0_i32_0, %c0_i32_1 : i32, i32, i32
  }
  func.func @transform_9(%arg0: i32) -> (i32, i32, i32) {
    %c0_i32 = arith.constant 0 : i32
    %c0_i32_0 = arith.constant 0 : i32
    %c0_i32_1 = arith.constant 0 : i32
    %c0_i32_2 = arith.constant 0 : i32
    return %c0_i32, %c0_i32_0, %c0_i32_1 : i32, i32, i32
  }
  func.func @transform_10(%arg0: i32) -> (i32, i32) {
    %c0_i32 = arith.constant 0 : i32
    %c0_i32_0 = arith.constant 0 : i32
    %c0_i32_1 = arith.constant 0 : i32
    return %c0_i32, %c0_i32_0 : i32, i32
  }
  func.func @transform_11(%arg0: i32) -> (i32, i32) {
    %c0_i32 = arith.constant 0 : i32
    %c0_i32_0 = arith.constant 0 : i32
    %c0_i32_1 = arith.constant 0 : i32
    return %c0_i32, %c0_i32_0 : i32, i32
  }
}

</mosaic_0001>

<llo_original>
// kernel: siglip_vision_forward.1
$region0: #{siglip_vision_forward.1}
  #allocation0 [shape = 'u32[]', space=smem, size = 0x4, offset = 0x4, fixed_abs, tag = 'smem constant byte address 0x4 - core index']
  #allocation1 [shape = 'u32[144,128]{1,0:T(1,128)}', space=vmem, size = 0x12000, scoped, tag = 'internal scratch']
  %s0 = inlined_call_operand.vmem [shape: f32[32,192], index: 0, kind: input, shape index: {}]
  %s1 = inlined_call_operand.vmem [shape: f32[192,64], index: 1, kind: input, shape index: {}]
  %s2 = inlined_call_operand.vmem [shape: f32[16,64], index: 2, kind: input, shape index: {}]
  %s3 = inlined_call_operand.vmem [shape: f32[2,64,192], index: 3, kind: input, shape index: {}]
  %s4 = inlined_call_operand.vmem [shape: f32[2,1,192], index: 4, kind: input, shape index: {}]
  %s5 = inlined_call_operand.vmem [shape: f32[2,4,16,64], index: 5, kind: input, shape index: {}]
  %s6 = inlined_call_operand.vmem [shape: f32[2,6,64], index: 6, kind: input, shape index: {}]
  %s7 = inlined_call_operand.vmem [shape: f32[2,64,128], index: 7, kind: input, shape index: {}]
  %s8 = inlined_call_operand.vmem [shape: f32[2,1,128], index: 8, kind: input, shape index: {}]
  %s9 = inlined_call_operand.vmem [shape: f32[2,128,64], index: 9, kind: input, shape index: {}]
  %s10 = inlined_call_operand.vmem [shape: f32[2,64], index: 10, kind: input, shape index: {}]
  %s11 = inlined_call_operand.hbm [shape: f32[32,64], index: 11, kind: output, shape index: {}]
  %s12 = sld [smem:[#allocation0]]
  $region54: #{siglip_vision_forward.1} parent=0
    _
  %s14 = ssub.s32 1, %s12
  %s15 = scalar_select 0, %s14, %s12
  $region1: #{siglip_vision_forward.1} parent=0
    #allocation2 [shape = 'u8[16384]{0}', space=vmem, size = 0x4000, scoped, tag = 'output window, operand 0, single buffered']
    #allocation3 [shape = 's32[1]{0}', space=sflag, size = 0x4, scoped, tag = 'scoped memory for siglip_vision_forward.1']
    %16 = vsyncpa [#allocation3], 0
    // Predicated region
    $region2: #{siglip_vision_forward.1} parent=1 // pred_check
      _
    $region3: #{siglip_vision_forward.1} parent=1 // pred_check_branch
      %18 = sbr.rel (0) target = $region5
    $region4: #{siglip_vision_forward.1} parent=1 // pred_region
      _
    $region5: #{siglip_vision_forward.1} parent=1 // pred_fallthru
      _
    // Predicated region
    $region6: #{siglip_vision_forward.1} parent=1 // pred_check
      _
    $region7: #{siglip_vision_forward.1} parent=1 // pred_check_branch
      %20 = sbr.rel (0) target = $region9
    $region8: #{siglip_vision_forward.1} parent=1 // pred_region
      _
    $region9: #{siglip_vision_forward.1} parent=1 // pred_fallthru
      _
    // Predicated region
    $region10: #{siglip_vision_forward.1} parent=1 // pred_check
      _
    $region11: #{siglip_vision_forward.1} parent=1 // pred_check_branch
      %22 = sbr.rel (0) target = $region13
    $region12: #{siglip_vision_forward.1} parent=1 // pred_region
      _
    $region13: #{siglip_vision_forward.1} parent=1 // pred_fallthru
      _
    // Predicated region
    $region14: #{siglip_vision_forward.1} parent=1 // pred_check
      _
    $region15: #{siglip_vision_forward.1} parent=1 // pred_check_branch
      %24 = sbr.rel (0) target = $region17
    $region16: #{siglip_vision_forward.1} parent=1 // pred_region
      _
    $region17: #{siglip_vision_forward.1} parent=1 // pred_fallthru
      _
    // Predicated region
    $region18: #{siglip_vision_forward.1} parent=1 // pred_check
      _
    $region19: #{siglip_vision_forward.1} parent=1 // pred_check_branch
      %26 = sbr.rel (0) target = $region21
    $region20: #{siglip_vision_forward.1} parent=1 // pred_region
      _
    $region21: #{siglip_vision_forward.1} parent=1 // pred_fallthru
      _
    // Predicated region
    $region22: #{siglip_vision_forward.1} parent=1 // pred_check
      _
    $region23: #{siglip_vision_forward.1} parent=1 // pred_check_branch
      %28 = sbr.rel (0) target = $region25
    $region24: #{siglip_vision_forward.1} parent=1 // pred_region
      _
    $region25: #{siglip_vision_forward.1} parent=1 // pred_fallthru
      _
    // Predicated region
    $region26: #{siglip_vision_forward.1} parent=1 // pred_check
      _
    $region27: #{siglip_vision_forward.1} parent=1 // pred_check_branch
      %30 = sbr.rel (0) target = $region29
    $region28: #{siglip_vision_forward.1} parent=1 // pred_region
      _
    $region29: #{siglip_vision_forward.1} parent=1 // pred_fallthru
      _
    // Predicated region
    $region30: #{siglip_vision_forward.1} parent=1 // pred_check
      _
    $region31: #{siglip_vision_forward.1} parent=1 // pred_check_branch
      %32 = sbr.rel (0) target = $region33
    $region32: #{siglip_vision_forward.1} parent=1 // pred_region
      _
    $region33: #{siglip_vision_forward.1} parent=1 // pred_fallthru
      _
    // Predicated region
    $region34: #{siglip_vision_forward.1} parent=1 // pred_check
      _
    $region35: #{siglip_vision_forward.1} parent=1 // pred_check_branch
      %34 = sbr.rel (0) target = $region37
    $region36: #{siglip_vision_forward.1} parent=1 // pred_region
      _
    $region37: #{siglip_vision_forward.1} parent=1 // pred_fallthru
      _
    // Predicated region
    $region38: #{siglip_vision_forward.1} parent=1 // pred_check
      _
    $region39: #{siglip_vision_forward.1} parent=1 // pred_check_branch
      %36 = sbr.rel (0) target = $region41
    $region40: #{siglip_vision_forward.1} parent=1 // pred_region
      _
    $region41: #{siglip_vision_forward.1} parent=1 // pred_fallthru
      _
    // Predicated region
    $region42: #{siglip_vision_forward.1} parent=1 // pred_check
      _
    $region43: #{siglip_vision_forward.1} parent=1 // pred_check_branch
      %38 = sbr.rel (0) target = $region45
    $region44: #{siglip_vision_forward.1} parent=1 // pred_region
      _
    $region45: #{siglip_vision_forward.1} parent=1 // pred_fallthru
      _
    %v39 = vld [vmem:[%s0] sm:$0xff]
    %v40 = vld [vmem:[%s0 + $0x8] sm:$0xff]
    %v41 = vld [vmem:[%s0 + $0x10] sm:$0xff]
    %v42 = vld [vmem:[%s0 + $0x18] sm:$0xff]
    %v43 = vld [vmem:[%s0 + $0x20] sm:$0xff]
    %v44 = vld [vmem:[%s0 + $0x28] sm:$0xff]
    %v45 = vld [vmem:[%s0 + $0x30] sm:$0xff]
    %v46 = vld [vmem:[%s0 + $0x38] sm:$0xff]
    %v47 = vld [vmem:[%s1] sm:$0xff]
    %v48 = vld [vmem:[%s1 + $0x8] sm:$0xff]
    %v49 = vld [vmem:[%s1 + $0x10] sm:$0xff]
    %v50 = vld [vmem:[%s1 + $0x18] sm:$0xff]
    %v51 = vld [vmem:[%s1 + $0x20] sm:$0xff]
    %v52 = vld [vmem:[%s1 + $0x28] sm:$0xff]
    %v53 = vld [vmem:[%s1 + $0x30] sm:$0xff]
    %v54 = vld [vmem:[%s1 + $0x38] sm:$0xff]
    %v55 = vld [vmem:[%s1 + $0x40] sm:$0xff]
    %v56 = vld [vmem:[%s1 + $0x48] sm:$0xff]
    %v57 = vld [vmem:[%s1 + $0x50] sm:$0xff]
    %v58 = vld [vmem:[%s1 + $0x58] sm:$0xff]
    %v59 = vld [vmem:[%s1 + $0x60] sm:$0xff]
    %v60 = vld [vmem:[%s1 + $0x68] sm:$0xff]
    %v61 = vld [vmem:[%s1 + $0x70] sm:$0xff]
    %v62 = vld [vmem:[%s1 + $0x78] sm:$0xff]
    %v63 = vld [vmem:[%s1 + $0x80] sm:$0xff]
    %v64 = vld [vmem:[%s1 + $0x88] sm:$0xff]
    %v65 = vld [vmem:[%s1 + $0x90] sm:$0xff]
    %v66 = vld [vmem:[%s1 + $0x98] sm:$0xff]
    %v67 = vld [vmem:[%s1 + $0xa0] sm:$0xff]
    %v68 = vld [vmem:[%s1 + $0xa8] sm:$0xff]
    %v69 = vld [vmem:[%s1 + $0xb0] sm:$0xff]
    %v70 = vld [vmem:[%s1 + $0xb8] sm:$0xff]
    %v71 = vld [vmem:[%s2] sm:$0xff]
    %v72 = vld [vmem:[%s2 + $0x8] sm:$0xff]
    %vm73 = vcmask 523264
    %v75 = vsel %vm73, %v40, 0
    %v78 = vsel %vm73, %v42, 0
    %v81 = vsel %vm73, %v44, 0
    %v84 = vsel %vm73, %v46, 0
    %86 = vmatprep.subr.mxu0 0.0
    %87 = vmatpush1.msra.mxu0 %v62
    %88 = vmatprep.subr.mxu0 0.0
    %89 = vmatpush1.msra.mxu0 %v61
    %90 = vmatprep.subr.mxu0 0.0
    %91 = vmatpush1.msra.mxu0 %v60
    %92 = vmatprep.subr.mxu0 0.0
    %93 = vmatpush1.msra.mxu0 %v59
    %94 = vmatprep.subr.mxu0 0.0
    %95 = vmatpush1.msra.mxu0 %v58
    %96 = vmatprep.subr.mxu0 0.0
    %97 = vmatpush1.msra.mxu0 %v57
    %98 = vmatprep.subr.mxu0 0.0
    %99 = vmatpush1.msra.mxu0 %v56
    %100 = vmatprep.subr.mxu0 0.0
    %101 = vmatpush1.msra.mxu0 %v55
    %102 = vmatprep.subr.mxu0 0.0
    %103 = vmatpush1.msra.mxu0 %v54
    %104 = vmatprep.subr.mxu0 0.0
    %105 = vmatpush1.msra.mxu0 %v53
    %106 = vmatprep.subr.mxu0 0.0
    %107 = vmatpush1.msra.mxu0 %v52
    %108 = vmatprep.subr.mxu0 0.0
    %109 = vmatpush1.msra.mxu0 %v51
    %110 = vmatprep.subr.mxu0 0.0
    %111 = vmatpush1.msra.mxu0 %v50
    %112 = vmatprep.subr.mxu0 0.0
    %113 = vmatpush1.msra.mxu0 %v49
    %114 = vmatprep.subr.mxu0 0.0
    %115 = vmatpush1.msra.mxu0 %v48
    %116 = vmatprep.subr.mxu0 0.0
    %117 = vmatpush1.msra.mxu0 %v47
    %118 = vmatprep.subr.mxu0 0.0
    %119 = vmatpush2.msra.mxu0 0.0
    %120 = vmatprep.subr.mxu0 0.0
    %121 = vmatpush2.msra.mxu0 0.0
    %122 = vmatprep.subr.mxu0 0.0
    %123 = vmatpush2.msra.mxu0 0.0
    %124 = vmatprep.subr.mxu0 0.0
    %125 = vmatpush2.msra.mxu0 0.0
    %126 = vmatprep.subr.mxu0 0.0
    %127 = vmatpush2.msra.mxu0 0.0
    %128 = vmatprep.subr.mxu0 0.0
    %129 = vmatpush2.msra.mxu0 0.0
    %130 = vmatprep.subr.mxu0 0.0
    %131 = vmatpush2.msra.mxu0 0.0
    %132 = vmatprep.subr.mxu0 0.0
    %133 = vmatpush2.msra.mxu0 0.0
    %134 = vmatprep.subr.mxu0 0.0
    %135 = vmatpush2.msra.mxu0 %v70
    %136 = vmatprep.subr.mxu0 0.0
    %137 = vmatpush2.msra.mxu0 %v69
    %138 = vmatprep.subr.mxu0 0.0
    %139 = vmatpush2.msra.mxu0 %v68
    %140 = vmatprep.subr.mxu0 0.0
    %141 = vmatpush2.msra.mxu0 %v67
    %142 = vmatprep.subr.mxu0 0.0
    %143 = vmatpush2.msra.mxu0 %v66
    %144 = vmatprep.subr.mxu0 0.0
    %145 = vmatpush2.msra.mxu0 %v65
    %146 = vmatprep.subr.mxu0 0.0
    %147 = vmatpush2.msra.mxu0 %v64
    %148 = vmatprep.subr.mxu0 0.0
    %149 = vmatpush2.msra.mxu0 %v63
    %150 = vmatprep.mubr.f32.mxu0 %v75
    %151 = vmatmul.mubr.f32.gmra.mxu0 %v39
    %v152 = vpop.f32.mrf.mxu0
    %v153 = vadd.f32 %v71, %v152
    %v154 = vpop.f32.mrf.mxu0
    %155 = vmatprep.mubr.f32.mxu0 %v78
    %156 = vmatmul.mubr.f32.gmra.mxu0 %v41
    %v157 = vpop.f32.mrf.mxu0
    %v158 = vadd.f32 %v72, %v157
    %v159 = vpop.f32.mrf.mxu0
    %160 = vmatprep.mubr.f32.mxu0 %v81
    %161 = vmatmul.mubr.f32.gmra.mxu0 %v43
    %v162 = vpop.f32.mrf.mxu0
    %v163 = vadd.f32 %v71, %v162
    %v164 = vpop.f32.mrf.mxu0
    %165 = vmatprep.mubr.f32.mxu0 %v84
    %166 = vmatmul.mubr.f32.gmra.mxu0 %v45
    %v167 = vpop.f32.mrf.mxu0
    %v168 = vadd.f32 %v72, %v167
    %v169 = vpop.f32.mrf.mxu0
    %170 = vdwg.mxu0
    %v171 = vld [vmem:[%s6] sm:$0x3f]
    %v172 = vsel %vm73, %v153, 0.0
    %173 = vadd.xlane.f32.xlu0 %v172
    %v174 = vpop.xlane.xlu0 %173
    %v175 = vsel %vm73, %v158, 0.0
    %176 = vadd.xlane.f32.xlu0 %v175
    %v177 = vpop.xlane.xlu0 %176
    %v178 = vsel %vm73, %v163, 0.0
    %179 = vadd.xlane.f32.xlu0 %v178
    %v180 = vpop.xlane.xlu0 %179
    %v181 = vsel %vm73, %v168, 0.0
    %182 = vadd.xlane.f32.xlu0 %v181
    %v183 = vpop.xlane.xlu0 %182
    %v184 = vrcp.pop 64.0
    %v185 = vmul.f32 %v174, %v184
    %v186 = vmul.f32 %v177, %v184
    %v187 = vmul.f32 %v180, %v184
    %v188 = vmul.f32 %v183, %v184
    %v189 = vsub.f32 %v153, %v185
    %v190 = vsub.f32 %v158, %v186
    %v191 = vsub.f32 %v163, %v187
    %v192 = vsub.f32 %v168, %v188
    %v193 = vmul.f32 %v189, %v189
    %v194 = vmul.f32 %v190, %v190
    %v195 = vmul.f32 %v191, %v191
    %v196 = vmul.f32 %v192, %v192
    %v197 = vsel %vm73, %v193, 0.0
    %198 = vadd.xlane.f32.xlu0 %v197
    %v199 = vpop.xlane.xlu0 %198
    %v200 = vsel %vm73, %v194, 0.0
    %201 = vadd.xlane.f32.xlu0 %v200
    %v202 = vpop.xlane.xlu0 %201
    %v203 = vsel %vm73, %v195, 0.0
    %204 = vadd.xlane.f32.xlu0 %v203
    %v205 = vpop.xlane.xlu0 %204
    %v206 = vsel %vm73, %v196, 0.0
    %207 = vadd.xlane.f32.xlu0 %v206
    %v208 = vpop.xlane.xlu0 %207
    %v209 = vmul.f32 %v199, %v184
    %v210 = vmul.f32 %v202, %v184
    %v211 = vmul.f32 %v205, %v184
    %v212 = vmul.f32 %v208, %v184
    %v213 = vadd.f32 %v209, 1e-06
    %v214 = vadd.f32 %v210, 1e-06
    %v215 = vadd.f32 %v211, 1e-06
    %v216 = vadd.f32 %v212, 1e-06
    %v217 = vrsqrt.pop %v213
    %v218 = vrsqrt.pop %v214
    %v219 = vrsqrt.pop %v215
    %v220 = vrsqrt.pop %v216
    %v221 = vmul.f32 %v189, %v217
    %v222 = vmul.f32 %v190, %v218
    %v223 = vmul.f32 %v191, %v219
    %v224 = vmul.f32 %v192, %v220
    %v225 = vlaneseq
    %v226 = vshrl.u32 %v225, 7
    %v227 = vsub.s32 0, %v226
    %v228 = vrot.slane %v171, %v227
    %v229 = vmul.f32 %v221, %v228
    %v230 = vmul.f32 %v222, %v228
    %v231 = vmul.f32 %v223, %v228
    %v232 = vmul.f32 %v224, %v228
    %v233 = vlaneseq
    %v234 = vshrl.u32 %v233, 7
    %v235 = vsub.s32 1, %v234
    %v236 = vrot.slane %v171, %v235
    %v237 = vadd.f32 %v229, %v236
    %v238 = vadd.f32 %v230, %v236
    %v239 = vadd.f32 %v231, %v236
    %v240 = vadd.f32 %v232, %v236
    %v241 = vld [vmem:[%s3] sm:$0xff]
    %v242 = vld [vmem:[%s3 + $0x8] sm:$0xff]
    %v243 = vld [vmem:[%s3 + $0x10] sm:$0xff]
    %v244 = vld [vmem:[%s3 + $0x18] sm:$0xff]
    %v245 = vld [vmem:[%s3 + $0x20] sm:$0xff]
    %v246 = vld [vmem:[%s3 + $0x28] sm:$0xff]
    %v247 = vld [vmem:[%s3 + $0x30] sm:$0xff]
    %v248 = vld [vmem:[%s3 + $0x38] sm:$0xff]
    %v249 = vld [vmem:[%s3 + $0x40] sm:$0xff]
    %v250 = vld [vmem:[%s3 + $0x48] sm:$0xff]
    %v251 = vld [vmem:[%s3 + $0x50] sm:$0xff]
    %v252 = vld [vmem:[%s3 + $0x58] sm:$0xff]
    %v253 = vld [vmem:[%s3 + $0x60] sm:$0xff]
    %v254 = vld [vmem:[%s3 + $0x68] sm:$0xff]
    %v255 = vld [vmem:[%s3 + $0x70] sm:$0xff]
    %v256 = vld [vmem:[%s3 + $0x78] sm:$0xff]
    %v257 = vld [vmem:[%s4] sm:$0x3]
    %v259 = vlaneseq
    %v260 = vshrl.u32 %v259, 7
    %v261 = vsub.s32 0, %v260
    %v262 = vrot.slane %v257, %v261
    %v263 = vlaneseq
    %v264 = vshrl.u32 %v263, 7
    %v265 = vsub.s32 1, %v264
    %v266 = vrot.slane %v257, %v265
    %v270 = vsel %vm73, %v237, 0
    %v273 = vsel %vm73, %v238, 0
    %v276 = vsel %vm73, %v239, 0
    %v279 = vsel %vm73, %v240, 0
    %281 = vmatprep.subr.mxu0 0.0
    %282 = vmatpush1.msra.mxu0 0.0
    %283 = vmatprep.subr.mxu0 0.0
    %284 = vmatpush1.msra.mxu0 0.0
    %285 = vmatprep.subr.mxu0 0.0
    %286 = vmatpush1.msra.mxu0 0.0
    %287 = vmatprep.subr.mxu0 0.0
    %288 = vmatpush1.msra.mxu0 0.0
    %289 = vmatprep.subr.mxu0 0.0
    %290 = vmatpush1.msra.mxu0 0.0
    %291 = vmatprep.subr.mxu0 0.0
    %292 = vmatpush1.msra.mxu0 0.0
    %293 = vmatprep.subr.mxu0 0.0
    %294 = vmatpush1.msra.mxu0 0.0
    %295 = vmatprep.subr.mxu0 0.0
    %296 = vmatpush1.msra.mxu0 0.0
    %297 = vmatprep.subr.mxu0 %v256
    %298 = vmatpush1.msra.mxu0 %v255
    %299 = vmatprep.subr.mxu0 %v254
    %300 = vmatpush1.msra.mxu0 %v253
    %301 = vmatprep.subr.mxu0 %v252
    %302 = vmatpush1.msra.mxu0 %v251
    %303 = vmatprep.subr.mxu0 %v250
    %304 = vmatpush1.msra.mxu0 %v249
    %305 = vmatprep.subr.mxu0 %v248
    %306 = vmatpush1.msra.mxu0 %v247
    %307 = vmatprep.subr.mxu0 %v246
    %308 = vmatpush1.msra.mxu0 %v245
    %309 = vmatprep.subr.mxu0 %v244
    %310 = vmatpush1.msra.mxu0 %v243
    %311 = vmatprep.subr.mxu0 %v242
    %312 = vmatpush1.msra.mxu0 %v241
    %313 = vmatprep.subr.mxu0 0.0
    %314 = vmatpush2.msra.mxu0 0.0
    %315 = vmatprep.subr.mxu0 0.0
    %316 = vmatpush2.msra.mxu0 0.0
    %317 = vmatprep.subr.mxu0 0.0
    %318 = vmatpush2.msra.mxu0 0.0
    %319 = vmatprep.subr.mxu0 0.0
    %320 = vmatpush2.msra.mxu0 0.0
    %321 = vmatprep.subr.mxu0 0.0
    %322 = vmatpush2.msra.mxu0 0.0
    %323 = vmatprep.subr.mxu0 0.0
    %324 = vmatpush2.msra.mxu0 0.0
    %325 = vmatprep.subr.mxu0 0.0
    %326 = vmatpush2.msra.mxu0 0.0
    %327 = vmatprep.subr.mxu0 0.0
    %328 = vmatpush2.msra.mxu0 0.0
    %329 = vmatprep.subr.mxu0 0.0
    %330 = vmatpush2.msra.mxu0 0.0
    %331 = vmatprep.subr.mxu0 0.0
    %332 = vmatpush2.msra.mxu0 0.0
    %333 = vmatprep.subr.mxu0 0.0
    %334 = vmatpush2.msra.mxu0 0.0
    %335 = vmatprep.subr.mxu0 0.0
    %336 = vmatpush2.msra.mxu0 0.0
    %337 = vmatprep.subr.mxu0 0.0
    %338 = vmatpush2.msra.mxu0 0.0
    %339 = vmatprep.subr.mxu0 0.0
    %340 = vmatpush2.msra.mxu0 0.0
    %341 = vmatprep.subr.mxu0 0.0
    %342 = vmatpush2.msra.mxu0 0.0
    %343 = vmatprep.subr.mxu0 0.0
    %344 = vmatpush2.msra.mxu0 0.0
    %345 = vmatprep.mubr.f32.mxu0 0.0
    %346 = vmatmul.mubr.f32.gmra.mxu0 %v270
    %v347 = vpop.f32.mrf.mxu0
    %v348 = vadd.f32 %v262, %v347
    %v349 = vpop.f32.mrf.mxu0
    %v350 = vadd.f32 %v266, %v349
    %351 = vmatprep.mubr.f32.mxu0 0.0
    %352 = vmatmul.mubr.f32.gmra.mxu0 %v273
    %v353 = vpop.f32.mrf.mxu0
    %v354 = vadd.f32 %v262, %v353
    %v355 = vpop.f32.mrf.mxu0
    %v356 = vadd.f32 %v266, %v355
    %357 = vmatprep.mubr.f32.mxu0 0.0
    %358 = vmatmul.mubr.f32.gmra.mxu0 %v276
    %v359 = vpop.f32.mrf.mxu0
    %v360 = vadd.f32 %v262, %v359
    %v361 = vpop.f32.mrf.mxu0
    %v362 = vadd.f32 %v266, %v361
    %363 = vmatprep.mubr.f32.mxu0 0.0
    %364 = vmatmul.mubr.f32.gmra.mxu0 %v279
    %v365 = vpop.f32.mrf.mxu0
    %v366 = vadd.f32 %v262, %v365
    %v367 = vpop.f32.mrf.mxu0
    %v368 = vadd.f32 %v266, %v367
    %369 = vdwg.mxu0
    %372 = vrot.lane.b32.xlu0 %v348, 112
    %v373 = vpop.permute.xlu0 %372
    %374 = vrot.lane.b32.xlu0 %v354, 112
    %v375 = vpop.permute.xlu0 %374
    %376 = vrot.lane.b32.xlu0 %v348, 96
    %v377 = vpop.permute.xlu0 %376
    %378 = vrot.lane.b32.xlu0 %v354, 96
    %v379 = vpop.permute.xlu0 %378
    %380 = vrot.lane.b32.xlu0 %v348, 80
    %v381 = vpop.permute.xlu0 %380
    %382 = vrot.lane.b32.xlu0 %v354, 80
    %v383 = vpop.permute.xlu0 %382
    %386 = vrot.lane.b32.xlu0 %v350, 112
    %v387 = vpop.permute.xlu0 %386
    %388 = vrot.lane.b32.xlu0 %v356, 112
    %v389 = vpop.permute.xlu0 %388
    %392 = vrot.lane.b32.xlu0 %v350, 96
    %v393 = vpop.permute.xlu0 %392
    %394 = vrot.lane.b32.xlu0 %v356, 96
    %v395 = vpop.permute.xlu0 %394
    %398 = vrot.lane.b32.xlu0 %v350, 80
    %v399 = vpop.permute.xlu0 %398
    %400 = vrot.lane.b32.xlu0 %v356, 80
    %v401 = vpop.permute.xlu0 %400
    %404 = vrot.lane.b32.xlu0 %v348, 64
    %v405 = vpop.permute.xlu0 %404
    %406 = vrot.lane.b32.xlu0 %v354, 64
    %v407 = vpop.permute.xlu0 %406
    %vm408 = vcmask 130048
    %v409 = vsel %vm408, %v348, 0
    %v411 = vsel %vm408, %v354, 0
    %v413 = vsel %vm408, %v405, 0
    %v415 = vsel %vm408, %v407, 0
    %417 = vmatprep.subr.mxu0 0.0
    %418 = vmatpush1.xpose.msra.mxu0 0.0
    %419 = vmatprep.subr.mxu0 0.0
    %420 = vmatpush1.xpose.msra.mxu0 0.0
    %421 = vmatprep.subr.mxu0 0.0
    %422 = vmatpush1.xpose.msra.mxu0 0.0
    %423 = vmatprep.subr.mxu0 0.0
    %424 = vmatpush1.xpose.msra.mxu0 0.0
    %425 = vmatprep.subr.mxu0 0.0
    %426 = vmatpush1.xpose.msra.mxu0 0.0
    %427 = vmatprep.subr.mxu0 0.0
    %428 = vmatpush1.xpose.msra.mxu0 0.0
    %429 = vmatprep.subr.mxu0 0.0
    %430 = vmatpush1.xpose.msra.mxu0 0.0
    %431 = vmatprep.subr.mxu0 0.0
    %432 = vmatpush1.xpose.msra.mxu0 0.0
    %433 = vmatprep.subr.mxu0 0.0
    %434 = vmatpush1.xpose.msra.mxu0 0.0
    %435 = vmatprep.subr.mxu0 0.0
    %436 = vmatpush1.xpose.msra.mxu0 0.0
    %437 = vmatprep.subr.mxu0 0.0
    %438 = vmatpush1.xpose.msra.mxu0 0.0
    %439 = vmatprep.subr.mxu0 0.0
    %440 = vmatpush1.xpose.msra.mxu0 0.0
    %441 = vmatprep.subr.mxu0 0.0
    %442 = vmatpush1.xpose.msra.mxu0 0.0
    %443 = vmatprep.subr.mxu0 0.0
    %444 = vmatpush1.xpose.msra.mxu0 0.0
    %445 = vmatprep.subr.mxu0 0.0
    %446 = vmatpush1.xpose.msra.mxu0 %v415
    %447 = vmatprep.subr.mxu0 0.0
    %448 = vmatpush1.xpose.msra.mxu0 %v413
    %449 = vmatprep.subr.mxu0 0.0
    %450 = vmatpush2.xpose.msra.mxu0 0.0
    %451 = vmatprep.subr.mxu0 0.0
    %452 = vmatpush2.xpose.msra.mxu0 0.0
    %453 = vmatprep.subr.mxu0 0.0
    %454 = vmatpush2.xpose.msra.mxu0 0.0
    %455 = vmatprep.subr.mxu0 0.0
    %456 = vmatpush2.xpose.msra.mxu0 0.0
    %457 = vmatprep.subr.mxu0 0.0
    %458 = vmatpush2.xpose.msra.mxu0 0.0
    %459 = vmatprep.subr.mxu0 0.0
    %460 = vmatpush2.xpose.msra.mxu0 0.0
    %461 = vmatprep.subr.mxu0 0.0
    %462 = vmatpush2.xpose.msra.mxu0 0.0
    %463 = vmatprep.subr.mxu0 0.0
    %464 = vmatpush2.xpose.msra.mxu0 0.0
    %465 = vmatprep.subr.mxu0 0.0
    %466 = vmatpush2.xpose.msra.mxu0 0.0
    %467 = vmatprep.subr.mxu0 0.0
    %468 = vmatpush2.xpose.msra.mxu0 0.0
    %469 = vmatprep.subr.mxu0 0.0
    %470 = vmatpush2.xpose.msra.mxu0 0.0
    %471 = vmatprep.subr.mxu0 0.0
    %472 = vmatpush2.xpose.msra.mxu0 0.0
    %473 = vmatprep.subr.mxu0 0.0
    %474 = vmatpush2.xpose.msra.mxu0 0.0
    %475 = vmatprep.subr.mxu0 0.0
    %476 = vmatpush2.xpose.msra.mxu0 0.0
    %477 = vmatprep.subr.mxu0 0.0
    %478 = vmatpush2.xpose.msra.mxu0 0.0
    %479 = vmatprep.subr.mxu0 0.0
    %480 = vmatpush2.xpose.msra.mxu0 0.0
    %481 = vmatprep.mubr.f32.mxu0 0.0
    %482 = vmatmul.mubr.f32.gmra.mxu0 %v409
    %v483 = vpop.f32.mrf.mxu0
    %v484 = vadd.f32 0.0, %v483
    %v485 = vpop.f32.mrf.mxu0
    %486 = vmatprep.mubr.f32.mxu0 0.0
    %487 = vmatmul.mubr.f32.gmra.mxu0 %v411
    %v488 = vpop.f32.mrf.mxu0
    %v489 = vadd.f32 0.0, %v488
    %v490 = vpop.f32.mrf.mxu0
    %491 = vdwg.mxu0
    %492 = vrot.lane.b32.xlu0 %v373, 64
    %v493 = vpop.permute.xlu0 %492
    %494 = vrot.lane.b32.xlu0 %v375, 64
    %v495 = vpop.permute.xlu0 %494
    %v496 = vsel %vm408, %v373, 0
    %v498 = vsel %vm408, %v375, 0
    %v500 = vsel %vm408, %v493, 0
    %v502 = vsel %vm408, %v495, 0
    %504 = vmatprep.subr.mxu0 0.0
    %505 = vmatpush1.xpose.msra.mxu0 0.0
    %506 = vmatprep.subr.mxu0 0.0
    %507 = vmatpush1.xpose.msra.mxu0 0.0
    %508 = vmatprep.subr.mxu0 0.0
    %509 = vmatpush1.xpose.msra.mxu0 0.0
    %510 = vmatprep.subr.mxu0 0.0
    %511 = vmatpush1.xpose.msra.mxu0 0.0
    %512 = vmatprep.subr.mxu0 0.0
    %513 = vmatpush1.xpose.msra.mxu0 0.0
    %514 = vmatprep.subr.mxu0 0.0
    %515 = vmatpush1.xpose.msra.mxu0 0.0
    %516 = vmatprep.subr.mxu0 0.0
    %517 = vmatpush1.xpose.msra.mxu0 0.0
    %518 = vmatprep.subr.mxu0 0.0
    %519 = vmatpush1.xpose.msra.mxu0 0.0
    %520 = vmatprep.subr.mxu0 0.0
    %521 = vmatpush1.xpose.msra.mxu0 0.0
    %522 = vmatprep.subr.mxu0 0.0
    %523 = vmatpush1.xpose.msra.mxu0 0.0
    %524 = vmatprep.subr.mxu0 0.0
    %525 = vmatpush1.xpose.msra.mxu0 0.0
    %526 = vmatprep.subr.mxu0 0.0
    %527 = vmatpush1.xpose.msra.mxu0 0.0
    %528 = vmatprep.subr.mxu0 0.0
    %529 = vmatpush1.xpose.msra.mxu0 0.0
    %530 = vmatprep.subr.mxu0 0.0
    %531 = vmatpush1.xpose.msra.mxu0 0.0
    %532 = vmatprep.subr.mxu0 0.0
    %533 = vmatpush1.xpose.msra.mxu0 %v502
    %534 = vmatprep.subr.mxu0 0.0
    %535 = vmatpush1.xpose.msra.mxu0 %v500
    %536 = vmatprep.subr.mxu0 0.0
    %537 = vmatpush2.xpose.msra.mxu0 0.0
    %538 = vmatprep.subr.mxu0 0.0
    %539 = vmatpush2.xpose.msra.mxu0 0.0
    %540 = vmatprep.subr.mxu0 0.0
    %541 = vmatpush2.xpose.msra.mxu0 0.0
    %542 = vmatprep.subr.mxu0 0.0
    %543 = vmatpush2.xpose.msra.mxu0 0.0
    %544 = vmatprep.subr.mxu0 0.0
    %545 = vmatpush2.xpose.msra.mxu0 0.0
    %546 = vmatprep.subr.mxu0 0.0
    %547 = vmatpush2.xpose.msra.mxu0 0.0
    %548 = vmatprep.subr.mxu0 0.0
    %549 = vmatpush2.xpose.msra.mxu0 0.0
    %550 = vmatprep.subr.mxu0 0.0
    %551 = vmatpush2.xpose.msra.mxu0 0.0
    %552 = vmatprep.subr.mxu0 0.0
    %553 = vmatpush2.xpose.msra.mxu0 0.0
    %554 = vmatprep.subr.mxu0 0.0
    %555 = vmatpush2.xpose.msra.mxu0 0.0
    %556 = vmatprep.subr.mxu0 0.0
    %557 = vmatpush2.xpose.msra.mxu0 0.0
    %558 = vmatprep.subr.mxu0 0.0
    %559 = vmatpush2.xpose.msra.mxu0 0.0
    %560 = vmatprep.subr.mxu0 0.0
    %561 = vmatpush2.xpose.msra.mxu0 0.0
    %562 = vmatprep.subr.mxu0 0.0
    %563 = vmatpush2.xpose.msra.mxu0 0.0
    %564 = vmatprep.subr.mxu0 0.0
    %565 = vmatpush2.xpose.msra.mxu0 0.0
    %566 = vmatprep.subr.mxu0 0.0
    %567 = vmatpush2.xpose.msra.mxu0 0.0
    %568 = vmatprep.mubr.f32.mxu0 0.0
    %569 = vmatmul.mubr.f32.gmra.mxu0 %v496
    %v570 = vpop.f32.mrf.mxu0
    %v571 = vadd.f32 0.0, %v570
    %v572 = vpop.f32.mrf.mxu0
    %573 = vmatprep.mubr.f32.mxu0 0.0
    %574 = vmatmul.mubr.f32.gmra.mxu0 %v498
    %v575 = vpop.f32.mrf.mxu0
    %v576 = vadd.f32 0.0, %v575
    %v577 = vpop.f32.mrf.mxu0
    %578 = vdwg.mxu0
    %579 = vrot.lane.b32.xlu0 %v377, 64
    %v580 = vpop.permute.xlu0 %579
    %581 = vrot.lane.b32.xlu0 %v379, 64
    %v582 = vpop.permute.xlu0 %581
    %v583 = vsel %vm408, %v377, 0
    %v585 = vsel %vm408, %v379, 0
    %v587 = vsel %vm408, %v580, 0
    %v589 = vsel %vm408, %v582, 0
    %591 = vmatprep.subr.mxu0 0.0
    %592 = vmatpush1.xpose.msra.mxu0 0.0
    %593 = vmatprep.subr.mxu0 0.0
    %594 = vmatpush1.xpose.msra.mxu0 0.0
    %595 = vmatprep.subr.mxu0 0.0
    %596 = vmatpush1.xpose.msra.mxu0 0.0
    %597 = vmatprep.subr.mxu0 0.0
    %598 = vmatpush1.xpose.msra.mxu0 0.0
    %599 = vmatprep.subr.mxu0 0.0
    %600 = vmatpush1.xpose.msra.mxu0 0.0
    %601 = vmatprep.subr.mxu0 0.0
    %602 = vmatpush1.xpose.msra.mxu0 0.0
    %603 = vmatprep.subr.mxu0 0.0
    %604 = vmatpush1.xpose.msra.mxu0 0.0
    %605 = vmatprep.subr.mxu0 0.0
    %606 = vmatpush1.xpose.msra.mxu0 0.0
    %607 = vmatprep.subr.mxu0 0.0
    %608 = vmatpush1.xpose.msra.mxu0 0.0
    %609 = vmatprep.subr.mxu0 0.0
    %610 = vmatpush1.xpose.msra.mxu0 0.0
    %611 = vmatprep.subr.mxu0 0.0
    %612 = vmatpush1.xpose.msra.mxu0 0.0
    %613 = vmatprep.subr.mxu0 0.0
    %614 = vmatpush1.xpose.msra.mxu0 0.0
    %615 = vmatprep.subr.mxu0 0.0
    %616 = vmatpush1.xpose.msra.mxu0 0.0
    %617 = vmatprep.subr.mxu0 0.0
    %618 = vmatpush1.xpose.msra.mxu0 0.0
    %619 = vmatprep.subr.mxu0 0.0
    %620 = vmatpush1.xpose.msra.mxu0 %v589
    %621 = vmatprep.subr.mxu0 0.0
    %622 = vmatpush1.xpose.msra.mxu0 %v587
    %623 = vmatprep.subr.mxu0 0.0
    %624 = vmatpush2.xpose.msra.mxu0 0.0
    %625 = vmatprep.subr.mxu0 0.0
    %626 = vmatpush2.xpose.msra.mxu0 0.0
    %627 = vmatprep.subr.mxu0 0.0
    %628 = vmatpush2.xpose.msra.mxu0 0.0
    %629 = vmatprep.subr.mxu0 0.0
    %630 = vmatpush2.xpose.msra.mxu0 0.0
    %631 = vmatprep.subr.mxu0 0.0
    %632 = vmatpush2.xpose.msra.mxu0 0.0
    %633 = vmatprep.subr.mxu0 0.0
    %634 = vmatpush2.xpose.msra.mxu0 0.0
    %635 = vmatprep.subr.mxu0 0.0
    %636 = vmatpush2.xpose.msra.mxu0 0.0
    %637 = vmatprep.subr.mxu0 0.0
    %638 = vmatpush2.xpose.msra.mxu0 0.0
    %639 = vmatprep.subr.mxu0 0.0
    %640 = vmatpush2.xpose.msra.mxu0 0.0
    %641 = vmatprep.subr.mxu0 0.0
    %642 = vmatpush2.xpose.msra.mxu0 0.0
    %643 = vmatprep.subr.mxu0 0.0
    %644 = vmatpush2.xpose.msra.mxu0 0.0
    %645 = vmatprep.subr.mxu0 0.0
    %646 = vmatpush2.xpose.msra.mxu0 0.0
    %647 = vmatprep.subr.mxu0 0.0
    %648 = vmatpush2.xpose.msra.mxu0 0.0
    %649 = vmatprep.subr.mxu0 0.0
    %650 = vmatpush2.xpose.msra.mxu0 0.0
    %651 = vmatprep.subr.mxu0 0.0
    %652 = vmatpush2.xpose.msra.mxu0 0.0
    %653 = vmatprep.subr.mxu0 0.0
    %654 = vmatpush2.xpose.msra.mxu0 0.0
    %655 = vmatprep.mubr.f32.mxu0 0.0
    %656 = vmatmul.mubr.f32.gmra.mxu0 %v583
    %v657 = vpop.f32.mrf.mxu0
    %v658 = vadd.f32 0.0, %v657
    %v659 = vpop.f32.mrf.mxu0
    %660 = vmatprep.mubr.f32.mxu0 0.0
    %661 = vmatmul.mubr.f32.gmra.mxu0 %v585
    %v662 = vpop.f32.mrf.mxu0
    %v663 = vadd.f32 0.0, %v662
    %v664 = vpop.f32.mrf.mxu0
    %665 = vdwg.mxu0
    %666 = vrot.lane.b32.xlu0 %v381, 64
    %v667 = vpop.permute.xlu0 %666
    %668 = vrot.lane.b32.xlu0 %v383, 64
    %v669 = vpop.permute.xlu0 %668
    %v670 = vsel %vm408, %v381, 0
    %v672 = vsel %vm408, %v383, 0
    %v674 = vsel %vm408, %v667, 0
    %v676 = vsel %vm408, %v669, 0
    %678 = vmatprep.subr.mxu0 0.0
    %679 = vmatpush1.xpose.msra.mxu0 0.0
    %680 = vmatprep.subr.mxu0 0.0
    %681 = vmatpush1.xpose.msra.mxu0 0.0
    %682 = vmatprep.subr.mxu0 0.0
    %683 = vmatpush1.xpose.msra.mxu0 0.0
    %684 = vmatprep.subr.mxu0 0.0
    %685 = vmatpush1.xpose.msra.mxu0 0.0
    %686 = vmatprep.subr.mxu0 0.0
    %687 = vmatpush1.xpose.msra.mxu0 0.0
    %688 = vmatprep.subr.mxu0 0.0
    %689 = vmatpush1.xpose.msra.mxu0 0.0
    %690 = vmatprep.subr.mxu0 0.0
    %691 = vmatpush1.xpose.msra.mxu0 0.0
    %692 = vmatprep.subr.mxu0 0.0
    %693 = vmatpush1.xpose.msra.mxu0 0.0
    %694 = vmatprep.subr.mxu0 0.0
    %695 = vmatpush1.xpose.msra.mxu0 0.0
    %696 = vmatprep.subr.mxu0 0.0
    %697 = vmatpush1.xpose.msra.mxu0 0.0
    %698 = vmatprep.subr.mxu0 0.0
    %699 = vmatpush1.xpose.msra.mxu0 0.0
    %700 = vmatprep.subr.mxu0 0.0
    %701 = vmatpush1.xpose.msra.mxu0 0.0
    %702 = vmatprep.subr.mxu0 0.0
    %703 = vmatpush1.xpose.msra.mxu0 0.0
    %704 = vmatprep.subr.mxu0 0.0
    %705 = vmatpush1.xpose.msra.mxu0 0.0
    %706 = vmatprep.subr.mxu0 0.0
    %707 = vmatpush1.xpose.msra.mxu0 %v676
    %708 = vmatprep.subr.mxu0 0.0
    %709 = vmatpush1.xpose.msra.mxu0 %v674
    %710 = vmatprep.subr.mxu0 0.0
    %711 = vmatpush2.xpose.msra.mxu0 0.0
    %712 = vmatprep.subr.mxu0 0.0
    %713 = vmatpush2.xpose.msra.mxu0 0.0
    %714 = vmatprep.subr.mxu0 0.0
    %715 = vmatpush2.xpose.msra.mxu0 0.0
    %716 = vmatprep.subr.mxu0 0.0
    %717 = vmatpush2.xpose.msra.mxu0 0.0
    %718 = vmatprep.subr.mxu0 0.0
    %719 = vmatpush2.xpose.msra.mxu0 0.0
    %720 = vmatprep.subr.mxu0 0.0
    %721 = vmatpush2.xpose.msra.mxu0 0.0
    %722 = vmatprep.subr.mxu0 0.0
    %723 = vmatpush2.xpose.msra.mxu0 0.0
    %724 = vmatprep.subr.mxu0 0.0
    %725 = vmatpush2.xpose.msra.mxu0 0.0
    %726 = vmatprep.subr.mxu0 0.0
    %727 = vmatpush2.xpose.msra.mxu0 0.0
    %728 = vmatprep.subr.mxu0 0.0
    %729 = vmatpush2.xpose.msra.mxu0 0.0
    %730 = vmatprep.subr.mxu0 0.0
    %731 = vmatpush2.xpose.msra.mxu0 0.0
    %732 = vmatprep.subr.mxu0 0.0
    %733 = vmatpush2.xpose.msra.mxu0 0.0
    %734 = vmatprep.subr.mxu0 0.0
    %735 = vmatpush2.xpose.msra.mxu0 0.0
    %736 = vmatprep.subr.mxu0 0.0
    %737 = vmatpush2.xpose.msra.mxu0 0.0
    %738 = vmatprep.subr.mxu0 0.0
    %739 = vmatpush2.xpose.msra.mxu0 0.0
    %740 = vmatprep.subr.mxu0 0.0
    %741 = vmatpush2.xpose.msra.mxu0 0.0
    %742 = vmatprep.mubr.f32.mxu0 0.0
    %743 = vmatmul.mubr.f32.gmra.mxu0 %v670
    %v744 = vpop.f32.mrf.mxu0
    %v745 = vadd.f32 0.0, %v744
    %v746 = vpop.f32.mrf.mxu0
    %747 = vmatprep.mubr.f32.mxu0 0.0
    %748 = vmatmul.mubr.f32.gmra.mxu0 %v672
    %v749 = vpop.f32.mrf.mxu0
    %v750 = vadd.f32 0.0, %v749
    %v751 = vpop.f32.mrf.mxu0
    %752 = vdwg.mxu0
    %v753 = vmul.f32 %v484, 0.25
    %v754 = vmul.f32 %v489, 0.25
    %v755 = vmul.f32 %v571, 0.25
    %v756 = vmul.f32 %v576, 0.25
    %v757 = vmul.f32 %v658, 0.25
    %v758 = vmul.f32 %v663, 0.25
    %v759 = vmul.f32 %v745, 0.25
    %v760 = vmul.f32 %v750, 0.25
    %v761 = vsel %vm408, %v753, -inf
    %762 = vmax.xlane.f32.xlu0 %v761
    %v763 = vpop.xlane.xlu0 %762
    %v764 = vsel %vm408, %v754, -inf
    %765 = vmax.xlane.f32.xlu0 %v764
    %v766 = vpop.xlane.xlu0 %765
    %v767 = vsel %vm408, %v755, -inf
    %768 = vmax.xlane.f32.xlu0 %v767
    %v769 = vpop.xlane.xlu0 %768
    %v770 = vsel %vm408, %v756, -inf
    %771 = vmax.xlane.f32.xlu0 %v770
    %v772 = vpop.xlane.xlu0 %771
    %v773 = vsel %vm408, %v757, -inf
    %774 = vmax.xlane.f32.xlu0 %v773
    %v775 = vpop.xlane.xlu0 %774
    %v776 = vsel %vm408, %v758, -inf
    %777 = vmax.xlane.f32.xlu0 %v776
    %v778 = vpop.xlane.xlu0 %777
    %v779 = vsel %vm408, %v759, -inf
    %780 = vmax.xlane.f32.xlu0 %v779
    %v781 = vpop.xlane.xlu0 %780
    %v782 = vsel %vm408, %v760, -inf
    %783 = vmax.xlane.f32.xlu0 %v782
    %v784 = vpop.xlane.xlu0 %783
    %v785 = vsub.f32 %v753, %v763
    %v786 = vsub.f32 %v754, %v766
    %v787 = vsub.f32 %v755, %v769
    %v788 = vsub.f32 %v756, %v772
    %v789 = vsub.f32 %v757, %v775
    %v790 = vsub.f32 %v758, %v778
    %v791 = vsub.f32 %v759, %v781
    %v792 = vsub.f32 %v760, %v784
    %v793 = vmul.f32 %v785, 1.442695
    %v794 = vpow.pop %v793
    %v795 = vmul.f32 %v786, 1.442695
    %v796 = vpow.pop %v795
    %v797 = vmul.f32 %v787, 1.442695
    %v798 = vpow.pop %v797
    %v799 = vmul.f32 %v788, 1.442695
    %v800 = vpow.pop %v799
    %v801 = vmul.f32 %v789, 1.442695
    %v802 = vpow.pop %v801
    %v803 = vmul.f32 %v790, 1.442695
    %v804 = vpow.pop %v803
    %v805 = vmul.f32 %v791, 1.442695
    %v806 = vpow.pop %v805
    %v807 = vmul.f32 %v792, 1.442695
    %v808 = vpow.pop %v807
    %v809 = vsel %vm408, %v794, 0.0
    %810 = vadd.xlane.f32.xlu0 %v809
    %v811 = vpop.xlane.xlu0 %810
    %v812 = vsel %vm408, %v796, 0.0
    %813 = vadd.xlane.f32.xlu0 %v812
    %v814 = vpop.xlane.xlu0 %813
    %v815 = vsel %vm408, %v798, 0.0
    %816 = vadd.xlane.f32.xlu0 %v815
    %v817 = vpop.xlane.xlu0 %816
    %v818 = vsel %vm408, %v800, 0.0
    %819 = vadd.xlane.f32.xlu0 %v818
    %v820 = vpop.xlane.xlu0 %819
    %v821 = vsel %vm408, %v802, 0.0
    %822 = vadd.xlane.f32.xlu0 %v821
    %v823 = vpop.xlane.xlu0 %822
    %v824 = vsel %vm408, %v804, 0.0
    %825 = vadd.xlane.f32.xlu0 %v824
    %v826 = vpop.xlane.xlu0 %825
    %v827 = vsel %vm408, %v806, 0.0
    %828 = vadd.xlane.f32.xlu0 %v827
    %v829 = vpop.xlane.xlu0 %828
    %v830 = vsel %vm408, %v808, 0.0
    %831 = vadd.xlane.f32.xlu0 %v830
    %v832 = vpop.xlane.xlu0 %831
    %v833 = vrcp.pop %v811
    %v834 = vrcp.pop %v814
    %v835 = vrcp.pop %v817
    %v836 = vrcp.pop %v820
    %v837 = vrcp.pop %v823
    %v838 = vrcp.pop %v826
    %v839 = vrcp.pop %v829
    %v840 = vrcp.pop %v832
    %v841 = vmul.f32 %v794, %v833
    %v842 = vmul.f32 %v796, %v834
    %v843 = vmul.f32 %v798, %v835
    %v844 = vmul.f32 %v800, %v836
    %v845 = vmul.f32 %v802, %v837
    %v846 = vmul.f32 %v804, %v838
    %v847 = vmul.f32 %v806, %v839
    %v848 = vmul.f32 %v808, %v840
    %v850 = vsel %vm408, %v841, 0
    %v853 = vsel %vm408, %v842, 0
    %855 = vmatprep.subr.mxu0 0.0
    %856 = vmatpush1.msra.mxu0 0.0
    %857 = vmatprep.subr.mxu0 0.0
    %858 = vmatpush1.msra.mxu0 0.0
    %859 = vmatprep.subr.mxu0 0.0
    %860 = vmatpush1.msra.mxu0 0.0
    %861 = vmatprep.subr.mxu0 0.0
    %862 = vmatpush1.msra.mxu0 0.0
    %863 = vmatprep.subr.mxu0 0.0
    %864 = vmatpush1.msra.mxu0 0.0
    %865 = vmatprep.subr.mxu0 0.0
    %866 = vmatpush1.msra.mxu0 0.0
    %867 = vmatprep.subr.mxu0 0.0
    %868 = vmatpush1.msra.mxu0 0.0
    %869 = vmatprep.subr.mxu0 0.0
    %870 = vmatpush1.msra.mxu0 0.0
    %871 = vmatprep.subr.mxu0 0.0
    %872 = vmatpush1.msra.mxu0 0.0
    %873 = vmatprep.subr.mxu0 0.0
    %874 = vmatpush1.msra.mxu0 0.0
    %875 = vmatprep.subr.mxu0 0.0
    %876 = vmatpush1.msra.mxu0 0.0
    %877 = vmatprep.subr.mxu0 0.0
    %878 = vmatpush1.msra.mxu0 0.0
    %879 = vmatprep.subr.mxu0 0.0
    %880 = vmatpush1.msra.mxu0 0.0
    %881 = vmatprep.subr.mxu0 0.0
    %882 = vmatpush1.msra.mxu0 0.0
    %883 = vmatprep.subr.mxu0 0.0
    %884 = vmatpush1.msra.mxu0 %v356
    %885 = vmatprep.subr.mxu0 0.0
    %886 = vmatpush1.msra.mxu0 %v350
    %887 = vmatprep.subr.mxu0 0.0
    %888 = vmatpush2.msra.mxu0 0.0
    %889 = vmatprep.subr.mxu0 0.0
    %890 = vmatpush2.msra.mxu0 0.0
    %891 = vmatprep.subr.mxu0 0.0
    %892 = vmatpush2.msra.mxu0 0.0
    %893 = vmatprep.subr.mxu0 0.0
    %894 = vmatpush2.msra.mxu0 0.0
    %895 = vmatprep.subr.mxu0 0.0
    %896 = vmatpush2.msra.mxu0 0.0
    %897 = vmatprep.subr.mxu0 0.0
    %898 = vmatpush2.msra.mxu0 0.0
    %899 = vmatprep.subr.mxu0 0.0
    %900 = vmatpush2.msra.mxu0 0.0
    %901 = vmatprep.subr.mxu0 0.0
    %902 = vmatpush2.msra.mxu0 0.0
    %903 = vmatprep.subr.mxu0 0.0
    %904 = vmatpush2.msra.mxu0 0.0
    %905 = vmatprep.subr.mxu0 0.0
    %906 = vmatpush2.msra.mxu0 0.0
    %907 = vmatprep.subr.mxu0 0.0
    %908 = vmatpush2.msra.mxu0 0.0
    %909 = vmatprep.subr.mxu0 0.0
    %910 = vmatpush2.msra.mxu0 0.0
    %911 = vmatprep.subr.mxu0 0.0
    %912 = vmatpush2.msra.mxu0 0.0
    %913 = vmatprep.subr.mxu0 0.0
    %914 = vmatpush2.msra.mxu0 0.0
    %915 = vmatprep.subr.mxu0 0.0
    %916 = vmatpush2.msra.mxu0 0.0
    %917 = vmatprep.subr.mxu0 0.0
    %918 = vmatpush2.msra.mxu0 0.0
    %919 = vmatprep.mubr.f32.mxu0 0.0
    %920 = vmatmul.mubr.f32.gmra.mxu0 %v850
    %v921 = vpop.f32.mrf.mxu0
    %v922 = vadd.f32 0.0, %v921
    %v923 = vpop.f32.mrf.mxu0
    %924 = vmatprep.mubr.f32.mxu0 0.0
    %925 = vmatmul.mubr.f32.gmra.mxu0 %v853
    %v926 = vpop.f32.mrf.mxu0
    %v927 = vadd.f32 0.0, %v926
    %v928 = vpop.f32.mrf.mxu0
    %929 = vdwg.mxu0
    %v931 = vsel %vm408, %v843, 0
    %v934 = vsel %vm408, %v844, 0
    %936 = vmatprep.subr.mxu0 0.0
    %937 = vmatpush1.msra.mxu0 0.0
    %938 = vmatprep.subr.mxu0 0.0
    %939 = vmatpush1.msra.mxu0 0.0
    %940 = vmatprep.subr.mxu0 0.0
    %941 = vmatpush1.msra.mxu0 0.0
    %942 = vmatprep.subr.mxu0 0.0
    %943 = vmatpush1.msra.mxu0 0.0
    %944 = vmatprep.subr.mxu0 0.0
    %945 = vmatpush1.msra.mxu0 0.0
    %946 = vmatprep.subr.mxu0 0.0
    %947 = vmatpush1.msra.mxu0 0.0
    %948 = vmatprep.subr.mxu0 0.0
    %949 = vmatpush1.msra.mxu0 0.0
    %950 = vmatprep.subr.mxu0 0.0
    %951 = vmatpush1.msra.mxu0 0.0
    %952 = vmatprep.subr.mxu0 0.0
    %953 = vmatpush1.msra.mxu0 0.0
    %954 = vmatprep.subr.mxu0 0.0
    %955 = vmatpush1.msra.mxu0 0.0
    %956 = vmatprep.subr.mxu0 0.0
    %957 = vmatpush1.msra.mxu0 0.0
    %958 = vmatprep.subr.mxu0 0.0
    %959 = vmatpush1.msra.mxu0 0.0
    %960 = vmatprep.subr.mxu0 0.0
    %961 = vmatpush1.msra.mxu0 0.0
    %962 = vmatprep.subr.mxu0 0.0
    %963 = vmatpush1.msra.mxu0 0.0
    %964 = vmatprep.subr.mxu0 0.0
    %965 = vmatpush1.msra.mxu0 %v389
    %966 = vmatprep.subr.mxu0 0.0
    %967 = vmatpush1.msra.mxu0 %v387
    %968 = vmatprep.subr.mxu0 0.0
    %969 = vmatpush2.msra.mxu0 0.0
    %970 = vmatprep.subr.mxu0 0.0
    %971 = vmatpush2.msra.mxu0 0.0
    %972 = vmatprep.subr.mxu0 0.0
    %973 = vmatpush2.msra.mxu0 0.0
    %974 = vmatprep.subr.mxu0 0.0
    %975 = vmatpush2.msra.mxu0 0.0
    %976 = vmatprep.subr.mxu0 0.0
    %977 = vmatpush2.msra.mxu0 0.0
    %978 = vmatprep.subr.mxu0 0.0
    %979 = vmatpush2.msra.mxu0 0.0
    %980 = vmatprep.subr.mxu0 0.0
    %981 = vmatpush2.msra.mxu0 0.0
    %982 = vmatprep.subr.mxu0 0.0
    %983 = vmatpush2.msra.mxu0 0.0
    %984 = vmatprep.subr.mxu0 0.0
    %985 = vmatpush2.msra.mxu0 0.0
    %986 = vmatprep.subr.mxu0 0.0
    %987 = vmatpush2.msra.mxu0 0.0
    %988 = vmatprep.subr.mxu0 0.0
    %989 = vmatpush2.msra.mxu0 0.0
    %990 = vmatprep.subr.mxu0 0.0
    %991 = vmatpush2.msra.mxu0 0.0
    %992 = vmatprep.subr.mxu0 0.0
    %993 = vmatpush2.msra.mxu0 0.0
    %994 = vmatprep.subr.mxu0 0.0
    %995 = vmatpush2.msra.mxu0 0.0
    %996 = vmatprep.subr.mxu0 0.0
    %997 = vmatpush2.msra.mxu0 0.0
    %998 = vmatprep.subr.mxu0 0.0
    %999 = vmatpush2.msra.mxu0 0.0
    %1000 = vmatprep.mubr.f32.mxu0 0.0
    %1001 = vmatmul.mubr.f32.gmra.mxu0 %v931
    %v1002 = vpop.f32.mrf.mxu0
    %v1003 = vadd.f32 0.0, %v1002
    %v1004 = vpop.f32.mrf.mxu0
    %1005 = vmatprep.mubr.f32.mxu0 0.0
    %1006 = vmatmul.mubr.f32.gmra.mxu0 %v934
    %v1007 = vpop.f32.mrf.mxu0
    %v1008 = vadd.f32 0.0, %v1007
    %v1009 = vpop.f32.mrf.mxu0
    %1010 = vdwg.mxu0
    %v1012 = vsel %vm408, %v845, 0
    %v1015 = vsel %vm408, %v846, 0
    %1017 = vmatprep.subr.mxu0 0.0
    %1018 = vmatpush1.msra.mxu0 0.0
    %1019 = vmatprep.subr.mxu0 0.0
    %1020 = vmatpush1.msra.mxu0 0.0
    %1021 = vmatprep.subr.mxu0 0.0
    %1022 = vmatpush1.msra.mxu0 0.0
    %1023 = vmatprep.subr.mxu0 0.0
    %1024 = vmatpush1.msra.mxu0 0.0
    %1025 = vmatprep.subr.mxu0 0.0
    %1026 = vmatpush1.msra.mxu0 0.0
    %1027 = vmatprep.subr.mxu0 0.0
    %1028 = vmatpush1.msra.mxu0 0.0
    %1029 = vmatprep.subr.mxu0 0.0
    %1030 = vmatpush1.msra.mxu0 0.0
    %1031 = vmatprep.subr.mxu0 0.0
    %1032 = vmatpush1.msra.mxu0 0.0
    %1033 = vmatprep.subr.mxu0 0.0
    %1034 = vmatpush1.msra.mxu0 0.0
    %1035 = vmatprep.subr.mxu0 0.0
    %1036 = vmatpush1.msra.mxu0 0.0
    %1037 = vmatprep.subr.mxu0 0.0
    %1038 = vmatpush1.msra.mxu0 0.0
    %1039 = vmatprep.subr.mxu0 0.0
    %1040 = vmatpush1.msra.mxu0 0.0
    %1041 = vmatprep.subr.mxu0 0.0
    %1042 = vmatpush1.msra.mxu0 0.0
    %1043 = vmatprep.subr.mxu0 0.0
    %1044 = vmatpush1.msra.mxu0 0.0
    %1045 = vmatprep.subr.mxu0 0.0
    %1046 = vmatpush1.msra.mxu0 %v395
    %1047 = vmatprep.subr.mxu0 0.0
    %1048 = vmatpush1.msra.mxu0 %v393
    %1049 = vmatprep.subr.mxu0 0.0
    %1050 = vmatpush2.msra.mxu0 0.0
    %1051 = vmatprep.subr.mxu0 0.0
    %1052 = vmatpush2.msra.mxu0 0.0
    %1053 = vmatprep.subr.mxu0 0.0
    %1054 = vmatpush2.msra.mxu0 0.0
    %1055 = vmatprep.subr.mxu0 0.0
    %1056 = vmatpush2.msra.mxu0 0.0
    %1057 = vmatprep.subr.mxu0 0.0
    %1058 = vmatpush2.msra.mxu0 0.0
    %1059 = vmatprep.subr.mxu0 0.0
    %1060 = vmatpush2.msra.mxu0 0.0
    %1061 = vmatprep.subr.mxu0 0.0
    %1062 = vmatpush2.msra.mxu0 0.0
    %1063 = vmatprep.subr.mxu0 0.0
    %1064 = vmatpush2.msra.mxu0 0.0
    %1065 = vmatprep.subr.mxu0 0.0
    %1066 = vmatpush2.msra.mxu0 0.0
    %1067 = vmatprep.subr.mxu0 0.0
    %1068 = vmatpush2.msra.mxu0 0.0
    %1069 = vmatprep.subr.mxu0 0.0
    %1070 = vmatpush2.msra.mxu0 0.0
    %1071 = vmatprep.subr.mxu0 0.0
    %1072 = vmatpush2.msra.mxu0 0.0
    %1073 = vmatprep.subr.mxu0 0.0
    %1074 = vmatpush2.msra.mxu0 0.0
    %1075 = vmatprep.subr.mxu0 0.0
    %1076 = vmatpush2.msra.mxu0 0.0
    %1077 = vmatprep.subr.mxu0 0.0
    %1078 = vmatpush2.msra.mxu0 0.0
    %1079 = vmatprep.subr.mxu0 0.0
    %1080 = vmatpush2.msra.mxu0 0.0
    %1081 = vmatprep.mubr.f32.mxu0 0.0
    %1082 = vmatmul.mubr.f32.gmra.mxu0 %v1012
    %v1083 = vpop.f32.mrf.mxu0
    %v1084 = vadd.f32 0.0, %v1083
    %v1085 = vpop.f32.mrf.mxu0
    %1086 = vmatprep.mubr.f32.mxu0 0.0
    %1087 = vmatmul.mubr.f32.gmra.mxu0 %v1015
    %v1088 = vpop.f32.mrf.mxu0
    %v1089 = vadd.f32 0.0, %v1088
    %v1090 = vpop.f32.mrf.mxu0
    %1091 = vdwg.mxu0
    %v1093 = vsel %vm408, %v847, 0
    %v1096 = vsel %vm408, %v848, 0
    %1098 = vmatprep.subr.mxu0 0.0
    %1099 = vmatpush1.msra.mxu0 0.0
    %1100 = vmatprep.subr.mxu0 0.0
    %1101 = vmatpush1.msra.mxu0 0.0
    %1102 = vmatprep.subr.mxu0 0.0
    %1103 = vmatpush1.msra.mxu0 0.0
    %1104 = vmatprep.subr.mxu0 0.0
    %1105 = vmatpush1.msra.mxu0 0.0
    %1106 = vmatprep.subr.mxu0 0.0
    %1107 = vmatpush1.msra.mxu0 0.0
    %1108 = vmatprep.subr.mxu0 0.0
    %1109 = vmatpush1.msra.mxu0 0.0
    %1110 = vmatprep.subr.mxu0 0.0
    %1111 = vmatpush1.msra.mxu0 0.0
    %1112 = vmatprep.subr.mxu0 0.0
    %1113 = vmatpush1.msra.mxu0 0.0
    %1114 = vmatprep.subr.mxu0 0.0
    %1115 = vmatpush1.msra.mxu0 0.0
    %1116 = vmatprep.subr.mxu0 0.0
    %1117 = vmatpush1.msra.mxu0 0.0
    %1118 = vmatprep.subr.mxu0 0.0
    %1119 = vmatpush1.msra.mxu0 0.0
    %1120 = vmatprep.subr.mxu0 0.0
    %1121 = vmatpush1.msra.mxu0 0.0
    %1122 = vmatprep.subr.mxu0 0.0
    %1123 = vmatpush1.msra.mxu0 0.0
    %1124 = vmatprep.subr.mxu0 0.0
    %1125 = vmatpush1.msra.mxu0 0.0
    %1126 = vmatprep.subr.mxu0 0.0
    %1127 = vmatpush1.msra.mxu0 %v401
    %1128 = vmatprep.subr.mxu0 0.0
    %1129 = vmatpush1.msra.mxu0 %v399
    %1130 = vmatprep.subr.mxu0 0.0
    %1131 = vmatpush2.msra.mxu0 0.0
    %1132 = vmatprep.subr.mxu0 0.0
    %1133 = vmatpush2.msra.mxu0 0.0
    %1134 = vmatprep.subr.mxu0 0.0
    %1135 = vmatpush2.msra.mxu0 0.0
    %1136 = vmatprep.subr.mxu0 0.0
    %1137 = vmatpush2.msra.mxu0 0.0
    %1138 = vmatprep.subr.mxu0 0.0
    %1139 = vmatpush2.msra.mxu0 0.0
    %1140 = vmatprep.subr.mxu0 0.0
    %1141 = vmatpush2.msra.mxu0 0.0
    %1142 = vmatprep.subr.mxu0 0.0
    %1143 = vmatpush2.msra.mxu0 0.0
    %1144 = vmatprep.subr.mxu0 0.0
    %1145 = vmatpush2.msra.mxu0 0.0
    %1146 = vmatprep.subr.mxu0 0.0
    %1147 = vmatpush2.msra.mxu0 0.0
    %1148 = vmatprep.subr.mxu0 0.0
    %1149 = vmatpush2.msra.mxu0 0.0
    %1150 = vmatprep.subr.mxu0 0.0
    %1151 = vmatpush2.msra.mxu0 0.0
    %1152 = vmatprep.subr.mxu0 0.0
    %1153 = vmatpush2.msra.mxu0 0.0
    %1154 = vmatprep.subr.mxu0 0.0
    %1155 = vmatpush2.msra.mxu0 0.0
    %1156 = vmatprep.subr.mxu0 0.0
    %1157 = vmatpush2.msra.mxu0 0.0
    %1158 = vmatprep.subr.mxu0 0.0
    %1159 = vmatpush2.msra.mxu0 0.0
    %1160 = vmatprep.subr.mxu0 0.0
    %1161 = vmatpush2.msra.mxu0 0.0
    %1162 = vmatprep.mubr.f32.mxu0 0.0
    %1163 = vmatmul.mubr.f32.gmra.mxu0 %v1093
    %v1164 = vpop.f32.mrf.mxu0
    %v1165 = vadd.f32 0.0, %v1164
    %v1166 = vpop.f32.mrf.mxu0
    %1167 = vmatprep.mubr.f32.mxu0 0.0
    %1168 = vmatmul.mubr.f32.gmra.mxu0 %v1096
    %v1169 = vpop.f32.mrf.mxu0
    %v1170 = vadd.f32 0.0, %v1169
    %v1171 = vpop.f32.mrf.mxu0
    %1172 = vdwg.mxu0
    %v1173 = vld [vmem:[%s5] sm:$0xff]
    %v1174 = vld [vmem:[%s5 + $0x8] sm:$0xff]
    %v1175 = vld [vmem:[%s5 + $0x10] sm:$0xff]
    %v1176 = vld [vmem:[%s5 + $0x18] sm:$0xff]
    %v1177 = vld [vmem:[%s5 + $0x20] sm:$0xff]
    %v1178 = vld [vmem:[%s5 + $0x28] sm:$0xff]
    %v1179 = vld [vmem:[%s5 + $0x30] sm:$0xff]
    %v1180 = vld [vmem:[%s5 + $0x38] sm:$0xff]
    %v1182 = vsel %vm408, %v922, 0
    %v1185 = vsel %vm408, %v927, 0
    %1187 = vmatprep.subr.mxu0 0.0
    %1188 = vmatpush1.msra.mxu0 0.0
    %1189 = vmatprep.subr.mxu0 0.0
    %1190 = vmatpush1.msra.mxu0 0.0
    %1191 = vmatprep.subr.mxu0 0.0
    %1192 = vmatpush1.msra.mxu0 0.0
    %1193 = vmatprep.subr.mxu0 0.0
    %1194 = vmatpush1.msra.mxu0 0.0
    %1195 = vmatprep.subr.mxu0 0.0
    %1196 = vmatpush1.msra.mxu0 0.0
    %1197 = vmatprep.subr.mxu0 0.0
    %1198 = vmatpush1.msra.mxu0 0.0
    %1199 = vmatprep.subr.mxu0 0.0
    %1200 = vmatpush1.msra.mxu0 0.0
    %1201 = vmatprep.subr.mxu0 0.0
    %1202 = vmatpush1.msra.mxu0 0.0
    %1203 = vmatprep.subr.mxu0 0.0
    %1204 = vmatpush1.msra.mxu0 0.0
    %1205 = vmatprep.subr.mxu0 0.0
    %1206 = vmatpush1.msra.mxu0 0.0
    %1207 = vmatprep.subr.mxu0 0.0
    %1208 = vmatpush1.msra.mxu0 0.0
    %1209 = vmatprep.subr.mxu0 0.0
    %1210 = vmatpush1.msra.mxu0 0.0
    %1211 = vmatprep.subr.mxu0 0.0
    %1212 = vmatpush1.msra.mxu0 0.0
    %1213 = vmatprep.subr.mxu0 0.0
    %1214 = vmatpush1.msra.mxu0 0.0
    %1215 = vmatprep.subr.mxu0 0.0
    %1216 = vmatpush1.msra.mxu0 %v1174
    %1217 = vmatprep.subr.mxu0 0.0
    %1218 = vmatpush1.msra.mxu0 %v1173
    %1219 = vmatprep.subr.mxu0 0.0
    %1220 = vmatpush2.msra.mxu0 0.0
    %1221 = vmatprep.subr.mxu0 0.0
    %1222 = vmatpush2.msra.mxu0 0.0
    %1223 = vmatprep.subr.mxu0 0.0
    %1224 = vmatpush2.msra.mxu0 0.0
    %1225 = vmatprep.subr.mxu0 0.0
    %1226 = vmatpush2.msra.mxu0 0.0
    %1227 = vmatprep.subr.mxu0 0.0
    %1228 = vmatpush2.msra.mxu0 0.0
    %1229 = vmatprep.subr.mxu0 0.0
    %1230 = vmatpush2.msra.mxu0 0.0
    %1231 = vmatprep.subr.mxu0 0.0
    %1232 = vmatpush2.msra.mxu0 0.0
    %1233 = vmatprep.subr.mxu0 0.0
    %1234 = vmatpush2.msra.mxu0 0.0
    %1235 = vmatprep.subr.mxu0 0.0
    %1236 = vmatpush2.msra.mxu0 0.0
    %1237 = vmatprep.subr.mxu0 0.0
    %1238 = vmatpush2.msra.mxu0 0.0
    %1239 = vmatprep.subr.mxu0 0.0
    %1240 = vmatpush2.msra.mxu0 0.0
    %1241 = vmatprep.subr.mxu0 0.0
    %1242 = vmatpush2.msra.mxu0 0.0
    %1243 = vmatprep.subr.mxu0 0.0
    %1244 = vmatpush2.msra.mxu0 0.0
    %1245 = vmatprep.subr.mxu0 0.0
    %1246 = vmatpush2.msra.mxu0 0.0
    %1247 = vmatprep.subr.mxu0 0.0
    %1248 = vmatpush2.msra.mxu0 0.0
    %1249 = vmatprep.subr.mxu0 0.0
    %1250 = vmatpush2.msra.mxu0 0.0
    %1251 = vmatprep.mubr.f32.mxu0 0.0
    %1252 = vmatmul.mubr.f32.gmra.mxu0 %v1182
    %v1253 = vpop.f32.mrf.mxu0
    %v1254 = vadd.f32 0.0, %v1253
    %v1255 = vpop.f32.mrf.mxu0
    %1256 = vmatprep.mubr.f32.mxu0 0.0
    %1257 = vmatmul.mubr.f32.gmra.mxu0 %v1185
    %v1258 = vpop.f32.mrf.mxu0
    %v1259 = vadd.f32 0.0, %v1258
    %v1260 = vpop.f32.mrf.mxu0
    %1261 = vdwg.mxu0
    %v1263 = vsel %vm408, %v1003, 0
    %v1266 = vsel %vm408, %v1008, 0
    %1268 = vmatprep.subr.mxu0 0.0
    %1269 = vmatpush1.msra.mxu0 0.0
    %1270 = vmatprep.subr.mxu0 0.0
    %1271 = vmatpush1.msra.mxu0 0.0
    %1272 = vmatprep.subr.mxu0 0.0
    %1273 = vmatpush1.msra.mxu0 0.0
    %1274 = vmatprep.subr.mxu0 0.0
    %1275 = vmatpush1.msra.mxu0 0.0
    %1276 = vmatprep.subr.mxu0 0.0
    %1277 = vmatpush1.msra.mxu0 0.0
    %1278 = vmatprep.subr.mxu0 0.0
    %1279 = vmatpush1.msra.mxu0 0.0
    %1280 = vmatprep.subr.mxu0 0.0
    %1281 = vmatpush1.msra.mxu0 0.0
    %1282 = vmatprep.subr.mxu0 0.0
    %1283 = vmatpush1.msra.mxu0 0.0
    %1284 = vmatprep.subr.mxu0 0.0
    %1285 = vmatpush1.msra.mxu0 0.0
    %1286 = vmatprep.subr.mxu0 0.0
    %1287 = vmatpush1.msra.mxu0 0.0
    %1288 = vmatprep.subr.mxu0 0.0
    %1289 = vmatpush1.msra.mxu0 0.0
    %1290 = vmatprep.subr.mxu0 0.0
    %1291 = vmatpush1.msra.mxu0 0.0
    %1292 = vmatprep.subr.mxu0 0.0
    %1293 = vmatpush1.msra.mxu0 0.0
    %1294 = vmatprep.subr.mxu0 0.0
    %1295 = vmatpush1.msra.mxu0 0.0
    %1296 = vmatprep.subr.mxu0 0.0
    %1297 = vmatpush1.msra.mxu0 %v1176
    %1298 = vmatprep.subr.mxu0 0.0
    %1299 = vmatpush1.msra.mxu0 %v1175
    %1300 = vmatprep.subr.mxu0 0.0
    %1301 = vmatpush2.msra.mxu0 0.0
    %1302 = vmatprep.subr.mxu0 0.0
    %1303 = vmatpush2.msra.mxu0 0.0
    %1304 = vmatprep.subr.mxu0 0.0
    %1305 = vmatpush2.msra.mxu0 0.0
    %1306 = vmatprep.subr.mxu0 0.0
    %1307 = vmatpush2.msra.mxu0 0.0
    %1308 = vmatprep.subr.mxu0 0.0
    %1309 = vmatpush2.msra.mxu0 0.0
    %1310 = vmatprep.subr.mxu0 0.0
    %1311 = vmatpush2.msra.mxu0 0.0
    %1312 = vmatprep.subr.mxu0 0.0
    %1313 = vmatpush2.msra.mxu0 0.0
    %1314 = vmatprep.subr.mxu0 0.0
    %1315 = vmatpush2.msra.mxu0 0.0
    %1316 = vmatprep.subr.mxu0 0.0
    %1317 = vmatpush2.msra.mxu0 0.0
    %1318 = vmatprep.subr.mxu0 0.0
    %1319 = vmatpush2.msra.mxu0 0.0
    %1320 = vmatprep.subr.mxu0 0.0
    %1321 = vmatpush2.msra.mxu0 0.0
    %1322 = vmatprep.subr.mxu0 0.0
    %1323 = vmatpush2.msra.mxu0 0.0
    %1324 = vmatprep.subr.mxu0 0.0
    %1325 = vmatpush2.msra.mxu0 0.0
    %1326 = vmatprep.subr.mxu0 0.0
    %1327 = vmatpush2.msra.mxu0 0.0
    %1328 = vmatprep.subr.mxu0 0.0
    %1329 = vmatpush2.msra.mxu0 0.0
    %1330 = vmatprep.subr.mxu0 0.0
    %1331 = vmatpush2.msra.mxu0 0.0
    %1332 = vmatprep.mubr.f32.mxu0 0.0
    %1333 = vmatmul.mubr.f32.gmra.mxu0 %v1263
    %v1334 = vpop.f32.mrf.mxu0
    %v1335 = vadd.f32 0.0, %v1334
    %v1336 = vpop.f32.mrf.mxu0
    %1337 = vmatprep.mubr.f32.mxu0 0.0
    %1338 = vmatmul.mubr.f32.gmra.mxu0 %v1266
    %v1339 = vpop.f32.mrf.mxu0
    %v1340 = vadd.f32 0.0, %v1339
    %v1341 = vpop.f32.mrf.mxu0
    %1342 = vdwg.mxu0
    %v1344 = vsel %vm408, %v1084, 0
    %v1347 = vsel %vm408, %v1089, 0
    %1349 = vmatprep.subr.mxu0 0.0
    %1350 = vmatpush1.msra.mxu0 0.0
    %1351 = vmatprep.subr.mxu0 0.0
    %1352 = vmatpush1.msra.mxu0 0.0
    %1353 = vmatprep.subr.mxu0 0.0
    %1354 = vmatpush1.msra.mxu0 0.0
    %1355 = vmatprep.subr.mxu0 0.0
    %1356 = vmatpush1.msra.mxu0 0.0
    %1357 = vmatprep.subr.mxu0 0.0
    %1358 = vmatpush1.msra.mxu0 0.0
    %1359 = vmatprep.subr.mxu0 0.0
    %1360 = vmatpush1.msra.mxu0 0.0
    %1361 = vmatprep.subr.mxu0 0.0
    %1362 = vmatpush1.msra.mxu0 0.0
    %1363 = vmatprep.subr.mxu0 0.0
    %1364 = vmatpush1.msra.mxu0 0.0
    %1365 = vmatprep.subr.mxu0 0.0
    %1366 = vmatpush1.msra.mxu0 0.0
    %1367 = vmatprep.subr.mxu0 0.0
    %1368 = vmatpush1.msra.mxu0 0.0
    %1369 = vmatprep.subr.mxu0 0.0
    %1370 = vmatpush1.msra.mxu0 0.0
    %1371 = vmatprep.subr.mxu0 0.0
    %1372 = vmatpush1.msra.mxu0 0.0
    %1373 = vmatprep.subr.mxu0 0.0
    %1374 = vmatpush1.msra.mxu0 0.0
    %1375 = vmatprep.subr.mxu0 0.0
    %1376 = vmatpush1.msra.mxu0 0.0
    %1377 = vmatprep.subr.mxu0 0.0
    %1378 = vmatpush1.msra.mxu0 %v1178
    %1379 = vmatprep.subr.mxu0 0.0
    %1380 = vmatpush1.msra.mxu0 %v1177
    %1381 = vmatprep.subr.mxu0 0.0
    %1382 = vmatpush2.msra.mxu0 0.0
    %1383 = vmatprep.subr.mxu0 0.0
    %1384 = vmatpush2.msra.mxu0 0.0
    %1385 = vmatprep.subr.mxu0 0.0
    %1386 = vmatpush2.msra.mxu0 0.0
    %1387 = vmatprep.subr.mxu0 0.0
    %1388 = vmatpush2.msra.mxu0 0.0
    %1389 = vmatprep.subr.mxu0 0.0
    %1390 = vmatpush2.msra.mxu0 0.0
    %1391 = vmatprep.subr.mxu0 0.0
    %1392 = vmatpush2.msra.mxu0 0.0
    %1393 = vmatprep.subr.mxu0 0.0
    %1394 = vmatpush2.msra.mxu0 0.0
    %1395 = vmatprep.subr.mxu0 0.0
    %1396 = vmatpush2.msra.mxu0 0.0
    %1397 = vmatprep.subr.mxu0 0.0
    %1398 = vmatpush2.msra.mxu0 0.0
    %1399 = vmatprep.subr.mxu0 0.0
    %1400 = vmatpush2.msra.mxu0 0.0
    %1401 = vmatprep.subr.mxu0 0.0
    %1402 = vmatpush2.msra.mxu0 0.0
    %1403 = vmatprep.subr.mxu0 0.0
    %1404 = vmatpush2.msra.mxu0 0.0
    %1405 = vmatprep.subr.mxu0 0.0
    %1406 = vmatpush2.msra.mxu0 0.0
    %1407 = vmatprep.subr.mxu0 0.0
    %1408 = vmatpush2.msra.mxu0 0.0
    %1409 = vmatprep.subr.mxu0 0.0
    %1410 = vmatpush2.msra.mxu0 0.0
    %1411 = vmatprep.subr.mxu0 0.0
    %1412 = vmatpush2.msra.mxu0 0.0
    %1413 = vmatprep.mubr.f32.mxu0 0.0
    %1414 = vmatmul.mubr.f32.gmra.mxu0 %v1344
    %v1415 = vpop.f32.mrf.mxu0
    %v1416 = vadd.f32 0.0, %v1415
    %v1417 = vpop.f32.mrf.mxu0
    %1418 = vmatprep.mubr.f32.mxu0 0.0
    %1419 = vmatmul.mubr.f32.gmra.mxu0 %v1347
    %v1420 = vpop.f32.mrf.mxu0
    %v1421 = vadd.f32 0.0, %v1420
    %v1422 = vpop.f32.mrf.mxu0
    %1423 = vdwg.mxu0
    %v1425 = vsel %vm408, %v1165, 0
    %v1428 = vsel %vm408, %v1170, 0
    %1430 = vmatprep.subr.mxu0 0.0
    %1431 = vmatpush1.msra.mxu0 0.0
    %1432 = vmatprep.subr.mxu0 0.0
    %1433 = vmatpush1.msra.mxu0 0.0
    %1434 = vmatprep.subr.mxu0 0.0
    %1435 = vmatpush1.msra.mxu0 0.0
    %1436 = vmatprep.subr.mxu0 0.0
    %1437 = vmatpush1.msra.mxu0 0.0
    %1438 = vmatprep.subr.mxu0 0.0
    %1439 = vmatpush1.msra.mxu0 0.0
    %1440 = vmatprep.subr.mxu0 0.0
    %1441 = vmatpush1.msra.mxu0 0.0
    %1442 = vmatprep.subr.mxu0 0.0
    %1443 = vmatpush1.msra.mxu0 0.0
    %1444 = vmatprep.subr.mxu0 0.0
    %1445 = vmatpush1.msra.mxu0 0.0
    %1446 = vmatprep.subr.mxu0 0.0
    %1447 = vmatpush1.msra.mxu0 0.0
    %1448 = vmatprep.subr.mxu0 0.0
    %1449 = vmatpush1.msra.mxu0 0.0
    %1450 = vmatprep.subr.mxu0 0.0
    %1451 = vmatpush1.msra.mxu0 0.0
    %1452 = vmatprep.subr.mxu0 0.0
    %1453 = vmatpush1.msra.mxu0 0.0
    %1454 = vmatprep.subr.mxu0 0.0
    %1455 = vmatpush1.msra.mxu0 0.0
    %1456 = vmatprep.subr.mxu0 0.0
    %1457 = vmatpush1.msra.mxu0 0.0
    %1458 = vmatprep.subr.mxu0 0.0
    %1459 = vmatpush1.msra.mxu0 %v1180
    %1460 = vmatprep.subr.mxu0 0.0
    %1461 = vmatpush1.msra.mxu0 %v1179
    %1462 = vmatprep.subr.mxu0 0.0
    %1463 = vmatpush2.msra.mxu0 0.0
    %1464 = vmatprep.subr.mxu0 0.0
    %1465 = vmatpush2.msra.mxu0 0.0
    %1466 = vmatprep.subr.mxu0 0.0
    %1467 = vmatpush2.msra.mxu0 0.0
    %1468 = vmatprep.subr.mxu0 0.0
    %1469 = vmatpush2.msra.mxu0 0.0
    %1470 = vmatprep.subr.mxu0 0.0
    %1471 = vmatpush2.msra.mxu0 0.0
    %1472 = vmatprep.subr.mxu0 0.0
    %1473 = vmatpush2.msra.mxu0 0.0
    %1474 = vmatprep.subr.mxu0 0.0
    %1475 = vmatpush2.msra.mxu0 0.0
    %1476 = vmatprep.subr.mxu0 0.0
    %1477 = vmatpush2.msra.mxu0 0.0
    %1478 = vmatprep.subr.mxu0 0.0
    %1479 = vmatpush2.msra.mxu0 0.0
    %1480 = vmatprep.subr.mxu0 0.0
    %1481 = vmatpush2.msra.mxu0 0.0
    %1482 = vmatprep.subr.mxu0 0.0
    %1483 = vmatpush2.msra.mxu0 0.0
    %1484 = vmatprep.subr.mxu0 0.0
    %1485 = vmatpush2.msra.mxu0 0.0
    %1486 = vmatprep.subr.mxu0 0.0
    %1487 = vmatpush2.msra.mxu0 0.0
    %1488 = vmatprep.subr.mxu0 0.0
    %1489 = vmatpush2.msra.mxu0 0.0
    %1490 = vmatprep.subr.mxu0 0.0
    %1491 = vmatpush2.msra.mxu0 0.0
    %1492 = vmatprep.subr.mxu0 0.0
    %1493 = vmatpush2.msra.mxu0 0.0
    %1494 = vmatprep.mubr.f32.mxu0 0.0
    %1495 = vmatmul.mubr.f32.gmra.mxu0 %v1425
    %v1496 = vpop.f32.mrf.mxu0
    %v1497 = vadd.f32 0.0, %v1496
    %v1498 = vpop.f32.mrf.mxu0
    %1499 = vmatprep.mubr.f32.mxu0 0.0
    %1500 = vmatmul.mubr.f32.gmra.mxu0 %v1428
    %v1501 = vpop.f32.mrf.mxu0
    %v1502 = vadd.f32 0.0, %v1501
    %v1503 = vpop.f32.mrf.mxu0
    %1504 = vdwg.mxu0
    %v1505 = vsel %vm73, %v1254, 0.0
    %v1506 = vsel %vm73, %v1335, 0.0
    %v1507 = vadd.f32 %v1505, %v1506
    %v1508 = vsel %vm73, %v1416, 0.0
    %v1509 = vadd.f32 %v1507, %v1508
    %v1510 = vsel %vm73, %v1497, 0.0
    %v1511 = vadd.f32 %v1509, %v1510
    %v1512 = vsel %vm73, %v1259, 0.0
    %v1513 = vsel %vm73, %v1340, 0.0
    %v1514 = vadd.f32 %v1512, %v1513
    %v1515 = vsel %vm73, %v1421, 0.0
    %v1516 = vadd.f32 %v1514, %v1515
    %v1517 = vsel %vm73, %v1502, 0.0
    %v1518 = vadd.f32 %v1516, %v1517
    %1521 = vrot.lane.b32.xlu0 %v360, 112
    %v1522 = vpop.permute.xlu0 %1521
    %1523 = vrot.lane.b32.xlu0 %v366, 112
    %v1524 = vpop.permute.xlu0 %1523
    %1525 = vrot.lane.b32.xlu0 %v360, 96
    %v1526 = vpop.permute.xlu0 %1525
    %1527 = vrot.lane.b32.xlu0 %v366, 96
    %v1528 = vpop.permute.xlu0 %1527
    %1529 = vrot.lane.b32.xlu0 %v360, 80
    %v1530 = vpop.permute.xlu0 %1529
    %1531 = vrot.lane.b32.xlu0 %v366, 80
    %v1532 = vpop.permute.xlu0 %1531
    %1535 = vrot.lane.b32.xlu0 %v362, 112
    %v1536 = vpop.permute.xlu0 %1535
    %1537 = vrot.lane.b32.xlu0 %v368, 112
    %v1538 = vpop.permute.xlu0 %1537
    %1541 = vrot.lane.b32.xlu0 %v362, 96
    %v1542 = vpop.permute.xlu0 %1541
    %1543 = vrot.lane.b32.xlu0 %v368, 96
    %v1544 = vpop.permute.xlu0 %1543
    %1547 = vrot.lane.b32.xlu0 %v362, 80
    %v1548 = vpop.permute.xlu0 %1547
    %1549 = vrot.lane.b32.xlu0 %v368, 80
    %v1550 = vpop.permute.xlu0 %1549
    %1553 = vrot.lane.b32.xlu0 %v360, 64
    %v1554 = vpop.permute.xlu0 %1553
    %1555 = vrot.lane.b32.xlu0 %v366, 64
    %v1556 = vpop.permute.xlu0 %1555
    %v1557 = vsel %vm408, %v360, 0
    %v1559 = vsel %vm408, %v366, 0
    %v1561 = vsel %vm408, %v1554, 0
    %v1563 = vsel %vm408, %v1556, 0
    %1565 = vmatprep.subr.mxu0 0.0
    %1566 = vmatpush1.xpose.msra.mxu0 0.0
    %1567 = vmatprep.subr.mxu0 0.0
    %1568 = vmatpush1.xpose.msra.mxu0 0.0
    %1569 = vmatprep.subr.mxu0 0.0
    %1570 = vmatpush1.xpose.msra.mxu0 0.0
    %1571 = vmatprep.subr.mxu0 0.0
    %1572 = vmatpush1.xpose.msra.mxu0 0.0
    %1573 = vmatprep.subr.mxu0 0.0
    %1574 = vmatpush1.xpose.msra.mxu0 0.0
    %1575 = vmatprep.subr.mxu0 0.0
    %1576 = vmatpush1.xpose.msra.mxu0 0.0
    %1577 = vmatprep.subr.mxu0 0.0
    %1578 = vmatpush1.xpose.msra.mxu0 0.0
    %1579 = vmatprep.subr.mxu0 0.0
    %1580 = vmatpush1.xpose.msra.mxu0 0.0
    %1581 = vmatprep.subr.mxu0 0.0
    %1582 = vmatpush1.xpose.msra.mxu0 0.0
    %1583 = vmatprep.subr.mxu0 0.0
    %1584 = vmatpush1.xpose.msra.mxu0 0.0
    %1585 = vmatprep.subr.mxu0 0.0
    %1586 = vmatpush1.xpose.msra.mxu0 0.0
    %1587 = vmatprep.subr.mxu0 0.0
    %1588 = vmatpush1.xpose.msra.mxu0 0.0
    %1589 = vmatprep.subr.mxu0 0.0
    %1590 = vmatpush1.xpose.msra.mxu0 0.0
    %1591 = vmatprep.subr.mxu0 0.0
    %1592 = vmatpush1.xpose.msra.mxu0 0.0
    %1593 = vmatprep.subr.mxu0 0.0
    %1594 = vmatpush1.xpose.msra.mxu0 %v1563
    %1595 = vmatprep.subr.mxu0 0.0
    %1596 = vmatpush1.xpose.msra.mxu0 %v1561
    %1597 = vmatprep.subr.mxu0 0.0
    %1598 = vmatpush2.xpose.msra.mxu0 0.0
    %1599 = vmatprep.subr.mxu0 0.0
    %1600 = vmatpush2.xpose.msra.mxu0 0.0
    %1601 = vmatprep.subr.mxu0 0.0
    %1602 = vmatpush2.xpose.msra.mxu0 0.0
    %1603 = vmatprep.subr.mxu0 0.0
    %1604 = vmatpush2.xpose.msra.mxu0 0.0
    %1605 = vmatprep.subr.mxu0 0.0
    %1606 = vmatpush2.xpose.msra.mxu0 0.0
    %1607 = vmatprep.subr.mxu0 0.0
    %1608 = vmatpush2.xpose.msra.mxu0 0.0
    %1609 = vmatprep.subr.mxu0 0.0
    %1610 = vmatpush2.xpose.msra.mxu0 0.0
    %1611 = vmatprep.subr.mxu0 0.0
    %1612 = vmatpush2.xpose.msra.mxu0 0.0
    %1613 = vmatprep.subr.mxu0 0.0
    %1614 = vmatpush2.xpose.msra.mxu0 0.0
    %1615 = vmatprep.subr.mxu0 0.0
    %1616 = vmatpush2.xpose.msra.mxu0 0.0
    %1617 = vmatprep.subr.mxu0 0.0
    %1618 = vmatpush2.xpose.msra.mxu0 0.0
    %1619 = vmatprep.subr.mxu0 0.0
    %1620 = vmatpush2.xpose.msra.mxu0 0.0
    %1621 = vmatprep.subr.mxu0 0.0
    %1622 = vmatpush2.xpose.msra.mxu0 0.0
    %1623 = vmatprep.subr.mxu0 0.0
    %1624 = vmatpush2.xpose.msra.mxu0 0.0
    %1625 = vmatprep.subr.mxu0 0.0
    %1626 = vmatpush2.xpose.msra.mxu0 0.0
    %1627 = vmatprep.subr.mxu0 0.0
    %1628 = vmatpush2.xpose.msra.mxu0 0.0
    %1629 = vmatprep.mubr.f32.mxu0 0.0
    %1630 = vmatmul.mubr.f32.gmra.mxu0 %v1557
    %v1631 = vpop.f32.mrf.mxu0
    %v1632 = vadd.f32 0.0, %v1631
    %v1633 = vpop.f32.mrf.mxu0
    %1634 = vmatprep.mubr.f32.mxu0 0.0
    %1635 = vmatmul.mubr.f32.gmra.mxu0 %v1559
    %v1636 = vpop.f32.mrf.mxu0
    %v1637 = vadd.f32 0.0, %v1636
    %v1638 = vpop.f32.mrf.mxu0
    %1639 = vdwg.mxu0
    %1640 = vrot.lane.b32.xlu0 %v1522, 64
    %v1641 = vpop.permute.xlu0 %1640
    %1642 = vrot.lane.b32.xlu0 %v1524, 64
    %v1643 = vpop.permute.xlu0 %1642
    %v1644 = vsel %vm408, %v1522, 0
    %v1646 = vsel %vm408, %v1524, 0
    %v1648 = vsel %vm408, %v1641, 0
    %v1650 = vsel %vm408, %v1643, 0
    %1652 = vmatprep.subr.mxu0 0.0
    %1653 = vmatpush1.xpose.msra.mxu0 0.0
    %1654 = vmatprep.subr.mxu0 0.0
    %1655 = vmatpush1.xpose.msra.mxu0 0.0
    %1656 = vmatprep.subr.mxu0 0.0
    %1657 = vmatpush1.xpose.msra.mxu0 0.0
    %1658 = vmatprep.subr.mxu0 0.0
    %1659 = vmatpush1.xpose.msra.mxu0 0.0
    %1660 = vmatprep.subr.mxu0 0.0
    %1661 = vmatpush1.xpose.msra.mxu0 0.0
    %1662 = vmatprep.subr.mxu0 0.0
    %1663 = vmatpush1.xpose.msra.mxu0 0.0
    %1664 = vmatprep.subr.mxu0 0.0
    %1665 = vmatpush1.xpose.msra.mxu0 0.0
    %1666 = vmatprep.subr.mxu0 0.0
    %1667 = vmatpush1.xpose.msra.mxu0 0.0
    %1668 = vmatprep.subr.mxu0 0.0
    %1669 = vmatpush1.xpose.msra.mxu0 0.0
    %1670 = vmatprep.subr.mxu0 0.0
    %1671 = vmatpush1.xpose.msra.mxu0 0.0
    %1672 = vmatprep.subr.mxu0 0.0
    %1673 = vmatpush1.xpose.msra.mxu0 0.0
    %1674 = vmatprep.subr.mxu0 0.0
    %1675 = vmatpush1.xpose.msra.mxu0 0.0
    %1676 = vmatprep.subr.mxu0 0.0
    %1677 = vmatpush1.xpose.msra.mxu0 0.0
    %1678 = vmatprep.subr.mxu0 0.0
    %1679 = vmatpush1.xpose.msra.mxu0 0.0
    %1680 = vmatprep.subr.mxu0 0.0
    %1681 = vmatpush1.xpose.msra.mxu0 %v1650
    %1682 = vmatprep.subr.mxu0 0.0
    %1683 = vmatpush1.xpose.msra.mxu0 %v1648
    %1684 = vmatprep.subr.mxu0 0.0
    %1685 = vmatpush2.xpose.msra.mxu0 0.0
    %1686 = vmatprep.subr.mxu0 0.0
    %1687 = vmatpush2.xpose.msra.mxu0 0.0
    %1688 = vmatprep.subr.mxu0 0.0
    %1689 = vmatpush2.xpose.msra.mxu0 0.0
    %1690 = vmatprep.subr.mxu0 0.0
    %1691 = vmatpush2.xpose.msra.mxu0 0.0
    %1692 = vmatprep.subr.mxu0 0.0
    %1693 = vmatpush2.xpose.msra.mxu0 0.0
    %1694 = vmatprep.subr.mxu0 0.0
    %1695 = vmatpush2.xpose.msra.mxu0 0.0
    %1696 = vmatprep.subr.mxu0 0.0
    %1697 = vmatpush2.xpose.msra.mxu0 0.0
    %1698 = vmatprep.subr.mxu0 0.0
    %1699 = vmatpush2.xpose.msra.mxu0 0.0
    %1700 = vmatprep.subr.mxu0 0.0
    %1701 = vmatpush2.xpose.msra.mxu0 0.0
    %1702 = vmatprep.subr.mxu0 0.0
    %1703 = vmatpush2.xpose.msra.mxu0 0.0
    %1704 = vmatprep.subr.mxu0 0.0
    %1705 = vmatpush2.xpose.msra.mxu0 0.0
    %1706 = vmatprep.subr.mxu0 0.0
    %1707 = vmatpush2.xpose.msra.mxu0 0.0
    %1708 = vmatprep.subr.mxu0 0.0
    %1709 = vmatpush2.xpose.msra.mxu0 0.0
    %1710 = vmatprep.subr.mxu0 0.0
    %1711 = vmatpush2.xpose.msra.mxu0 0.0
    %1712 = vmatprep.subr.mxu0 0.0
    %1713 = vmatpush2.xpose.msra.mxu0 0.0
    %1714 = vmatprep.subr.mxu0 0.0
    %1715 = vmatpush2.xpose.msra.mxu0 0.0
    %1716 = vmatprep.mubr.f32.mxu0 0.0
    %1717 = vmatmul.mubr.f32.gmra.mxu0 %v1644
    %v1718 = vpop.f32.mrf.mxu0
    %v1719 = vadd.f32 0.0, %v1718
    %v1720 = vpop.f32.mrf.mxu0
    %1721 = vmatprep.mubr.f32.mxu0 0.0
    %1722 = vmatmul.mubr.f32.gmra.mxu0 %v1646
    %v1723 = vpop.f32.mrf.mxu0
    %v1724 = vadd.f32 0.0, %v1723
    %v1725 = vpop.f32.mrf.mxu0
    %1726 = vdwg.mxu0
    %1727 = vrot.lane.b32.xlu0 %v1526, 64
    %v1728 = vpop.permute.xlu0 %1727
    %1729 = vrot.lane.b32.xlu0 %v1528, 64
    %v1730 = vpop.permute.xlu0 %1729
    %v1731 = vsel %vm408, %v1526, 0
    %v1733 = vsel %vm408, %v1528, 0
    %v1735 = vsel %vm408, %v1728, 0
    %v1737 = vsel %vm408, %v1730, 0
    %1739 = vmatprep.subr.mxu0 0.0
    %1740 = vmatpush1.xpose.msra.mxu0 0.0
    %1741 = vmatprep.subr.mxu0 0.0
    %1742 = vmatpush1.xpose.msra.mxu0 0.0
    %1743 = vmatprep.subr.mxu0 0.0
    %1744 = vmatpush1.xpose.msra.mxu0 0.0
    %1745 = vmatprep.subr.mxu0 0.0
    %1746 = vmatpush1.xpose.msra.mxu0 0.0
    %1747 = vmatprep.subr.mxu0 0.0
    %1748 = vmatpush1.xpose.msra.mxu0 0.0
    %1749 = vmatprep.subr.mxu0 0.0
    %1750 = vmatpush1.xpose.msra.mxu0 0.0
    %1751 = vmatprep.subr.mxu0 0.0
    %1752 = vmatpush1.xpose.msra.mxu0 0.0
    %1753 = vmatprep.subr.mxu0 0.0
    %1754 = vmatpush1.xpose.msra.mxu0 0.0
    %1755 = vmatprep.subr.mxu0 0.0
    %1756 = vmatpush1.xpose.msra.mxu0 0.0
    %1757 = vmatprep.subr.mxu0 0.0
    %1758 = vmatpush1.xpose.msra.mxu0 0.0
    %1759 = vmatprep.subr.mxu0 0.0
    %1760 = vmatpush1.xpose.msra.mxu0 0.0
    %1761 = vmatprep.subr.mxu0 0.0
    %1762 = vmatpush1.xpose.msra.mxu0 0.0
    %1763 = vmatprep.subr.mxu0 0.0
    %1764 = vmatpush1.xpose.msra.mxu0 0.0
    %1765 = vmatprep.subr.mxu0 0.0
    %1766 = vmatpush1.xpose.msra.mxu0 0.0
    %1767 = vmatprep.subr.mxu0 0.0
    %1768 = vmatpush1.xpose.msra.mxu0 %v1737
    %1769 = vmatprep.subr.mxu0 0.0
    %1770 = vmatpush1.xpose.msra.mxu0 %v1735
    %1771 = vmatprep.subr.mxu0 0.0
    %1772 = vmatpush2.xpose.msra.mxu0 0.0
    %1773 = vmatprep.subr.mxu0 0.0
    %1774 = vmatpush2.xpose.msra.mxu0 0.0
    %1775 = vmatprep.subr.mxu0 0.0
    %1776 = vmatpush2.xpose.msra.mxu0 0.0
    %1777 = vmatprep.subr.mxu0 0.0
    %1778 = vmatpush2.xpose.msra.mxu0 0.0
    %1779 = vmatprep.subr.mxu0 0.0
    %1780 = vmatpush2.xpose.msra.mxu0 0.0
    %1781 = vmatprep.subr.mxu0 0.0
    %1782 = vmatpush2.xpose.msra.mxu0 0.0
    %1783 = vmatprep.subr.mxu0 0.0
    %1784 = vmatpush2.xpose.msra.mxu0 0.0
    %1785 = vmatprep.subr.mxu0 0.0
    %1786 = vmatpush2.xpose.msra.mxu0 0.0
    %1787 = vmatprep.subr.mxu0 0.0
    %1788 = vmatpush2.xpose.msra.mxu0 0.0
    %1789 = vmatprep.subr.mxu0 0.0
    %1790 = vmatpush2.xpose.msra.mxu0 0.0
    %1791 = vmatprep.subr.mxu0 0.0
    %1792 = vmatpush2.xpose.msra.mxu0 0.0
    %1793 = vmatprep.subr.mxu0 0.0
    %1794 = vmatpush2.xpose.msra.mxu0 0.0
    %1795 = vmatprep.subr.mxu0 0.0
    %1796 = vmatpush2.xpose.msra.mxu0 0.0
    %1797 = vmatprep.subr.mxu0 0.0
    %1798 = vmatpush2.xpose.msra.mxu0 0.0
    %1799 = vmatprep.subr.mxu0 0.0
    %1800 = vmatpush2.xpose.msra.mxu0 0.0
    %1801 = vmatprep.subr.mxu0 0.0
    %1802 = vmatpush2.xpose.msra.mxu0 0.0
    %1803 = vmatprep.mubr.f32.mxu0 0.0
    %1804 = vmatmul.mubr.f32.gmra.mxu0 %v1731
    %v1805 = vpop.f32.mrf.mxu0
    %v1806 = vadd.f32 0.0, %v1805
    %v1807 = vpop.f32.mrf.mxu0
    %1808 = vmatprep.mubr.f32.mxu0 0.0
    %1809 = vmatmul.mubr.f32.gmra.mxu0 %v1733
    %v1810 = vpop.f32.mrf.mxu0
    %v1811 = vadd.f32 0.0, %v1810
    %v1812 = vpop.f32.mrf.mxu0
    %1813 = vdwg.mxu0
    %1814 = vrot.lane.b32.xlu0 %v1530, 64
    %v1815 = vpop.permute.xlu0 %1814
    %1816 = vrot.lane.b32.xlu0 %v1532, 64
    %v1817 = vpop.permute.xlu0 %1816
    %v1818 = vsel %vm408, %v1530, 0
    %v1820 = vsel %vm408, %v1532, 0
    %v1822 = vsel %vm408, %v1815, 0
    %v1824 = vsel %vm408, %v1817, 0
    %1826 = vmatprep.subr.mxu0 0.0
    %1827 = vmatpush1.xpose.msra.mxu0 0.0
    %1828 = vmatprep.subr.mxu0 0.0
    %1829 = vmatpush1.xpose.msra.mxu0 0.0
    %1830 = vmatprep.subr.mxu0 0.0
    %1831 = vmatpush1.xpose.msra.mxu0 0.0
    %1832 = vmatprep.subr.mxu0 0.0
    %1833 = vmatpush1.xpose.msra.mxu0 0.0
    %1834 = vmatprep.subr.mxu0 0.0
    %1835 = vmatpush1.xpose.msra.mxu0 0.0
    %1836 = vmatprep.subr.mxu0 0.0
    %1837 = vmatpush1.xpose.msra.mxu0 0.0
    %1838 = vmatprep.subr.mxu0 0.0
    %1839 = vmatpush1.xpose.msra.mxu0 0.0
    %1840 = vmatprep.subr.mxu0 0.0
    %1841 = vmatpush1.xpose.msra.mxu0 0.0
    %1842 = vmatprep.subr.mxu0 0.0
    %1843 = vmatpush1.xpose.msra.mxu0 0.0
    %1844 = vmatprep.subr.mxu0 0.0
    %1845 = vmatpush1.xpose.msra.mxu0 0.0
    %1846 = vmatprep.subr.mxu0 0.0
    %1847 = vmatpush1.xpose.msra.mxu0 0.0
    %1848 = vmatprep.subr.mxu0 0.0
    %1849 = vmatpush1.xpose.msra.mxu0 0.0
    %1850 = vmatprep.subr.mxu0 0.0
    %1851 = vmatpush1.xpose.msra.mxu0 0.0
    %1852 = vmatprep.subr.mxu0 0.0
    %1853 = vmatpush1.xpose.msra.mxu0 0.0
    %1854 = vmatprep.subr.mxu0 0.0
    %1855 = vmatpush1.xpose.msra.mxu0 %v1824
    %1856 = vmatprep.subr.mxu0 0.0
    %1857 = vmatpush1.xpose.msra.mxu0 %v1822
    %1858 = vmatprep.subr.mxu0 0.0
    %1859 = vmatpush2.xpose.msra.mxu0 0.0
    %1860 = vmatprep.subr.mxu0 0.0
    %1861 = vmatpush2.xpose.msra.mxu0 0.0
    %1862 = vmatprep.subr.mxu0 0.0
    %1863 = vmatpush2.xpose.msra.mxu0 0.0
    %1864 = vmatprep.subr.mxu0 0.0
    %1865 = vmatpush2.xpose.msra.mxu0 0.0
    %1866 = vmatprep.subr.mxu0 0.0
    %1867 = vmatpush2.xpose.msra.mxu0 0.0
    %1868 = vmatprep.subr.mxu0 0.0
    %1869 = vmatpush2.xpose.msra.mxu0 0.0
    %1870 = vmatprep.subr.mxu0 0.0
    %1871 = vmatpush2.xpose.msra.mxu0 0.0
    %1872 = vmatprep.subr.mxu0 0.0
    %1873 = vmatpush2.xpose.msra.mxu0 0.0
    %1874 = vmatprep.subr.mxu0 0.0
    %1875 = vmatpush2.xpose.msra.mxu0 0.0
    %1876 = vmatprep.subr.mxu0 0.0
    %1877 = vmatpush2.xpose.msra.mxu0 0.0
    %1878 = vmatprep.subr.mxu0 0.0
    %1879 = vmatpush2.xpose.msra.mxu0 0.0
    %1880 = vmatprep.subr.mxu0 0.0
    %1881 = vmatpush2.xpose.msra.mxu0 0.0
    %1882 = vmatprep.subr.mxu0 0.0
    %1883 = vmatpush2.xpose.msra.mxu0 0.0
    %1884 = vmatprep.subr.mxu0 0.0
    %1885 = vmatpush2.xpose.msra.mxu0 0.0
    %1886 = vmatprep.subr.mxu0 0.0
    %1887 = vmatpush2.xpose.msra.mxu0 0.0
    %1888 = vmatprep.subr.mxu0 0.0
    %1889 = vmatpush2.xpose.msra.mxu0 0.0
    %1890 = vmatprep.mubr.f32.mxu0 0.0
    %1891 = vmatmul.mubr.f32.gmra.mxu0 %v1818
    %v1892 = vpop.f32.mrf.mxu0
    %v1893 = vadd.f32 0.0, %v1892
    %v1894 = vpop.f32.mrf.mxu0
    %1895 = vmatprep.mubr.f32.mxu0 0.0
    %1896 = vmatmul.mubr.f32.gmra.mxu0 %v1820
    %v1897 = vpop.f32.mrf.mxu0
    %v1898 = vadd.f32 0.0, %v1897
    %v1899 = vpop.f32.mrf.mxu0
    %1900 = vdwg.mxu0
    %v1901 = vmul.f32 %v1632, 0.25
    %v1902 = vmul.f32 %v1637, 0.25
    %v1903 = vmul.f32 %v1719, 0.25
    %v1904 = vmul.f32 %v1724, 0.25
    %v1905 = vmul.f32 %v1806, 0.25
    %v1906 = vmul.f32 %v1811, 0.25
    %v1907 = vmul.f32 %v1893, 0.25
    %v1908 = vmul.f32 %v1898, 0.25
    %v1909 = vsel %vm408, %v1901, -inf
    %1910 = vmax.xlane.f32.xlu0 %v1909
    %v1911 = vpop.xlane.xlu0 %1910
    %v1912 = vsel %vm408, %v1902, -inf
    %1913 = vmax.xlane.f32.xlu0 %v1912
    %v1914 = vpop.xlane.xlu0 %1913
    %v1915 = vsel %vm408, %v1903, -inf
    %1916 = vmax.xlane.f32.xlu0 %v1915
    %v1917 = vpop.xlane.xlu0 %1916
    %v1918 = vsel %vm408, %v1904, -inf
    %1919 = vmax.xlane.f32.xlu0 %v1918
    %v1920 = vpop.xlane.xlu0 %1919
    %v1921 = vsel %vm408, %v1905, -inf
    %1922 = vmax.xlane.f32.xlu0 %v1921
    %v1923 = vpop.xlane.xlu0 %1922
    %v1924 = vsel %vm408, %v1906, -inf
    %1925 = vmax.xlane.f32.xlu0 %v1924
    %v1926 = vpop.xlane.xlu0 %1925
    %v1927 = vsel %vm408, %v1907, -inf
    %1928 = vmax.xlane.f32.xlu0 %v1927
    %v1929 = vpop.xlane.xlu0 %1928
    %v1930 = vsel %vm408, %v1908, -inf
    %1931 = vmax.xlane.f32.xlu0 %v1930
    %v1932 = vpop.xlane.xlu0 %1931
    %v1933 = vsub.f32 %v1901, %v1911
    %v1934 = vsub.f32 %v1902, %v1914
    %v1935 = vsub.f32 %v1903, %v1917
    %v1936 = vsub.f32 %v1904, %v1920
    %v1937 = vsub.f32 %v1905, %v1923
    %v1938 = vsub.f32 %v1906, %v1926
    %v1939 = vsub.f32 %v1907, %v1929
    %v1940 = vsub.f32 %v1908, %v1932
    %v1941 = vmul.f32 %v1933, 1.442695
    %v1942 = vpow.pop %v1941
    %v1943 = vmul.f32 %v1934, 1.442695
    %v1944 = vpow.pop %v1943
    %v1945 = vmul.f32 %v1935, 1.442695
    %v1946 = vpow.pop %v1945
    %v1947 = vmul.f32 %v1936, 1.442695
    %v1948 = vpow.pop %v1947
    %v1949 = vmul.f32 %v1937, 1.442695
    %v1950 = vpow.pop %v1949
    %v1951 = vmul.f32 %v1938, 1.442695
    %v1952 = vpow.pop %v1951
    %v1953 = vmul.f32 %v1939, 1.442695
    %v1954 = vpow.pop %v1953
    %v1955 = vmul.f32 %v1940, 1.442695
    %v1956 = vpow.pop %v1955
    %v1957 = vsel %vm408, %v1942, 0.0
    %1958 = vadd.xlane.f32.xlu0 %v1957
    %v1959 = vpop.xlane.xlu0 %1958
    %v1960 = vsel %vm408, %v1944, 0.0
    %1961 = vadd.xlane.f32.xlu0 %v1960
    %v1962 = vpop.xlane.xlu0 %1961
    %v1963 = vsel %vm408, %v1946, 0.0
    %1964 = vadd.xlane.f32.xlu0 %v1963
    %v1965 = vpop.xlane.xlu0 %1964
    %v1966 = vsel %vm408, %v1948, 0.0
    %1967 = vadd.xlane.f32.xlu0 %v1966
    %v1968 = vpop.xlane.xlu0 %1967
    %v1969 = vsel %vm408, %v1950, 0.0
    %1970 = vadd.xlane.f32.xlu0 %v1969
    %v1971 = vpop.xlane.xlu0 %1970
    %v1972 = vsel %vm408, %v1952, 0.0
    %1973 = vadd.xlane.f32.xlu0 %v1972
    %v1974 = vpop.xlane.xlu0 %1973
    %v1975 = vsel %vm408, %v1954, 0.0
    %1976 = vadd.xlane.f32.xlu0 %v1975
    %v1977 = vpop.xlane.xlu0 %1976
    %v1978 = vsel %vm408, %v1956, 0.0
    %1979 = vadd.xlane.f32.xlu0 %v1978
    %v1980 = vpop.xlane.xlu0 %1979
    %v1981 = vrcp.pop %v1959
    %v1982 = vrcp.pop %v1962
    %v1983 = vrcp.pop %v1965
    %v1984 = vrcp.pop %v1968
    %v1985 = vrcp.pop %v1971
    %v1986 = vrcp.pop %v1974
    %v1987 = vrcp.pop %v1977
    %v1988 = vrcp.pop %v1980
    %v1989 = vmul.f32 %v1942, %v1981
    %v1990 = vmul.f32 %v1944, %v1982
    %v1991 = vmul.f32 %v1946, %v1983
    %v1992 = vmul.f32 %v1948, %v1984
    %v1993 = vmul.f32 %v1950, %v1985
    %v1994 = vmul.f32 %v1952, %v1986
    %v1995 = vmul.f32 %v1954, %v1987
    %v1996 = vmul.f32 %v1956, %v1988
    %v1998 = vsel %vm408, %v1989, 0
    %v2001 = vsel %vm408, %v1990, 0
    %2003 = vmatprep.subr.mxu0 0.0
    %2004 = vmatpush1.msra.mxu0 0.0
    %2005 = vmatprep.subr.mxu0 0.0
    %2006 = vmatpush1.msra.mxu0 0.0
    %2007 = vmatprep.subr.mxu0 0.0
    %2008 = vmatpush1.msra.mxu0 0.0
    %2009 = vmatprep.subr.mxu0 0.0
    %2010 = vmatpush1.msra.mxu0 0.0
    %2011 = vmatprep.subr.mxu0 0.0
    %2012 = vmatpush1.msra.mxu0 0.0
    %2013 = vmatprep.subr.mxu0 0.0
    %2014 = vmatpush1.msra.mxu0 0.0
    %2015 = vmatprep.subr.mxu0 0.0
    %2016 = vmatpush1.msra.mxu0 0.0
    %2017 = vmatprep.subr.mxu0 0.0
    %2018 = vmatpush1.msra.mxu0 0.0
    %2019 = vmatprep.subr.mxu0 0.0
    %2020 = vmatpush1.msra.mxu0 0.0
    %2021 = vmatprep.subr.mxu0 0.0
    %2022 = vmatpush1.msra.mxu0 0.0
    %2023 = vmatprep.subr.mxu0 0.0
    %2024 = vmatpush1.msra.mxu0 0.0
    %2025 = vmatprep.subr.mxu0 0.0
    %2026 = vmatpush1.msra.mxu0 0.0
    %2027 = vmatprep.subr.mxu0 0.0
    %2028 = vmatpush1.msra.mxu0 0.0
    %2029 = vmatprep.subr.mxu0 0.0
    %2030 = vmatpush1.msra.mxu0 0.0
    %2031 = vmatprep.subr.mxu0 0.0
    %2032 = vmatpush1.msra.mxu0 %v368
    %2033 = vmatprep.subr.mxu0 0.0
    %2034 = vmatpush1.msra.mxu0 %v362
    %2035 = vmatprep.subr.mxu0 0.0
    %2036 = vmatpush2.msra.mxu0 0.0
    %2037 = vmatprep.subr.mxu0 0.0
    %2038 = vmatpush2.msra.mxu0 0.0
    %2039 = vmatprep.subr.mxu0 0.0
    %2040 = vmatpush2.msra.mxu0 0.0
    %2041 = vmatprep.subr.mxu0 0.0
    %2042 = vmatpush2.msra.mxu0 0.0
    %2043 = vmatprep.subr.mxu0 0.0
    %2044 = vmatpush2.msra.mxu0 0.0
    %2045 = vmatprep.subr.mxu0 0.0
    %2046 = vmatpush2.msra.mxu0 0.0
    %2047 = vmatprep.subr.mxu0 0.0
    %2048 = vmatpush2.msra.mxu0 0.0
    %2049 = vmatprep.subr.mxu0 0.0
    %2050 = vmatpush2.msra.mxu0 0.0
    %2051 = vmatprep.subr.mxu0 0.0
    %2052 = vmatpush2.msra.mxu0 0.0
    %2053 = vmatprep.subr.mxu0 0.0
    %2054 = vmatpush2.msra.mxu0 0.0
    %2055 = vmatprep.subr.mxu0 0.0
    %2056 = vmatpush2.msra.mxu0 0.0
    %2057 = vmatprep.subr.mxu0 0.0
    %2058 = vmatpush2.msra.mxu0 0.0
    %2059 = vmatprep.subr.mxu0 0.0
    %2060 = vmatpush2.msra.mxu0 0.0
    %2061 = vmatprep.subr.mxu0 0.0
    %2062 = vmatpush2.msra.mxu0 0.0
    %2063 = vmatprep.subr.mxu0 0.0
    %2064 = vmatpush2.msra.mxu0 0.0
    %2065 = vmatprep.subr.mxu0 0.0
    %2066 = vmatpush2.msra.mxu0 0.0
    %2067 = vmatprep.mubr.f32.mxu0 0.0
    %2068 = vmatmul.mubr.f32.gmra.mxu0 %v1998
    %v2069 = vpop.f32.mrf.mxu0
    %v2070 = vadd.f32 0.0, %v2069
    %v2071 = vpop.f32.mrf.mxu0
    %2072 = vmatprep.mubr.f32.mxu0 0.0
    %2073 = vmatmul.mubr.f32.gmra.mxu0 %v2001
    %v2074 = vpop.f32.mrf.mxu0
    %v2075 = vadd.f32 0.0, %v2074
    %v2076 = vpop.f32.mrf.mxu0
    %2077 = vdwg.mxu0
    %v2079 = vsel %vm408, %v1991, 0
    %v2082 = vsel %vm408, %v1992, 0
    %2084 = vmatprep.subr.mxu0 0.0
    %2085 = vmatpush1.msra.mxu0 0.0
    %2086 = vmatprep.subr.mxu0 0.0
    %2087 = vmatpush1.msra.mxu0 0.0
    %2088 = vmatprep.subr.mxu0 0.0
    %2089 = vmatpush1.msra.mxu0 0.0
    %2090 = vmatprep.subr.mxu0 0.0
    %2091 = vmatpush1.msra.mxu0 0.0
    %2092 = vmatprep.subr.mxu0 0.0
    %2093 = vmatpush1.msra.mxu0 0.0
    %2094 = vmatprep.subr.mxu0 0.0
    %2095 = vmatpush1.msra.mxu0 0.0
    %2096 = vmatprep.subr.mxu0 0.0
    %2097 = vmatpush1.msra.mxu0 0.0
    %2098 = vmatprep.subr.mxu0 0.0
    %2099 = vmatpush1.msra.mxu0 0.0
    %2100 = vmatprep.subr.mxu0 0.0
    %2101 = vmatpush1.msra.mxu0 0.0
    %2102 = vmatprep.subr.mxu0 0.0
    %2103 = vmatpush1.msra.mxu0 0.0
    %2104 = vmatprep.subr.mxu0 0.0
    %2105 = vmatpush1.msra.mxu0 0.0
    %2106 = vmatprep.subr.mxu0 0.0
    %2107 = vmatpush1.msra.mxu0 0.0
    %2108 = vmatprep.subr.mxu0 0.0
    %2109 = vmatpush1.msra.mxu0 0.0
    %2110 = vmatprep.subr.mxu0 0.0
    %2111 = vmatpush1.msra.mxu0 0.0
    %2112 = vmatprep.subr.mxu0 0.0
    %2113 = vmatpush1.msra.mxu0 %v1538
    %2114 = vmatprep.subr.mxu0 0.0
    %2115 = vmatpush1.msra.mxu0 %v1536
    %2116 = vmatprep.subr.mxu0 0.0
    %2117 = vmatpush2.msra.mxu0 0.0
    %2118 = vmatprep.subr.mxu0 0.0
    %2119 = vmatpush2.msra.mxu0 0.0
    %2120 = vmatprep.subr.mxu0 0.0
    %2121 = vmatpush2.msra.mxu0 0.0
    %2122 = vmatprep.subr.mxu0 0.0
    %2123 = vmatpush2.msra.mxu0 0.0
    %2124 = vmatprep.subr.mxu0 0.0
    %2125 = vmatpush2.msra.mxu0 0.0
    %2126 = vmatprep.subr.mxu0 0.0
    %2127 = vmatpush2.msra.mxu0 0.0
    %2128 = vmatprep.subr.mxu0 0.0
    %2129 = vmatpush2.msra.mxu0 0.0
    %2130 = vmatprep.subr.mxu0 0.0
    %2131 = vmatpush2.msra.mxu0 0.0
    %2132 = vmatprep.subr.mxu0 0.0
    %2133 = vmatpush2.msra.mxu0 0.0
    %2134 = vmatprep.subr.mxu0 0.0
    %2135 = vmatpush2.msra.mxu0 0.0
    %2136 = vmatprep.subr.mxu0 0.0
    %2137 = vmatpush2.msra.mxu0 0.0
    %2138 = vmatprep.subr.mxu0 0.0
    %2139 = vmatpush2.msra.mxu0 0.0
    %2140 = vmatprep.subr.mxu0 0.0
    %2141 = vmatpush2.msra.mxu0 0.0
    %2142 = vmatprep.subr.mxu0 0.0
    %2143 = vmatpush2.msra.mxu0 0.0
    %2144 = vmatprep.subr.mxu0 0.0
    %2145 = vmatpush2.msra.mxu0 0.0
    %2146 = vmatprep.subr.mxu0 0.0
    %2147 = vmatpush2.msra.mxu0 0.0
    %2148 = vmatprep.mubr.f32.mxu0 0.0
    %2149 = vmatmul.mubr.f32.gmra.mxu0 %v2079
    %v2150 = vpop.f32.mrf.mxu0
    %v2151 = vadd.f32 0.0, %v2150
    %v2152 = vpop.f32.mrf.mxu0
    %2153 = vmatprep.mubr.f32.mxu0 0.0
    %2154 = vmatmul.mubr.f32.gmra.mxu0 %v2082
    %v2155 = vpop.f32.mrf.mxu0
    %v2156 = vadd.f32 0.0, %v2155
    %v2157 = vpop.f32.mrf.mxu0
    %2158 = vdwg.mxu0
    %v2160 = vsel %vm408, %v1993, 0
    %v2163 = vsel %vm408, %v1994, 0
    %2165 = vmatprep.subr.mxu0 0.0
    %2166 = vmatpush1.msra.mxu0 0.0
    %2167 = vmatprep.subr.mxu0 0.0
    %2168 = vmatpush1.msra.mxu0 0.0
    %2169 = vmatprep.subr.mxu0 0.0
    %2170 = vmatpush1.msra.mxu0 0.0
    %2171 = vmatprep.subr.mxu0 0.0
    %2172 = vmatpush1.msra.mxu0 0.0
    %2173 = vmatprep.subr.mxu0 0.0
    %2174 = vmatpush1.msra.mxu0 0.0
    %2175 = vmatprep.subr.mxu0 0.0
    %2176 = vmatpush1.msra.mxu0 0.0
    %2177 = vmatprep.subr.mxu0 0.0
    %2178 = vmatpush1.msra.mxu0 0.0
    %2179 = vmatprep.subr.mxu0 0.0
    %2180 = vmatpush1.msra.mxu0 0.0
    %2181 = vmatprep.subr.mxu0 0.0
    %2182 = vmatpush1.msra.mxu0 0.0
    %2183 = vmatprep.subr.mxu0 0.0
    %2184 = vmatpush1.msra.mxu0 0.0
    %2185 = vmatprep.subr.mxu0 0.0
    %2186 = vmatpush1.msra.mxu0 0.0
    %2187 = vmatprep.subr.mxu0 0.0
    %2188 = vmatpush1.msra.mxu0 0.0
    %2189 = vmatprep.subr.mxu0 0.0
    %2190 = vmatpush1.msra.mxu0 0.0
    %2191 = vmatprep.subr.mxu0 0.0
    %2192 = vmatpush1.msra.mxu0 0.0
    %2193 = vmatprep.subr.mxu0 0.0
    %2194 = vmatpush1.msra.mxu0 %v1544
    %2195 = vmatprep.subr.mxu0 0.0
    %2196 = vmatpush1.msra.mxu0 %v1542
    %2197 = vmatprep.subr.mxu0 0.0
    %2198 = vmatpush2.msra.mxu0 0.0
    %2199 = vmatprep.subr.mxu0 0.0
    %2200 = vmatpush2.msra.mxu0 0.0
    %2201 = vmatprep.subr.mxu0 0.0
    %2202 = vmatpush2.msra.mxu0 0.0
    %2203 = vmatprep.subr.mxu0 0.0
    %2204 = vmatpush2.msra.mxu0 0.0
    %2205 = vmatprep.subr.mxu0 0.0
    %2206 = vmatpush2.msra.mxu0 0.0
    %2207 = vmatprep.subr.mxu0 0.0
    %2208 = vmatpush2.msra.mxu0 0.0
    %2209 = vmatprep.subr.mxu0 0.0
    %2210 = vmatpush2.msra.mxu0 0.0
    %2211 = vmatprep.subr.mxu0 0.0
    %2212 = vmatpush2.msra.mxu0 0.0
    %2213 = vmatprep.subr.mxu0 0.0
    %2214 = vmatpush2.msra.mxu0 0.0
    %2215 = vmatprep.subr.mxu0 0.0
    %2216 = vmatpush2.msra.mxu0 0.0
    %2217 = vmatprep.subr.mxu0 0.0
    %2218 = vmatpush2.msra.mxu0 0.0
    %2219 = vmatprep.subr.mxu0 0.0
    %2220 = vmatpush2.msra.mxu0 0.0
    %2221 = vmatprep.subr.mxu0 0.0
    %2222 = vmatpush2.msra.mxu0 0.0
    %2223 = vmatprep.subr.mxu0 0.0
    %2224 = vmatpush2.msra.mxu0 0.0
    %2225 = vmatprep.subr.mxu0 0.0
    %2226 = vmatpush2.msra.mxu0 0.0
    %2227 = vmatprep.subr.mxu0 0.0
    %2228 = vmatpush2.msra.mxu0 0.0
    %2229 = vmatprep.mubr.f32.mxu0 0.0
    %2230 = vmatmul.mubr.f32.gmra.mxu0 %v2160
    %v2231 = vpop.f32.mrf.mxu0
    %v2232 = vadd.f32 0.0, %v2231
    %v2233 = vpop.f32.mrf.mxu0
    %2234 = vmatprep.mubr.f32.mxu0 0.0
    %2235 = vmatmul.mubr.f32.gmra.mxu0 %v2163
    %v2236 = vpop.f32.mrf.mxu0
    %v2237 = vadd.f32 0.0, %v2236
    %v2238 = vpop.f32.mrf.mxu0
    %2239 = vdwg.mxu0
    %v2241 = vsel %vm408, %v1995, 0
    %v2244 = vsel %vm408, %v1996, 0
    %2246 = vmatprep.subr.mxu0 0.0
    %2247 = vmatpush1.msra.mxu0 0.0
    %2248 = vmatprep.subr.mxu0 0.0
    %2249 = vmatpush1.msra.mxu0 0.0
    %2250 = vmatprep.subr.mxu0 0.0
    %2251 = vmatpush1.msra.mxu0 0.0
    %2252 = vmatprep.subr.mxu0 0.0
    %2253 = vmatpush1.msra.mxu0 0.0
    %2254 = vmatprep.subr.mxu0 0.0
    %2255 = vmatpush1.msra.mxu0 0.0
    %2256 = vmatprep.subr.mxu0 0.0
    %2257 = vmatpush1.msra.mxu0 0.0
    %2258 = vmatprep.subr.mxu0 0.0
    %2259 = vmatpush1.msra.mxu0 0.0
    %2260 = vmatprep.subr.mxu0 0.0
    %2261 = vmatpush1.msra.mxu0 0.0
    %2262 = vmatprep.subr.mxu0 0.0
    %2263 = vmatpush1.msra.mxu0 0.0
    %2264 = vmatprep.subr.mxu0 0.0
    %2265 = vmatpush1.msra.mxu0 0.0
    %2266 = vmatprep.subr.mxu0 0.0
    %2267 = vmatpush1.msra.mxu0 0.0
    %2268 = vmatprep.subr.mxu0 0.0
    %2269 = vmatpush1.msra.mxu0 0.0
    %2270 = vmatprep.subr.mxu0 0.0
    %2271 = vmatpush1.msra.mxu0 0.0
    %2272 = vmatprep.subr.mxu0 0.0
    %2273 = vmatpush1.msra.mxu0 0.0
    %2274 = vmatprep.subr.mxu0 0.0
    %2275 = vmatpush1.msra.mxu0 %v1550
    %2276 = vmatprep.subr.mxu0 0.0
    %2277 = vmatpush1.msra.mxu0 %v1548
    %2278 = vmatprep.subr.mxu0 0.0
    %2279 = vmatpush2.msra.mxu0 0.0
    %2280 = vmatprep.subr.mxu0 0.0
    %2281 = vmatpush2.msra.mxu0 0.0
    %2282 = vmatprep.subr.mxu0 0.0
    %2283 = vmatpush2.msra.mxu0 0.0
    %2284 = vmatprep.subr.mxu0 0.0
    %2285 = vmatpush2.msra.mxu0 0.0
    %2286 = vmatprep.subr.mxu0 0.0
    %2287 = vmatpush2.msra.mxu0 0.0
    %2288 = vmatprep.subr.mxu0 0.0
    %2289 = vmatpush2.msra.mxu0 0.0
    %2290 = vmatprep.subr.mxu0 0.0
    %2291 = vmatpush2.msra.mxu0 0.0
    %2292 = vmatprep.subr.mxu0 0.0
    %2293 = vmatpush2.msra.mxu0 0.0
    %2294 = vmatprep.subr.mxu0 0.0
    %2295 = vmatpush2.msra.mxu0 0.0
    %2296 = vmatprep.subr.mxu0 0.0
    %2297 = vmatpush2.msra.mxu0 0.0
    %2298 = vmatprep.subr.mxu0 0.0
    %2299 = vmatpush2.msra.mxu0 0.0
    %2300 = vmatprep.subr.mxu0 0.0
    %2301 = vmatpush2.msra.mxu0 0.0
    %2302 = vmatprep.subr.mxu0 0.0
    %2303 = vmatpush2.msra.mxu0 0.0
    %2304 = vmatprep.subr.mxu0 0.0
    %2305 = vmatpush2.msra.mxu0 0.0
    %2306 = vmatprep.subr.mxu0 0.0
    %2307 = vmatpush2.msra.mxu0 0.0
    %2308 = vmatprep.subr.mxu0 0.0
    %2309 = vmatpush2.msra.mxu0 0.0
    %2310 = vmatprep.mubr.f32.mxu0 0.0
    %2311 = vmatmul.mubr.f32.gmra.mxu0 %v2241
    %v2312 = vpop.f32.mrf.mxu0
    %v2313 = vadd.f32 0.0, %v2312
    %v2314 = vpop.f32.mrf.mxu0
    %2315 = vmatprep.mubr.f32.mxu0 0.0
    %2316 = vmatmul.mubr.f32.gmra.mxu0 %v2244
    %v2317 = vpop.f32.mrf.mxu0
    %v2318 = vadd.f32 0.0, %v2317
    %v2319 = vpop.f32.mrf.mxu0
    %2320 = vdwg.mxu0
    %v2321 = vld [vmem:[%s5] sm:$0xff]
    %v2322 = vld [vmem:[%s5 + $0x8] sm:$0xff]
    %v2323 = vld [vmem:[%s5 + $0x10] sm:$0xff]
    %v2324 = vld [vmem:[%s5 + $0x18] sm:$0xff]
    %v2325 = vld [vmem:[%s5 + $0x20] sm:$0xff]
    %v2326 = vld [vmem:[%s5 + $0x28] sm:$0xff]
    %v2327 = vld [vmem:[%s5 + $0x30] sm:$0xff]
    %v2328 = vld [vmem:[%s5 + $0x38] sm:$0xff]
    %v2330 = vsel %vm408, %v2070, 0
    %v2333 = vsel %vm408, %v2075, 0
    %2335 = vmatprep.subr.mxu0 0.0
    %2336 = vmatpush1.msra.mxu0 0.0
    %2337 = vmatprep.subr.mxu0 0.0
    %2338 = vmatpush1.msra.mxu0 0.0
    %2339 = vmatprep.subr.mxu0 0.0
    %2340 = vmatpush1.msra.mxu0 0.0
    %2341 = vmatprep.subr.mxu0 0.0
    %2342 = vmatpush1.msra.mxu0 0.0
    %2343 = vmatprep.subr.mxu0 0.0
    %2344 = vmatpush1.msra.mxu0 0.0
    %2345 = vmatprep.subr.mxu0 0.0
    %2346 = vmatpush1.msra.mxu0 0.0
    %2347 = vmatprep.subr.mxu0 0.0
    %2348 = vmatpush1.msra.mxu0 0.0
    %2349 = vmatprep.subr.mxu0 0.0
    %2350 = vmatpush1.msra.mxu0 0.0
    %2351 = vmatprep.subr.mxu0 0.0
    %2352 = vmatpush1.msra.mxu0 0.0
    %2353 = vmatprep.subr.mxu0 0.0
    %2354 = vmatpush1.msra.mxu0 0.0
    %2355 = vmatprep.subr.mxu0 0.0
    %2356 = vmatpush1.msra.mxu0 0.0
    %2357 = vmatprep.subr.mxu0 0.0
    %2358 = vmatpush1.msra.mxu0 0.0
    %2359 = vmatprep.subr.mxu0 0.0
    %2360 = vmatpush1.msra.mxu0 0.0
    %2361 = vmatprep.subr.mxu0 0.0
    %2362 = vmatpush1.msra.mxu0 0.0
    %2363 = vmatprep.subr.mxu0 0.0
    %2364 = vmatpush1.msra.mxu0 %v2322
    %2365 = vmatprep.subr.mxu0 0.0
    %2366 = vmatpush1.msra.mxu0 %v2321
    %2367 = vmatprep.subr.mxu0 0.0
    %2368 = vmatpush2.msra.mxu0 0.0
    %2369 = vmatprep.subr.mxu0 0.0
    %2370 = vmatpush2.msra.mxu0 0.0
    %2371 = vmatprep.subr.mxu0 0.0
    %2372 = vmatpush2.msra.mxu0 0.0
    %2373 = vmatprep.subr.mxu0 0.0
    %2374 = vmatpush2.msra.mxu0 0.0
    %2375 = vmatprep.subr.mxu0 0.0
    %2376 = vmatpush2.msra.mxu0 0.0
    %2377 = vmatprep.subr.mxu0 0.0
    %2378 = vmatpush2.msra.mxu0 0.0
    %2379 = vmatprep.subr.mxu0 0.0
    %2380 = vmatpush2.msra.mxu0 0.0
    %2381 = vmatprep.subr.mxu0 0.0
    %2382 = vmatpush2.msra.mxu0 0.0
    %2383 = vmatprep.subr.mxu0 0.0
    %2384 = vmatpush2.msra.mxu0 0.0
    %2385 = vmatprep.subr.mxu0 0.0
    %2386 = vmatpush2.msra.mxu0 0.0
    %2387 = vmatprep.subr.mxu0 0.0
    %2388 = vmatpush2.msra.mxu0 0.0
    %2389 = vmatprep.subr.mxu0 0.0
    %2390 = vmatpush2.msra.mxu0 0.0
    %2391 = vmatprep.subr.mxu0 0.0
    %2392 = vmatpush2.msra.mxu0 0.0
    %2393 = vmatprep.subr.mxu0 0.0
    %2394 = vmatpush2.msra.mxu0 0.0
    %2395 = vmatprep.subr.mxu0 0.0
    %2396 = vmatpush2.msra.mxu0 0.0
    %2397 = vmatprep.subr.mxu0 0.0
    %2398 = vmatpush2.msra.mxu0 0.0
    %2399 = vmatprep.mubr.f32.mxu0 0.0
    %2400 = vmatmul.mubr.f32.gmra.mxu0 %v2330
    %v2401 = vpop.f32.mrf.mxu0
    %v2402 = vadd.f32 0.0, %v2401
    %v2403 = vpop.f32.mrf.mxu0
    %2404 = vmatprep.mubr.f32.mxu0 0.0
    %2405 = vmatmul.mubr.f32.gmra.mxu0 %v2333
    %v2406 = vpop.f32.mrf.mxu0
    %v2407 = vadd.f32 0.0, %v2406
    %v2408 = vpop.f32.mrf.mxu0
    %2409 = vdwg.mxu0
    %v2411 = vsel %vm408, %v2151, 0
    %v2414 = vsel %vm408, %v2156, 0
    %2416 = vmatprep.subr.mxu0 0.0
    %2417 = vmatpush1.msra.mxu0 0.0
    %2418 = vmatprep.subr.mxu0 0.0
    %2419 = vmatpush1.msra.mxu0 0.0
    %2420 = vmatprep.subr.mxu0 0.0
    %2421 = vmatpush1.msra.mxu0 0.0
    %2422 = vmatprep.subr.mxu0 0.0
    %2423 = vmatpush1.msra.mxu0 0.0
    %2424 = vmatprep.subr.mxu0 0.0
    %2425 = vmatpush1.msra.mxu0 0.0
    %2426 = vmatprep.subr.mxu0 0.0
    %2427 = vmatpush1.msra.mxu0 0.0
    %2428 = vmatprep.subr.mxu0 0.0
    %2429 = vmatpush1.msra.mxu0 0.0
    %2430 = vmatprep.subr.mxu0 0.0
    %2431 = vmatpush1.msra.mxu0 0.0
    %2432 = vmatprep.subr.mxu0 0.0
    %2433 = vmatpush1.msra.mxu0 0.0
    %2434 = vmatprep.subr.mxu0 0.0
    %2435 = vmatpush1.msra.mxu0 0.0
    %2436 = vmatprep.subr.mxu0 0.0
    %2437 = vmatpush1.msra.mxu0 0.0
    %2438 = vmatprep.subr.mxu0 0.0
    %2439 = vmatpush1.msra.mxu0 0.0
    %2440 = vmatprep.subr.mxu0 0.0
    %2441 = vmatpush1.msra.mxu0 0.0
    %2442 = vmatprep.subr.mxu0 0.0
    %2443 = vmatpush1.msra.mxu0 0.0
    %2444 = vmatprep.subr.mxu0 0.0
    %2445 = vmatpush1.msra.mxu0 %v2324
    %2446 = vmatprep.subr.mxu0 0.0
    %2447 = vmatpush1.msra.mxu0 %v2323
    %2448 = vmatprep.subr.mxu0 0.0
    %2449 = vmatpush2.msra.mxu0 0.0
    %2450 = vmatprep.subr.mxu0 0.0
    %2451 = vmatpush2.msra.mxu0 0.0
    %2452 = vmatprep.subr.mxu0 0.0
    %2453 = vmatpush2.msra.mxu0 0.0
    %2454 = vmatprep.subr.mxu0 0.0
    %2455 = vmatpush2.msra.mxu0 0.0
    %2456 = vmatprep.subr.mxu0 0.0
    %2457 = vmatpush2.msra.mxu0 0.0
    %2458 = vmatprep.subr.mxu0 0.0
    %2459 = vmatpush2.msra.mxu0 0.0
    %2460 = vmatprep.subr.mxu0 0.0
    %2461 = vmatpush2.msra.mxu0 0.0
    %2462 = vmatprep.subr.mxu0 0.0
    %2463 = vmatpush2.msra.mxu0 0.0
    %2464 = vmatprep.subr.mxu0 0.0
    %2465 = vmatpush2.msra.mxu0 0.0
    %2466 = vmatprep.subr.mxu0 0.0
    %2467 = vmatpush2.msra.mxu0 0.0
    %2468 = vmatprep.subr.mxu0 0.0
    %2469 = vmatpush2.msra.mxu0 0.0
    %2470 = vmatprep.subr.mxu0 0.0
    %2471 = vmatpush2.msra.mxu0 0.0
    %2472 = vmatprep.subr.mxu0 0.0
    %2473 = vmatpush2.msra.mxu0 0.0
    %2474 = vmatprep.subr.mxu0 0.0
    %2475 = vmatpush2.msra.mxu0 0.0
    %2476 = vmatprep.subr.mxu0 0.0
    %2477 = vmatpush2.msra.mxu0 0.0
    %2478 = vmatprep.subr.mxu0 0.0
    %2479 = vmatpush2.msra.mxu0 0.0
    %2480 = vmatprep.mubr.f32.mxu0 0.0
    %2481 = vmatmul.mubr.f32.gmra.mxu0 %v2411
    %v2482 = vpop.f32.mrf.mxu0
    %v2483 = vadd.f32 0.0, %v2482
    %v2484 = vpop.f32.mrf.mxu0
    %2485 = vmatprep.mubr.f32.mxu0 0.0
    %2486 = vmatmul.mubr.f32.gmra.mxu0 %v2414
    %v2487 = vpop.f32.mrf.mxu0
    %v2488 = vadd.f32 0.0, %v2487
    %v2489 = vpop.f32.mrf.mxu0
    %2490 = vdwg.mxu0
    %v2492 = vsel %vm408, %v2232, 0
    %v2495 = vsel %vm408, %v2237, 0
    %2497 = vmatprep.subr.mxu0 0.0
    %2498 = vmatpush1.msra.mxu0 0.0
    %2499 = vmatprep.subr.mxu0 0.0
    %2500 = vmatpush1.msra.mxu0 0.0
    %2501 = vmatprep.subr.mxu0 0.0
    %2502 = vmatpush1.msra.mxu0 0.0
    %2503 = vmatprep.subr.mxu0 0.0
    %2504 = vmatpush1.msra.mxu0 0.0
    %2505 = vmatprep.subr.mxu0 0.0
    %2506 = vmatpush1.msra.mxu0 0.0
    %2507 = vmatprep.subr.mxu0 0.0
    %2508 = vmatpush1.msra.mxu0 0.0
    %2509 = vmatprep.subr.mxu0 0.0
    %2510 = vmatpush1.msra.mxu0 0.0
    %2511 = vmatprep.subr.mxu0 0.0
    %2512 = vmatpush1.msra.mxu0 0.0
    %2513 = vmatprep.subr.mxu0 0.0
    %2514 = vmatpush1.msra.mxu0 0.0
    %2515 = vmatprep.subr.mxu0 0.0
    %2516 = vmatpush1.msra.mxu0 0.0
    %2517 = vmatprep.subr.mxu0 0.0
    %2518 = vmatpush1.msra.mxu0 0.0
    %2519 = vmatprep.subr.mxu0 0.0
    %2520 = vmatpush1.msra.mxu0 0.0
    %2521 = vmatprep.subr.mxu0 0.0
    %2522 = vmatpush1.msra.mxu0 0.0
    %2523 = vmatprep.subr.mxu0 0.0
    %2524 = vmatpush1.msra.mxu0 0.0
    %2525 = vmatprep.subr.mxu0 0.0
    %2526 = vmatpush1.msra.mxu0 %v2326
    %2527 = vmatprep.subr.mxu0 0.0
    %2528 = vmatpush1.msra.mxu0 %v2325
    %2529 = vmatprep.subr.mxu0 0.0
    %2530 = vmatpush2.msra.mxu0 0.0
    %2531 = vmatprep.subr.mxu0 0.0
    %2532 = vmatpush2.msra.mxu0 0.0
    %2533 = vmatprep.subr.mxu0 0.0
    %2534 = vmatpush2.msra.mxu0 0.0
    %2535 = vmatprep.subr.mxu0 0.0
    %2536 = vmatpush2.msra.mxu0 0.0
    %2537 = vmatprep.subr.mxu0 0.0
    %2538 = vmatpush2.msra.mxu0 0.0
    %2539 = vmatprep.subr.mxu0 0.0
    %2540 = vmatpush2.msra.mxu0 0.0
    %2541 = vmatprep.subr.mxu0 0.0
    %2542 = vmatpush2.msra.mxu0 0.0
    %2543 = vmatprep.subr.mxu0 0.0
    %2544 = vmatpush2.msra.mxu0 0.0
    %2545 = vmatprep.subr.mxu0 0.0
    %2546 = vmatpush2.msra.mxu0 0.0
    %2547 = vmatprep.subr.mxu0 0.0
    %2548 = vmatpush2.msra.mxu0 0.0
    %2549 = vmatprep.subr.mxu0 0.0
    %2550 = vmatpush2.msra.mxu0 0.0
    %2551 = vmatprep.subr.mxu0 0.0
    %2552 = vmatpush2.msra.mxu0 0.0
    %2553 = vmatprep.subr.mxu0 0.0
    %2554 = vmatpush2.msra.mxu0 0.0
    %2555 = vmatprep.subr.mxu0 0.0
    %2556 = vmatpush2.msra.mxu0 0.0
    %2557 = vmatprep.subr.mxu0 0.0
    %2558 = vmatpush2.msra.mxu0 0.0
    %2559 = vmatprep.subr.mxu0 0.0
    %2560 = vmatpush2.msra.mxu0 0.0
    %2561 = vmatprep.mubr.f32.mxu0 0.0
    %2562 = vmatmul.mubr.f32.gmra.mxu0 %v2492
    %v2563 = vpop.f32.mrf.mxu0
    %v2564 = vadd.f32 0.0, %v2563
    %v2565 = vpop.f32.mrf.mxu0
    %2566 = vmatprep.mubr.f32.mxu0 0.0
    %2567 = vmatmul.mubr.f32.gmra.mxu0 %v2495
    %v2568 = vpop.f32.mrf.mxu0
    %v2569 = vadd.f32 0.0, %v2568
    %v2570 = vpop.f32.mrf.mxu0
    %2571 = vdwg.mxu0
    %v2573 = vsel %vm408, %v2313, 0
    %v2576 = vsel %vm408, %v2318, 0
    %2578 = vmatprep.subr.mxu0 0.0
    %2579 = vmatpush1.msra.mxu0 0.0
    %2580 = vmatprep.subr.mxu0 0.0
    %2581 = vmatpush1.msra.mxu0 0.0
    %2582 = vmatprep.subr.mxu0 0.0
    %2583 = vmatpush1.msra.mxu0 0.0
    %2584 = vmatprep.subr.mxu0 0.0
    %2585 = vmatpush1.msra.mxu0 0.0
    %2586 = vmatprep.subr.mxu0 0.0
    %2587 = vmatpush1.msra.mxu0 0.0
    %2588 = vmatprep.subr.mxu0 0.0
    %2589 = vmatpush1.msra.mxu0 0.0
    %2590 = vmatprep.subr.mxu0 0.0
    %2591 = vmatpush1.msra.mxu0 0.0
    %2592 = vmatprep.subr.mxu0 0.0
    %2593 = vmatpush1.msra.mxu0 0.0
    %2594 = vmatprep.subr.mxu0 0.0
    %2595 = vmatpush1.msra.mxu0 0.0
    %2596 = vmatprep.subr.mxu0 0.0
    %2597 = vmatpush1.msra.mxu0 0.0
    %2598 = vmatprep.subr.mxu0 0.0
    %2599 = vmatpush1.msra.mxu0 0.0
    %2600 = vmatprep.subr.mxu0 0.0
    %2601 = vmatpush1.msra.mxu0 0.0
    %2602 = vmatprep.subr.mxu0 0.0
    %2603 = vmatpush1.msra.mxu0 0.0
    %2604 = vmatprep.subr.mxu0 0.0
    %2605 = vmatpush1.msra.mxu0 0.0
    %2606 = vmatprep.subr.mxu0 0.0
    %2607 = vmatpush1.msra.mxu0 %v2328
    %2608 = vmatprep.subr.mxu0 0.0
    %2609 = vmatpush1.msra.mxu0 %v2327
    %2610 = vmatprep.subr.mxu0 0.0
    %2611 = vmatpush2.msra.mxu0 0.0
    %2612 = vmatprep.subr.mxu0 0.0
    %2613 = vmatpush2.msra.mxu0 0.0
    %2614 = vmatprep.subr.mxu0 0.0
    %2615 = vmatpush2.msra.mxu0 0.0
    %2616 = vmatprep.subr.mxu0 0.0
    %2617 = vmatpush2.msra.mxu0 0.0
    %2618 = vmatprep.subr.mxu0 0.0
    %2619 = vmatpush2.msra.mxu0 0.0
    %2620 = vmatprep.subr.mxu0 0.0
    %2621 = vmatpush2.msra.mxu0 0.0
    %2622 = vmatprep.subr.mxu0 0.0
    %2623 = vmatpush2.msra.mxu0 0.0
    %2624 = vmatprep.subr.mxu0 0.0
    %2625 = vmatpush2.msra.mxu0 0.0
    %2626 = vmatprep.subr.mxu0 0.0
    %2627 = vmatpush2.msra.mxu0 0.0
    %2628 = vmatprep.subr.mxu0 0.0
    %2629 = vmatpush2.msra.mxu0 0.0
    %2630 = vmatprep.subr.mxu0 0.0
    %2631 = vmatpush2.msra.mxu0 0.0
    %2632 = vmatprep.subr.mxu0 0.0
    %2633 = vmatpush2.msra.mxu0 0.0
    %2634 = vmatprep.subr.mxu0 0.0
    %2635 = vmatpush2.msra.mxu0 0.0
    %2636 = vmatprep.subr.mxu0 0.0
    %2637 = vmatpush2.msra.mxu0 0.0
    %2638 = vmatprep.subr.mxu0 0.0
    %2639 = vmatpush2.msra.mxu0 0.0
    %2640 = vmatprep.subr.mxu0 0.0
    %2641 = vmatpush2.msra.mxu0 0.0
    %2642 = vmatprep.mubr.f32.mxu0 0.0
    %2643 = vmatmul.mubr.f32.gmra.mxu0 %v2573
    %v2644 = vpop.f32.mrf.mxu0
    %v2645 = vadd.f32 0.0, %v2644
    %v2646 = vpop.f32.mrf.mxu0
    %2647 = vmatprep.mubr.f32.mxu0 0.0
    %2648 = vmatmul.mubr.f32.gmra.mxu0 %v2576
    %v2649 = vpop.f32.mrf.mxu0
    %v2650 = vadd.f32 0.0, %v2649
    %v2651 = vpop.f32.mrf.mxu0
    %2652 = vdwg.mxu0
    %v2653 = vsel %vm73, %v2402, 0.0
    %v2654 = vsel %vm73, %v2483, 0.0
    %v2655 = vadd.f32 %v2653, %v2654
    %v2656 = vsel %vm73, %v2564, 0.0
    %v2657 = vadd.f32 %v2655, %v2656
    %v2658 = vsel %vm73, %v2645, 0.0
    %v2659 = vadd.f32 %v2657, %v2658
    %v2660 = vsel %vm73, %v2407, 0.0
    %v2661 = vsel %vm73, %v2488, 0.0
    %v2662 = vadd.f32 %v2660, %v2661
    %v2663 = vsel %vm73, %v2569, 0.0
    %v2664 = vadd.f32 %v2662, %v2663
    %v2665 = vsel %vm73, %v2650, 0.0
    %v2666 = vadd.f32 %v2664, %v2665
    %v2667 = vadd.f32 %v153, %v1511
    %v2668 = vadd.f32 %v158, %v1518
    %v2669 = vadd.f32 %v163, %v2659
    %v2670 = vadd.f32 %v168, %v2666
    %v2671 = vlaneseq
    %v2672 = vshrl.u32 %v2671, 7
    %v2673 = vsub.s32 4, %v2672
    %v2674 = vrot.slane %v171, %v2673
    %v2675 = vadd.f32 %v2667, %v2674
    %v2676 = vadd.f32 %v2668, %v2674
    %v2677 = vadd.f32 %v2669, %v2674
    %v2678 = vadd.f32 %v2670, %v2674
    %v2679 = vsel %vm73, %v2675, 0.0
    %2680 = vadd.xlane.f32.xlu0 %v2679
    %v2681 = vpop.xlane.xlu0 %2680
    %v2682 = vsel %vm73, %v2676, 0.0
    %2683 = vadd.xlane.f32.xlu0 %v2682
    %v2684 = vpop.xlane.xlu0 %2683
    %v2685 = vsel %vm73, %v2677, 0.0
    %2686 = vadd.xlane.f32.xlu0 %v2685
    %v2687 = vpop.xlane.xlu0 %2686
    %v2688 = vsel %vm73, %v2678, 0.0
    %2689 = vadd.xlane.f32.xlu0 %v2688
    %v2690 = vpop.xlane.xlu0 %2689
    %v2691 = vmul.f32 %v2681, %v184
    %v2692 = vmul.f32 %v2684, %v184
    %v2693 = vmul.f32 %v2687, %v184
    %v2694 = vmul.f32 %v2690, %v184
    %v2695 = vsub.f32 %v2675, %v2691
    %v2696 = vsub.f32 %v2676, %v2692
    %v2697 = vsub.f32 %v2677, %v2693
    %v2698 = vsub.f32 %v2678, %v2694
    %v2699 = vmul.f32 %v2695, %v2695
    %v2700 = vmul.f32 %v2696, %v2696
    %v2701 = vmul.f32 %v2697, %v2697
    %v2702 = vmul.f32 %v2698, %v2698
    %v2703 = vsel %vm73, %v2699, 0.0
    %2704 = vadd.xlane.f32.xlu0 %v2703
    %v2705 = vpop.xlane.xlu0 %2704
    %v2706 = vsel %vm73, %v2700, 0.0
    %2707 = vadd.xlane.f32.xlu0 %v2706
    %v2708 = vpop.xlane.xlu0 %2707
    %v2709 = vsel %vm73, %v2701, 0.0
    %2710 = vadd.xlane.f32.xlu0 %v2709
    %v2711 = vpop.xlane.xlu0 %2710
    %v2712 = vsel %vm73, %v2702, 0.0
    %2713 = vadd.xlane.f32.xlu0 %v2712
    %v2714 = vpop.xlane.xlu0 %2713
    %v2715 = vmul.f32 %v2705, %v184
    %v2716 = vmul.f32 %v2708, %v184
    %v2717 = vmul.f32 %v2711, %v184
    %v2718 = vmul.f32 %v2714, %v184
    %v2719 = vadd.f32 %v2715, 1e-06
    %v2720 = vadd.f32 %v2716, 1e-06
    %v2721 = vadd.f32 %v2717, 1e-06
    %v2722 = vadd.f32 %v2718, 1e-06
    %v2723 = vrsqrt.pop %v2719
    %v2724 = vrsqrt.pop %v2720
    %v2725 = vrsqrt.pop %v2721
    %v2726 = vrsqrt.pop %v2722
    %v2727 = vmul.f32 %v2695, %v2723
    %v2728 = vmul.f32 %v2696, %v2724
    %v2729 = vmul.f32 %v2697, %v2725
    %v2730 = vmul.f32 %v2698, %v2726
    %v2731 = vlaneseq
    %v2732 = vshrl.u32 %v2731, 7
    %v2733 = vsub.s32 2, %v2732
    %v2734 = vrot.slane %v171, %v2733
    %v2735 = vmul.f32 %v2727, %v2734
    %v2736 = vmul.f32 %v2728, %v2734
    %v2737 = vmul.f32 %v2729, %v2734
    %v2738 = vmul.f32 %v2730, %v2734
    %v2739 = vlaneseq
    %v2740 = vshrl.u32 %v2739, 7
    %v2741 = vsub.s32 3, %v2740
    %v2742 = vrot.slane %v171, %v2741
    %v2743 = vadd.f32 %v2735, %v2742
    %v2744 = vadd.f32 %v2736, %v2742
    %v2745 = vadd.f32 %v2737, %v2742
    %v2746 = vadd.f32 %v2738, %v2742
    %v2747 = vld [vmem:[%s7] sm:$0xff]
    %v2748 = vld [vmem:[%s7 + $0x8] sm:$0xff]
    %v2749 = vld [vmem:[%s7 + $0x10] sm:$0xff]
    %v2750 = vld [vmem:[%s7 + $0x18] sm:$0xff]
    %v2751 = vld [vmem:[%s7 + $0x20] sm:$0xff]
    %v2752 = vld [vmem:[%s7 + $0x28] sm:$0xff]
    %v2753 = vld [vmem:[%s7 + $0x30] sm:$0xff]
    %v2754 = vld [vmem:[%s7 + $0x38] sm:$0xff]
    %v2755 = vld [vmem:[%s8] sm:$0x1]
    %v2757 = vlaneseq
    %v2758 = vshrl.u32 %v2757, 7
    %v2759 = vsub.s32 0, %v2758
    %v2760 = vrot.slane %v2755, %v2759
    %v2763 = vsel %vm73, %v2743, 0
    %v2766 = vsel %vm73, %v2744, 0
    %v2769 = vsel %vm73, %v2745, 0
    %v2772 = vsel %vm73, %v2746, 0
    %2774 = vmatprep.subr.mxu0 0.0
    %2775 = vmatpush1.msra.mxu0 0.0
    %2776 = vmatprep.subr.mxu0 0.0
    %2777 = vmatpush1.msra.mxu0 0.0
    %2778 = vmatprep.subr.mxu0 0.0
    %2779 = vmatpush1.msra.mxu0 0.0
    %2780 = vmatprep.subr.mxu0 0.0
    %2781 = vmatpush1.msra.mxu0 0.0
    %2782 = vmatprep.subr.mxu0 0.0
    %2783 = vmatpush1.msra.mxu0 0.0
    %2784 = vmatprep.subr.mxu0 0.0
    %2785 = vmatpush1.msra.mxu0 0.0
    %2786 = vmatprep.subr.mxu0 0.0
    %2787 = vmatpush1.msra.mxu0 0.0
    %2788 = vmatprep.subr.mxu0 0.0
    %2789 = vmatpush1.msra.mxu0 0.0
    %2790 = vmatprep.subr.mxu0 0.0
    %2791 = vmatpush1.msra.mxu0 %v2754
    %2792 = vmatprep.subr.mxu0 0.0
    %2793 = vmatpush1.msra.mxu0 %v2753
    %2794 = vmatprep.subr.mxu0 0.0
    %2795 = vmatpush1.msra.mxu0 %v2752
    %2796 = vmatprep.subr.mxu0 0.0
    %2797 = vmatpush1.msra.mxu0 %v2751
    %2798 = vmatprep.subr.mxu0 0.0
    %2799 = vmatpush1.msra.mxu0 %v2750
    %2800 = vmatprep.subr.mxu0 0.0
    %2801 = vmatpush1.msra.mxu0 %v2749
    %2802 = vmatprep.subr.mxu0 0.0
    %2803 = vmatpush1.msra.mxu0 %v2748
    %2804 = vmatprep.subr.mxu0 0.0
    %2805 = vmatpush1.msra.mxu0 %v2747
    %2806 = vmatprep.subr.mxu0 0.0
    %2807 = vmatpush2.msra.mxu0 0.0
    %2808 = vmatprep.subr.mxu0 0.0
    %2809 = vmatpush2.msra.mxu0 0.0
    %2810 = vmatprep.subr.mxu0 0.0
    %2811 = vmatpush2.msra.mxu0 0.0
    %2812 = vmatprep.subr.mxu0 0.0
    %2813 = vmatpush2.msra.mxu0 0.0
    %2814 = vmatprep.subr.mxu0 0.0
    %2815 = vmatpush2.msra.mxu0 0.0
    %2816 = vmatprep.subr.mxu0 0.0
    %2817 = vmatpush2.msra.mxu0 0.0
    %2818 = vmatprep.subr.mxu0 0.0
    %2819 = vmatpush2.msra.mxu0 0.0
    %2820 = vmatprep.subr.mxu0 0.0
    %2821 = vmatpush2.msra.mxu0 0.0
    %2822 = vmatprep.subr.mxu0 0.0
    %2823 = vmatpush2.msra.mxu0 0.0
    %2824 = vmatprep.subr.mxu0 0.0
    %2825 = vmatpush2.msra.mxu0 0.0
    %2826 = vmatprep.subr.mxu0 0.0
    %2827 = vmatpush2.msra.mxu0 0.0
    %2828 = vmatprep.subr.mxu0 0.0
    %2829 = vmatpush2.msra.mxu0 0.0
    %2830 = vmatprep.subr.mxu0 0.0
    %2831 = vmatpush2.msra.mxu0 0.0
    %2832 = vmatprep.subr.mxu0 0.0
    %2833 = vmatpush2.msra.mxu0 0.0
    %2834 = vmatprep.subr.mxu0 0.0
    %2835 = vmatpush2.msra.mxu0 0.0
    %2836 = vmatprep.subr.mxu0 0.0
    %2837 = vmatpush2.msra.mxu0 0.0
    %2838 = vmatprep.mubr.f32.mxu0 0.0
    %2839 = vmatmul.mubr.f32.gmra.mxu0 %v2763
    %v2840 = vpop.f32.mrf.mxu0
    %v2841 = vadd.f32 %v2760, %v2840
    %v2842 = vpop.f32.mrf.mxu0
    %2843 = vmatprep.mubr.f32.mxu0 0.0
    %2844 = vmatmul.mubr.f32.gmra.mxu0 %v2766
    %v2845 = vpop.f32.mrf.mxu0
    %v2846 = vadd.f32 %v2760, %v2845
    %v2847 = vpop.f32.mrf.mxu0
    %2848 = vmatprep.mubr.f32.mxu0 0.0
    %2849 = vmatmul.mubr.f32.gmra.mxu0 %v2769
    %v2850 = vpop.f32.mrf.mxu0
    %v2851 = vadd.f32 %v2760, %v2850
    %v2852 = vpop.f32.mrf.mxu0
    %2853 = vmatprep.mubr.f32.mxu0 0.0
    %2854 = vmatmul.mubr.f32.gmra.mxu0 %v2772
    %v2855 = vpop.f32.mrf.mxu0
    %v2856 = vadd.f32 %v2760, %v2855
    %v2857 = vpop.f32.mrf.mxu0
    %2858 = vdwg.mxu0
    %v2859 = vmul.f32 %v2841, 0.5
    %v2860 = vmul.f32 %v2846, 0.5
    %v2861 = vmul.f32 %v2851, 0.5
    %v2862 = vmul.f32 %v2856, 0.5
    %v2863 = vmul.f32 %v2841, 0.044715
    %v2864 = vmul.f32 %v2846, 0.044715
    %v2865 = vmul.f32 %v2851, 0.044715
    %v2866 = vmul.f32 %v2856, 0.044715
    %v2867 = vmul.f32 %v2863, %v2841
    %v2868 = vmul.f32 %v2864, %v2846
    %v2869 = vmul.f32 %v2865, %v2851
    %v2870 = vmul.f32 %v2866, %v2856
    %v2871 = vmul.f32 %v2867, %v2841
    %v2872 = vmul.f32 %v2868, %v2846
    %v2873 = vmul.f32 %v2869, %v2851
    %v2874 = vmul.f32 %v2870, %v2856
    %v2875 = vadd.f32 %v2841, %v2871
    %v2876 = vadd.f32 %v2846, %v2872
    %v2877 = vadd.f32 %v2851, %v2873
    %v2878 = vadd.f32 %v2856, %v2874
    %v2879 = vmul.f32 %v2875, 0.7978846
    %v2880 = vmul.f32 %v2876, 0.7978846
    %v2881 = vmul.f32 %v2877, 0.7978846
    %v2882 = vmul.f32 %v2878, 0.7978846
    %v2883 = vtanh.pop %v2879
    %v2884 = vtanh.pop %v2880
    %v2885 = vtanh.pop %v2881
    %v2886 = vtanh.pop %v2882
    %v2887 = vadd.f32 %v2883, 1.0
    %v2888 = vadd.f32 %v2884, 1.0
    %v2889 = vadd.f32 %v2885, 1.0
    %v2890 = vadd.f32 %v2886, 1.0
    %v2891 = vmul.f32 %v2859, %v2887
    %v2892 = vmul.f32 %v2860, %v2888
    %v2893 = vmul.f32 %v2861, %v2889
    %v2894 = vmul.f32 %v2862, %v2890
    %v2895 = vld [vmem:[%s9] sm:$0xff]
    %v2896 = vld [vmem:[%s9 + $0x8] sm:$0xff]
    %v2897 = vld [vmem:[%s9 + $0x10] sm:$0xff]
    %v2898 = vld [vmem:[%s9 + $0x18] sm:$0xff]
    %v2899 = vld [vmem:[%s9 + $0x20] sm:$0xff]
    %v2900 = vld [vmem:[%s9 + $0x28] sm:$0xff]
    %v2901 = vld [vmem:[%s9 + $0x30] sm:$0xff]
    %v2902 = vld [vmem:[%s9 + $0x38] sm:$0xff]
    %v2903 = vld [vmem:[%s9 + $0x40] sm:$0xff]
    %v2904 = vld [vmem:[%s9 + $0x48] sm:$0xff]
    %v2905 = vld [vmem:[%s9 + $0x50] sm:$0xff]
    %v2906 = vld [vmem:[%s9 + $0x58] sm:$0xff]
    %v2907 = vld [vmem:[%s9 + $0x60] sm:$0xff]
    %v2908 = vld [vmem:[%s9 + $0x68] sm:$0xff]
    %v2909 = vld [vmem:[%s9 + $0x70] sm:$0xff]
    %v2910 = vld [vmem:[%s9 + $0x78] sm:$0xff]
    %2911 = vmatprep.subr.mxu0 0.0
    %2912 = vmatpush1.msra.mxu0 %v2910
    %2913 = vmatprep.subr.mxu0 0.0
    %2914 = vmatpush1.msra.mxu0 %v2909
    %2915 = vmatprep.subr.mxu0 0.0
    %2916 = vmatpush1.msra.mxu0 %v2908
    %2917 = vmatprep.subr.mxu0 0.0
    %2918 = vmatpush1.msra.mxu0 %v2907
    %2919 = vmatprep.subr.mxu0 0.0
    %2920 = vmatpush1.msra.mxu0 %v2906
    %2921 = vmatprep.subr.mxu0 0.0
    %2922 = vmatpush1.msra.mxu0 %v2905
    %2923 = vmatprep.subr.mxu0 0.0
    %2924 = vmatpush1.msra.mxu0 %v2904
    %2925 = vmatprep.subr.mxu0 0.0
    %2926 = vmatpush1.msra.mxu0 %v2903
    %2927 = vmatprep.subr.mxu0 0.0
    %2928 = vmatpush1.msra.mxu0 %v2902
    %2929 = vmatprep.subr.mxu0 0.0
    %2930 = vmatpush1.msra.mxu0 %v2901
    %2931 = vmatprep.subr.mxu0 0.0
    %2932 = vmatpush1.msra.mxu0 %v2900
    %2933 = vmatprep.subr.mxu0 0.0
    %2934 = vmatpush1.msra.mxu0 %v2899
    %2935 = vmatprep.subr.mxu0 0.0
    %2936 = vmatpush1.msra.mxu0 %v2898
    %2937 = vmatprep.subr.mxu0 0.0
    %2938 = vmatpush1.msra.mxu0 %v2897
    %2939 = vmatprep.subr.mxu0 0.0
    %2940 = vmatpush1.msra.mxu0 %v2896
    %2941 = vmatprep.subr.mxu0 0.0
    %2942 = vmatpush1.msra.mxu0 %v2895
    %2943 = vmatprep.subr.mxu0 0.0
    %2944 = vmatpush2.msra.mxu0 0.0
    %2945 = vmatprep.subr.mxu0 0.0
    %2946 = vmatpush2.msra.mxu0 0.0
    %2947 = vmatprep.subr.mxu0 0.0
    %2948 = vmatpush2.msra.mxu0 0.0
    %2949 = vmatprep.subr.mxu0 0.0
    %2950 = vmatpush2.msra.mxu0 0.0
    %2951 = vmatprep.subr.mxu0 0.0
    %2952 = vmatpush2.msra.mxu0 0.0
    %2953 = vmatprep.subr.mxu0 0.0
    %2954 = vmatpush2.msra.mxu0 0.0
    %2955 = vmatprep.subr.mxu0 0.0
    %2956 = vmatpush2.msra.mxu0 0.0
    %2957 = vmatprep.subr.mxu0 0.0
    %2958 = vmatpush2.msra.mxu0 0.0
    %2959 = vmatprep.subr.mxu0 0.0
    %2960 = vmatpush2.msra.mxu0 0.0
    %2961 = vmatprep.subr.mxu0 0.0
    %2962 = vmatpush2.msra.mxu0 0.0
    %2963 = vmatprep.subr.mxu0 0.0
    %2964 = vmatpush2.msra.mxu0 0.0
    %2965 = vmatprep.subr.mxu0 0.0
    %2966 = vmatpush2.msra.mxu0 0.0
    %2967 = vmatprep.subr.mxu0 0.0
    %2968 = vmatpush2.msra.mxu0 0.0
    %2969 = vmatprep.subr.mxu0 0.0
    %2970 = vmatpush2.msra.mxu0 0.0
    %2971 = vmatprep.subr.mxu0 0.0
    %2972 = vmatpush2.msra.mxu0 0.0
    %2973 = vmatprep.subr.mxu0 0.0
    %2974 = vmatpush2.msra.mxu0 0.0
    %2975 = vmatprep.mubr.f32.mxu0 0.0
    %2976 = vmatmul.mubr.f32.gmra.mxu0 %v2891
    %v2977 = vpop.f32.mrf.mxu0
    %v2978 = vadd.f32 0.0, %v2977
    %v2979 = vpop.f32.mrf.mxu0
    %2980 = vmatprep.mubr.f32.mxu0 0.0
    %2981 = vmatmul.mubr.f32.gmra.mxu0 %v2892
    %v2982 = vpop.f32.mrf.mxu0
    %v2983 = vadd.f32 0.0, %v2982
    %v2984 = vpop.f32.mrf.mxu0
    %2985 = vmatprep.mubr.f32.mxu0 0.0
    %2986 = vmatmul.mubr.f32.gmra.mxu0 %v2893
    %v2987 = vpop.f32.mrf.mxu0
    %v2988 = vadd.f32 0.0, %v2987
    %v2989 = vpop.f32.mrf.mxu0
    %2990 = vmatprep.mubr.f32.mxu0 0.0
    %2991 = vmatmul.mubr.f32.gmra.mxu0 %v2894
    %v2992 = vpop.f32.mrf.mxu0
    %v2993 = vadd.f32 0.0, %v2992
    %v2994 = vpop.f32.mrf.mxu0
    %2995 = vdwg.mxu0
    %v2996 = vadd.f32 %v2675, %v2978
    %v2997 = vadd.f32 %v2676, %v2983
    %v2998 = vadd.f32 %v2677, %v2988
    %v2999 = vadd.f32 %v2678, %v2993
    %v3000 = vlaneseq
    %v3001 = vshrl.u32 %v3000, 7
    %v3002 = vsub.s32 5, %v3001
    %v3003 = vrot.slane %v171, %v3002
    %v3004 = vadd.f32 %v2996, %v3003
    %v3005 = vadd.f32 %v2997, %v3003
    %v3006 = vadd.f32 %v2998, %v3003
    %v3007 = vadd.f32 %v2999, %v3003
    %s3008 = scalar_lea.vmem %s6, 8
    %v3009 = vld [vmem:[%s3008] sm:$0x3f]
    %v3010 = vsel %vm73, %v3004, 0.0
    %3011 = vadd.xlane.f32.xlu0 %v3010
    %v3012 = vpop.xlane.xlu0 %3011
    %v3013 = vsel %vm73, %v3005, 0.0
    %3014 = vadd.xlane.f32.xlu0 %v3013
    %v3015 = vpop.xlane.xlu0 %3014
    %v3016 = vsel %vm73, %v3006, 0.0
    %3017 = vadd.xlane.f32.xlu0 %v3016
    %v3018 = vpop.xlane.xlu0 %3017
    %v3019 = vsel %vm73, %v3007, 0.0
    %3020 = vadd.xlane.f32.xlu0 %v3019
    %v3021 = vpop.xlane.xlu0 %3020
    %v3022 = vmul.f32 %v3012, %v184
    %v3023 = vmul.f32 %v3015, %v184
    %v3024 = vmul.f32 %v3018, %v184
    %v3025 = vmul.f32 %v3021, %v184
    %v3026 = vsub.f32 %v3004, %v3022
    %v3027 = vsub.f32 %v3005, %v3023
    %v3028 = vsub.f32 %v3006, %v3024
    %v3029 = vsub.f32 %v3007, %v3025
    %v3030 = vmul.f32 %v3026, %v3026
    %v3031 = vmul.f32 %v3027, %v3027
    %v3032 = vmul.f32 %v3028, %v3028
    %v3033 = vmul.f32 %v3029, %v3029
    %v3034 = vsel %vm73, %v3030, 0.0
    %3035 = vadd.xlane.f32.xlu0 %v3034
    %v3036 = vpop.xlane.xlu0 %3035
    %v3037 = vsel %vm73, %v3031, 0.0
    %3038 = vadd.xlane.f32.xlu0 %v3037
    %v3039 = vpop.xlane.xlu0 %3038
    %v3040 = vsel %vm73, %v3032, 0.0
    %3041 = vadd.xlane.f32.xlu0 %v3040
    %v3042 = vpop.xlane.xlu0 %3041
    %v3043 = vsel %vm73, %v3033, 0.0
    %3044 = vadd.xlane.f32.xlu0 %v3043
    %v3045 = vpop.xlane.xlu0 %3044
    %v3046 = vmul.f32 %v3036, %v184
    %v3047 = vmul.f32 %v3039, %v184
    %v3048 = vmul.f32 %v3042, %v184
    %v3049 = vmul.f32 %v3045, %v184
    %v3050 = vadd.f32 %v3046, 1e-06
    %v3051 = vadd.f32 %v3047, 1e-06
    %v3052 = vadd.f32 %v3048, 1e-06
    %v3053 = vadd.f32 %v3049, 1e-06
    %v3054 = vrsqrt.pop %v3050
    %v3055 = vrsqrt.pop %v3051
    %v3056 = vrsqrt.pop %v3052
    %v3057 = vrsqrt.pop %v3053
    %v3058 = vmul.f32 %v3026, %v3054
    %v3059 = vmul.f32 %v3027, %v3055
    %v3060 = vmul.f32 %v3028, %v3056
    %v3061 = vmul.f32 %v3029, %v3057
    %v3062 = vlaneseq
    %v3063 = vshrl.u32 %v3062, 7
    %v3064 = vsub.s32 0, %v3063
    %v3065 = vrot.slane %v3009, %v3064
    %v3066 = vmul.f32 %v3058, %v3065
    %v3067 = vmul.f32 %v3059, %v3065
    %v3068 = vmul.f32 %v3060, %v3065
    %v3069 = vmul.f32 %v3061, %v3065
    %v3070 = vlaneseq
    %v3071 = vshrl.u32 %v3070, 7
    %v3072 = vsub.s32 1, %v3071
    %v3073 = vrot.slane %v3009, %v3072
    %v3074 = vadd.f32 %v3066, %v3073
    %v3075 = vadd.f32 %v3067, %v3073
    %v3076 = vadd.f32 %v3068, %v3073
    %v3077 = vadd.f32 %v3069, %v3073
    %s3078 = scalar_lea.vmem %s3, 128
    %v3079 = vld [vmem:[%s3078] sm:$0xff]
    %v3080 = vld [vmem:[%s3078 + $0x8] sm:$0xff]
    %v3081 = vld [vmem:[%s3078 + $0x10] sm:$0xff]
    %v3082 = vld [vmem:[%s3078 + $0x18] sm:$0xff]
    %v3083 = vld [vmem:[%s3078 + $0x20] sm:$0xff]
    %v3084 = vld [vmem:[%s3078 + $0x28] sm:$0xff]
    %v3085 = vld [vmem:[%s3078 + $0x30] sm:$0xff]
    %v3086 = vld [vmem:[%s3078 + $0x38] sm:$0xff]
    %v3087 = vld [vmem:[%s3078 + $0x40] sm:$0xff]
    %v3088 = vld [vmem:[%s3078 + $0x48] sm:$0xff]
    %v3089 = vld [vmem:[%s3078 + $0x50] sm:$0xff]
    %v3090 = vld [vmem:[%s3078 + $0x58] sm:$0xff]
    %v3091 = vld [vmem:[%s3078 + $0x60] sm:$0xff]
    %v3092 = vld [vmem:[%s3078 + $0x68] sm:$0xff]
    %v3093 = vld [vmem:[%s3078 + $0x70] sm:$0xff]
    %v3094 = vld [vmem:[%s3078 + $0x78] sm:$0xff]
    %s3095 = scalar_lea.vmem %s4, 2
    %v3096 = vld [vmem:[%s3095] sm:$0x3]
    %v3098 = vlaneseq
    %v3099 = vshrl.u32 %v3098, 7
    %v3100 = vsub.s32 0, %v3099
    %v3101 = vrot.slane %v3096, %v3100
    %v3102 = vlaneseq
    %v3103 = vshrl.u32 %v3102, 7
    %v3104 = vsub.s32 1, %v3103
    %v3105 = vrot.slane %v3096, %v3104
    %v3109 = vsel %vm73, %v3074, 0
    %v3112 = vsel %vm73, %v3075, 0
    %v3115 = vsel %vm73, %v3076, 0
    %v3118 = vsel %vm73, %v3077, 0
    %3120 = vmatprep.subr.mxu0 0.0
    %3121 = vmatpush1.msra.mxu0 0.0
    %3122 = vmatprep.subr.mxu0 0.0
    %3123 = vmatpush1.msra.mxu0 0.0
    %3124 = vmatprep.subr.mxu0 0.0
    %3125 = vmatpush1.msra.mxu0 0.0
    %3126 = vmatprep.subr.mxu0 0.0
    %3127 = vmatpush1.msra.mxu0 0.0
    %3128 = vmatprep.subr.mxu0 0.0
    %3129 = vmatpush1.msra.mxu0 0.0
    %3130 = vmatprep.subr.mxu0 0.0
    %3131 = vmatpush1.msra.mxu0 0.0
    %3132 = vmatprep.subr.mxu0 0.0
    %3133 = vmatpush1.msra.mxu0 0.0
    %3134 = vmatprep.subr.mxu0 0.0
    %3135 = vmatpush1.msra.mxu0 0.0
    %3136 = vmatprep.subr.mxu0 %v3094
    %3137 = vmatpush1.msra.mxu0 %v3093
    %3138 = vmatprep.subr.mxu0 %v3092
    %3139 = vmatpush1.msra.mxu0 %v3091
    %3140 = vmatprep.subr.mxu0 %v3090
    %3141 = vmatpush1.msra.mxu0 %v3089
    %3142 = vmatprep.subr.mxu0 %v3088
    %3143 = vmatpush1.msra.mxu0 %v3087
    %3144 = vmatprep.subr.mxu0 %v3086
    %3145 = vmatpush1.msra.mxu0 %v3085
    %3146 = vmatprep.subr.mxu0 %v3084
    %3147 = vmatpush1.msra.mxu0 %v3083
    %3148 = vmatprep.subr.mxu0 %v3082
    %3149 = vmatpush1.msra.mxu0 %v3081
    %3150 = vmatprep.subr.mxu0 %v3080
    %3151 = vmatpush1.msra.mxu0 %v3079
    %3152 = vmatprep.subr.mxu0 0.0
    %3153 = vmatpush2.msra.mxu0 0.0
    %3154 = vmatprep.subr.mxu0 0.0
    %3155 = vmatpush2.msra.mxu0 0.0
    %3156 = vmatprep.subr.mxu0 0.0
    %3157 = vmatpush2.msra.mxu0 0.0
    %3158 = vmatprep.subr.mxu0 0.0
    %3159 = vmatpush2.msra.mxu0 0.0
    %3160 = vmatprep.subr.mxu0 0.0
    %3161 = vmatpush2.msra.mxu0 0.0
    %3162 = vmatprep.subr.mxu0 0.0
    %3163 = vmatpush2.msra.mxu0 0.0
    %3164 = vmatprep.subr.mxu0 0.0
    %3165 = vmatpush2.msra.mxu0 0.0
    %3166 = vmatprep.subr.mxu0 0.0
    %3167 = vmatpush2.msra.mxu0 0.0
    %3168 = vmatprep.subr.mxu0 0.0
    %3169 = vmatpush2.msra.mxu0 0.0
    %3170 = vmatprep.subr.mxu0 0.0
    %3171 = vmatpush2.msra.mxu0 0.0
    %3172 = vmatprep.subr.mxu0 0.0
    %3173 = vmatpush2.msra.mxu0 0.0
    %3174 = vmatprep.subr.mxu0 0.0
    %3175 = vmatpush2.msra.mxu0 0.0
    %3176 = vmatprep.subr.mxu0 0.0
    %3177 = vmatpush2.msra.mxu0 0.0
    %3178 = vmatprep.subr.mxu0 0.0
    %3179 = vmatpush2.msra.mxu0 0.0
    %3180 = vmatprep.subr.mxu0 0.0
    %3181 = vmatpush2.msra.mxu0 0.0
    %3182 = vmatprep.subr.mxu0 0.0
    %3183 = vmatpush2.msra.mxu0 0.0
    %3184 = vmatprep.mubr.f32.mxu0 0.0
    %3185 = vmatmul.mubr.f32.gmra.mxu0 %v3109
    %v3186 = vpop.f32.mrf.mxu0
    %v3187 = vadd.f32 %v3101, %v3186
    %v3188 = vpop.f32.mrf.mxu0
    %v3189 = vadd.f32 %v3105, %v3188
    %3190 = vmatprep.mubr.f32.mxu0 0.0
    %3191 = vmatmul.mubr.f32.gmra.mxu0 %v3112
    %v3192 = vpop.f32.mrf.mxu0
    %v3193 = vadd.f32 %v3101, %v3192
    %v3194 = vpop.f32.mrf.mxu0
    %v3195 = vadd.f32 %v3105, %v3194
    %3196 = vmatprep.mubr.f32.mxu0 0.0
    %3197 = vmatmul.mubr.f32.gmra.mxu0 %v3115
    %v3198 = vpop.f32.mrf.mxu0
    %v3199 = vadd.f32 %v3101, %v3198
    %v3200 = vpop.f32.mrf.mxu0
    %v3201 = vadd.f32 %v3105, %v3200
    %3202 = vmatprep.mubr.f32.mxu0 0.0
    %3203 = vmatmul.mubr.f32.gmra.mxu0 %v3118
    %v3204 = vpop.f32.mrf.mxu0
    %v3205 = vadd.f32 %v3101, %v3204
    %v3206 = vpop.f32.mrf.mxu0
    %v3207 = vadd.f32 %v3105, %v3206
    %3208 = vdwg.mxu0
    %3211 = vrot.lane.b32.xlu0 %v3187, 112
    %v3212 = vpop.permute.xlu0 %3211
    %3213 = vrot.lane.b32.xlu0 %v3193, 112
    %v3214 = vpop.permute.xlu0 %3213
    %3215 = vrot.lane.b32.xlu0 %v3187, 96
    %v3216 = vpop.permute.xlu0 %3215
    %3217 = vrot.lane.b32.xlu0 %v3193, 96
    %v3218 = vpop.permute.xlu0 %3217
    %3219 = vrot.lane.b32.xlu0 %v3187, 80
    %v3220 = vpop.permute.xlu0 %3219
    %3221 = vrot.lane.b32.xlu0 %v3193, 80
    %v3222 = vpop.permute.xlu0 %3221
    %3225 = vrot.lane.b32.xlu0 %v3189, 112
    %v3226 = vpop.permute.xlu0 %3225
    %3227 = vrot.lane.b32.xlu0 %v3195, 112
    %v3228 = vpop.permute.xlu0 %3227
    %3231 = vrot.lane.b32.xlu0 %v3189, 96
    %v3232 = vpop.permute.xlu0 %3231
    %3233 = vrot.lane.b32.xlu0 %v3195, 96
    %v3234 = vpop.permute.xlu0 %3233
    %3237 = vrot.lane.b32.xlu0 %v3189, 80
    %v3238 = vpop.permute.xlu0 %3237
    %3239 = vrot.lane.b32.xlu0 %v3195, 80
    %v3240 = vpop.permute.xlu0 %3239
    %3243 = vrot.lane.b32.xlu0 %v3187, 64
    %v3244 = vpop.permute.xlu0 %3243
    %3245 = vrot.lane.b32.xlu0 %v3193, 64
    %v3246 = vpop.permute.xlu0 %3245
    %v3247 = vsel %vm408, %v3187, 0
    %v3249 = vsel %vm408, %v3193, 0
    %v3251 = vsel %vm408, %v3244, 0
    %v3253 = vsel %vm408, %v3246, 0
    %3255 = vmatprep.subr.mxu0 0.0
    %3256 = vmatpush1.xpose.msra.mxu0 0.0
    %3257 = vmatprep.subr.mxu0 0.0
    %3258 = vmatpush1.xpose.msra.mxu0 0.0
    %3259 = vmatprep.subr.mxu0 0.0
    %3260 = vmatpush1.xpose.msra.mxu0 0.0
    %3261 = vmatprep.subr.mxu0 0.0
    %3262 = vmatpush1.xpose.msra.mxu0 0.0
    %3263 = vmatprep.subr.mxu0 0.0
    %3264 = vmatpush1.xpose.msra.mxu0 0.0
    %3265 = vmatprep.subr.mxu0 0.0
    %3266 = vmatpush1.xpose.msra.mxu0 0.0
    %3267 = vmatprep.subr.mxu0 0.0
    %3268 = vmatpush1.xpose.msra.mxu0 0.0
    %3269 = vmatprep.subr.mxu0 0.0
    %3270 = vmatpush1.xpose.msra.mxu0 0.0
    %3271 = vmatprep.subr.mxu0 0.0
    %3272 = vmatpush1.xpose.msra.mxu0 0.0
    %3273 = vmatprep.subr.mxu0 0.0
    %3274 = vmatpush1.xpose.msra.mxu0 0.0
    %3275 = vmatprep.subr.mxu0 0.0
    %3276 = vmatpush1.xpose.msra.mxu0 0.0
    %3277 = vmatprep.subr.mxu0 0.0
    %3278 = vmatpush1.xpose.msra.mxu0 0.0
    %3279 = vmatprep.subr.mxu0 0.0
    %3280 = vmatpush1.xpose.msra.mxu0 0.0
    %3281 = vmatprep.subr.mxu0 0.0
    %3282 = vmatpush1.xpose.msra.mxu0 0.0
    %3283 = vmatprep.subr.mxu0 0.0
    %3284 = vmatpush1.xpose.msra.mxu0 %v3253
    %3285 = vmatprep.subr.mxu0 0.0
    %3286 = vmatpush1.xpose.msra.mxu0 %v3251
    %3287 = vmatprep.subr.mxu0 0.0
    %3288 = vmatpush2.xpose.msra.mxu0 0.0
    %3289 = vmatprep.subr.mxu0 0.0
    %3290 = vmatpush2.xpose.msra.mxu0 0.0
    %3291 = vmatprep.subr.mxu0 0.0
    %3292 = vmatpush2.xpose.msra.mxu0 0.0
    %3293 = vmatprep.subr.mxu0 0.0
    %3294 = vmatpush2.xpose.msra.mxu0 0.0
    %3295 = vmatprep.subr.mxu0 0.0
    %3296 = vmatpush2.xpose.msra.mxu0 0.0
    %3297 = vmatprep.subr.mxu0 0.0
    %3298 = vmatpush2.xpose.msra.mxu0 0.0
    %3299 = vmatprep.subr.mxu0 0.0
    %3300 = vmatpush2.xpose.msra.mxu0 0.0
    %3301 = vmatprep.subr.mxu0 0.0
    %3302 = vmatpush2.xpose.msra.mxu0 0.0
    %3303 = vmatprep.subr.mxu0 0.0
    %3304 = vmatpush2.xpose.msra.mxu0 0.0
    %3305 = vmatprep.subr.mxu0 0.0
    %3306 = vmatpush2.xpose.msra.mxu0 0.0
    %3307 = vmatprep.subr.mxu0 0.0
    %3308 = vmatpush2.xpose.msra.mxu0 0.0
    %3309 = vmatprep.subr.mxu0 0.0
    %3310 = vmatpush2.xpose.msra.mxu0 0.0
    %3311 = vmatprep.subr.mxu0 0.0
    %3312 = vmatpush2.xpose.msra.mxu0 0.0
    %3313 = vmatprep.subr.mxu0 0.0
    %3314 = vmatpush2.xpose.msra.mxu0 0.0
    %3315 = vmatprep.subr.mxu0 0.0
    %3316 = vmatpush2.xpose.msra.mxu0 0.0
    %3317 = vmatprep.subr.mxu0 0.0
    %3318 = vmatpush2.xpose.msra.mxu0 0.0
    %3319 = vmatprep.mubr.f32.mxu0 0.0
    %3320 = vmatmul.mubr.f32.gmra.mxu0 %v3247
    %v3321 = vpop.f32.mrf.mxu0
    %v3322 = vadd.f32 0.0, %v3321
    %v3323 = vpop.f32.mrf.mxu0
    %3324 = vmatprep.mubr.f32.mxu0 0.0
    %3325 = vmatmul.mubr.f32.gmra.mxu0 %v3249
    %v3326 = vpop.f32.mrf.mxu0
    %v3327 = vadd.f32 0.0, %v3326
    %v3328 = vpop.f32.mrf.mxu0
    %3329 = vdwg.mxu0
    %3330 = vrot.lane.b32.xlu0 %v3212, 64
    %v3331 = vpop.permute.xlu0 %3330
    %3332 = vrot.lane.b32.xlu0 %v3214, 64
    %v3333 = vpop.permute.xlu0 %3332
    %v3334 = vsel %vm408, %v3212, 0
    %v3336 = vsel %vm408, %v3214, 0
    %v3338 = vsel %vm408, %v3331, 0
    %v3340 = vsel %vm408, %v3333, 0
    %3342 = vmatprep.subr.mxu0 0.0
    %3343 = vmatpush1.xpose.msra.mxu0 0.0
    %3344 = vmatprep.subr.mxu0 0.0
    %3345 = vmatpush1.xpose.msra.mxu0 0.0
    %3346 = vmatprep.subr.mxu0 0.0
    %3347 = vmatpush1.xpose.msra.mxu0 0.0
    %3348 = vmatprep.subr.mxu0 0.0
    %3349 = vmatpush1.xpose.msra.mxu0 0.0
    %3350 = vmatprep.subr.mxu0 0.0
    %3351 = vmatpush1.xpose.msra.mxu0 0.0
    %3352 = vmatprep.subr.mxu0 0.0
    %3353 = vmatpush1.xpose.msra.mxu0 0.0
    %3354 = vmatprep.subr.mxu0 0.0
    %3355 = vmatpush1.xpose.msra.mxu0 0.0
    %3356 = vmatprep.subr.mxu0 0.0
    %3357 = vmatpush1.xpose.msra.mxu0 0.0
    %3358 = vmatprep.subr.mxu0 0.0
    %3359 = vmatpush1.xpose.msra.mxu0 0.0
    %3360 = vmatprep.subr.mxu0 0.0
    %3361 = vmatpush1.xpose.msra.mxu0 0.0
    %3362 = vmatprep.subr.mxu0 0.0
    %3363 = vmatpush1.xpose.msra.mxu0 0.0
    %3364 = vmatprep.subr.mxu0 0.0
    %3365 = vmatpush1.xpose.msra.mxu0 0.0
    %3366 = vmatprep.subr.mxu0 0.0
    %3367 = vmatpush1.xpose.msra.mxu0 0.0
    %3368 = vmatprep.subr.mxu0 0.0
    %3369 = vmatpush1.xpose.msra.mxu0 0.0
    %3370 = vmatprep.subr.mxu0 0.0
    %3371 = vmatpush1.xpose.msra.mxu0 %v3340
    %3372 = vmatprep.subr.mxu0 0.0
    %3373 = vmatpush1.xpose.msra.mxu0 %v3338
    %3374 = vmatprep.subr.mxu0 0.0
    %3375 = vmatpush2.xpose.msra.mxu0 0.0
    %3376 = vmatprep.subr.mxu0 0.0
    %3377 = vmatpush2.xpose.msra.mxu0 0.0
    %3378 = vmatprep.subr.mxu0 0.0
    %3379 = vmatpush2.xpose.msra.mxu0 0.0
    %3380 = vmatprep.subr.mxu0 0.0
    %3381 = vmatpush2.xpose.msra.mxu0 0.0
    %3382 = vmatprep.subr.mxu0 0.0
    %3383 = vmatpush2.xpose.msra.mxu0 0.0
    %3384 = vmatprep.subr.mxu0 0.0
    %3385 = vmatpush2.xpose.msra.mxu0 0.0
    %3386 = vmatprep.subr.mxu0 0.0
    %3387 = vmatpush2.xpose.msra.mxu0 0.0
    %3388 = vmatprep.subr.mxu0 0.0
    %3389 = vmatpush2.xpose.msra.mxu0 0.0
    %3390 = vmatprep.subr.mxu0 0.0
    %3391 = vmatpush2.xpose.msra.mxu0 0.0
    %3392 = vmatprep.subr.mxu0 0.0
    %3393 = vmatpush2.xpose.msra.mxu0 0.0
    %3394 = vmatprep.subr.mxu0 0.0
    %3395 = vmatpush2.xpose.msra.mxu0 0.0
    %3396 = vmatprep.subr.mxu0 0.0
    %3397 = vmatpush2.xpose.msra.mxu0 0.0
    %3398 = vmatprep.subr.mxu0 0.0
    %3399 = vmatpush2.xpose.msra.mxu0 0.0
    %3400 = vmatprep.subr.mxu0 0.0
    %3401 = vmatpush2.xpose.msra.mxu0 0.0
    %3402 = vmatprep.subr.mxu0 0.0
    %3403 = vmatpush2.xpose.msra.mxu0 0.0
    %3404 = vmatprep.subr.mxu0 0.0
    %3405 = vmatpush2.xpose.msra.mxu0 0.0
    %3406 = vmatprep.mubr.f32.mxu0 0.0
    %3407 = vmatmul.mubr.f32.gmra.mxu0 %v3334
    %v3408 = vpop.f32.mrf.mxu0
    %v3409 = vadd.f32 0.0, %v3408
    %v3410 = vpop.f32.mrf.mxu0
    %3411 = vmatprep.mubr.f32.mxu0 0.0
    %3412 = vmatmul.mubr.f32.gmra.mxu0 %v3336
    %v3413 = vpop.f32.mrf.mxu0
    %v3414 = vadd.f32 0.0, %v3413
    %v3415 = vpop.f32.mrf.mxu0
    %3416 = vdwg.mxu0
    %3417 = vrot.lane.b32.xlu0 %v3216, 64
    %v3418 = vpop.permute.xlu0 %3417
    %3419 = vrot.lane.b32.xlu0 %v3218, 64
    %v3420 = vpop.permute.xlu0 %3419
    %v3421 = vsel %vm408, %v3216, 0
    %v3423 = vsel %vm408, %v3218, 0
    %v3425 = vsel %vm408, %v3418, 0
    %v3427 = vsel %vm408, %v3420, 0
    %3429 = vmatprep.subr.mxu0 0.0
    %3430 = vmatpush1.xpose.msra.mxu0 0.0
    %3431 = vmatprep.subr.mxu0 0.0
    %3432 = vmatpush1.xpose.msra.mxu0 0.0
    %3433 = vmatprep.subr.mxu0 0.0
    %3434 = vmatpush1.xpose.msra.mxu0 0.0
    %3435 = vmatprep.subr.mxu0 0.0
    %3436 = vmatpush1.xpose.msra.mxu0 0.0
    %3437 = vmatprep.subr.mxu0 0.0
    %3438 = vmatpush1.xpose.msra.mxu0 0.0
    %3439 = vmatprep.subr.mxu0 0.0
    %3440 = vmatpush1.xpose.msra.mxu0 0.0
    %3441 = vmatprep.subr.mxu0 0.0
    %3442 = vmatpush1.xpose.msra.mxu0 0.0
    %3443 = vmatprep.subr.mxu0 0.0
    %3444 = vmatpush1.xpose.msra.mxu0 0.0
    %3445 = vmatprep.subr.mxu0 0.0
    %3446 = vmatpush1.xpose.msra.mxu0 0.0
    %3447 = vmatprep.subr.mxu0 0.0
    %3448 = vmatpush1.xpose.msra.mxu0 0.0
    %3449 = vmatprep.subr.mxu0 0.0
    %3450 = vmatpush1.xpose.msra.mxu0 0.0
    %3451 = vmatprep.subr.mxu0 0.0
    %3452 = vmatpush1.xpose.msra.mxu0 0.0
    %3453 = vmatprep.subr.mxu0 0.0
    %3454 = vmatpush1.xpose.msra.mxu0 0.0
    %3455 = vmatprep.subr.mxu0 0.0
    %3456 = vmatpush1.xpose.msra.mxu0 0.0
    %3457 = vmatprep.subr.mxu0 0.0
    %3458 = vmatpush1.xpose.msra.mxu0 %v3427
    %3459 = vmatprep.subr.mxu0 0.0
    %3460 = vmatpush1.xpose.msra.mxu0 %v3425
    %3461 = vmatprep.subr.mxu0 0.0
    %3462 = vmatpush2.xpose.msra.mxu0 0.0
    %3463 = vmatprep.subr.mxu0 0.0
    %3464 = vmatpush2.xpose.msra.mxu0 0.0
    %3465 = vmatprep.subr.mxu0 0.0
    %3466 = vmatpush2.xpose.msra.mxu0 0.0
    %3467 = vmatprep.subr.mxu0 0.0
    %3468 = vmatpush2.xpose.msra.mxu0 0.0
    %3469 = vmatprep.subr.mxu0 0.0
    %3470 = vmatpush2.xpose.msra.mxu0 0.0
    %3471 = vmatprep.subr.mxu0 0.0
    %3472 = vmatpush2.xpose.msra.mxu0 0.0
    %3473 = vmatprep.subr.mxu0 0.0
    %3474 = vmatpush2.xpose.msra.mxu0 0.0
    %3475 = vmatprep.subr.mxu0 0.0
    %3476 = vmatpush2.xpose.msra.mxu0 0.0
    %3477 = vmatprep.subr.mxu0 0.0
    %3478 = vmatpush2.xpose.msra.mxu0 0.0
    %3479 = vmatprep.subr.mxu0 0.0
    %3480 = vmatpush2.xpose.msra.mxu0 0.0
    %3481 = vmatprep.subr.mxu0 0.0
    %3482 = vmatpush2.xpose.msra.mxu0 0.0
    %3483 = vmatprep.subr.mxu0 0.0
    %3484 = vmatpush2.xpose.msra.mxu0 0.0
    %3485 = vmatprep.subr.mxu0 0.0
    %3486 = vmatpush2.xpose.msra.mxu0 0.0
    %3487 = vmatprep.subr.mxu0 0.0
    %3488 = vmatpush2.xpose.msra.mxu0 0.0
    %3489 = vmatprep.subr.mxu0 0.0
    %3490 = vmatpush2.xpose.msra.mxu0 0.0
    %3491 = vmatprep.subr.mxu0 0.0
    %3492 = vmatpush2.xpose.msra.mxu0 0.0
    %3493 = vmatprep.mubr.f32.mxu0 0.0
    %3494 = vmatmul.mubr.f32.gmra.mxu0 %v3421
    %v3495 = vpop.f32.mrf.mxu0
    %v3496 = vadd.f32 0.0, %v3495
    %v3497 = vpop.f32.mrf.mxu0
    %3498 = vmatprep.mubr.f32.mxu0 0.0
    %3499 = vmatmul.mubr.f32.gmra.mxu0 %v3423
    %v3500 = vpop.f32.mrf.mxu0
    %v3501 = vadd.f32 0.0, %v3500
    %v3502 = vpop.f32.mrf.mxu0
    %3503 = vdwg.mxu0
    %3504 = vrot.lane.b32.xlu0 %v3220, 64
    %v3505 = vpop.permute.xlu0 %3504
    %3506 = vrot.lane.b32.xlu0 %v3222, 64
    %v3507 = vpop.permute.xlu0 %3506
    %v3508 = vsel %vm408, %v3220, 0
    %v3510 = vsel %vm408, %v3222, 0
    %v3512 = vsel %vm408, %v3505, 0
    %v3514 = vsel %vm408, %v3507, 0
    %3516 = vmatprep.subr.mxu0 0.0
    %3517 = vmatpush1.xpose.msra.mxu0 0.0
    %3518 = vmatprep.subr.mxu0 0.0
    %3519 = vmatpush1.xpose.msra.mxu0 0.0
    %3520 = vmatprep.subr.mxu0 0.0
    %3521 = vmatpush1.xpose.msra.mxu0 0.0
    %3522 = vmatprep.subr.mxu0 0.0
    %3523 = vmatpush1.xpose.msra.mxu0 0.0
    %3524 = vmatprep.subr.mxu0 0.0
    %3525 = vmatpush1.xpose.msra.mxu0 0.0
    %3526 = vmatprep.subr.mxu0 0.0
    %3527 = vmatpush1.xpose.msra.mxu0 0.0
    %3528 = vmatprep.subr.mxu0 0.0
    %3529 = vmatpush1.xpose.msra.mxu0 0.0
    %3530 = vmatprep.subr.mxu0 0.0
    %3531 = vmatpush1.xpose.msra.mxu0 0.0
    %3532 = vmatprep.subr.mxu0 0.0
    %3533 = vmatpush1.xpose.msra.mxu0 0.0
    %3534 = vmatprep.subr.mxu0 0.0
    %3535 = vmatpush1.xpose.msra.mxu0 0.0
    %3536 = vmatprep.subr.mxu0 0.0
    %3537 = vmatpush1.xpose.msra.mxu0 0.0
    %3538 = vmatprep.subr.mxu0 0.0
    %3539 = vmatpush1.xpose.msra.mxu0 0.0
    %3540 = vmatprep.subr.mxu0 0.0
    %3541 = vmatpush1.xpose.msra.mxu0 0.0
    %3542 = vmatprep.subr.mxu0 0.0
    %3543 = vmatpush1.xpose.msra.mxu0 0.0
    %3544 = vmatprep.subr.mxu0 0.0
    %3545 = vmatpush1.xpose.msra.mxu0 %v3514
    %3546 = vmatprep.subr.mxu0 0.0
    %3547 = vmatpush1.xpose.msra.mxu0 %v3512
    %3548 = vmatprep.subr.mxu0 0.0
    %3549 = vmatpush2.xpose.msra.mxu0 0.0
    %3550 = vmatprep.subr.mxu0 0.0
    %3551 = vmatpush2.xpose.msra.mxu0 0.0
    %3552 = vmatprep.subr.mxu0 0.0
    %3553 = vmatpush2.xpose.msra.mxu0 0.0
    %3554 = vmatprep.subr.mxu0 0.0
    %3555 = vmatpush2.xpose.msra.mxu0 0.0
    %3556 = vmatprep.subr.mxu0 0.0
    %3557 = vmatpush2.xpose.msra.mxu0 0.0
    %3558 = vmatprep.subr.mxu0 0.0
    %3559 = vmatpush2.xpose.msra.mxu0 0.0
    %3560 = vmatprep.subr.mxu0 0.0
    %3561 = vmatpush2.xpose.msra.mxu0 0.0
    %3562 = vmatprep.subr.mxu0 0.0
    %3563 = vmatpush2.xpose.msra.mxu0 0.0
    %3564 = vmatprep.subr.mxu0 0.0
    %3565 = vmatpush2.xpose.msra.mxu0 0.0
    %3566 = vmatprep.subr.mxu0 0.0
    %3567 = vmatpush2.xpose.msra.mxu0 0.0
    %3568 = vmatprep.subr.mxu0 0.0
    %3569 = vmatpush2.xpose.msra.mxu0 0.0
    %3570 = vmatprep.subr.mxu0 0.0
    %3571 = vmatpush2.xpose.msra.mxu0 0.0
    %3572 = vmatprep.subr.mxu0 0.0
    %3573 = vmatpush2.xpose.msra.mxu0 0.0
    %3574 = vmatprep.subr.mxu0 0.0
    %3575 = vmatpush2.xpose.msra.mxu0 0.0
    %3576 = vmatprep.subr.mxu0 0.0
    %3577 = vmatpush2.xpose.msra.mxu0 0.0
    %3578 = vmatprep.subr.mxu0 0.0
    %3579 = vmatpush2.xpose.msra.mxu0 0.0
    %3580 = vmatprep.mubr.f32.mxu0 0.0
    %3581 = vmatmul.mubr.f32.gmra.mxu0 %v3508
    %v3582 = vpop.f32.mrf.mxu0
    %v3583 = vadd.f32 0.0, %v3582
    %v3584 = vpop.f32.mrf.mxu0
    %3585 = vmatprep.mubr.f32.mxu0 0.0
    %3586 = vmatmul.mubr.f32.gmra.mxu0 %v3510
    %v3587 = vpop.f32.mrf.mxu0
    %v3588 = vadd.f32 0.0, %v3587
    %v3589 = vpop.f32.mrf.mxu0
    %3590 = vdwg.mxu0
    %v3591 = vmul.f32 %v3322, 0.25
    %v3592 = vmul.f32 %v3327, 0.25
    %v3593 = vmul.f32 %v3409, 0.25
    %v3594 = vmul.f32 %v3414, 0.25
    %v3595 = vmul.f32 %v3496, 0.25
    %v3596 = vmul.f32 %v3501, 0.25
    %v3597 = vmul.f32 %v3583, 0.25
    %v3598 = vmul.f32 %v3588, 0.25
    %v3599 = vsel %vm408, %v3591, -inf
    %3600 = vmax.xlane.f32.xlu0 %v3599
    %v3601 = vpop.xlane.xlu0 %3600
    %v3602 = vsel %vm408, %v3592, -inf
    %3603 = vmax.xlane.f32.xlu0 %v3602
    %v3604 = vpop.xlane.xlu0 %3603
    %v3605 = vsel %vm408, %v3593, -inf
    %3606 = vmax.xlane.f32.xlu0 %v3605
    %v3607 = vpop.xlane.xlu0 %3606
    %v3608 = vsel %vm408, %v3594, -inf
    %3609 = vmax.xlane.f32.xlu0 %v3608
    %v3610 = vpop.xlane.xlu0 %3609
    %v3611 = vsel %vm408, %v3595, -inf
    %3612 = vmax.xlane.f32.xlu0 %v3611
    %v3613 = vpop.xlane.xlu0 %3612
    %v3614 = vsel %vm408, %v3596, -inf
    %3615 = vmax.xlane.f32.xlu0 %v3614
    %v3616 = vpop.xlane.xlu0 %3615
    %v3617 = vsel %vm408, %v3597, -inf
    %3618 = vmax.xlane.f32.xlu0 %v3617
    %v3619 = vpop.xlane.xlu0 %3618
    %v3620 = vsel %vm408, %v3598, -inf
    %3621 = vmax.xlane.f32.xlu0 %v3620
    %v3622 = vpop.xlane.xlu0 %3621
    %v3623 = vsub.f32 %v3591, %v3601
    %v3624 = vsub.f32 %v3592, %v3604
    %v3625 = vsub.f32 %v3593, %v3607
    %v3626 = vsub.f32 %v3594, %v3610
    %v3627 = vsub.f32 %v3595, %v3613
    %v3628 = vsub.f32 %v3596, %v3616
    %v3629 = vsub.f32 %v3597, %v3619
    %v3630 = vsub.f32 %v3598, %v3622
    %v3631 = vmul.f32 %v3623, 1.442695
    %v3632 = vpow.pop %v3631
    %v3633 = vmul.f32 %v3624, 1.442695
    %v3634 = vpow.pop %v3633
    %v3635 = vmul.f32 %v3625, 1.442695
    %v3636 = vpow.pop %v3635
    %v3637 = vmul.f32 %v3626, 1.442695
    %v3638 = vpow.pop %v3637
    %v3639 = vmul.f32 %v3627, 1.442695
    %v3640 = vpow.pop %v3639
    %v3641 = vmul.f32 %v3628, 1.442695
    %v3642 = vpow.pop %v3641
    %v3643 = vmul.f32 %v3629, 1.442695
    %v3644 = vpow.pop %v3643
    %v3645 = vmul.f32 %v3630, 1.442695
    %v3646 = vpow.pop %v3645
    %v3647 = vsel %vm408, %v3632, 0.0
    %3648 = vadd.xlane.f32.xlu0 %v3647
    %v3649 = vpop.xlane.xlu0 %3648
    %v3650 = vsel %vm408, %v3634, 0.0
    %3651 = vadd.xlane.f32.xlu0 %v3650
    %v3652 = vpop.xlane.xlu0 %3651
    %v3653 = vsel %vm408, %v3636, 0.0
    %3654 = vadd.xlane.f32.xlu0 %v3653
    %v3655 = vpop.xlane.xlu0 %3654
    %v3656 = vsel %vm408, %v3638, 0.0
    %3657 = vadd.xlane.f32.xlu0 %v3656
    %v3658 = vpop.xlane.xlu0 %3657
    %v3659 = vsel %vm408, %v3640, 0.0
    %3660 = vadd.xlane.f32.xlu0 %v3659
    %v3661 = vpop.xlane.xlu0 %3660
    %v3662 = vsel %vm408, %v3642, 0.0
    %3663 = vadd.xlane.f32.xlu0 %v3662
    %v3664 = vpop.xlane.xlu0 %3663
    %v3665 = vsel %vm408, %v3644, 0.0
    %3666 = vadd.xlane.f32.xlu0 %v3665
    %v3667 = vpop.xlane.xlu0 %3666
    %v3668 = vsel %vm408, %v3646, 0.0
    %3669 = vadd.xlane.f32.xlu0 %v3668
    %v3670 = vpop.xlane.xlu0 %3669
    %v3671 = vrcp.pop %v3649
    %v3672 = vrcp.pop %v3652
    %v3673 = vrcp.pop %v3655
    %v3674 = vrcp.pop %v3658
    %v3675 = vrcp.pop %v3661
    %v3676 = vrcp.pop %v3664
    %v3677 = vrcp.pop %v3667
    %v3678 = vrcp.pop %v3670
    %v3679 = vmul.f32 %v3632, %v3671
    %v3680 = vmul.f32 %v3634, %v3672
    %v3681 = vmul.f32 %v3636, %v3673
    %v3682 = vmul.f32 %v3638, %v3674
    %v3683 = vmul.f32 %v3640, %v3675
    %v3684 = vmul.f32 %v3642, %v3676
    %v3685 = vmul.f32 %v3644, %v3677
    %v3686 = vmul.f32 %v3646, %v3678
    %v3688 = vsel %vm408, %v3679, 0
    %v3691 = vsel %vm408, %v3680, 0
    %3693 = vmatprep.subr.mxu0 0.0
    %3694 = vmatpush1.msra.mxu0 0.0
    %3695 = vmatprep.subr.mxu0 0.0
    %3696 = vmatpush1.msra.mxu0 0.0
    %3697 = vmatprep.subr.mxu0 0.0
    %3698 = vmatpush1.msra.mxu0 0.0
    %3699 = vmatprep.subr.mxu0 0.0
    %3700 = vmatpush1.msra.mxu0 0.0
    %3701 = vmatprep.subr.mxu0 0.0
    %3702 = vmatpush1.msra.mxu0 0.0
    %3703 = vmatprep.subr.mxu0 0.0
    %3704 = vmatpush1.msra.mxu0 0.0
    %3705 = vmatprep.subr.mxu0 0.0
    %3706 = vmatpush1.msra.mxu0 0.0
    %3707 = vmatprep.subr.mxu0 0.0
    %3708 = vmatpush1.msra.mxu0 0.0
    %3709 = vmatprep.subr.mxu0 0.0
    %3710 = vmatpush1.msra.mxu0 0.0
    %3711 = vmatprep.subr.mxu0 0.0
    %3712 = vmatpush1.msra.mxu0 0.0
    %3713 = vmatprep.subr.mxu0 0.0
    %3714 = vmatpush1.msra.mxu0 0.0
    %3715 = vmatprep.subr.mxu0 0.0
    %3716 = vmatpush1.msra.mxu0 0.0
    %3717 = vmatprep.subr.mxu0 0.0
    %3718 = vmatpush1.msra.mxu0 0.0
    %3719 = vmatprep.subr.mxu0 0.0
    %3720 = vmatpush1.msra.mxu0 0.0
    %3721 = vmatprep.subr.mxu0 0.0
    %3722 = vmatpush1.msra.mxu0 %v3195
    %3723 = vmatprep.subr.mxu0 0.0
    %3724 = vmatpush1.msra.mxu0 %v3189
    %3725 = vmatprep.subr.mxu0 0.0
    %3726 = vmatpush2.msra.mxu0 0.0
    %3727 = vmatprep.subr.mxu0 0.0
    %3728 = vmatpush2.msra.mxu0 0.0
    %3729 = vmatprep.subr.mxu0 0.0
    %3730 = vmatpush2.msra.mxu0 0.0
    %3731 = vmatprep.subr.mxu0 0.0
    %3732 = vmatpush2.msra.mxu0 0.0
    %3733 = vmatprep.subr.mxu0 0.0
    %3734 = vmatpush2.msra.mxu0 0.0
    %3735 = vmatprep.subr.mxu0 0.0
    %3736 = vmatpush2.msra.mxu0 0.0
    %3737 = vmatprep.subr.mxu0 0.0
    %3738 = vmatpush2.msra.mxu0 0.0
    %3739 = vmatprep.subr.mxu0 0.0
    %3740 = vmatpush2.msra.mxu0 0.0
    %3741 = vmatprep.subr.mxu0 0.0
    %3742 = vmatpush2.msra.mxu0 0.0
    %3743 = vmatprep.subr.mxu0 0.0
    %3744 = vmatpush2.msra.mxu0 0.0
    %3745 = vmatprep.subr.mxu0 0.0
    %3746 = vmatpush2.msra.mxu0 0.0
    %3747 = vmatprep.subr.mxu0 0.0
    %3748 = vmatpush2.msra.mxu0 0.0
    %3749 = vmatprep.subr.mxu0 0.0
    %3750 = vmatpush2.msra.mxu0 0.0
    %3751 = vmatprep.subr.mxu0 0.0
    %3752 = vmatpush2.msra.mxu0 0.0
    %3753 = vmatprep.subr.mxu0 0.0
    %3754 = vmatpush2.msra.mxu0 0.0
    %3755 = vmatprep.subr.mxu0 0.0
    %3756 = vmatpush2.msra.mxu0 0.0
    %3757 = vmatprep.mubr.f32.mxu0 0.0
    %3758 = vmatmul.mubr.f32.gmra.mxu0 %v3688
    %v3759 = vpop.f32.mrf.mxu0
    %v3760 = vadd.f32 0.0, %v3759
    %v3761 = vpop.f32.mrf.mxu0
    %3762 = vmatprep.mubr.f32.mxu0 0.0
    %3763 = vmatmul.mubr.f32.gmra.mxu0 %v3691
    %v3764 = vpop.f32.mrf.mxu0
    %v3765 = vadd.f32 0.0, %v3764
    %v3766 = vpop.f32.mrf.mxu0
    %3767 = vdwg.mxu0
    %v3769 = vsel %vm408, %v3681, 0
    %v3772 = vsel %vm408, %v3682, 0
    %3774 = vmatprep.subr.mxu0 0.0
    %3775 = vmatpush1.msra.mxu0 0.0
    %3776 = vmatprep.subr.mxu0 0.0
    %3777 = vmatpush1.msra.mxu0 0.0
    %3778 = vmatprep.subr.mxu0 0.0
    %3779 = vmatpush1.msra.mxu0 0.0
    %3780 = vmatprep.subr.mxu0 0.0
    %3781 = vmatpush1.msra.mxu0 0.0
    %3782 = vmatprep.subr.mxu0 0.0
    %3783 = vmatpush1.msra.mxu0 0.0
    %3784 = vmatprep.subr.mxu0 0.0
    %3785 = vmatpush1.msra.mxu0 0.0
    %3786 = vmatprep.subr.mxu0 0.0
    %3787 = vmatpush1.msra.mxu0 0.0
    %3788 = vmatprep.subr.mxu0 0.0
    %3789 = vmatpush1.msra.mxu0 0.0
    %3790 = vmatprep.subr.mxu0 0.0
    %3791 = vmatpush1.msra.mxu0 0.0
    %3792 = vmatprep.subr.mxu0 0.0
    %3793 = vmatpush1.msra.mxu0 0.0
    %3794 = vmatprep.subr.mxu0 0.0
    %3795 = vmatpush1.msra.mxu0 0.0
    %3796 = vmatprep.subr.mxu0 0.0
    %3797 = vmatpush1.msra.mxu0 0.0
    %3798 = vmatprep.subr.mxu0 0.0
    %3799 = vmatpush1.msra.mxu0 0.0
    %3800 = vmatprep.subr.mxu0 0.0
    %3801 = vmatpush1.msra.mxu0 0.0
    %3802 = vmatprep.subr.mxu0 0.0
    %3803 = vmatpush1.msra.mxu0 %v3228
    %3804 = vmatprep.subr.mxu0 0.0
    %3805 = vmatpush1.msra.mxu0 %v3226
    %3806 = vmatprep.subr.mxu0 0.0
    %3807 = vmatpush2.msra.mxu0 0.0
    %3808 = vmatprep.subr.mxu0 0.0
    %3809 = vmatpush2.msra.mxu0 0.0
    %3810 = vmatprep.subr.mxu0 0.0
    %3811 = vmatpush2.msra.mxu0 0.0
    %3812 = vmatprep.subr.mxu0 0.0
    %3813 = vmatpush2.msra.mxu0 0.0
    %3814 = vmatprep.subr.mxu0 0.0
    %3815 = vmatpush2.msra.mxu0 0.0
    %3816 = vmatprep.subr.mxu0 0.0
    %3817 = vmatpush2.msra.mxu0 0.0
    %3818 = vmatprep.subr.mxu0 0.0
    %3819 = vmatpush2.msra.mxu0 0.0
    %3820 = vmatprep.subr.mxu0 0.0
    %3821 = vmatpush2.msra.mxu0 0.0
    %3822 = vmatprep.subr.mxu0 0.0
    %3823 = vmatpush2.msra.mxu0 0.0
    %3824 = vmatprep.subr.mxu0 0.0
    %3825 = vmatpush2.msra.mxu0 0.0
    %3826 = vmatprep.subr.mxu0 0.0
    %3827 = vmatpush2.msra.mxu0 0.0
    %3828 = vmatprep.subr.mxu0 0.0
    %3829 = vmatpush2.msra.mxu0 0.0
    %3830 = vmatprep.subr.mxu0 0.0
    %3831 = vmatpush2.msra.mxu0 0.0
    %3832 = vmatprep.subr.mxu0 0.0
    %3833 = vmatpush2.msra.mxu0 0.0
    %3834 = vmatprep.subr.mxu0 0.0
    %3835 = vmatpush2.msra.mxu0 0.0
    %3836 = vmatprep.subr.mxu0 0.0
    %3837 = vmatpush2.msra.mxu0 0.0
    %3838 = vmatprep.mubr.f32.mxu0 0.0
    %3839 = vmatmul.mubr.f32.gmra.mxu0 %v3769
    %v3840 = vpop.f32.mrf.mxu0
    %v3841 = vadd.f32 0.0, %v3840
    %v3842 = vpop.f32.mrf.mxu0
    %3843 = vmatprep.mubr.f32.mxu0 0.0
    %3844 = vmatmul.mubr.f32.gmra.mxu0 %v3772
    %v3845 = vpop.f32.mrf.mxu0
    %v3846 = vadd.f32 0.0, %v3845
    %v3847 = vpop.f32.mrf.mxu0
    %3848 = vdwg.mxu0
    %v3850 = vsel %vm408, %v3683, 0
    %v3853 = vsel %vm408, %v3684, 0
    %3855 = vmatprep.subr.mxu0 0.0
    %3856 = vmatpush1.msra.mxu0 0.0
    %3857 = vmatprep.subr.mxu0 0.0
    %3858 = vmatpush1.msra.mxu0 0.0
    %3859 = vmatprep.subr.mxu0 0.0
    %3860 = vmatpush1.msra.mxu0 0.0
    %3861 = vmatprep.subr.mxu0 0.0
    %3862 = vmatpush1.msra.mxu0 0.0
    %3863 = vmatprep.subr.mxu0 0.0
    %3864 = vmatpush1.msra.mxu0 0.0
    %3865 = vmatprep.subr.mxu0 0.0
    %3866 = vmatpush1.msra.mxu0 0.0
    %3867 = vmatprep.subr.mxu0 0.0
    %3868 = vmatpush1.msra.mxu0 0.0
    %3869 = vmatprep.subr.mxu0 0.0
    %3870 = vmatpush1.msra.mxu0 0.0
    %3871 = vmatprep.subr.mxu0 0.0
    %3872 = vmatpush1.msra.mxu0 0.0
    %3873 = vmatprep.subr.mxu0 0.0
    %3874 = vmatpush1.msra.mxu0 0.0
    %3875 = vmatprep.subr.mxu0 0.0
    %3876 = vmatpush1.msra.mxu0 0.0
    %3877 = vmatprep.subr.mxu0 0.0
    %3878 = vmatpush1.msra.mxu0 0.0
    %3879 = vmatprep.subr.mxu0 0.0
    %3880 = vmatpush1.msra.mxu0 0.0
    %3881 = vmatprep.subr.mxu0 0.0
    %3882 = vmatpush1.msra.mxu0 0.0
    %3883 = vmatprep.subr.mxu0 0.0
    %3884 = vmatpush1.msra.mxu0 %v3234
    %3885 = vmatprep.subr.mxu0 0.0
    %3886 = vmatpush1.msra.mxu0 %v3232
    %3887 = vmatprep.subr.mxu0 0.0
    %3888 = vmatpush2.msra.mxu0 0.0
    %3889 = vmatprep.subr.mxu0 0.0
    %3890 = vmatpush2.msra.mxu0 0.0
    %3891 = vmatprep.subr.mxu0 0.0
    %3892 = vmatpush2.msra.mxu0 0.0
    %3893 = vmatprep.subr.mxu0 0.0
    %3894 = vmatpush2.msra.mxu0 0.0
    %3895 = vmatprep.subr.mxu0 0.0
    %3896 = vmatpush2.msra.mxu0 0.0
    %3897 = vmatprep.subr.mxu0 0.0
    %3898 = vmatpush2.msra.mxu0 0.0
    %3899 = vmatprep.subr.mxu0 0.0
    %3900 = vmatpush2.msra.mxu0 0.0
    %3901 = vmatprep.subr.mxu0 0.0
    %3902 = vmatpush2.msra.mxu0 0.0
    %3903 = vmatprep.subr.mxu0 0.0
    %3904 = vmatpush2.msra.mxu0 0.0
    %3905 = vmatprep.subr.mxu0 0.0
    %3906 = vmatpush2.msra.mxu0 0.0
    %3907 = vmatprep.subr.mxu0 0.0
    %3908 = vmatpush2.msra.mxu0 0.0
    %3909 = vmatprep.subr.mxu0 0.0
    %3910 = vmatpush2.msra.mxu0 0.0
    %3911 = vmatprep.subr.mxu0 0.0
    %3912 = vmatpush2.msra.mxu0 0.0
    %3913 = vmatprep.subr.mxu0 0.0
    %3914 = vmatpush2.msra.mxu0 0.0
    %3915 = vmatprep.subr.mxu0 0.0
    %3916 = vmatpush2.msra.mxu0 0.0
    %3917 = vmatprep.subr.mxu0 0.0
    %3918 = vmatpush2.msra.mxu0 0.0
    %3919 = vmatprep.mubr.f32.mxu0 0.0
    %3920 = vmatmul.mubr.f32.gmra.mxu0 %v3850
    %v3921 = vpop.f32.mrf.mxu0
    %v3922 = vadd.f32 0.0, %v3921
    %v3923 = vpop.f32.mrf.mxu0
    %3924 = vmatprep.mubr.f32.mxu0 0.0
    %3925 = vmatmul.mubr.f32.gmra.mxu0 %v3853
    %v3926 = vpop.f32.mrf.mxu0
    %v3927 = vadd.f32 0.0, %v3926
    %v3928 = vpop.f32.mrf.mxu0
    %3929 = vdwg.mxu0
    %v3931 = vsel %vm408, %v3685, 0
    %v3934 = vsel %vm408, %v3686, 0
    %3936 = vmatprep.subr.mxu0 0.0
    %3937 = vmatpush1.msra.mxu0 0.0
    %3938 = vmatprep.subr.mxu0 0.0
    %3939 = vmatpush1.msra.mxu0 0.0
    %3940 = vmatprep.subr.mxu0 0.0
    %3941 = vmatpush1.msra.mxu0 0.0
    %3942 = vmatprep.subr.mxu0 0.0
    %3943 = vmatpush1.msra.mxu0 0.0
    %3944 = vmatprep.subr.mxu0 0.0
    %3945 = vmatpush1.msra.mxu0 0.0
    %3946 = vmatprep.subr.mxu0 0.0
    %3947 = vmatpush1.msra.mxu0 0.0
    %3948 = vmatprep.subr.mxu0 0.0
    %3949 = vmatpush1.msra.mxu0 0.0
    %3950 = vmatprep.subr.mxu0 0.0
    %3951 = vmatpush1.msra.mxu0 0.0
    %3952 = vmatprep.subr.mxu0 0.0
    %3953 = vmatpush1.msra.mxu0 0.0
    %3954 = vmatprep.subr.mxu0 0.0
    %3955 = vmatpush1.msra.mxu0 0.0
    %3956 = vmatprep.subr.mxu0 0.0
    %3957 = vmatpush1.msra.mxu0 0.0
    %3958 = vmatprep.subr.mxu0 0.0
    %3959 = vmatpush1.msra.mxu0 0.0
    %3960 = vmatprep.subr.mxu0 0.0
    %3961 = vmatpush1.msra.mxu0 0.0
    %3962 = vmatprep.subr.mxu0 0.0
    %3963 = vmatpush1.msra.mxu0 0.0
    %3964 = vmatprep.subr.mxu0 0.0
    %3965 = vmatpush1.msra.mxu0 %v3240
    %3966 = vmatprep.subr.mxu0 0.0
    %3967 = vmatpush1.msra.mxu0 %v3238
    %3968 = vmatprep.subr.mxu0 0.0
    %3969 = vmatpush2.msra.mxu0 0.0
    %3970 = vmatprep.subr.mxu0 0.0
    %3971 = vmatpush2.msra.mxu0 0.0
    %3972 = vmatprep.subr.mxu0 0.0
    %3973 = vmatpush2.msra.mxu0 0.0
    %3974 = vmatprep.subr.mxu0 0.0
    %3975 = vmatpush2.msra.mxu0 0.0
    %3976 = vmatprep.subr.mxu0 0.0
    %3977 = vmatpush2.msra.mxu0 0.0
    %3978 = vmatprep.subr.mxu0 0.0
    %3979 = vmatpush2.msra.mxu0 0.0
    %3980 = vmatprep.subr.mxu0 0.0
    %3981 = vmatpush2.msra.mxu0 0.0
    %3982 = vmatprep.subr.mxu0 0.0
    %3983 = vmatpush2.msra.mxu0 0.0
    %3984 = vmatprep.subr.mxu0 0.0
    %3985 = vmatpush2.msra.mxu0 0.0
    %3986 = vmatprep.subr.mxu0 0.0
    %3987 = vmatpush2.msra.mxu0 0.0
    %3988 = vmatprep.subr.mxu0 0.0
    %3989 = vmatpush2.msra.mxu0 0.0
    %3990 = vmatprep.subr.mxu0 0.0
    %3991 = vmatpush2.msra.mxu0 0.0
    %3992 = vmatprep.subr.mxu0 0.0
    %3993 = vmatpush2.msra.mxu0 0.0
    %3994 = vmatprep.subr.mxu0 0.0
    %3995 = vmatpush2.msra.mxu0 0.0
    %3996 = vmatprep.subr.mxu0 0.0
    %3997 = vmatpush2.msra.mxu0 0.0
    %3998 = vmatprep.subr.mxu0 0.0
    %3999 = vmatpush2.msra.mxu0 0.0
    %4000 = vmatprep.mubr.f32.mxu0 0.0
    %4001 = vmatmul.mubr.f32.gmra.mxu0 %v3931
    %v4002 = vpop.f32.mrf.mxu0
    %v4003 = vadd.f32 0.0, %v4002
    %v4004 = vpop.f32.mrf.mxu0
    %4005 = vmatprep.mubr.f32.mxu0 0.0
    %4006 = vmatmul.mubr.f32.gmra.mxu0 %v3934
    %v4007 = vpop.f32.mrf.mxu0
    %v4008 = vadd.f32 0.0, %v4007
    %v4009 = vpop.f32.mrf.mxu0
    %4010 = vdwg.mxu0
    %s4011 = scalar_lea.vmem %s5, 64
    %v4012 = vld [vmem:[%s4011] sm:$0xff]
    %v4013 = vld [vmem:[%s4011 + $0x8] sm:$0xff]
    %v4014 = vld [vmem:[%s4011 + $0x10] sm:$0xff]
    %v4015 = vld [vmem:[%s4011 + $0x18] sm:$0xff]
    %v4016 = vld [vmem:[%s4011 + $0x20] sm:$0xff]
    %v4017 = vld [vmem:[%s4011 + $0x28] sm:$0xff]
    %v4018 = vld [vmem:[%s4011 + $0x30] sm:$0xff]
    %v4019 = vld [vmem:[%s4011 + $0x38] sm:$0xff]
    %v4021 = vsel %vm408, %v3760, 0
    %v4024 = vsel %vm408, %v3765, 0
    %4026 = vmatprep.subr.mxu0 0.0
    %4027 = vmatpush1.msra.mxu0 0.0
    %4028 = vmatprep.subr.mxu0 0.0
    %4029 = vmatpush1.msra.mxu0 0.0
    %4030 = vmatprep.subr.mxu0 0.0
    %4031 = vmatpush1.msra.mxu0 0.0
    %4032 = vmatprep.subr.mxu0 0.0
    %4033 = vmatpush1.msra.mxu0 0.0
    %4034 = vmatprep.subr.mxu0 0.0
    %4035 = vmatpush1.msra.mxu0 0.0
    %4036 = vmatprep.subr.mxu0 0.0
    %4037 = vmatpush1.msra.mxu0 0.0
    %4038 = vmatprep.subr.mxu0 0.0
    %4039 = vmatpush1.msra.mxu0 0.0
    %4040 = vmatprep.subr.mxu0 0.0
    %4041 = vmatpush1.msra.mxu0 0.0
    %4042 = vmatprep.subr.mxu0 0.0
    %4043 = vmatpush1.msra.mxu0 0.0
    %4044 = vmatprep.subr.mxu0 0.0
    %4045 = vmatpush1.msra.mxu0 0.0
    %4046 = vmatprep.subr.mxu0 0.0
    %4047 = vmatpush1.msra.mxu0 0.0
    %4048 = vmatprep.subr.mxu0 0.0
    %4049 = vmatpush1.msra.mxu0 0.0
    %4050 = vmatprep.subr.mxu0 0.0
    %4051 = vmatpush1.msra.mxu0 0.0
    %4052 = vmatprep.subr.mxu0 0.0
    %4053 = vmatpush1.msra.mxu0 0.0
    %4054 = vmatprep.subr.mxu0 0.0
    %4055 = vmatpush1.msra.mxu0 %v4013
    %4056 = vmatprep.subr.mxu0 0.0
    %4057 = vmatpush1.msra.mxu0 %v4012
    %4058 = vmatprep.subr.mxu0 0.0
    %4059 = vmatpush2.msra.mxu0 0.0
    %4060 = vmatprep.subr.mxu0 0.0
    %4061 = vmatpush2.msra.mxu0 0.0
    %4062 = vmatprep.subr.mxu0 0.0
    %4063 = vmatpush2.msra.mxu0 0.0
    %4064 = vmatprep.subr.mxu0 0.0
    %4065 = vmatpush2.msra.mxu0 0.0
    %4066 = vmatprep.subr.mxu0 0.0
    %4067 = vmatpush2.msra.mxu0 0.0
    %4068 = vmatprep.subr.mxu0 0.0
    %4069 = vmatpush2.msra.mxu0 0.0
    %4070 = vmatprep.subr.mxu0 0.0
    %4071 = vmatpush2.msra.mxu0 0.0
    %4072 = vmatprep.subr.mxu0 0.0
    %4073 = vmatpush2.msra.mxu0 0.0
    %4074 = vmatprep.subr.mxu0 0.0
    %4075 = vmatpush2.msra.mxu0 0.0
    %4076 = vmatprep.subr.mxu0 0.0
    %4077 = vmatpush2.msra.mxu0 0.0
    %4078 = vmatprep.subr.mxu0 0.0
    %4079 = vmatpush2.msra.mxu0 0.0
    %4080 = vmatprep.subr.mxu0 0.0
    %4081 = vmatpush2.msra.mxu0 0.0
    %4082 = vmatprep.subr.mxu0 0.0
    %4083 = vmatpush2.msra.mxu0 0.0
    %4084 = vmatprep.subr.mxu0 0.0
    %4085 = vmatpush2.msra.mxu0 0.0
    %4086 = vmatprep.subr.mxu0 0.0
    %4087 = vmatpush2.msra.mxu0 0.0
    %4088 = vmatprep.subr.mxu0 0.0
    %4089 = vmatpush2.msra.mxu0 0.0
    %4090 = vmatprep.mubr.f32.mxu0 0.0
    %4091 = vmatmul.mubr.f32.gmra.mxu0 %v4021
    %v4092 = vpop.f32.mrf.mxu0
    %v4093 = vadd.f32 0.0, %v4092
    %v4094 = vpop.f32.mrf.mxu0
    %4095 = vmatprep.mubr.f32.mxu0 0.0
    %4096 = vmatmul.mubr.f32.gmra.mxu0 %v4024
    %v4097 = vpop.f32.mrf.mxu0
    %v4098 = vadd.f32 0.0, %v4097
    %v4099 = vpop.f32.mrf.mxu0
    %4100 = vdwg.mxu0
    %v4102 = vsel %vm408, %v3841, 0
    %v4105 = vsel %vm408, %v3846, 0
    %4107 = vmatprep.subr.mxu0 0.0
    %4108 = vmatpush1.msra.mxu0 0.0
    %4109 = vmatprep.subr.mxu0 0.0
    %4110 = vmatpush1.msra.mxu0 0.0
    %4111 = vmatprep.subr.mxu0 0.0
    %4112 = vmatpush1.msra.mxu0 0.0
    %4113 = vmatprep.subr.mxu0 0.0
    %4114 = vmatpush1.msra.mxu0 0.0
    %4115 = vmatprep.subr.mxu0 0.0
    %4116 = vmatpush1.msra.mxu0 0.0
    %4117 = vmatprep.subr.mxu0 0.0
    %4118 = vmatpush1.msra.mxu0 0.0
    %4119 = vmatprep.subr.mxu0 0.0
    %4120 = vmatpush1.msra.mxu0 0.0
    %4121 = vmatprep.subr.mxu0 0.0
    %4122 = vmatpush1.msra.mxu0 0.0
    %4123 = vmatprep.subr.mxu0 0.0
    %4124 = vmatpush1.msra.mxu0 0.0
    %4125 = vmatprep.subr.mxu0 0.0
    %4126 = vmatpush1.msra.mxu0 0.0
    %4127 = vmatprep.subr.mxu0 0.0
    %4128 = vmatpush1.msra.mxu0 0.0
    %4129 = vmatprep.subr.mxu0 0.0
    %4130 = vmatpush1.msra.mxu0 0.0
    %4131 = vmatprep.subr.mxu0 0.0
    %4132 = vmatpush1.msra.mxu0 0.0
    %4133 = vmatprep.subr.mxu0 0.0
    %4134 = vmatpush1.msra.mxu0 0.0
    %4135 = vmatprep.subr.mxu0 0.0
    %4136 = vmatpush1.msra.mxu0 %v4015
    %4137 = vmatprep.subr.mxu0 0.0
    %4138 = vmatpush1.msra.mxu0 %v4014
    %4139 = vmatprep.subr.mxu0 0.0
    %4140 = vmatpush2.msra.mxu0 0.0
    %4141 = vmatprep.subr.mxu0 0.0
    %4142 = vmatpush2.msra.mxu0 0.0
    %4143 = vmatprep.subr.mxu0 0.0
    %4144 = vmatpush2.msra.mxu0 0.0
    %4145 = vmatprep.subr.mxu0 0.0
    %4146 = vmatpush2.msra.mxu0 0.0
    %4147 = vmatprep.subr.mxu0 0.0
    %4148 = vmatpush2.msra.mxu0 0.0
    %4149 = vmatprep.subr.mxu0 0.0
    %4150 = vmatpush2.msra.mxu0 0.0
    %4151 = vmatprep.subr.mxu0 0.0
    %4152 = vmatpush2.msra.mxu0 0.0
    %4153 = vmatprep.subr.mxu0 0.0
    %4154 = vmatpush2.msra.mxu0 0.0
    %4155 = vmatprep.subr.mxu0 0.0
    %4156 = vmatpush2.msra.mxu0 0.0
    %4157 = vmatprep.subr.mxu0 0.0
    %4158 = vmatpush2.msra.mxu0 0.0
    %4159 = vmatprep.subr.mxu0 0.0
    %4160 = vmatpush2.msra.mxu0 0.0
    %4161 = vmatprep.subr.mxu0 0.0
    %4162 = vmatpush2.msra.mxu0 0.0
    %4163 = vmatprep.subr.mxu0 0.0
    %4164 = vmatpush2.msra.mxu0 0.0
    %4165 = vmatprep.subr.mxu0 0.0
    %4166 = vmatpush2.msra.mxu0 0.0
    %4167 = vmatprep.subr.mxu0 0.0
    %4168 = vmatpush2.msra.mxu0 0.0
    %4169 = vmatprep.subr.mxu0 0.0
    %4170 = vmatpush2.msra.mxu0 0.0
    %4171 = vmatprep.mubr.f32.mxu0 0.0
    %4172 = vmatmul.mubr.f32.gmra.mxu0 %v4102
    %v4173 = vpop.f32.mrf.mxu0
    %v4174 = vadd.f32 0.0, %v4173
    %v4175 = vpop.f32.mrf.mxu0
    %4176 = vmatprep.mubr.f32.mxu0 0.0
    %4177 = vmatmul.mubr.f32.gmra.mxu0 %v4105
    %v4178 = vpop.f32.mrf.mxu0
    %v4179 = vadd.f32 0.0, %v4178
    %v4180 = vpop.f32.mrf.mxu0
    %4181 = vdwg.mxu0
    %v4183 = vsel %vm408, %v3922, 0
    %v4186 = vsel %vm408, %v3927, 0
    %4188 = vmatprep.subr.mxu0 0.0
    %4189 = vmatpush1.msra.mxu0 0.0
    %4190 = vmatprep.subr.mxu0 0.0
    %4191 = vmatpush1.msra.mxu0 0.0
    %4192 = vmatprep.subr.mxu0 0.0
    %4193 = vmatpush1.msra.mxu0 0.0
    %4194 = vmatprep.subr.mxu0 0.0
    %4195 = vmatpush1.msra.mxu0 0.0
    %4196 = vmatprep.subr.mxu0 0.0
    %4197 = vmatpush1.msra.mxu0 0.0
    %4198 = vmatprep.subr.mxu0 0.0
    %4199 = vmatpush1.msra.mxu0 0.0
    %4200 = vmatprep.subr.mxu0 0.0
    %4201 = vmatpush1.msra.mxu0 0.0
    %4202 = vmatprep.subr.mxu0 0.0
    %4203 = vmatpush1.msra.mxu0 0.0
    %4204 = vmatprep.subr.mxu0 0.0
    %4205 = vmatpush1.msra.mxu0 0.0
    %4206 = vmatprep.subr.mxu0 0.0
    %4207 = vmatpush1.msra.mxu0 0.0
    %4208 = vmatprep.subr.mxu0 0.0
    %4209 = vmatpush1.msra.mxu0 0.0
    %4210 = vmatprep.subr.mxu0 0.0
    %4211 = vmatpush1.msra.mxu0 0.0
    %4212 = vmatprep.subr.mxu0 0.0
    %4213 = vmatpush1.msra.mxu0 0.0
    %4214 = vmatprep.subr.mxu0 0.0
    %4215 = vmatpush1.msra.mxu0 0.0
    %4216 = vmatprep.subr.mxu0 0.0
    %4217 = vmatpush1.msra.mxu0 %v4017
    %4218 = vmatprep.subr.mxu0 0.0
    %4219 = vmatpush1.msra.mxu0 %v4016
    %4220 = vmatprep.subr.mxu0 0.0
    %4221 = vmatpush2.msra.mxu0 0.0
    %4222 = vmatprep.subr.mxu0 0.0
    %4223 = vmatpush2.msra.mxu0 0.0
    %4224 = vmatprep.subr.mxu0 0.0
    %4225 = vmatpush2.msra.mxu0 0.0
    %4226 = vmatprep.subr.mxu0 0.0
    %4227 = vmatpush2.msra.mxu0 0.0
    %4228 = vmatprep.subr.mxu0 0.0
    %4229 = vmatpush2.msra.mxu0 0.0
    %4230 = vmatprep.subr.mxu0 0.0
    %4231 = vmatpush2.msra.mxu0 0.0
    %4232 = vmatprep.subr.mxu0 0.0
    %4233 = vmatpush2.msra.mxu0 0.0
    %4234 = vmatprep.subr.mxu0 0.0
    %4235 = vmatpush2.msra.mxu0 0.0
    %4236 = vmatprep.subr.mxu0 0.0
    %4237 = vmatpush2.msra.mxu0 0.0
    %4238 = vmatprep.subr.mxu0 0.0
    %4239 = vmatpush2.msra.mxu0 0.0
    %4240 = vmatprep.subr.mxu0 0.0
    %4241 = vmatpush2.msra.mxu0 0.0
    %4242 = vmatprep.subr.mxu0 0.0
    %4243 = vmatpush2.msra.mxu0 0.0
    %4244 = vmatprep.subr.mxu0 0.0
    %4245 = vmatpush2.msra.mxu0 0.0
    %4246 = vmatprep.subr.mxu0 0.0
    %4247 = vmatpush2.msra.mxu0 0.0
    %4248 = vmatprep.subr.mxu0 0.0
    %4249 = vmatpush2.msra.mxu0 0.0
    %4250 = vmatprep.subr.mxu0 0.0
    %4251 = vmatpush2.msra.mxu0 0.0
    %4252 = vmatprep.mubr.f32.mxu0 0.0
    %4253 = vmatmul.mubr.f32.gmra.mxu0 %v4183
    %v4254 = vpop.f32.mrf.mxu0
    %v4255 = vadd.f32 0.0, %v4254
    %v4256 = vpop.f32.mrf.mxu0
    %4257 = vmatprep.mubr.f32.mxu0 0.0
    %4258 = vmatmul.mubr.f32.gmra.mxu0 %v4186
    %v4259 = vpop.f32.mrf.mxu0
    %v4260 = vadd.f32 0.0, %v4259
    %v4261 = vpop.f32.mrf.mxu0
    %4262 = vdwg.mxu0
    %v4264 = vsel %vm408, %v4003, 0
    %v4267 = vsel %vm408, %v4008, 0
    %4269 = vmatprep.subr.mxu0 0.0
    %4270 = vmatpush1.msra.mxu0 0.0
    %4271 = vmatprep.subr.mxu0 0.0
    %4272 = vmatpush1.msra.mxu0 0.0
    %4273 = vmatprep.subr.mxu0 0.0
    %4274 = vmatpush1.msra.mxu0 0.0
    %4275 = vmatprep.subr.mxu0 0.0
    %4276 = vmatpush1.msra.mxu0 0.0
    %4277 = vmatprep.subr.mxu0 0.0
    %4278 = vmatpush1.msra.mxu0 0.0
    %4279 = vmatprep.subr.mxu0 0.0
    %4280 = vmatpush1.msra.mxu0 0.0
    %4281 = vmatprep.subr.mxu0 0.0
    %4282 = vmatpush1.msra.mxu0 0.0
    %4283 = vmatprep.subr.mxu0 0.0
    %4284 = vmatpush1.msra.mxu0 0.0
    %4285 = vmatprep.subr.mxu0 0.0
    %4286 = vmatpush1.msra.mxu0 0.0
    %4287 = vmatprep.subr.mxu0 0.0
    %4288 = vmatpush1.msra.mxu0 0.0
    %4289 = vmatprep.subr.mxu0 0.0
    %4290 = vmatpush1.msra.mxu0 0.0
    %4291 = vmatprep.subr.mxu0 0.0
    %4292 = vmatpush1.msra.mxu0 0.0
    %4293 = vmatprep.subr.mxu0 0.0
    %4294 = vmatpush1.msra.mxu0 0.0
    %4295 = vmatprep.subr.mxu0 0.0
    %4296 = vmatpush1.msra.mxu0 0.0
    %4297 = vmatprep.subr.mxu0 0.0
    %4298 = vmatpush1.msra.mxu0 %v4019
    %4299 = vmatprep.subr.mxu0 0.0
    %4300 = vmatpush1.msra.mxu0 %v4018
    %4301 = vmatprep.subr.mxu0 0.0
    %4302 = vmatpush2.msra.mxu0 0.0
    %4303 = vmatprep.subr.mxu0 0.0
    %4304 = vmatpush2.msra.mxu0 0.0
    %4305 = vmatprep.subr.mxu0 0.0
    %4306 = vmatpush2.msra.mxu0 0.0
    %4307 = vmatprep.subr.mxu0 0.0
    %4308 = vmatpush2.msra.mxu0 0.0
    %4309 = vmatprep.subr.mxu0 0.0
    %4310 = vmatpush2.msra.mxu0 0.0
    %4311 = vmatprep.subr.mxu0 0.0
    %4312 = vmatpush2.msra.mxu0 0.0
    %4313 = vmatprep.subr.mxu0 0.0
    %4314 = vmatpush2.msra.mxu0 0.0
    %4315 = vmatprep.subr.mxu0 0.0
    %4316 = vmatpush2.msra.mxu0 0.0
    %4317 = vmatprep.subr.mxu0 0.0
    %4318 = vmatpush2.msra.mxu0 0.0
    %4319 = vmatprep.subr.mxu0 0.0
    %4320 = vmatpush2.msra.mxu0 0.0
    %4321 = vmatprep.subr.mxu0 0.0
    %4322 = vmatpush2.msra.mxu0 0.0
    %4323 = vmatprep.subr.mxu0 0.0
    %4324 = vmatpush2.msra.mxu0 0.0
    %4325 = vmatprep.subr.mxu0 0.0
    %4326 = vmatpush2.msra.mxu0 0.0
    %4327 = vmatprep.subr.mxu0 0.0
    %4328 = vmatpush2.msra.mxu0 0.0
    %4329 = vmatprep.subr.mxu0 0.0
    %4330 = vmatpush2.msra.mxu0 0.0
    %4331 = vmatprep.subr.mxu0 0.0
    %4332 = vmatpush2.msra.mxu0 0.0
    %4333 = vmatprep.mubr.f32.mxu0 0.0
    %4334 = vmatmul.mubr.f32.gmra.mxu0 %v4264
    %v4335 = vpop.f32.mrf.mxu0
    %v4336 = vadd.f32 0.0, %v4335
    %v4337 = vpop.f32.mrf.mxu0
    %4338 = vmatprep.mubr.f32.mxu0 0.0
    %4339 = vmatmul.mubr.f32.gmra.mxu0 %v4267
    %v4340 = vpop.f32.mrf.mxu0
    %v4341 = vadd.f32 0.0, %v4340
    %v4342 = vpop.f32.mrf.mxu0
    %4343 = vdwg.mxu0
    %v4344 = vsel %vm73, %v4093, 0.0
    %v4345 = vsel %vm73, %v4174, 0.0
    %v4346 = vadd.f32 %v4344, %v4345
    %v4347 = vsel %vm73, %v4255, 0.0
    %v4348 = vadd.f32 %v4346, %v4347
    %v4349 = vsel %vm73, %v4336, 0.0
    %v4350 = vadd.f32 %v4348, %v4349
    %v4351 = vsel %vm73, %v4098, 0.0
    %v4352 = vsel %vm73, %v4179, 0.0
    %v4353 = vadd.f32 %v4351, %v4352
    %v4354 = vsel %vm73, %v4260, 0.0
    %v4355 = vadd.f32 %v4353, %v4354
    %v4356 = vsel %vm73, %v4341, 0.0
    %v4357 = vadd.f32 %v4355, %v4356
    %4360 = vrot.lane.b32.xlu0 %v3199, 112
    %v4361 = vpop.permute.xlu0 %4360
    %4362 = vrot.lane.b32.xlu0 %v3205, 112
    %v4363 = vpop.permute.xlu0 %4362
    %4364 = vrot.lane.b32.xlu0 %v3199, 96
    %v4365 = vpop.permute.xlu0 %4364
    %4366 = vrot.lane.b32.xlu0 %v3205, 96
    %v4367 = vpop.permute.xlu0 %4366
    %4368 = vrot.lane.b32.xlu0 %v3199, 80
    %v4369 = vpop.permute.xlu0 %4368
    %4370 = vrot.lane.b32.xlu0 %v3205, 80
    %v4371 = vpop.permute.xlu0 %4370
    %4374 = vrot.lane.b32.xlu0 %v3201, 112
    %v4375 = vpop.permute.xlu0 %4374
    %4376 = vrot.lane.b32.xlu0 %v3207, 112
    %v4377 = vpop.permute.xlu0 %4376
    %4380 = vrot.lane.b32.xlu0 %v3201, 96
    %v4381 = vpop.permute.xlu0 %4380
    %4382 = vrot.lane.b32.xlu0 %v3207, 96
    %v4383 = vpop.permute.xlu0 %4382
    %4386 = vrot.lane.b32.xlu0 %v3201, 80
    %v4387 = vpop.permute.xlu0 %4386
    %4388 = vrot.lane.b32.xlu0 %v3207, 80
    %v4389 = vpop.permute.xlu0 %4388
    %4392 = vrot.lane.b32.xlu0 %v3199, 64
    %v4393 = vpop.permute.xlu0 %4392
    %4394 = vrot.lane.b32.xlu0 %v3205, 64
    %v4395 = vpop.permute.xlu0 %4394
    %v4396 = vsel %vm408, %v3199, 0
    %v4398 = vsel %vm408, %v3205, 0
    %v4400 = vsel %vm408, %v4393, 0
    %v4402 = vsel %vm408, %v4395, 0
    %4404 = vmatprep.subr.mxu0 0.0
    %4405 = vmatpush1.xpose.msra.mxu0 0.0
    %4406 = vmatprep.subr.mxu0 0.0
    %4407 = vmatpush1.xpose.msra.mxu0 0.0
    %4408 = vmatprep.subr.mxu0 0.0
    %4409 = vmatpush1.xpose.msra.mxu0 0.0
    %4410 = vmatprep.subr.mxu0 0.0
    %4411 = vmatpush1.xpose.msra.mxu0 0.0
    %4412 = vmatprep.subr.mxu0 0.0
    %4413 = vmatpush1.xpose.msra.mxu0 0.0
    %4414 = vmatprep.subr.mxu0 0.0
    %4415 = vmatpush1.xpose.msra.mxu0 0.0
    %4416 = vmatprep.subr.mxu0 0.0
    %4417 = vmatpush1.xpose.msra.mxu0 0.0
    %4418 = vmatprep.subr.mxu0 0.0
    %4419 = vmatpush1.xpose.msra.mxu0 0.0
    %4420 = vmatprep.subr.mxu0 0.0
    %4421 = vmatpush1.xpose.msra.mxu0 0.0
    %4422 = vmatprep.subr.mxu0 0.0
    %4423 = vmatpush1.xpose.msra.mxu0 0.0
    %4424 = vmatprep.subr.mxu0 0.0
    %4425 = vmatpush1.xpose.msra.mxu0 0.0
    %4426 = vmatprep.subr.mxu0 0.0
    %4427 = vmatpush1.xpose.msra.mxu0 0.0
    %4428 = vmatprep.subr.mxu0 0.0
    %4429 = vmatpush1.xpose.msra.mxu0 0.0
    %4430 = vmatprep.subr.mxu0 0.0
    %4431 = vmatpush1.xpose.msra.mxu0 0.0
    %4432 = vmatprep.subr.mxu0 0.0
    %4433 = vmatpush1.xpose.msra.mxu0 %v4402
    %4434 = vmatprep.subr.mxu0 0.0
    %4435 = vmatpush1.xpose.msra.mxu0 %v4400
    %4436 = vmatprep.subr.mxu0 0.0
    %4437 = vmatpush2.xpose.msra.mxu0 0.0
    %4438 = vmatprep.subr.mxu0 0.0
    %4439 = vmatpush2.xpose.msra.mxu0 0.0
    %4440 = vmatprep.subr.mxu0 0.0
    %4441 = vmatpush2.xpose.msra.mxu0 0.0
    %4442 = vmatprep.subr.mxu0 0.0
    %4443 = vmatpush2.xpose.msra.mxu0 0.0
    %4444 = vmatprep.subr.mxu0 0.0
    %4445 = vmatpush2.xpose.msra.mxu0 0.0
    %4446 = vmatprep.subr.mxu0 0.0
    %4447 = vmatpush2.xpose.msra.mxu0 0.0
    %4448 = vmatprep.subr.mxu0 0.0
    %4449 = vmatpush2.xpose.msra.mxu0 0.0
    %4450 = vmatprep.subr.mxu0 0.0
    %4451 = vmatpush2.xpose.msra.mxu0 0.0
    %4452 = vmatprep.subr.mxu0 0.0
    %4453 = vmatpush2.xpose.msra.mxu0 0.0
    %4454 = vmatprep.subr.mxu0 0.0
    %4455 = vmatpush2.xpose.msra.mxu0 0.0
    %4456 = vmatprep.subr.mxu0 0.0
    %4457 = vmatpush2.xpose.msra.mxu0 0.0
    %4458 = vmatprep.subr.mxu0 0.0
    %4459 = vmatpush2.xpose.msra.mxu0 0.0
    %4460 = vmatprep.subr.mxu0 0.0
    %4461 = vmatpush2.xpose.msra.mxu0 0.0
    %4462 = vmatprep.subr.mxu0 0.0
    %4463 = vmatpush2.xpose.msra.mxu0 0.0
    %4464 = vmatprep.subr.mxu0 0.0
    %4465 = vmatpush2.xpose.msra.mxu0 0.0
    %4466 = vmatprep.subr.mxu0 0.0
    %4467 = vmatpush2.xpose.msra.mxu0 0.0
    %4468 = vmatprep.mubr.f32.mxu0 0.0
    %4469 = vmatmul.mubr.f32.gmra.mxu0 %v4396
    %v4470 = vpop.f32.mrf.mxu0
    %v4471 = vadd.f32 0.0, %v4470
    %v4472 = vpop.f32.mrf.mxu0
    %4473 = vmatprep.mubr.f32.mxu0 0.0
    %4474 = vmatmul.mubr.f32.gmra.mxu0 %v4398
    %v4475 = vpop.f32.mrf.mxu0
    %v4476 = vadd.f32 0.0, %v4475
    %v4477 = vpop.f32.mrf.mxu0
    %4478 = vdwg.mxu0
    %4479 = vrot.lane.b32.xlu0 %v4361, 64
    %v4480 = vpop.permute.xlu0 %4479
    %4481 = vrot.lane.b32.xlu0 %v4363, 64
    %v4482 = vpop.permute.xlu0 %4481
    %v4483 = vsel %vm408, %v4361, 0
    %v4485 = vsel %vm408, %v4363, 0
    %v4487 = vsel %vm408, %v4480, 0
    %v4489 = vsel %vm408, %v4482, 0
    %4491 = vmatprep.subr.mxu0 0.0
    %4492 = vmatpush1.xpose.msra.mxu0 0.0
    %4493 = vmatprep.subr.mxu0 0.0
    %4494 = vmatpush1.xpose.msra.mxu0 0.0
    %4495 = vmatprep.subr.mxu0 0.0
    %4496 = vmatpush1.xpose.msra.mxu0 0.0
    %4497 = vmatprep.subr.mxu0 0.0
    %4498 = vmatpush1.xpose.msra.mxu0 0.0
    %4499 = vmatprep.subr.mxu0 0.0
    %4500 = vmatpush1.xpose.msra.mxu0 0.0
    %4501 = vmatprep.subr.mxu0 0.0
    %4502 = vmatpush1.xpose.msra.mxu0 0.0
    %4503 = vmatprep.subr.mxu0 0.0
    %4504 = vmatpush1.xpose.msra.mxu0 0.0
    %4505 = vmatprep.subr.mxu0 0.0
    %4506 = vmatpush1.xpose.msra.mxu0 0.0
    %4507 = vmatprep.subr.mxu0 0.0
    %4508 = vmatpush1.xpose.msra.mxu0 0.0
    %4509 = vmatprep.subr.mxu0 0.0
    %4510 = vmatpush1.xpose.msra.mxu0 0.0
    %4511 = vmatprep.subr.mxu0 0.0
    %4512 = vmatpush1.xpose.msra.mxu0 0.0
    %4513 = vmatprep.subr.mxu0 0.0
    %4514 = vmatpush1.xpose.msra.mxu0 0.0
    %4515 = vmatprep.subr.mxu0 0.0
    %4516 = vmatpush1.xpose.msra.mxu0 0.0
    %4517 = vmatprep.subr.mxu0 0.0
    %4518 = vmatpush1.xpose.msra.mxu0 0.0
    %4519 = vmatprep.subr.mxu0 0.0
    %4520 = vmatpush1.xpose.msra.mxu0 %v4489
    %4521 = vmatprep.subr.mxu0 0.0
    %4522 = vmatpush1.xpose.msra.mxu0 %v4487
    %4523 = vmatprep.subr.mxu0 0.0
    %4524 = vmatpush2.xpose.msra.mxu0 0.0
    %4525 = vmatprep.subr.mxu0 0.0
    %4526 = vmatpush2.xpose.msra.mxu0 0.0
    %4527 = vmatprep.subr.mxu0 0.0
    %4528 = vmatpush2.xpose.msra.mxu0 0.0
    %4529 = vmatprep.subr.mxu0 0.0
    %4530 = vmatpush2.xpose.msra.mxu0 0.0
    %4531 = vmatprep.subr.mxu0 0.0
    %4532 = vmatpush2.xpose.msra.mxu0 0.0
    %4533 = vmatprep.subr.mxu0 0.0
    %4534 = vmatpush2.xpose.msra.mxu0 0.0
    %4535 = vmatprep.subr.mxu0 0.0
    %4536 = vmatpush2.xpose.msra.mxu0 0.0
    %4537 = vmatprep.subr.mxu0 0.0
    %4538 = vmatpush2.xpose.msra.mxu0 0.0
    %4539 = vmatprep.subr.mxu0 0.0
    %4540 = vmatpush2.xpose.msra.mxu0 0.0
    %4541 = vmatprep.subr.mxu0 0.0
    %4542 = vmatpush2.xpose.msra.mxu0 0.0
    %4543 = vmatprep.subr.mxu0 0.0
    %4544 = vmatpush2.xpose.msra.mxu0 0.0
    %4545 = vmatprep.subr.mxu0 0.0
    %4546 = vmatpush2.xpose.msra.mxu0 0.0
    %4547 = vmatprep.subr.mxu0 0.0
    %4548 = vmatpush2.xpose.msra.mxu0 0.0
    %4549 = vmatprep.subr.mxu0 0.0
    %4550 = vmatpush2.xpose.msra.mxu0 0.0
    %4551 = vmatprep.subr.mxu0 0.0
    %4552 = vmatpush2.xpose.msra.mxu0 0.0
    %4553 = vmatprep.subr.mxu0 0.0
    %4554 = vmatpush2.xpose.msra.mxu0 0.0
    %4555 = vmatprep.mubr.f32.mxu0 0.0
    %4556 = vmatmul.mubr.f32.gmra.mxu0 %v4483
    %v4557 = vpop.f32.mrf.mxu0
    %v4558 = vadd.f32 0.0, %v4557
    %v4559 = vpop.f32.mrf.mxu0
    %4560 = vmatprep.mubr.f32.mxu0 0.0
    %4561 = vmatmul.mubr.f32.gmra.mxu0 %v4485
    %v4562 = vpop.f32.mrf.mxu0
    %v4563 = vadd.f32 0.0, %v4562
    %v4564 = vpop.f32.mrf.mxu0
    %4565 = vdwg.mxu0
    %4566 = vrot.lane.b32.xlu0 %v4365, 64
    %v4567 = vpop.permute.xlu0 %4566
    %4568 = vrot.lane.b32.xlu0 %v4367, 64
    %v4569 = vpop.permute.xlu0 %4568
    %v4570 = vsel %vm408, %v4365, 0
    %v4572 = vsel %vm408, %v4367, 0
    %v4574 = vsel %vm408, %v4567, 0
    %v4576 = vsel %vm408, %v4569, 0
    %4578 = vmatprep.subr.mxu0 0.0
    %4579 = vmatpush1.xpose.msra.mxu0 0.0
    %4580 = vmatprep.subr.mxu0 0.0
    %4581 = vmatpush1.xpose.msra.mxu0 0.0
    %4582 = vmatprep.subr.mxu0 0.0
    %4583 = vmatpush1.xpose.msra.mxu0 0.0
    %4584 = vmatprep.subr.mxu0 0.0
    %4585 = vmatpush1.xpose.msra.mxu0 0.0
    %4586 = vmatprep.subr.mxu0 0.0
    %4587 = vmatpush1.xpose.msra.mxu0 0.0
    %4588 = vmatprep.subr.mxu0 0.0
    %4589 = vmatpush1.xpose.msra.mxu0 0.0
    %4590 = vmatprep.subr.mxu0 0.0
    %4591 = vmatpush1.xpose.msra.mxu0 0.0
    %4592 = vmatprep.subr.mxu0 0.0
    %4593 = vmatpush1.xpose.msra.mxu0 0.0
    %4594 = vmatprep.subr.mxu0 0.0
    %4595 = vmatpush1.xpose.msra.mxu0 0.0
    %4596 = vmatprep.subr.mxu0 0.0
    %4597 = vmatpush1.xpose.msra.mxu0 0.0
    %4598 = vmatprep.subr.mxu0 0.0
    %4599 = vmatpush1.xpose.msra.mxu0 0.0
    %4600 = vmatprep.subr.mxu0 0.0
    %4601 = vmatpush1.xpose.msra.mxu0 0.0
    %4602 = vmatprep.subr.mxu0 0.0
    %4603 = vmatpush1.xpose.msra.mxu0 0.0
    %4604 = vmatprep.subr.mxu0 0.0
    %4605 = vmatpush1.xpose.msra.mxu0 0.0
    %4606 = vmatprep.subr.mxu0 0.0
    %4607 = vmatpush1.xpose.msra.mxu0 %v4576
    %4608 = vmatprep.subr.mxu0 0.0
    %4609 = vmatpush1.xpose.msra.mxu0 %v4574
    %4610 = vmatprep.subr.mxu0 0.0
    %4611 = vmatpush2.xpose.msra.mxu0 0.0
    %4612 = vmatprep.subr.mxu0 0.0
    %4613 = vmatpush2.xpose.msra.mxu0 0.0
    %4614 = vmatprep.subr.mxu0 0.0
    %4615 = vmatpush2.xpose.msra.mxu0 0.0
    %4616 = vmatprep.subr.mxu0 0.0
    %4617 = vmatpush2.xpose.msra.mxu0 0.0
    %4618 = vmatprep.subr.mxu0 0.0
    %4619 = vmatpush2.xpose.msra.mxu0 0.0
    %4620 = vmatprep.subr.mxu0 0.0
    %4621 = vmatpush2.xpose.msra.mxu0 0.0
    %4622 = vmatprep.subr.mxu0 0.0
    %4623 = vmatpush2.xpose.msra.mxu0 0.0
    %4624 = vmatprep.subr.mxu0 0.0
    %4625 = vmatpush2.xpose.msra.mxu0 0.0
    %4626 = vmatprep.subr.mxu0 0.0
    %4627 = vmatpush2.xpose.msra.mxu0 0.0
    %4628 = vmatprep.subr.mxu0 0.0
    %4629 = vmatpush2.xpose.msra.mxu0 0.0
    %4630 = vmatprep.subr.mxu0 0.0
    %4631 = vmatpush2.xpose.msra.mxu0 0.0
    %4632 = vmatprep.subr.mxu0 0.0
    %4633 = vmatpush2.xpose.msra.mxu0 0.0
    %4634 = vmatprep.subr.mxu0 0.0
    %4635 = vmatpush2.xpose.msra.mxu0 0.0
    %4636 = vmatprep.subr.mxu0 0.0
    %4637 = vmatpush2.xpose.msra.mxu0 0.0
    %4638 = vmatprep.subr.mxu0 0.0
    %4639 = vmatpush2.xpose.msra.mxu0 0.0
    %4640 = vmatprep.subr.mxu0 0.0
    %4641 = vmatpush2.xpose.msra.mxu0 0.0
    %4642 = vmatprep.mubr.f32.mxu0 0.0
    %4643 = vmatmul.mubr.f32.gmra.mxu0 %v4570
    %v4644 = vpop.f32.mrf.mxu0
    %v4645 = vadd.f32 0.0, %v4644
    %v4646 = vpop.f32.mrf.mxu0
    %4647 = vmatprep.mubr.f32.mxu0 0.0
    %4648 = vmatmul.mubr.f32.gmra.mxu0 %v4572
    %v4649 = vpop.f32.mrf.mxu0
    %v4650 = vadd.f32 0.0, %v4649
    %v4651 = vpop.f32.mrf.mxu0
    %4652 = vdwg.mxu0
    %4653 = vrot.lane.b32.xlu0 %v4369, 64
    %v4654 = vpop.permute.xlu0 %4653
    %4655 = vrot.lane.b32.xlu0 %v4371, 64
    %v4656 = vpop.permute.xlu0 %4655
    %v4657 = vsel %vm408, %v4369, 0
    %v4659 = vsel %vm408, %v4371, 0
    %v4661 = vsel %vm408, %v4654, 0
    %v4663 = vsel %vm408, %v4656, 0
    %4665 = vmatprep.subr.mxu0 0.0
    %4666 = vmatpush1.xpose.msra.mxu0 0.0
    %4667 = vmatprep.subr.mxu0 0.0
    %4668 = vmatpush1.xpose.msra.mxu0 0.0
    %4669 = vmatprep.subr.mxu0 0.0
    %4670 = vmatpush1.xpose.msra.mxu0 0.0
    %4671 = vmatprep.subr.mxu0 0.0
    %4672 = vmatpush1.xpose.msra.mxu0 0.0
    %4673 = vmatprep.subr.mxu0 0.0
    %4674 = vmatpush1.xpose.msra.mxu0 0.0
    %4675 = vmatprep.subr.mxu0 0.0
    %4676 = vmatpush1.xpose.msra.mxu0 0.0
    %4677 = vmatprep.subr.mxu0 0.0
    %4678 = vmatpush1.xpose.msra.mxu0 0.0
    %4679 = vmatprep.subr.mxu0 0.0
    %4680 = vmatpush1.xpose.msra.mxu0 0.0
    %4681 = vmatprep.subr.mxu0 0.0
    %4682 = vmatpush1.xpose.msra.mxu0 0.0
    %4683 = vmatprep.subr.mxu0 0.0
    %4684 = vmatpush1.xpose.msra.mxu0 0.0
    %4685 = vmatprep.subr.mxu0 0.0
    %4686 = vmatpush1.xpose.msra.mxu0 0.0
    %4687 = vmatprep.subr.mxu0 0.0
    %4688 = vmatpush1.xpose.msra.mxu0 0.0
    %4689 = vmatprep.subr.mxu0 0.0
    %4690 = vmatpush1.xpose.msra.mxu0 0.0
    %4691 = vmatprep.subr.mxu0 0.0
    %4692 = vmatpush1.xpose.msra.mxu0 0.0
    %4693 = vmatprep.subr.mxu0 0.0
    %4694 = vmatpush1.xpose.msra.mxu0 %v4663
    %4695 = vmatprep.subr.mxu0 0.0
    %4696 = vmatpush1.xpose.msra.mxu0 %v4661
    %4697 = vmatprep.subr.mxu0 0.0
    %4698 = vmatpush2.xpose.msra.mxu0 0.0
    %4699 = vmatprep.subr.mxu0 0.0
    %4700 = vmatpush2.xpose.msra.mxu0 0.0
    %4701 = vmatprep.subr.mxu0 0.0
    %4702 = vmatpush2.xpose.msra.mxu0 0.0
    %4703 = vmatprep.subr.mxu0 0.0
    %4704 = vmatpush2.xpose.msra.mxu0 0.0
    %4705 = vmatprep.subr.mxu0 0.0
    %4706 = vmatpush2.xpose.msra.mxu0 0.0
    %4707 = vmatprep.subr.mxu0 0.0
    %4708 = vmatpush2.xpose.msra.mxu0 0.0
    %4709 = vmatprep.subr.mxu0 0.0
    %4710 = vmatpush2.xpose.msra.mxu0 0.0
    %4711 = vmatprep.subr.mxu0 0.0
    %4712 = vmatpush2.xpose.msra.mxu0 0.0
    %4713 = vmatprep.subr.mxu0 0.0
    %4714 = vmatpush2.xpose.msra.mxu0 0.0
    %4715 = vmatprep.subr.mxu0 0.0
    %4716 = vmatpush2.xpose.msra.mxu0 0.0
    %4717 = vmatprep.subr.mxu0 0.0
    %4718 = vmatpush2.xpose.msra.mxu0 0.0
    %4719 = vmatprep.subr.mxu0 0.0
    %4720 = vmatpush2.xpose.msra.mxu0 0.0
    %4721 = vmatprep.subr.mxu0 0.0
    %4722 = vmatpush2.xpose.msra.mxu0 0.0
    %4723 = vmatprep.subr.mxu0 0.0
    %4724 = vmatpush2.xpose.msra.mxu0 0.0
    %4725 = vmatprep.subr.mxu0 0.0
    %4726 = vmatpush2.xpose.msra.mxu0 0.0
    %4727 = vmatprep.subr.mxu0 0.0
    %4728 = vmatpush2.xpose.msra.mxu0 0.0
    %4729 = vmatprep.mubr.f32.mxu0 0.0
    %4730 = vmatmul.mubr.f32.gmra.mxu0 %v4657
    %v4731 = vpop.f32.mrf.mxu0
    %v4732 = vadd.f32 0.0, %v4731
    %v4733 = vpop.f32.mrf.mxu0
    %4734 = vmatprep.mubr.f32.mxu0 0.0
    %4735 = vmatmul.mubr.f32.gmra.mxu0 %v4659
    %v4736 = vpop.f32.mrf.mxu0
    %v4737 = vadd.f32 0.0, %v4736
    %v4738 = vpop.f32.mrf.mxu0
    %4739 = vdwg.mxu0
    %v4740 = vmul.f32 %v4471, 0.25
    %v4741 = vmul.f32 %v4476, 0.25
    %v4742 = vmul.f32 %v4558, 0.25
    %v4743 = vmul.f32 %v4563, 0.25
    %v4744 = vmul.f32 %v4645, 0.25
    %v4745 = vmul.f32 %v4650, 0.25
    %v4746 = vmul.f32 %v4732, 0.25
    %v4747 = vmul.f32 %v4737, 0.25
    %v4748 = vsel %vm408, %v4740, -inf
    %4749 = vmax.xlane.f32.xlu0 %v4748
    %v4750 = vpop.xlane.xlu0 %4749
    %v4751 = vsel %vm408, %v4741, -inf
    %4752 = vmax.xlane.f32.xlu0 %v4751
    %v4753 = vpop.xlane.xlu0 %4752
    %v4754 = vsel %vm408, %v4742, -inf
    %4755 = vmax.xlane.f32.xlu0 %v4754
    %v4756 = vpop.xlane.xlu0 %4755
    %v4757 = vsel %vm408, %v4743, -inf
    %4758 = vmax.xlane.f32.xlu0 %v4757
    %v4759 = vpop.xlane.xlu0 %4758
    %v4760 = vsel %vm408, %v4744, -inf
    %4761 = vmax.xlane.f32.xlu0 %v4760
    %v4762 = vpop.xlane.xlu0 %4761
    %v4763 = vsel %vm408, %v4745, -inf
    %4764 = vmax.xlane.f32.xlu0 %v4763
    %v4765 = vpop.xlane.xlu0 %4764
    %v4766 = vsel %vm408, %v4746, -inf
    %4767 = vmax.xlane.f32.xlu0 %v4766
    %v4768 = vpop.xlane.xlu0 %4767
    %v4769 = vsel %vm408, %v4747, -inf
    %4770 = vmax.xlane.f32.xlu0 %v4769
    %v4771 = vpop.xlane.xlu0 %4770
    %v4772 = vsub.f32 %v4740, %v4750
    %v4773 = vsub.f32 %v4741, %v4753
    %v4774 = vsub.f32 %v4742, %v4756
    %v4775 = vsub.f32 %v4743, %v4759
    %v4776 = vsub.f32 %v4744, %v4762
    %v4777 = vsub.f32 %v4745, %v4765
    %v4778 = vsub.f32 %v4746, %v4768
    %v4779 = vsub.f32 %v4747, %v4771
    %v4780 = vmul.f32 %v4772, 1.442695
    %v4781 = vpow.pop %v4780
    %v4782 = vmul.f32 %v4773, 1.442695
    %v4783 = vpow.pop %v4782
    %v4784 = vmul.f32 %v4774, 1.442695
    %v4785 = vpow.pop %v4784
    %v4786 = vmul.f32 %v4775, 1.442695
    %v4787 = vpow.pop %v4786
    %v4788 = vmul.f32 %v4776, 1.442695
    %v4789 = vpow.pop %v4788
    %v4790 = vmul.f32 %v4777, 1.442695
    %v4791 = vpow.pop %v4790
    %v4792 = vmul.f32 %v4778, 1.442695
    %v4793 = vpow.pop %v4792
    %v4794 = vmul.f32 %v4779, 1.442695
    %v4795 = vpow.pop %v4794
    %v4796 = vsel %vm408, %v4781, 0.0
    %4797 = vadd.xlane.f32.xlu0 %v4796
    %v4798 = vpop.xlane.xlu0 %4797
    %v4799 = vsel %vm408, %v4783, 0.0
    %4800 = vadd.xlane.f32.xlu0 %v4799
    %v4801 = vpop.xlane.xlu0 %4800
    %v4802 = vsel %vm408, %v4785, 0.0
    %4803 = vadd.xlane.f32.xlu0 %v4802
    %v4804 = vpop.xlane.xlu0 %4803
    %v4805 = vsel %vm408, %v4787, 0.0
    %4806 = vadd.xlane.f32.xlu0 %v4805
    %v4807 = vpop.xlane.xlu0 %4806
    %v4808 = vsel %vm408, %v4789, 0.0
    %4809 = vadd.xlane.f32.xlu0 %v4808
    %v4810 = vpop.xlane.xlu0 %4809
    %v4811 = vsel %vm408, %v4791, 0.0
    %4812 = vadd.xlane.f32.xlu0 %v4811
    %v4813 = vpop.xlane.xlu0 %4812
    %v4814 = vsel %vm408, %v4793, 0.0
    %4815 = vadd.xlane.f32.xlu0 %v4814
    %v4816 = vpop.xlane.xlu0 %4815
    %v4817 = vsel %vm408, %v4795, 0.0
    %4818 = vadd.xlane.f32.xlu0 %v4817
    %v4819 = vpop.xlane.xlu0 %4818
    %v4820 = vrcp.pop %v4798
    %v4821 = vrcp.pop %v4801
    %v4822 = vrcp.pop %v4804
    %v4823 = vrcp.pop %v4807
    %v4824 = vrcp.pop %v4810
    %v4825 = vrcp.pop %v4813
    %v4826 = vrcp.pop %v4816
    %v4827 = vrcp.pop %v4819
    %v4828 = vmul.f32 %v4781, %v4820
    %v4829 = vmul.f32 %v4783, %v4821
    %v4830 = vmul.f32 %v4785, %v4822
    %v4831 = vmul.f32 %v4787, %v4823
    %v4832 = vmul.f32 %v4789, %v4824
    %v4833 = vmul.f32 %v4791, %v4825
    %v4834 = vmul.f32 %v4793, %v4826
    %v4835 = vmul.f32 %v4795, %v4827
    %v4837 = vsel %vm408, %v4828, 0
    %v4840 = vsel %vm408, %v4829, 0
    %4842 = vmatprep.subr.mxu0 0.0
    %4843 = vmatpush1.msra.mxu0 0.0
    %4844 = vmatprep.subr.mxu0 0.0
    %4845 = vmatpush1.msra.mxu0 0.0
    %4846 = vmatprep.subr.mxu0 0.0
    %4847 = vmatpush1.msra.mxu0 0.0
    %4848 = vmatprep.subr.mxu0 0.0
    %4849 = vmatpush1.msra.mxu0 0.0
    %4850 = vmatprep.subr.mxu0 0.0
    %4851 = vmatpush1.msra.mxu0 0.0
    %4852 = vmatprep.subr.mxu0 0.0
    %4853 = vmatpush1.msra.mxu0 0.0
    %4854 = vmatprep.subr.mxu0 0.0
    %4855 = vmatpush1.msra.mxu0 0.0
    %4856 = vmatprep.subr.mxu0 0.0
    %4857 = vmatpush1.msra.mxu0 0.0
    %4858 = vmatprep.subr.mxu0 0.0
    %4859 = vmatpush1.msra.mxu0 0.0
    %4860 = vmatprep.subr.mxu0 0.0
    %4861 = vmatpush1.msra.mxu0 0.0
    %4862 = vmatprep.subr.mxu0 0.0
    %4863 = vmatpush1.msra.mxu0 0.0
    %4864 = vmatprep.subr.mxu0 0.0
    %4865 = vmatpush1.msra.mxu0 0.0
    %4866 = vmatprep.subr.mxu0 0.0
    %4867 = vmatpush1.msra.mxu0 0.0
    %4868 = vmatprep.subr.mxu0 0.0
    %4869 = vmatpush1.msra.mxu0 0.0
    %4870 = vmatprep.subr.mxu0 0.0
    %4871 = vmatpush1.msra.mxu0 %v3207
    %4872 = vmatprep.subr.mxu0 0.0
    %4873 = vmatpush1.msra.mxu0 %v3201
    %4874 = vmatprep.subr.mxu0 0.0
    %4875 = vmatpush2.msra.mxu0 0.0
    %4876 = vmatprep.subr.mxu0 0.0
    %4877 = vmatpush2.msra.mxu0 0.0
    %4878 = vmatprep.subr.mxu0 0.0
    %4879 = vmatpush2.msra.mxu0 0.0
    %4880 = vmatprep.subr.mxu0 0.0
    %4881 = vmatpush2.msra.mxu0 0.0
    %4882 = vmatprep.subr.mxu0 0.0
    %4883 = vmatpush2.msra.mxu0 0.0
    %4884 = vmatprep.subr.mxu0 0.0
    %4885 = vmatpush2.msra.mxu0 0.0
    %4886 = vmatprep.subr.mxu0 0.0
    %4887 = vmatpush2.msra.mxu0 0.0
    %4888 = vmatprep.subr.mxu0 0.0
    %4889 = vmatpush2.msra.mxu0 0.0
    %4890 = vmatprep.subr.mxu0 0.0
    %4891 = vmatpush2.msra.mxu0 0.0
    %4892 = vmatprep.subr.mxu0 0.0
    %4893 = vmatpush2.msra.mxu0 0.0
    %4894 = vmatprep.subr.mxu0 0.0
    %4895 = vmatpush2.msra.mxu0 0.0
    %4896 = vmatprep.subr.mxu0 0.0
    %4897 = vmatpush2.msra.mxu0 0.0
    %4898 = vmatprep.subr.mxu0 0.0
    %4899 = vmatpush2.msra.mxu0 0.0
    %4900 = vmatprep.subr.mxu0 0.0
    %4901 = vmatpush2.msra.mxu0 0.0
    %4902 = vmatprep.subr.mxu0 0.0
    %4903 = vmatpush2.msra.mxu0 0.0
    %4904 = vmatprep.subr.mxu0 0.0
    %4905 = vmatpush2.msra.mxu0 0.0
    %4906 = vmatprep.mubr.f32.mxu0 0.0
    %4907 = vmatmul.mubr.f32.gmra.mxu0 %v4837
    %v4908 = vpop.f32.mrf.mxu0
    %v4909 = vadd.f32 0.0, %v4908
    %v4910 = vpop.f32.mrf.mxu0
    %4911 = vmatprep.mubr.f32.mxu0 0.0
    %4912 = vmatmul.mubr.f32.gmra.mxu0 %v4840
    %v4913 = vpop.f32.mrf.mxu0
    %v4914 = vadd.f32 0.0, %v4913
    %v4915 = vpop.f32.mrf.mxu0
    %4916 = vdwg.mxu0
    %v4918 = vsel %vm408, %v4830, 0
    %v4921 = vsel %vm408, %v4831, 0
    %4923 = vmatprep.subr.mxu0 0.0
    %4924 = vmatpush1.msra.mxu0 0.0
    %4925 = vmatprep.subr.mxu0 0.0
    %4926 = vmatpush1.msra.mxu0 0.0
    %4927 = vmatprep.subr.mxu0 0.0
    %4928 = vmatpush1.msra.mxu0 0.0
    %4929 = vmatprep.subr.mxu0 0.0
    %4930 = vmatpush1.msra.mxu0 0.0
    %4931 = vmatprep.subr.mxu0 0.0
    %4932 = vmatpush1.msra.mxu0 0.0
    %4933 = vmatprep.subr.mxu0 0.0
    %4934 = vmatpush1.msra.mxu0 0.0
    %4935 = vmatprep.subr.mxu0 0.0
    %4936 = vmatpush1.msra.mxu0 0.0
    %4937 = vmatprep.subr.mxu0 0.0
    %4938 = vmatpush1.msra.mxu0 0.0
    %4939 = vmatprep.subr.mxu0 0.0
    %4940 = vmatpush1.msra.mxu0 0.0
    %4941 = vmatprep.subr.mxu0 0.0
    %4942 = vmatpush1.msra.mxu0 0.0
    %4943 = vmatprep.subr.mxu0 0.0
    %4944 = vmatpush1.msra.mxu0 0.0
    %4945 = vmatprep.subr.mxu0 0.0
    %4946 = vmatpush1.msra.mxu0 0.0
    %4947 = vmatprep.subr.mxu0 0.0
    %4948 = vmatpush1.msra.mxu0 0.0
    %4949 = vmatprep.subr.mxu0 0.0
    %4950 = vmatpush1.msra.mxu0 0.0
    %4951 = vmatprep.subr.mxu0 0.0
    %4952 = vmatpush1.msra.mxu0 %v4377
    %4953 = vmatprep.subr.mxu0 0.0
    %4954 = vmatpush1.msra.mxu0 %v4375
    %4955 = vmatprep.subr.mxu0 0.0
    %4956 = vmatpush2.msra.mxu0 0.0
    %4957 = vmatprep.subr.mxu0 0.0
    %4958 = vmatpush2.msra.mxu0 0.0
    %4959 = vmatprep.subr.mxu0 0.0
    %4960 = vmatpush2.msra.mxu0 0.0
    %4961 = vmatprep.subr.mxu0 0.0
    %4962 = vmatpush2.msra.mxu0 0.0
    %4963 = vmatprep.subr.mxu0 0.0
    %4964 = vmatpush2.msra.mxu0 0.0
    %4965 = vmatprep.subr.mxu0 0.0
    %4966 = vmatpush2.msra.mxu0 0.0
    %4967 = vmatprep.subr.mxu0 0.0
    %4968 = vmatpush2.msra.mxu0 0.0
    %4969 = vmatprep.subr.mxu0 0.0
    %4970 = vmatpush2.msra.mxu0 0.0
    %4971 = vmatprep.subr.mxu0 0.0
    %4972 = vmatpush2.msra.mxu0 0.0
    %4973 = vmatprep.subr.mxu0 0.0
    %4974 = vmatpush2.msra.mxu0 0.0
    %4975 = vmatprep.subr.mxu0 0.0
    %4976 = vmatpush2.msra.mxu0 0.0
    %4977 = vmatprep.subr.mxu0 0.0
    %4978 = vmatpush2.msra.mxu0 0.0
    %4979 = vmatprep.subr.mxu0 0.0
    %4980 = vmatpush2.msra.mxu0 0.0
    %4981 = vmatprep.subr.mxu0 0.0
    %4982 = vmatpush2.msra.mxu0 0.0
    %4983 = vmatprep.subr.mxu0 0.0
    %4984 = vmatpush2.msra.mxu0 0.0
    %4985 = vmatprep.subr.mxu0 0.0
    %4986 = vmatpush2.msra.mxu0 0.0
    %4987 = vmatprep.mubr.f32.mxu0 0.0
    %4988 = vmatmul.mubr.f32.gmra.mxu0 %v4918
    %v4989 = vpop.f32.mrf.mxu0
    %v4990 = vadd.f32 0.0, %v4989
    %v4991 = vpop.f32.mrf.mxu0
    %4992 = vmatprep.mubr.f32.mxu0 0.0
    %4993 = vmatmul.mubr.f32.gmra.mxu0 %v4921
    %v4994 = vpop.f32.mrf.mxu0
    %v4995 = vadd.f32 0.0, %v4994
    %v4996 = vpop.f32.mrf.mxu0
    %4997 = vdwg.mxu0
    %v4999 = vsel %vm408, %v4832, 0
    %v5002 = vsel %vm408, %v4833, 0
    %5004 = vmatprep.subr.mxu0 0.0
    %5005 = vmatpush1.msra.mxu0 0.0
    %5006 = vmatprep.subr.mxu0 0.0
    %5007 = vmatpush1.msra.mxu0 0.0
    %5008 = vmatprep.subr.mxu0 0.0
    %5009 = vmatpush1.msra.mxu0 0.0
    %5010 = vmatprep.subr.mxu0 0.0
    %5011 = vmatpush1.msra.mxu0 0.0
    %5012 = vmatprep.subr.mxu0 0.0
    %5013 = vmatpush1.msra.mxu0 0.0
    %5014 = vmatprep.subr.mxu0 0.0
    %5015 = vmatpush1.msra.mxu0 0.0
    %5016 = vmatprep.subr.mxu0 0.0
    %5017 = vmatpush1.msra.mxu0 0.0
    %5018 = vmatprep.subr.mxu0 0.0
    %5019 = vmatpush1.msra.mxu0 0.0
    %5020 = vmatprep.subr.mxu0 0.0
    %5021 = vmatpush1.msra.mxu0 0.0
    %5022 = vmatprep.subr.mxu0 0.0
    %5023 = vmatpush1.msra.mxu0 0.0
    %5024 = vmatprep.subr.mxu0 0.0
    %5025 = vmatpush1.msra.mxu0 0.0
    %5026 = vmatprep.subr.mxu0 0.0
    %5027 = vmatpush1.msra.mxu0 0.0
    %5028 = vmatprep.subr.mxu0 0.0
    %5029 = vmatpush1.msra.mxu0 0.0
    %5030 = vmatprep.subr.mxu0 0.0
    %5031 = vmatpush1.msra.mxu0 0.0
    %5032 = vmatprep.subr.mxu0 0.0
    %5033 = vmatpush1.msra.mxu0 %v4383
    %5034 = vmatprep.subr.mxu0 0.0
    %5035 = vmatpush1.msra.mxu0 %v4381
    %5036 = vmatprep.subr.mxu0 0.0
    %5037 = vmatpush2.msra.mxu0 0.0
    %5038 = vmatprep.subr.mxu0 0.0
    %5039 = vmatpush2.msra.mxu0 0.0
    %5040 = vmatprep.subr.mxu0 0.0
    %5041 = vmatpush2.msra.mxu0 0.0
    %5042 = vmatprep.subr.mxu0 0.0
    %5043 = vmatpush2.msra.mxu0 0.0
    %5044 = vmatprep.subr.mxu0 0.0
    %5045 = vmatpush2.msra.mxu0 0.0
    %5046 = vmatprep.subr.mxu0 0.0
    %5047 = vmatpush2.msra.mxu0 0.0
    %5048 = vmatprep.subr.mxu0 0.0
    %5049 = vmatpush2.msra.mxu0 0.0
    %5050 = vmatprep.subr.mxu0 0.0
    %5051 = vmatpush2.msra.mxu0 0.0
    %5052 = vmatprep.subr.mxu0 0.0
    %5053 = vmatpush2.msra.mxu0 0.0
    %5054 = vmatprep.subr.mxu0 0.0
    %5055 = vmatpush2.msra.mxu0 0.0
    %5056 = vmatprep.subr.mxu0 0.0
    %5057 = vmatpush2.msra.mxu0 0.0
    %5058 = vmatprep.subr.mxu0 0.0
    %5059 = vmatpush2.msra.mxu0 0.0
    %5060 = vmatprep.subr.mxu0 0.0
    %5061 = vmatpush2.msra.mxu0 0.0
    %5062 = vmatprep.subr.mxu0 0.0
    %5063 = vmatpush2.msra.mxu0 0.0
    %5064 = vmatprep.subr.mxu0 0.0
    %5065 = vmatpush2.msra.mxu0 0.0
    %5066 = vmatprep.subr.mxu0 0.0
    %5067 = vmatpush2.msra.mxu0 0.0
    %5068 = vmatprep.mubr.f32.mxu0 0.0
    %5069 = vmatmul.mubr.f32.gmra.mxu0 %v4999
    %v5070 = vpop.f32.mrf.mxu0
    %v5071 = vadd.f32 0.0, %v5070
    %v5072 = vpop.f32.mrf.mxu0
    %5073 = vmatprep.mubr.f32.mxu0 0.0
    %5074 = vmatmul.mubr.f32.gmra.mxu0 %v5002
    %v5075 = vpop.f32.mrf.mxu0
    %v5076 = vadd.f32 0.0, %v5075
    %v5077 = vpop.f32.mrf.mxu0
    %5078 = vdwg.mxu0
    %v5080 = vsel %vm408, %v4834, 0
    %v5083 = vsel %vm408, %v4835, 0
    %5085 = vmatprep.subr.mxu0 0.0
    %5086 = vmatpush1.msra.mxu0 0.0
    %5087 = vmatprep.subr.mxu0 0.0
    %5088 = vmatpush1.msra.mxu0 0.0
    %5089 = vmatprep.subr.mxu0 0.0
    %5090 = vmatpush1.msra.mxu0 0.0
    %5091 = vmatprep.subr.mxu0 0.0
    %5092 = vmatpush1.msra.mxu0 0.0
    %5093 = vmatprep.subr.mxu0 0.0
    %5094 = vmatpush1.msra.mxu0 0.0
    %5095 = vmatprep.subr.mxu0 0.0
    %5096 = vmatpush1.msra.mxu0 0.0
    %5097 = vmatprep.subr.mxu0 0.0
    %5098 = vmatpush1.msra.mxu0 0.0
    %5099 = vmatprep.subr.mxu0 0.0
    %5100 = vmatpush1.msra.mxu0 0.0
    %5101 = vmatprep.subr.mxu0 0.0
    %5102 = vmatpush1.msra.mxu0 0.0
    %5103 = vmatprep.subr.mxu0 0.0
    %5104 = vmatpush1.msra.mxu0 0.0
    %5105 = vmatprep.subr.mxu0 0.0
    %5106 = vmatpush1.msra.mxu0 0.0
    %5107 = vmatprep.subr.mxu0 0.0
    %5108 = vmatpush1.msra.mxu0 0.0
    %5109 = vmatprep.subr.mxu0 0.0
    %5110 = vmatpush1.msra.mxu0 0.0
    %5111 = vmatprep.subr.mxu0 0.0
    %5112 = vmatpush1.msra.mxu0 0.0
    %5113 = vmatprep.subr.mxu0 0.0
    %5114 = vmatpush1.msra.mxu0 %v4389
    %5115 = vmatprep.subr.mxu0 0.0
    %5116 = vmatpush1.msra.mxu0 %v4387
    %5117 = vmatprep.subr.mxu0 0.0
    %5118 = vmatpush2.msra.mxu0 0.0
    %5119 = vmatprep.subr.mxu0 0.0
    %5120 = vmatpush2.msra.mxu0 0.0
    %5121 = vmatprep.subr.mxu0 0.0
    %5122 = vmatpush2.msra.mxu0 0.0
    %5123 = vmatprep.subr.mxu0 0.0
    %5124 = vmatpush2.msra.mxu0 0.0
    %5125 = vmatprep.subr.mxu0 0.0
    %5126 = vmatpush2.msra.mxu0 0.0
    %5127 = vmatprep.subr.mxu0 0.0
    %5128 = vmatpush2.msra.mxu0 0.0
    %5129 = vmatprep.subr.mxu0 0.0
    %5130 = vmatpush2.msra.mxu0 0.0
    %5131 = vmatprep.subr.mxu0 0.0
    %5132 = vmatpush2.msra.mxu0 0.0
    %5133 = vmatprep.subr.mxu0 0.0
    %5134 = vmatpush2.msra.mxu0 0.0
    %5135 = vmatprep.subr.mxu0 0.0
    %5136 = vmatpush2.msra.mxu0 0.0
    %5137 = vmatprep.subr.mxu0 0.0
    %5138 = vmatpush2.msra.mxu0 0.0
    %5139 = vmatprep.subr.mxu0 0.0
    %5140 = vmatpush2.msra.mxu0 0.0
    %5141 = vmatprep.subr.mxu0 0.0
    %5142 = vmatpush2.msra.mxu0 0.0
    %5143 = vmatprep.subr.mxu0 0.0
    %5144 = vmatpush2.msra.mxu0 0.0
    %5145 = vmatprep.subr.mxu0 0.0
    %5146 = vmatpush2.msra.mxu0 0.0
    %5147 = vmatprep.subr.mxu0 0.0
    %5148 = vmatpush2.msra.mxu0 0.0
    %5149 = vmatprep.mubr.f32.mxu0 0.0
    %5150 = vmatmul.mubr.f32.gmra.mxu0 %v5080
    %v5151 = vpop.f32.mrf.mxu0
    %v5152 = vadd.f32 0.0, %v5151
    %v5153 = vpop.f32.mrf.mxu0
    %5154 = vmatprep.mubr.f32.mxu0 0.0
    %5155 = vmatmul.mubr.f32.gmra.mxu0 %v5083
    %v5156 = vpop.f32.mrf.mxu0
    %v5157 = vadd.f32 0.0, %v5156
    %v5158 = vpop.f32.mrf.mxu0
    %5159 = vdwg.mxu0
    %v5160 = vld [vmem:[%s4011] sm:$0xff]
    %v5161 = vld [vmem:[%s4011 + $0x8] sm:$0xff]
    %v5162 = vld [vmem:[%s4011 + $0x10] sm:$0xff]
    %v5163 = vld [vmem:[%s4011 + $0x18] sm:$0xff]
    %v5164 = vld [vmem:[%s4011 + $0x20] sm:$0xff]
    %v5165 = vld [vmem:[%s4011 + $0x28] sm:$0xff]
    %v5166 = vld [vmem:[%s4011 + $0x30] sm:$0xff]
    %v5167 = vld [vmem:[%s4011 + $0x38] sm:$0xff]
    %v5169 = vsel %vm408, %v4909, 0
    %v5172 = vsel %vm408, %v4914, 0
    %5174 = vmatprep.subr.mxu0 0.0
    %5175 = vmatpush1.msra.mxu0 0.0
    %5176 = vmatprep.subr.mxu0 0.0
    %5177 = vmatpush1.msra.mxu0 0.0
    %5178 = vmatprep.subr.mxu0 0.0
    %5179 = vmatpush1.msra.mxu0 0.0
    %5180 = vmatprep.subr.mxu0 0.0
    %5181 = vmatpush1.msra.mxu0 0.0
    %5182 = vmatprep.subr.mxu0 0.0
    %5183 = vmatpush1.msra.mxu0 0.0
    %5184 = vmatprep.subr.mxu0 0.0
    %5185 = vmatpush1.msra.mxu0 0.0
    %5186 = vmatprep.subr.mxu0 0.0
    %5187 = vmatpush1.msra.mxu0 0.0
    %5188 = vmatprep.subr.mxu0 0.0
    %5189 = vmatpush1.msra.mxu0 0.0
    %5190 = vmatprep.subr.mxu0 0.0
    %5191 = vmatpush1.msra.mxu0 0.0
    %5192 = vmatprep.subr.mxu0 0.0
    %5193 = vmatpush1.msra.mxu0 0.0
    %5194 = vmatprep.subr.mxu0 0.0
    %5195 = vmatpush1.msra.mxu0 0.0
    %5196 = vmatprep.subr.mxu0 0.0
    %5197 = vmatpush1.msra.mxu0 0.0
    %5198 = vmatprep.subr.mxu0 0.0
    %5199 = vmatpush1.msra.mxu0 0.0
    %5200 = vmatprep.subr.mxu0 0.0
    %5201 = vmatpush1.msra.mxu0 0.0
    %5202 = vmatprep.subr.mxu0 0.0
    %5203 = vmatpush1.msra.mxu0 %v5161
    %5204 = vmatprep.subr.mxu0 0.0
    %5205 = vmatpush1.msra.mxu0 %v5160
    %5206 = vmatprep.subr.mxu0 0.0
    %5207 = vmatpush2.msra.mxu0 0.0
    %5208 = vmatprep.subr.mxu0 0.0
    %5209 = vmatpush2.msra.mxu0 0.0
    %5210 = vmatprep.subr.mxu0 0.0
    %5211 = vmatpush2.msra.mxu0 0.0
    %5212 = vmatprep.subr.mxu0 0.0
    %5213 = vmatpush2.msra.mxu0 0.0
    %5214 = vmatprep.subr.mxu0 0.0
    %5215 = vmatpush2.msra.mxu0 0.0
    %5216 = vmatprep.subr.mxu0 0.0
    %5217 = vmatpush2.msra.mxu0 0.0
    %5218 = vmatprep.subr.mxu0 0.0
    %5219 = vmatpush2.msra.mxu0 0.0
    %5220 = vmatprep.subr.mxu0 0.0
    %5221 = vmatpush2.msra.mxu0 0.0
    %5222 = vmatprep.subr.mxu0 0.0
    %5223 = vmatpush2.msra.mxu0 0.0
    %5224 = vmatprep.subr.mxu0 0.0
    %5225 = vmatpush2.msra.mxu0 0.0
    %5226 = vmatprep.subr.mxu0 0.0
    %5227 = vmatpush2.msra.mxu0 0.0
    %5228 = vmatprep.subr.mxu0 0.0
    %5229 = vmatpush2.msra.mxu0 0.0
    %5230 = vmatprep.subr.mxu0 0.0
    %5231 = vmatpush2.msra.mxu0 0.0
    %5232 = vmatprep.subr.mxu0 0.0
    %5233 = vmatpush2.msra.mxu0 0.0
    %5234 = vmatprep.subr.mxu0 0.0
    %5235 = vmatpush2.msra.mxu0 0.0
    %5236 = vmatprep.subr.mxu0 0.0
    %5237 = vmatpush2.msra.mxu0 0.0
    %5238 = vmatprep.mubr.f32.mxu0 0.0
    %5239 = vmatmul.mubr.f32.gmra.mxu0 %v5169
    %v5240 = vpop.f32.mrf.mxu0
    %v5241 = vadd.f32 0.0, %v5240
    %v5242 = vpop.f32.mrf.mxu0
    %5243 = vmatprep.mubr.f32.mxu0 0.0
    %5244 = vmatmul.mubr.f32.gmra.mxu0 %v5172
    %v5245 = vpop.f32.mrf.mxu0
    %v5246 = vadd.f32 0.0, %v5245
    %v5247 = vpop.f32.mrf.mxu0
    %5248 = vdwg.mxu0
    %v5250 = vsel %vm408, %v4990, 0
    %v5253 = vsel %vm408, %v4995, 0
    %5255 = vmatprep.subr.mxu0 0.0
    %5256 = vmatpush1.msra.mxu0 0.0
    %5257 = vmatprep.subr.mxu0 0.0
    %5258 = vmatpush1.msra.mxu0 0.0
    %5259 = vmatprep.subr.mxu0 0.0
    %5260 = vmatpush1.msra.mxu0 0.0
    %5261 = vmatprep.subr.mxu0 0.0
    %5262 = vmatpush1.msra.mxu0 0.0
    %5263 = vmatprep.subr.mxu0 0.0
    %5264 = vmatpush1.msra.mxu0 0.0
    %5265 = vmatprep.subr.mxu0 0.0
    %5266 = vmatpush1.msra.mxu0 0.0
    %5267 = vmatprep.subr.mxu0 0.0
    %5268 = vmatpush1.msra.mxu0 0.0
    %5269 = vmatprep.subr.mxu0 0.0
    %5270 = vmatpush1.msra.mxu0 0.0
    %5271 = vmatprep.subr.mxu0 0.0
    %5272 = vmatpush1.msra.mxu0 0.0
    %5273 = vmatprep.subr.mxu0 0.0
    %5274 = vmatpush1.msra.mxu0 0.0
    %5275 = vmatprep.subr.mxu0 0.0
    %5276 = vmatpush1.msra.mxu0 0.0
    %5277 = vmatprep.subr.mxu0 0.0
    %5278 = vmatpush1.msra.mxu0 0.0
    %5279 = vmatprep.subr.mxu0 0.0
    %5280 = vmatpush1.msra.mxu0 0.0
    %5281 = vmatprep.subr.mxu0 0.0
    %5282 = vmatpush1.msra.mxu0 0.0
    %5283 = vmatprep.subr.mxu0 0.0
    %5284 = vmatpush1.msra.mxu0 %v5163
    %5285 = vmatprep.subr.mxu0 0.0
    %5286 = vmatpush1.msra.mxu0 %v5162
    %5287 = vmatprep.subr.mxu0 0.0
    %5288 = vmatpush2.msra.mxu0 0.0
    %5289 = vmatprep.subr.mxu0 0.0
    %5290 = vmatpush2.msra.mxu0 0.0
    %5291 = vmatprep.subr.mxu0 0.0
    %5292 = vmatpush2.msra.mxu0 0.0
    %5293 = vmatprep.subr.mxu0 0.0
    %5294 = vmatpush2.msra.mxu0 0.0
    %5295 = vmatprep.subr.mxu0 0.0
    %5296 = vmatpush2.msra.mxu0 0.0
    %5297 = vmatprep.subr.mxu0 0.0
    %5298 = vmatpush2.msra.mxu0 0.0
    %5299 = vmatprep.subr.mxu0 0.0
    %5300 = vmatpush2.msra.mxu0 0.0
    %5301 = vmatprep.subr.mxu0 0.0
    %5302 = vmatpush2.msra.mxu0 0.0
    %5303 = vmatprep.subr.mxu0 0.0
    %5304 = vmatpush2.msra.mxu0 0.0
    %5305 = vmatprep.subr.mxu0 0.0
    %5306 = vmatpush2.msra.mxu0 0.0
    %5307 = vmatprep.subr.mxu0 0.0
    %5308 = vmatpush2.msra.mxu0 0.0
    %5309 = vmatprep.subr.mxu0 0.0
    %5310 = vmatpush2.msra.mxu0 0.0
    %5311 = vmatprep.subr.mxu0 0.0
    %5312 = vmatpush2.msra.mxu0 0.0
    %5313 = vmatprep.subr.mxu0 0.0
    %5314 = vmatpush2.msra.mxu0 0.0
    %5315 = vmatprep.subr.mxu0 0.0
    %5316 = vmatpush2.msra.mxu0 0.0
    %5317 = vmatprep.subr.mxu0 0.0
    %5318 = vmatpush2.msra.mxu0 0.0
    %5319 = vmatprep.mubr.f32.mxu0 0.0
    %5320 = vmatmul.mubr.f32.gmra.mxu0 %v5250
    %v5321 = vpop.f32.mrf.mxu0
    %v5322 = vadd.f32 0.0, %v5321
    %v5323 = vpop.f32.mrf.mxu0
    %5324 = vmatprep.mubr.f32.mxu0 0.0
    %5325 = vmatmul.mubr.f32.gmra.mxu0 %v5253
    %v5326 = vpop.f32.mrf.mxu0
    %v5327 = vadd.f32 0.0, %v5326
    %v5328 = vpop.f32.mrf.mxu0
    %5329 = vdwg.mxu0
    %v5331 = vsel %vm408, %v5071, 0
    %v5334 = vsel %vm408, %v5076, 0
    %5336 = vmatprep.subr.mxu0 0.0
    %5337 = vmatpush1.msra.mxu0 0.0
    %5338 = vmatprep.subr.mxu0 0.0
    %5339 = vmatpush1.msra.mxu0 0.0
    %5340 = vmatprep.subr.mxu0 0.0
    %5341 = vmatpush1.msra.mxu0 0.0
    %5342 = vmatprep.subr.mxu0 0.0
    %5343 = vmatpush1.msra.mxu0 0.0
    %5344 = vmatprep.subr.mxu0 0.0
    %5345 = vmatpush1.msra.mxu0 0.0
    %5346 = vmatprep.subr.mxu0 0.0
    %5347 = vmatpush1.msra.mxu0 0.0
    %5348 = vmatprep.subr.mxu0 0.0
    %5349 = vmatpush1.msra.mxu0 0.0
    %5350 = vmatprep.subr.mxu0 0.0
    %5351 = vmatpush1.msra.mxu0 0.0
    %5352 = vmatprep.subr.mxu0 0.0
    %5353 = vmatpush1.msra.mxu0 0.0
    %5354 = vmatprep.subr.mxu0 0.0
    %5355 = vmatpush1.msra.mxu0 0.0
    %5356 = vmatprep.subr.mxu0 0.0
    %5357 = vmatpush1.msra.mxu0 0.0
    %5358 = vmatprep.subr.mxu0 0.0
    %5359 = vmatpush1.msra.mxu0 0.0
    %5360 = vmatprep.subr.mxu0 0.0
    %5361 = vmatpush1.msra.mxu0 0.0
    %5362 = vmatprep.subr.mxu0 0.0
    %5363 = vmatpush1.msra.mxu0 0.0
    %5364 = vmatprep.subr.mxu0 0.0
    %5365 = vmatpush1.msra.mxu0 %v5165
    %5366 = vmatprep.subr.mxu0 0.0
    %5367 = vmatpush1.msra.mxu0 %v5164
    %5368 = vmatprep.subr.mxu0 0.0
    %5369 = vmatpush2.msra.mxu0 0.0
    %5370 = vmatprep.subr.mxu0 0.0
    %5371 = vmatpush2.msra.mxu0 0.0
    %5372 = vmatprep.subr.mxu0 0.0
    %5373 = vmatpush2.msra.mxu0 0.0
    %5374 = vmatprep.subr.mxu0 0.0
    %5375 = vmatpush2.msra.mxu0 0.0
    %5376 = vmatprep.subr.mxu0 0.0
    %5377 = vmatpush2.msra.mxu0 0.0
    %5378 = vmatprep.subr.mxu0 0.0
    %5379 = vmatpush2.msra.mxu0 0.0
    %5380 = vmatprep.subr.mxu0 0.0
    %5381 = vmatpush2.msra.mxu0 0.0
    %5382 = vmatprep.subr.mxu0 0.0
    %5383 = vmatpush2.msra.mxu0 0.0
    %5384 = vmatprep.subr.mxu0 0.0
    %5385 = vmatpush2.msra.mxu0 0.0
    %5386 = vmatprep.subr.mxu0 0.0
    %5387 = vmatpush2.msra.mxu0 0.0
    %5388 = vmatprep.subr.mxu0 0.0
    %5389 = vmatpush2.msra.mxu0 0.0
    %5390 = vmatprep.subr.mxu0 0.0
    %5391 = vmatpush2.msra.mxu0 0.0
    %5392 = vmatprep.subr.mxu0 0.0
    %5393 = vmatpush2.msra.mxu0 0.0
    %5394 = vmatprep.subr.mxu0 0.0
    %5395 = vmatpush2.msra.mxu0 0.0
    %5396 = vmatprep.subr.mxu0 0.0
    %5397 = vmatpush2.msra.mxu0 0.0
    %5398 = vmatprep.subr.mxu0 0.0
    %5399 = vmatpush2.msra.mxu0 0.0
    %5400 = vmatprep.mubr.f32.mxu0 0.0
    %5401 = vmatmul.mubr.f32.gmra.mxu0 %v5331
    %v5402 = vpop.f32.mrf.mxu0
    %v5403 = vadd.f32 0.0, %v5402
    %v5404 = vpop.f32.mrf.mxu0
    %5405 = vmatprep.mubr.f32.mxu0 0.0
    %5406 = vmatmul.mubr.f32.gmra.mxu0 %v5334
    %v5407 = vpop.f32.mrf.mxu0
    %v5408 = vadd.f32 0.0, %v5407
    %v5409 = vpop.f32.mrf.mxu0
    %5410 = vdwg.mxu0
    %v5412 = vsel %vm408, %v5152, 0
    %v5415 = vsel %vm408, %v5157, 0
    %5417 = vmatprep.subr.mxu0 0.0
    %5418 = vmatpush1.msra.mxu0 0.0
    %5419 = vmatprep.subr.mxu0 0.0
    %5420 = vmatpush1.msra.mxu0 0.0
    %5421 = vmatprep.subr.mxu0 0.0
    %5422 = vmatpush1.msra.mxu0 0.0
    %5423 = vmatprep.subr.mxu0 0.0
    %5424 = vmatpush1.msra.mxu0 0.0
    %5425 = vmatprep.subr.mxu0 0.0
    %5426 = vmatpush1.msra.mxu0 0.0
    %5427 = vmatprep.subr.mxu0 0.0
    %5428 = vmatpush1.msra.mxu0 0.0
    %5429 = vmatprep.subr.mxu0 0.0
    %5430 = vmatpush1.msra.mxu0 0.0
    %5431 = vmatprep.subr.mxu0 0.0
    %5432 = vmatpush1.msra.mxu0 0.0
    %5433 = vmatprep.subr.mxu0 0.0
    %5434 = vmatpush1.msra.mxu0 0.0
    %5435 = vmatprep.subr.mxu0 0.0
    %5436 = vmatpush1.msra.mxu0 0.0
    %5437 = vmatprep.subr.mxu0 0.0
    %5438 = vmatpush1.msra.mxu0 0.0
    %5439 = vmatprep.subr.mxu0 0.0
    %5440 = vmatpush1.msra.mxu0 0.0
    %5441 = vmatprep.subr.mxu0 0.0
    %5442 = vmatpush1.msra.mxu0 0.0
    %5443 = vmatprep.subr.mxu0 0.0
    %5444 = vmatpush1.msra.mxu0 0.0
    %5445 = vmatprep.subr.mxu0 0.0
    %5446 = vmatpush1.msra.mxu0 %v5167
    %5447 = vmatprep.subr.mxu0 0.0
    %5448 = vmatpush1.msra.mxu0 %v5166
    %5449 = vmatprep.subr.mxu0 0.0
    %5450 = vmatpush2.msra.mxu0 0.0
    %5451 = vmatprep.subr.mxu0 0.0
    %5452 = vmatpush2.msra.mxu0 0.0
    %5453 = vmatprep.subr.mxu0 0.0
    %5454 = vmatpush2.msra.mxu0 0.0
    %5455 = vmatprep.subr.mxu0 0.0
    %5456 = vmatpush2.msra.mxu0 0.0
    %5457 = vmatprep.subr.mxu0 0.0
    %5458 = vmatpush2.msra.mxu0 0.0
    %5459 = vmatprep.subr.mxu0 0.0
    %5460 = vmatpush2.msra.mxu0 0.0
    %5461 = vmatprep.subr.mxu0 0.0
    %5462 = vmatpush2.msra.mxu0 0.0
    %5463 = vmatprep.subr.mxu0 0.0
    %5464 = vmatpush2.msra.mxu0 0.0
    %5465 = vmatprep.subr.mxu0 0.0
    %5466 = vmatpush2.msra.mxu0 0.0
    %5467 = vmatprep.subr.mxu0 0.0
    %5468 = vmatpush2.msra.mxu0 0.0
    %5469 = vmatprep.subr.mxu0 0.0
    %5470 = vmatpush2.msra.mxu0 0.0
    %5471 = vmatprep.subr.mxu0 0.0
    %5472 = vmatpush2.msra.mxu0 0.0
    %5473 = vmatprep.subr.mxu0 0.0
    %5474 = vmatpush2.msra.mxu0 0.0
    %5475 = vmatprep.subr.mxu0 0.0
    %5476 = vmatpush2.msra.mxu0 0.0
    %5477 = vmatprep.subr.mxu0 0.0
    %5478 = vmatpush2.msra.mxu0 0.0
    %5479 = vmatprep.subr.mxu0 0.0
    %5480 = vmatpush2.msra.mxu0 0.0
    %5481 = vmatprep.mubr.f32.mxu0 0.0
    %5482 = vmatmul.mubr.f32.gmra.mxu0 %v5412
    %v5483 = vpop.f32.mrf.mxu0
    %v5484 = vadd.f32 0.0, %v5483
    %v5485 = vpop.f32.mrf.mxu0
    %5486 = vmatprep.mubr.f32.mxu0 0.0
    %5487 = vmatmul.mubr.f32.gmra.mxu0 %v5415
    %v5488 = vpop.f32.mrf.mxu0
    %v5489 = vadd.f32 0.0, %v5488
    %v5490 = vpop.f32.mrf.mxu0
    %5491 = vdwg.mxu0
    %v5492 = vsel %vm73, %v5241, 0.0
    %v5493 = vsel %vm73, %v5322, 0.0
    %v5494 = vadd.f32 %v5492, %v5493
    %v5495 = vsel %vm73, %v5403, 0.0
    %v5496 = vadd.f32 %v5494, %v5495
    %v5497 = vsel %vm73, %v5484, 0.0
    %v5498 = vadd.f32 %v5496, %v5497
    %v5499 = vsel %vm73, %v5246, 0.0
    %v5500 = vsel %vm73, %v5327, 0.0
    %v5501 = vadd.f32 %v5499, %v5500
    %v5502 = vsel %vm73, %v5408, 0.0
    %v5503 = vadd.f32 %v5501, %v5502
    %v5504 = vsel %vm73, %v5489, 0.0
    %v5505 = vadd.f32 %v5503, %v5504
    %v5506 = vadd.f32 %v3004, %v4350
    %v5507 = vadd.f32 %v3005, %v4357
    %v5508 = vadd.f32 %v3006, %v5498
    %v5509 = vadd.f32 %v3007, %v5505
    %v5510 = vlaneseq
    %v5511 = vshrl.u32 %v5510, 7
    %v5512 = vsub.s32 4, %v5511
    %v5513 = vrot.slane %v3009, %v5512
    %v5514 = vadd.f32 %v5506, %v5513
    %v5515 = vadd.f32 %v5507, %v5513
    %v5516 = vadd.f32 %v5508, %v5513
    %v5517 = vadd.f32 %v5509, %v5513
    %v5518 = vsel %vm73, %v5514, 0.0
    %5519 = vadd.xlane.f32.xlu0 %v5518
    %v5520 = vpop.xlane.xlu0 %5519
    %v5521 = vsel %vm73, %v5515, 0.0
    %5522 = vadd.xlane.f32.xlu0 %v5521
    %v5523 = vpop.xlane.xlu0 %5522
    %v5524 = vsel %vm73, %v5516, 0.0
    %5525 = vadd.xlane.f32.xlu0 %v5524
    %v5526 = vpop.xlane.xlu0 %5525
    %v5527 = vsel %vm73, %v5517, 0.0
    %5528 = vadd.xlane.f32.xlu0 %v5527
    %v5529 = vpop.xlane.xlu0 %5528
    %v5530 = vmul.f32 %v5520, %v184
    %v5531 = vmul.f32 %v5523, %v184
    %v5532 = vmul.f32 %v5526, %v184
    %v5533 = vmul.f32 %v5529, %v184
    %v5534 = vsub.f32 %v5514, %v5530
    %v5535 = vsub.f32 %v5515, %v5531
    %v5536 = vsub.f32 %v5516, %v5532
    %v5537 = vsub.f32 %v5517, %v5533
    %v5538 = vmul.f32 %v5534, %v5534
    %v5539 = vmul.f32 %v5535, %v5535
    %v5540 = vmul.f32 %v5536, %v5536
    %v5541 = vmul.f32 %v5537, %v5537
    %v5542 = vsel %vm73, %v5538, 0.0
    %5543 = vadd.xlane.f32.xlu0 %v5542
    %v5544 = vpop.xlane.xlu0 %5543
    %v5545 = vsel %vm73, %v5539, 0.0
    %5546 = vadd.xlane.f32.xlu0 %v5545
    %v5547 = vpop.xlane.xlu0 %5546
    %v5548 = vsel %vm73, %v5540, 0.0
    %5549 = vadd.xlane.f32.xlu0 %v5548
    %v5550 = vpop.xlane.xlu0 %5549
    %v5551 = vsel %vm73, %v5541, 0.0
    %5552 = vadd.xlane.f32.xlu0 %v5551
    %v5553 = vpop.xlane.xlu0 %5552
    %v5554 = vmul.f32 %v5544, %v184
    %v5555 = vmul.f32 %v5547, %v184
    %v5556 = vmul.f32 %v5550, %v184
    %v5557 = vmul.f32 %v5553, %v184
    %v5558 = vadd.f32 %v5554, 1e-06
    %v5559 = vadd.f32 %v5555, 1e-06
    %v5560 = vadd.f32 %v5556, 1e-06
    %v5561 = vadd.f32 %v5557, 1e-06
    %v5562 = vrsqrt.pop %v5558
    %v5563 = vrsqrt.pop %v5559
    %v5564 = vrsqrt.pop %v5560
    %v5565 = vrsqrt.pop %v5561
    %v5566 = vmul.f32 %v5534, %v5562
    %v5567 = vmul.f32 %v5535, %v5563
    %v5568 = vmul.f32 %v5536, %v5564
    %v5569 = vmul.f32 %v5537, %v5565
    %v5570 = vlaneseq
    %v5571 = vshrl.u32 %v5570, 7
    %v5572 = vsub.s32 2, %v5571
    %v5573 = vrot.slane %v3009, %v5572
    %v5574 = vmul.f32 %v5566, %v5573
    %v5575 = vmul.f32 %v5567, %v5573
    %v5576 = vmul.f32 %v5568, %v5573
    %v5577 = vmul.f32 %v5569, %v5573
    %v5578 = vlaneseq
    %v5579 = vshrl.u32 %v5578, 7
    %v5580 = vsub.s32 3, %v5579
    %v5581 = vrot.slane %v3009, %v5580
    %v5582 = vadd.f32 %v5574, %v5581
    %v5583 = vadd.f32 %v5575, %v5581
    %v5584 = vadd.f32 %v5576, %v5581
    %v5585 = vadd.f32 %v5577, %v5581
    %s5586 = scalar_lea.vmem %s7, 64
    %v5587 = vld [vmem:[%s5586] sm:$0xff]
    %v5588 = vld [vmem:[%s5586 + $0x8] sm:$0xff]
    %v5589 = vld [vmem:[%s5586 + $0x10] sm:$0xff]
    %v5590 = vld [vmem:[%s5586 + $0x18] sm:$0xff]
    %v5591 = vld [vmem:[%s5586 + $0x20] sm:$0xff]
    %v5592 = vld [vmem:[%s5586 + $0x28] sm:$0xff]
    %v5593 = vld [vmem:[%s5586 + $0x30] sm:$0xff]
    %v5594 = vld [vmem:[%s5586 + $0x38] sm:$0xff]
    %s5595 = scalar_lea.vmem %s8, 1
    %v5596 = vld [vmem:[%s5595] sm:$0x1]
    %v5598 = vlaneseq
    %v5599 = vshrl.u32 %v5598, 7
    %v5600 = vsub.s32 0, %v5599
    %v5601 = vrot.slane %v5596, %v5600
    %v5604 = vsel %vm73, %v5582, 0
    %v5607 = vsel %vm73, %v5583, 0
    %v5610 = vsel %vm73, %v5584, 0
    %v5613 = vsel %vm73, %v5585, 0
    %5615 = vmatprep.subr.mxu0 0.0
    %5616 = vmatpush1.msra.mxu0 0.0
    %5617 = vmatprep.subr.mxu0 0.0
    %5618 = vmatpush1.msra.mxu0 0.0
    %5619 = vmatprep.subr.mxu0 0.0
    %5620 = vmatpush1.msra.mxu0 0.0
    %5621 = vmatprep.subr.mxu0 0.0
    %5622 = vmatpush1.msra.mxu0 0.0
    %5623 = vmatprep.subr.mxu0 0.0
    %5624 = vmatpush1.msra.mxu0 0.0
    %5625 = vmatprep.subr.mxu0 0.0
    %5626 = vmatpush1.msra.mxu0 0.0
    %5627 = vmatprep.subr.mxu0 0.0
    %5628 = vmatpush1.msra.mxu0 0.0
    %5629 = vmatprep.subr.mxu0 0.0
    %5630 = vmatpush1.msra.mxu0 0.0
    %5631 = vmatprep.subr.mxu0 0.0
    %5632 = vmatpush1.msra.mxu0 %v5594
    %5633 = vmatprep.subr.mxu0 0.0
    %5634 = vmatpush1.msra.mxu0 %v5593
    %5635 = vmatprep.subr.mxu0 0.0
    %5636 = vmatpush1.msra.mxu0 %v5592
    %5637 = vmatprep.subr.mxu0 0.0
    %5638 = vmatpush1.msra.mxu0 %v5591
    %5639 = vmatprep.subr.mxu0 0.0
    %5640 = vmatpush1.msra.mxu0 %v5590
    %5641 = vmatprep.subr.mxu0 0.0
    %5642 = vmatpush1.msra.mxu0 %v5589
    %5643 = vmatprep.subr.mxu0 0.0
    %5644 = vmatpush1.msra.mxu0 %v5588
    %5645 = vmatprep.subr.mxu0 0.0
    %5646 = vmatpush1.msra.mxu0 %v5587
    %5647 = vmatprep.subr.mxu0 0.0
    %5648 = vmatpush2.msra.mxu0 0.0
    %5649 = vmatprep.subr.mxu0 0.0
    %5650 = vmatpush2.msra.mxu0 0.0
    %5651 = vmatprep.subr.mxu0 0.0
    %5652 = vmatpush2.msra.mxu0 0.0
    %5653 = vmatprep.subr.mxu0 0.0
    %5654 = vmatpush2.msra.mxu0 0.0
    %5655 = vmatprep.subr.mxu0 0.0
    %5656 = vmatpush2.msra.mxu0 0.0
    %5657 = vmatprep.subr.mxu0 0.0
    %5658 = vmatpush2.msra.mxu0 0.0
    %5659 = vmatprep.subr.mxu0 0.0
    %5660 = vmatpush2.msra.mxu0 0.0
    %5661 = vmatprep.subr.mxu0 0.0
    %5662 = vmatpush2.msra.mxu0 0.0
    %5663 = vmatprep.subr.mxu0 0.0
    %5664 = vmatpush2.msra.mxu0 0.0
    %5665 = vmatprep.subr.mxu0 0.0
    %5666 = vmatpush2.msra.mxu0 0.0
    %5667 = vmatprep.subr.mxu0 0.0
    %5668 = vmatpush2.msra.mxu0 0.0
    %5669 = vmatprep.subr.mxu0 0.0
    %5670 = vmatpush2.msra.mxu0 0.0
    %5671 = vmatprep.subr.mxu0 0.0
    %5672 = vmatpush2.msra.mxu0 0.0
    %5673 = vmatprep.subr.mxu0 0.0
    %5674 = vmatpush2.msra.mxu0 0.0
    %5675 = vmatprep.subr.mxu0 0.0
    %5676 = vmatpush2.msra.mxu0 0.0
    %5677 = vmatprep.subr.mxu0 0.0
    %5678 = vmatpush2.msra.mxu0 0.0
    %5679 = vmatprep.mubr.f32.mxu0 0.0
    %5680 = vmatmul.mubr.f32.gmra.mxu0 %v5604
    %v5681 = vpop.f32.mrf.mxu0
    %v5682 = vadd.f32 %v5601, %v5681
    %v5683 = vpop.f32.mrf.mxu0
    %5684 = vmatprep.mubr.f32.mxu0 0.0
    %5685 = vmatmul.mubr.f32.gmra.mxu0 %v5607
    %v5686 = vpop.f32.mrf.mxu0
    %v5687 = vadd.f32 %v5601, %v5686
    %v5688 = vpop.f32.mrf.mxu0
    %5689 = vmatprep.mubr.f32.mxu0 0.0
    %5690 = vmatmul.mubr.f32.gmra.mxu0 %v5610
    %v5691 = vpop.f32.mrf.mxu0
    %v5692 = vadd.f32 %v5601, %v5691
    %v5693 = vpop.f32.mrf.mxu0
    %5694 = vmatprep.mubr.f32.mxu0 0.0
    %5695 = vmatmul.mubr.f32.gmra.mxu0 %v5613
    %v5696 = vpop.f32.mrf.mxu0
    %v5697 = vadd.f32 %v5601, %v5696
    %v5698 = vpop.f32.mrf.mxu0
    %5699 = vdwg.mxu0
    %v5700 = vmul.f32 %v5682, 0.5
    %v5701 = vmul.f32 %v5687, 0.5
    %v5702 = vmul.f32 %v5692, 0.5
    %v5703 = vmul.f32 %v5697, 0.5
    %v5704 = vmul.f32 %v5682, 0.044715
    %v5705 = vmul.f32 %v5687, 0.044715
    %v5706 = vmul.f32 %v5692, 0.044715
    %v5707 = vmul.f32 %v5697, 0.044715
    %v5708 = vmul.f32 %v5704, %v5682
    %v5709 = vmul.f32 %v5705, %v5687
    %v5710 = vmul.f32 %v5706, %v5692
    %v5711 = vmul.f32 %v5707, %v5697
    %v5712 = vmul.f32 %v5708, %v5682
    %v5713 = vmul.f32 %v5709, %v5687
    %v5714 = vmul.f32 %v5710, %v5692
    %v5715 = vmul.f32 %v5711, %v5697
    %v5716 = vadd.f32 %v5682, %v5712
    %v5717 = vadd.f32 %v5687, %v5713
    %v5718 = vadd.f32 %v5692, %v5714
    %v5719 = vadd.f32 %v5697, %v5715
    %v5720 = vmul.f32 %v5716, 0.7978846
    %v5721 = vmul.f32 %v5717, 0.7978846
    %v5722 = vmul.f32 %v5718, 0.7978846
    %v5723 = vmul.f32 %v5719, 0.7978846
    %v5724 = vtanh.pop %v5720
    %v5725 = vtanh.pop %v5721
    %v5726 = vtanh.pop %v5722
    %v5727 = vtanh.pop %v5723
    %v5728 = vadd.f32 %v5724, 1.0
    %v5729 = vadd.f32 %v5725, 1.0
    %v5730 = vadd.f32 %v5726, 1.0
    %v5731 = vadd.f32 %v5727, 1.0
    %v5732 = vmul.f32 %v5700, %v5728
    %v5733 = vmul.f32 %v5701, %v5729
    %v5734 = vmul.f32 %v5702, %v5730
    %v5735 = vmul.f32 %v5703, %v5731
    %s5736 = scalar_lea.vmem %s9, 128
    %v5737 = vld [vmem:[%s5736] sm:$0xff]
    %v5738 = vld [vmem:[%s5736 + $0x8] sm:$0xff]
    %v5739 = vld [vmem:[%s5736 + $0x10] sm:$0xff]
    %v5740 = vld [vmem:[%s5736 + $0x18] sm:$0xff]
    %v5741 = vld [vmem:[%s5736 + $0x20] sm:$0xff]
    %v5742 = vld [vmem:[%s5736 + $0x28] sm:$0xff]
    %v5743 = vld [vmem:[%s5736 + $0x30] sm:$0xff]
    %v5744 = vld [vmem:[%s5736 + $0x38] sm:$0xff]
    %v5745 = vld [vmem:[%s5736 + $0x40] sm:$0xff]
    %v5746 = vld [vmem:[%s5736 + $0x48] sm:$0xff]
    %v5747 = vld [vmem:[%s5736 + $0x50] sm:$0xff]
    %v5748 = vld [vmem:[%s5736 + $0x58] sm:$0xff]
    %v5749 = vld [vmem:[%s5736 + $0x60] sm:$0xff]
    %v5750 = vld [vmem:[%s5736 + $0x68] sm:$0xff]
    %v5751 = vld [vmem:[%s5736 + $0x70] sm:$0xff]
    %v5752 = vld [vmem:[%s5736 + $0x78] sm:$0xff]
    %5753 = vmatprep.subr.mxu0 0.0
    %5754 = vmatpush1.msra.mxu0 %v5752
    %5755 = vmatprep.subr.mxu0 0.0
    %5756 = vmatpush1.msra.mxu0 %v5751
    %5757 = vmatprep.subr.mxu0 0.0
    %5758 = vmatpush1.msra.mxu0 %v5750
    %5759 = vmatprep.subr.mxu0 0.0
    %5760 = vmatpush1.msra.mxu0 %v5749
    %5761 = vmatprep.subr.mxu0 0.0
    %5762 = vmatpush1.msra.mxu0 %v5748
    %5763 = vmatprep.subr.mxu0 0.0
    %5764 = vmatpush1.msra.mxu0 %v5747
    %5765 = vmatprep.subr.mxu0 0.0
    %5766 = vmatpush1.msra.mxu0 %v5746
    %5767 = vmatprep.subr.mxu0 0.0
    %5768 = vmatpush1.msra.mxu0 %v5745
    %5769 = vmatprep.subr.mxu0 0.0
    %5770 = vmatpush1.msra.mxu0 %v5744
    %5771 = vmatprep.subr.mxu0 0.0
    %5772 = vmatpush1.msra.mxu0 %v5743
    %5773 = vmatprep.subr.mxu0 0.0
    %5774 = vmatpush1.msra.mxu0 %v5742
    %5775 = vmatprep.subr.mxu0 0.0
    %5776 = vmatpush1.msra.mxu0 %v5741
    %5777 = vmatprep.subr.mxu0 0.0
    %5778 = vmatpush1.msra.mxu0 %v5740
    %5779 = vmatprep.subr.mxu0 0.0
    %5780 = vmatpush1.msra.mxu0 %v5739
    %5781 = vmatprep.subr.mxu0 0.0
    %5782 = vmatpush1.msra.mxu0 %v5738
    %5783 = vmatprep.subr.mxu0 0.0
    %5784 = vmatpush1.msra.mxu0 %v5737
    %5785 = vmatprep.subr.mxu0 0.0
    %5786 = vmatpush2.msra.mxu0 0.0
    %5787 = vmatprep.subr.mxu0 0.0
    %5788 = vmatpush2.msra.mxu0 0.0
    %5789 = vmatprep.subr.mxu0 0.0
    %5790 = vmatpush2.msra.mxu0 0.0
    %5791 = vmatprep.subr.mxu0 0.0
    %5792 = vmatpush2.msra.mxu0 0.0
    %5793 = vmatprep.subr.mxu0 0.0
    %5794 = vmatpush2.msra.mxu0 0.0
    %5795 = vmatprep.subr.mxu0 0.0
    %5796 = vmatpush2.msra.mxu0 0.0
    %5797 = vmatprep.subr.mxu0 0.0
    %5798 = vmatpush2.msra.mxu0 0.0
    %5799 = vmatprep.subr.mxu0 0.0
    %5800 = vmatpush2.msra.mxu0 0.0
    %5801 = vmatprep.subr.mxu0 0.0
    %5802 = vmatpush2.msra.mxu0 0.0
    %5803 = vmatprep.subr.mxu0 0.0
    %5804 = vmatpush2.msra.mxu0 0.0
    %5805 = vmatprep.subr.mxu0 0.0
    %5806 = vmatpush2.msra.mxu0 0.0
    %5807 = vmatprep.subr.mxu0 0.0
    %5808 = vmatpush2.msra.mxu0 0.0
    %5809 = vmatprep.subr.mxu0 0.0
    %5810 = vmatpush2.msra.mxu0 0.0
    %5811 = vmatprep.subr.mxu0 0.0
    %5812 = vmatpush2.msra.mxu0 0.0
    %5813 = vmatprep.subr.mxu0 0.0
    %5814 = vmatpush2.msra.mxu0 0.0
    %5815 = vmatprep.subr.mxu0 0.0
    %5816 = vmatpush2.msra.mxu0 0.0
    %5817 = vmatprep.mubr.f32.mxu0 0.0
    %5818 = vmatmul.mubr.f32.gmra.mxu0 %v5732
    %v5819 = vpop.f32.mrf.mxu0
    %v5820 = vadd.f32 0.0, %v5819
    %v5821 = vpop.f32.mrf.mxu0
    %5822 = vmatprep.mubr.f32.mxu0 0.0
    %5823 = vmatmul.mubr.f32.gmra.mxu0 %v5733
    %v5824 = vpop.f32.mrf.mxu0
    %v5825 = vadd.f32 0.0, %v5824
    %v5826 = vpop.f32.mrf.mxu0
    %5827 = vmatprep.mubr.f32.mxu0 0.0
    %5828 = vmatmul.mubr.f32.gmra.mxu0 %v5734
    %v5829 = vpop.f32.mrf.mxu0
    %v5830 = vadd.f32 0.0, %v5829
    %v5831 = vpop.f32.mrf.mxu0
    %5832 = vmatprep.mubr.f32.mxu0 0.0
    %5833 = vmatmul.mubr.f32.gmra.mxu0 %v5735
    %v5834 = vpop.f32.mrf.mxu0
    %v5835 = vadd.f32 0.0, %v5834
    %v5836 = vpop.f32.mrf.mxu0
    %5837 = vdwg.mxu0
    %v5838 = vadd.f32 %v5514, %v5820
    %v5839 = vadd.f32 %v5515, %v5825
    %v5840 = vadd.f32 %v5516, %v5830
    %v5841 = vadd.f32 %v5517, %v5835
    %v5842 = vlaneseq
    %v5843 = vshrl.u32 %v5842, 7
    %v5844 = vsub.s32 5, %v5843
    %v5845 = vrot.slane %v3009, %v5844
    %v5846 = vadd.f32 %v5838, %v5845
    %v5847 = vadd.f32 %v5839, %v5845
    %v5848 = vadd.f32 %v5840, %v5845
    %v5849 = vadd.f32 %v5841, %v5845
    %v5850 = vld [vmem:[%s10] sm:$0x1]
    %v5851 = vld [vmem:[%s10 + $0x1] sm:$0x1]
    %v5852 = vsel %vm73, %v5846, 0.0
    %5853 = vadd.xlane.f32.xlu0 %v5852
    %v5854 = vpop.xlane.xlu0 %5853
    %v5855 = vsel %vm73, %v5847, 0.0
    %5856 = vadd.xlane.f32.xlu0 %v5855
    %v5857 = vpop.xlane.xlu0 %5856
    %v5858 = vsel %vm73, %v5848, 0.0
    %5859 = vadd.xlane.f32.xlu0 %v5858
    %v5860 = vpop.xlane.xlu0 %5859
    %v5861 = vsel %vm73, %v5849, 0.0
    %5862 = vadd.xlane.f32.xlu0 %v5861
    %v5863 = vpop.xlane.xlu0 %5862
    %v5864 = vmul.f32 %v5854, %v184
    %v5865 = vmul.f32 %v5857, %v184
    %v5866 = vmul.f32 %v5860, %v184
    %v5867 = vmul.f32 %v5863, %v184
    %v5868 = vsub.f32 %v5846, %v5864
    %v5869 = vsub.f32 %v5847, %v5865
    %v5870 = vsub.f32 %v5848, %v5866
    %v5871 = vsub.f32 %v5849, %v5867
    %v5872 = vmul.f32 %v5868, %v5868
    %v5873 = vmul.f32 %v5869, %v5869
    %v5874 = vmul.f32 %v5870, %v5870
    %v5875 = vmul.f32 %v5871, %v5871
    %v5876 = vsel %vm73, %v5872, 0.0
    %5877 = vadd.xlane.f32.xlu0 %v5876
    %v5878 = vpop.xlane.xlu0 %5877
    %v5879 = vsel %vm73, %v5873, 0.0
    %5880 = vadd.xlane.f32.xlu0 %v5879
    %v5881 = vpop.xlane.xlu0 %5880
    %v5882 = vsel %vm73, %v5874, 0.0
    %5883 = vadd.xlane.f32.xlu0 %v5882
    %v5884 = vpop.xlane.xlu0 %5883
    %v5885 = vsel %vm73, %v5875, 0.0
    %5886 = vadd.xlane.f32.xlu0 %v5885
    %v5887 = vpop.xlane.xlu0 %5886
    %v5888 = vmul.f32 %v5878, %v184
    %v5889 = vmul.f32 %v5881, %v184
    %v5890 = vmul.f32 %v5884, %v184
    %v5891 = vmul.f32 %v5887, %v184
    %v5892 = vadd.f32 %v5888, 1e-06
    %v5893 = vadd.f32 %v5889, 1e-06
    %v5894 = vadd.f32 %v5890, 1e-06
    %v5895 = vadd.f32 %v5891, 1e-06
    %v5896 = vrsqrt.pop %v5892
    %v5897 = vrsqrt.pop %v5893
    %v5898 = vrsqrt.pop %v5894
    %v5899 = vrsqrt.pop %v5895
    %v5900 = vmul.f32 %v5868, %v5896
    %v5901 = vmul.f32 %v5869, %v5897
    %v5902 = vmul.f32 %v5870, %v5898
    %v5903 = vmul.f32 %v5871, %v5899
    %v5904 = vlaneseq
    %v5905 = vshrl.u32 %v5904, 7
    %v5906 = vsub.s32 0, %v5905
    %v5907 = vrot.slane %v5850, %v5906
    %v5908 = vmul.f32 %v5900, %v5907
    %v5909 = vmul.f32 %v5901, %v5907
    %v5910 = vmul.f32 %v5902, %v5907
    %v5911 = vmul.f32 %v5903, %v5907
    %v5912 = vlaneseq
    %v5913 = vshrl.u32 %v5912, 7
    %v5914 = vsub.s32 0, %v5913
    %v5915 = vrot.slane %v5851, %v5914
    %v5916 = vadd.f32 %v5908, %v5915
    %v5917 = vadd.f32 %v5909, %v5915
    %v5918 = vadd.f32 %v5910, %v5915
    %v5919 = vadd.f32 %v5911, %v5915
    %5920 = vst.msk [vmem:[#allocation2] sm:$0xff] %vm73, %v5916
    %5921 = vst.msk [vmem:[#allocation2 + $0x8] sm:$0xff] %vm73, %v5917
    %5922 = vst.msk [vmem:[#allocation2 + $0x10] sm:$0xff] %vm73, %v5918
    %5923 = vst.msk [vmem:[#allocation2 + $0x18] sm:$0xff] %vm73, %v5919
    // Predicated region
    $region46: #{siglip_vision_forward.1} parent=1 // pred_check
      _
    $region47: #{siglip_vision_forward.1} parent=1 // pred_check_branch
      %5925 = sbr.rel (0) target = $region49
    $region48: #{siglip_vision_forward.1} parent=1 // pred_region
      %s5927 = ssub.s32 512, 512
      %5928 = vsyncadd [#allocation3], %s5927
      %s5929 = sshll.u32 [#allocation2], 4
      %s5930 = int_to_ptr.vmem [resolvable:$true] %s5929
      %5935 = dma.vmem_to_hbm [thread:$0]  %s5930, 512, %s11, [#allocation3], 128, 128, 8
    $region49: #{siglip_vision_forward.1} parent=1 // pred_fallthru
      _
    // Predicated region
    $region50: #{siglip_vision_forward.1} parent=1 // pred_check
      _
    $region51: #{siglip_vision_forward.1} parent=1 // pred_check_branch
      %5937 = sbr.rel (0) target = $region53
    $region52: #{siglip_vision_forward.1} parent=1 // pred_region
      %5938 = dma.done [#allocation3], 512
    $region53: #{siglip_vision_forward.1} parent=1 // pred_fallthru
      _
    %5939 = vsyncpa [#allocation3], 1

</llo_original>
